<compile_context>
chip_gen: v7x
topology: tpu7x:2x2x1
jax: 0.10.0
libtpu: 0.0.40
codegen_flags: <defaults>
</compile_context>

<pallas_src>
import functools

import jax
import jax.numpy as jnp
from jax.experimental import pallas as pl
from jax.experimental.pallas import tpu as pltpu

EPS = 1e-5            # BatchNorm2d default eps
K = 5                 # kernel size of every (de)conv layer
LANE = 128            # TPU lane width
MAX_FUSED_ROWS = 1024 # use the single fused kernel when padded M fits one tile
MAX_M_TILE = 1024     # row tile for the two-pass (large-M) fallback path


def _round_up(x, m):
    return (x + m - 1) // m * m


def _vmem_limit_bytes():
    # Per-generation VMEM budget (v5e/v6e: 128 MiB physical, v7x: 64 MiB).
    try:
        cap = int(pltpu.get_tpu_info().vmem_capacity_bytes)
    except Exception:
        cap = 64 * 1024 * 1024
    return min(cap * 3 // 4, 100 * 1024 * 1024)


VMEM_LIMIT = _vmem_limit_bytes()


# ----------------------------------------------------------------------------
# Pallas kernels
# ----------------------------------------------------------------------------
def _fused_layer_kernel(p_ref, w_ref, b_ref, g_ref, beta_ref, o_ref, *,
                        add_bias, relu_pre, sign, relu_post, n_phase, cp,
                        m_actual, count):
    """One-shot layer: matmul (+bias/ReLU) -> batch-stats BN -> (sign | ReLU) -> store."""
    y = jnp.dot(p_ref[...], w_ref[...], preferred_element_type=jnp.float32)
    if add_bias:
        y = y + b_ref[...]
    if relu_pre:
        y = jnp.maximum(y, 0.0)

    mt = y.shape[0]
    if m_actual < mt:   # rows that are pure zero-padding must not enter the BN statistics
        row = jax.lax.broadcasted_iota(jnp.int32, (mt, 1), 0)
        ym = jnp.where(row < m_actual, y, 0.0)
    else:
        ym = y
    s = jnp.sum(ym, axis=0, keepdims=True)           # (1, n_phase*cp)
    ss = jnp.sum(ym * ym, axis=0, keepdims=True)
    if n_phase > 1:     # fold phase column blocks: BN stats are per channel, shared by phases
        s = sum(s[:, ph * cp:(ph + 1) * cp] for ph in range(n_phase))
        ss = sum(ss[:, ph * cp:(ph + 1) * cp] for ph in range(n_phase))
    mean = s * (1.0 / count)
    var = jnp.maximum(ss * (1.0 / count) - mean * mean, 0.0)
    scale = jax.lax.rsqrt(var + EPS) * g_ref[...]
    shift = beta_ref[...] - mean * scale
    if n_phase > 1:
        scale = jnp.concatenate([scale] * n_phase, axis=-1)
        shift = jnp.concatenate([shift] * n_phase, axis=-1)

    y = y * scale + shift
    if sign:
        # TODO(synk): `Binarizer` is not defined in the reference source; deterministic +/-1
        # binarization is used (stochastic train-time behaviour not modelled).
        y = jnp.where(y >= 0.0, 1.0, -1.0)
    if relu_post:
        y = jnp.maximum(y, 0.0)
    o_ref[...] = y.astype(o_ref.dtype)


def _matmul_stats_kernel(p_ref, w_ref, b_ref, y_ref, stats_ref, *,
                         add_bias, relu_pre, m_actual, m_tile):
    """Two-pass path, pass 1: matmul (+bias/ReLU), bf16 y, per-tile channel sum / sum-of-squares."""
    i = pl.program_id(0)
    y = jnp.dot(p_ref[...], w_ref[...], preferred_element_type=jnp.float32)
    if add_bias:
        y = y + b_ref[...]
    if relu_pre:
        y = jnp.maximum(y, 0.0)
    y_ref[...] = y.astype(y_ref.dtype)               # bf16 intermediate: halves HBM traffic

    row = i * m_tile + jax.lax.broadcasted_iota(jnp.int32, (m_tile, 1), 0)
    ym = jnp.where(row < m_actual, y, 0.0)           # mask zero-padded rows out of the stats
    s = jnp.sum(ym, axis=0, keepdims=True)
    ss = jnp.sum(ym * ym, axis=0, keepdims=True)
    ncol = y.shape[1]
    stats_ref[...] = jnp.concatenate([s, ss, jnp.zeros((6, ncol), jnp.float32)], axis=0)


def _bn_act_kernel(y_ref, scale_ref, shift_ref, o_ref, *, sign, relu_post):
    """Two-pass path, pass 2: y * scale + shift (folded BatchNorm), optional sign / ReLU."""
    y = y_ref[...].astype(jnp.float32) * scale_ref[...] + shift_ref[...]
    if sign:
        y = jnp.where(y >= 0.0, 1.0, -1.0)
    if relu_post:
        y = jnp.maximum(y, 0.0)
    o_ref[...] = y.astype(o_ref.dtype)


# ----------------------------------------------------------------------------
# pallas_call wrappers
# ----------------------------------------------------------------------------
def _fused_layer_call(p, w, b, g, beta, *, add_bias, relu_pre, sign, relu_post,
                      n_phase, m_actual, count, out_dtype):
    mp, kd = p.shape
    ncol = w.shape[1]
    cp = ncol // n_phase
    kern = functools.partial(_fused_layer_kernel, add_bias=add_bias, relu_pre=relu_pre,
                             sign=sign, relu_post=relu_post, n_phase=n_phase, cp=cp,
                             m_actual=m_actual, count=count)
    out_bytes = mp * ncol * jnp.dtype(out_dtype).itemsize
    cost = pl.CostEstimate(flops=2 * mp * kd * ncol, transcendentals=0,
                           bytes_accessed=mp * kd * 2 + kd * ncol * 2 + out_bytes)
    return pl.pallas_call(
        kern,
        out_shape=jax.ShapeDtypeStruct((mp, ncol), out_dtype),
        grid=(1,),
        in_specs=[
            pl.BlockSpec((mp, kd), lambda i: (0, 0)),
            pl.BlockSpec((kd, ncol), lambda i: (0, 0)),
            pl.BlockSpec((1, ncol), lambda i: (0, 0)),
            pl.BlockSpec((1, cp), lambda i: (0, 0)),
            pl.BlockSpec((1, cp), lambda i: (0, 0)),
        ],
        out_specs=pl.BlockSpec((mp, ncol), lambda i: (0, 0)),
        compiler_params=pltpu.CompilerParams(
            dimension_semantics=("arbitrary",), vmem_limit_bytes=VMEM_LIMIT),
        cost_estimate=cost,
    )(p, w, b, g, beta)


def _matmul_stats_call(p, w, b, *, add_bias, relu_pre, m_actual, m_tile):
    mp, kd = p.shape
    ncol = w.shape[1]
    nt = mp // m_tile
    kern = functools.partial(_matmul_stats_kernel, add_bias=add_bias, relu_pre=relu_pre,
                             m_actual=m_actual, m_tile=m_tile)
    cost = pl.CostEstimate(
        flops=2 * mp * kd * ncol, transcendentals=0,
        bytes_accessed=mp * kd * 2 + kd * ncol * 2 + mp * ncol * 2 + nt * 8 * ncol * 4)
    return pl.pallas_call(
        kern,
        out_shape=(jax.ShapeDtypeStruct((mp, ncol), jnp.bfloat16),
                   jax.ShapeDtypeStruct((nt * 8, ncol), jnp.float32)),
        grid=(nt,),
        in_specs=[
            pl.BlockSpec((m_tile, kd), lambda i: (i, 0)),
            # Constant-index weight/bias blocks stay resident across M tiles. (Single-buffering
            # them via pipeline_mode=pl.Buffered(1) would save a little VMEM but support for
            # buffer_count=1 is uneven, so the compiler default is kept.)
            pl.BlockSpec((kd, ncol), lambda i: (0, 0)),
            pl.BlockSpec((1, ncol), lambda i: (0, 0)),
        ],
        out_specs=(
            pl.BlockSpec((m_tile, ncol), lambda i: (i, 0)),
            pl.BlockSpec((8, ncol), lambda i: (i, 0)),
        ),
        compiler_params=pltpu.CompilerParams(
            dimension_semantics=("parallel",), vmem_limit_bytes=VMEM_LIMIT),
        cost_estimate=cost,
    )(p, w, b)


def _bn_act_call(y, scale, shift, *, sign, relu_post, m_tile, out_dtype):
    mp, ncol = y.shape
    nt = mp // m_tile
    kern = functools.partial(_bn_act_kernel, sign=sign, relu_post=relu_post)
    cost = pl.CostEstimate(flops=2 * mp * ncol, transcendentals=0,
                           bytes_accessed=mp * ncol * (2 + jnp.dtype(out_dtype).itemsize))
    return pl.pallas_call(
        kern,
        out_shape=jax.ShapeDtypeStruct((mp, ncol), out_dtype),
        grid=(nt,),
        in_specs=[
            pl.BlockSpec((m_tile, ncol), lambda i: (i, 0)),
            pl.BlockSpec((1, ncol), lambda i: (0, 0)),
            pl.BlockSpec((1, ncol), lambda i: (0, 0)),
        ],
        out_specs=pl.BlockSpec((m_tile, ncol), lambda i: (i, 0)),
        compiler_params=pltpu.CompilerParams(
            dimension_semantics=("parallel",), vmem_limit_bytes=VMEM_LIMIT),
        cost_estimate=cost,
    )(y, scale, shift)


def matmul_bn_act(patches, w, bias_row, g_row, beta_row, *, relu_pre, add_bias,
                  sign, relu_post, n_phase, count, out_dtype):
    """matmul -> batch-stats BN -> activation; fused single call when one tile suffices."""
    M, kd = patches.shape
    kd_pad, ncol = w.shape
    cp = ncol // n_phase

    if M <= MAX_FUSED_ROWS:
        mp = _round_up(max(M, 8), 8)
        p = jnp.pad(patches, ((0, mp - M), (0, kd_pad - kd))).astype(jnp.bfloat16)
        y = _fused_layer_call(p, w, bias_row, g_row, beta_row,
                              add_bias=add_bias, relu_pre=relu_pre, sign=sign,
                              relu_post=relu_post, n_phase=n_phase,
                              m_actual=M, count=float(count), out_dtype=out_dtype)
        return y[:M]

    # Two-pass fallback for large images: tiled matmul+stats, XLA reduce, tiled BN apply.
    m_tile = min(MAX_M_TILE, _round_up((M + 1) // 2, 8))   # >=2 tiles -> both v7x TCs busy
    mp = _round_up(M, m_tile)
    p = jnp.pad(patches, ((0, mp - M), (0, kd_pad - kd))).astype(jnp.bfloat16)
    y, partials = _matmul_stats_call(p, w, bias_row, add_bias=add_bias,
                                     relu_pre=relu_pre, m_actual=M, m_tile=m_tile)
    tot = jnp.sum(partials.reshape(-1, 8, ncol), axis=0)
    s, ss = tot[0], tot[1]
    if n_phase > 1:
        s = jnp.sum(s.reshape(n_phase, cp), axis=0)
        ss = jnp.sum(ss.reshape(n_phase, cp), axis=0)
    mean = s / count
    var = jnp.maximum(ss / count - mean * mean, 0.0)
    scale = jax.lax.rsqrt(var + EPS) * g_row[0]
    shift = beta_row[0] - mean * scale
    scale = jnp.tile(scale.reshape(1, cp), (1, n_phase))
    shift = jnp.tile(shift.reshape(1, cp), (1, n_phase))
    out = _bn_act_call(y, scale, shift, sign=sign, relu_post=relu_post,
                       m_tile=m_tile, out_dtype=out_dtype)
    return out[:M]


# ----------------------------------------------------------------------------
# Glue: patch construction (pure data movement in XLA, no compute)
# ----------------------------------------------------------------------------
def im2col(x_nhwc, k, stride, pad):
    """Returns (patches[(N*Ho*Wo), k*k*C], Ho, Wo); feature order = (kh, kw, cin)."""
    N, H, W, C = x_nhwc.shape
    xp = jnp.pad(x_nhwc, ((0, 0), (pad, pad), (pad, pad), (0, 0)))
    Ho = (H + 2 * pad - k) // stride + 1
    Wo = (W + 2 * pad - k) // stride + 1
    cols = [xp[:, kh:kh + stride * (Ho - 1) + 1:stride,
                  kw:kw + stride * (Wo - 1) + 1:stride, :]
            for kh in range(k) for kw in range(k)]
    patches = jnp.concatenate(cols, axis=-1)
    return patches.reshape(N * Ho * Wo, k * k * C), Ho, Wo


def fused_phase_patches(x_nhwc):
    """3x3 stride-1 patches with pad=1; feature order (jh, jw, cin). Tap (jh, jw) of output
    coarse pixel (yo, xo) reads input (yo+jh-1, xo+jw-1)."""
    N, H, W, C = x_nhwc.shape
    xp = jnp.pad(x_nhwc, ((0, 0), (1, 1), (1, 1), (0, 0)))
    cols = [xp[:, jh:jh + H, jw:jw + W, :] for jh in range(3) for jw in range(3)]
    return jnp.concatenate(cols, axis=-1).reshape(N * H * W, 9 * C)


# ----------------------------------------------------------------------------
# Parameters (deterministic, shapes from the PyTorch __init__)
# ----------------------------------------------------------------------------
def _conv_wmat(w_oihw, cp):
    """Conv2d weight (Cout, Cin, kh, kw) -> (kh*kw*Cin, cp) im2col matrix, padded, bf16."""
    co, ci, kh, kw = w_oihw.shape
    kd = kh * kw * ci
    kd_pad = _round_up(kd, LANE)
    m = jnp.transpose(w_oihw, (2, 3, 1, 0)).reshape(kd, co)
    return jnp.pad(m, ((0, kd_pad - kd), (0, cp - co))).astype(jnp.bfloat16)


def _deconv_fused_wmat(w_iohw, cp):
    """ConvTranspose2d(k=5,s=2,p=2,op=1) weight (Cin, Cout, 5, 5) -> one (9*Cin, 4*cp)
    stride-1 conv matrix; column blocks are the four sub-pixel phases (ph, pw).
    Contributing kernel index for tap j: phase 0 -> 4-2j (j=0,1,2); phase 1 -> 5-2j (j=1,2)."""
    ci, co, _, _ = w_iohw.shape
    kd = 9 * ci
    kd_pad = _round_up(kd, LANE)

    def kidx(j, p):
        if p == 0:
            return 4 - 2 * j
        return 5 - 2 * j if j >= 1 else -1

    blocks = []
    for ph in (0, 1):
        for pw in (0, 1):
            taps = []
            for jh in range(3):
                for jw in range(3):
                    khi, kwi = kidx(jh, ph), kidx(jw, pw)
                    if khi < 0 or kwi < 0:
                        taps.append(jnp.zeros((ci, co), w_iohw.dtype))
                    else:
                        taps.append(w_iohw[:, :, khi, kwi])
            blk = jnp.stack(taps, axis=0).reshape(kd, co)        # (9*Cin, Cout)
            blocks.append(jnp.pad(blk, ((0, 0), (0, cp - co))))
    wmat = jnp.concatenate(blocks, axis=-1)                       # (9*Cin, 4*cp)
    return jnp.pad(wmat, ((0, kd_pad - kd), (0, 0))).astype(jnp.bfloat16)


def make_params(key):
    enc_chan = [(3, 32), (32, 64), (64, 128)]
    dec_chan = [(128, 64), (64, 32), (32, 3)]
    keys = iter(jax.random.split(key, 4 * (len(enc_chan) + len(dec_chan))))
    params = {"enc": [], "dec": []}
    for ci, co in enc_chan:
        cp = _round_up(co, LANE)
        w = jax.random.normal(next(keys), (co, ci, K, K), jnp.float32) * 0.1
        b = jax.random.normal(next(keys), (co,), jnp.float32) * 0.05
        g = 1.0 + 0.1 * jax.random.normal(next(keys), (co,), jnp.float32)
        beta = 0.1 * jax.random.normal(next(keys), (co,), jnp.float32)
        params["enc"].append({
            "co": co,
            "w": _conv_wmat(w, cp),
            "b": jnp.pad(b, (0, cp - co)).reshape(1, cp),
            "g": jnp.pad(g, (0, cp - co)).reshape(1, cp),
            "beta": jnp.pad(beta, (0, cp - co)).reshape(1, cp),
        })
    for ci, co in dec_chan:
        cp = _round_up(co, LANE)
        w = jax.random.normal(next(keys), (ci, co, K, K), jnp.float32) * 0.1
        _ = jax.random.normal(next(keys), (co,), jnp.float32)  # ConvT bias: a per-channel
        # constant before a batch-stats BatchNorm is cancelled by the mean subtraction.
        g = 1.0 + 0.1 * jax.random.normal(next(keys), (co,), jnp.float32)
        beta = 0.1 * jax.random.normal(next(keys), (co,), jnp.float32)
        params["dec"].append({
            "co": co,
            "w": _deconv_fused_wmat(w, cp),
            "g": jnp.pad(g, (0, cp - co)).reshape(1, cp),
            "beta": jnp.pad(beta, (0, cp - co)).reshape(1, cp),
        })
    return params


# ----------------------------------------------------------------------------
# Layers
# ----------------------------------------------------------------------------
def conv_relu_bn_layer(x, pr, *, fuse_sign):
    """Conv2d(k5,s2,p2) -> ReLU -> BatchNorm (batch stats); sign binarizer fused on last layer."""
    N = x.shape[0]
    co = pr["co"]
    patches, Ho, Wo = im2col(x, K, stride=2, pad=2)
    M = patches.shape[0]
    y = matmul_bn_act(patches, pr["w"], pr["b"], pr["g"], pr["beta"],
                      relu_pre=True, add_bias=True, sign=fuse_sign, relu_post=False,
                      n_phase=1, count=M, out_dtype=jnp.bfloat16)
    return y[:, :co].reshape(N, Ho, Wo, co)


def deconv_bn_relu_layer(x, pr, *, out_dtype):
    """ConvTranspose2d(k5,s2,p2,op1) -> BatchNorm -> ReLU. All four sub-pixel phases fused into
    a single (M, 9*Cin) x (9*Cin, 4*cp) matmul; BN+ReLU applied on the phase-major layout."""
    N, H, W, _ = x.shape
    co = pr["co"]
    cp = pr["g"].shape[1]
    patches = fused_phase_patches(x)
    M = patches.shape[0]
    zero_bias = jnp.zeros((1, 4 * cp), jnp.float32)
    y = matmul_bn_act(patches, pr["w"], zero_bias, pr["g"], pr["beta"],
                      relu_pre=False, add_bias=False, sign=False, relu_post=True,
                      n_phase=4, count=4 * M, out_dtype=out_dtype)
    # Sub-pixel interleave, done once on the already-normalized (narrow-dtype) result.
    y = y.reshape(N, H, W, 2, 2, cp)[..., :co]
    return jnp.transpose(y, (0, 1, 3, 2, 4, 5)).reshape(N, 2 * H, 2 * W, co)


# ----------------------------------------------------------------------------
# Forward pass
# ----------------------------------------------------------------------------
def autoencoder_forward(x_nchw, params, is_train=True):
    # TODO(synk): is_train would only affect the undefined stochastic Binarizer and eval-mode BN
    # running statistics; training-mode (batch-stats) semantics are implemented here.
    del is_train
    x = jnp.transpose(x_nchw, (0, 2, 3, 1)).astype(jnp.float32)   # NCHW -> NHWC
    n_enc = len(params["enc"])
    for li, pr in enumerate(params["enc"]):
        x = conv_relu_bn_layer(x, pr, fuse_sign=(li == n_enc - 1))  # binarizer fused here
    n_dec = len(params["dec"])
    for li, pr in enumerate(params["dec"]):
        x = deconv_bn_relu_layer(
            x, pr, out_dtype=jnp.float32 if li == n_dec - 1 else jnp.bfloat16)
    return jnp.transpose(x, (0, 3, 1, 2))                          # NHWC -> NCHW


# ----------------------------------------------------------------------------
if __name__ == "__main__":
    key = jax.random.PRNGKey(0)
    kx, kp = jax.random.split(key)
    x = jax.random.normal(kx, (2, 3, 16, 16), jnp.float32)   # NCHW, like PyTorch
    params = make_params(kp)

    fwd = jax.jit(lambda xx: autoencoder_forward(xx, params, is_train=True))
    out = fwd(x)
    jax.block_until_ready(out)

    assert out.shape == (2, 3, 16, 16), out.shape
    assert out.dtype == jnp.float32
    assert bool(jnp.all(jnp.isfinite(out)))
    assert bool(jnp.all(out >= 0.0))   # final op is ReLU
    print("KERNEL_OK")
</pallas_src>

<mosaic_0001>
module attributes {stable_mosaic.version = 11 : i64} {
  func.func @_fused_layer_kernel(%arg0: i32, %arg1: memref<128x128xbf16, #tpu.memory_space<vmem>>, %arg2: memref<128x128xbf16, #tpu.memory_space<vmem>>, %arg3: memref<1x128xf32, #tpu.memory_space<vmem>>, %arg4: memref<1x128xf32, #tpu.memory_space<vmem>>, %arg5: memref<1x128xf32, #tpu.memory_space<vmem>>, %arg6: memref<128x128xbf16, #tpu.memory_space<vmem>>) attributes {dimension_semantics = [#tpu.dimension_semantics<arbitrary>], iteration_bounds = array<i64: 1>, scalar_prefetch = 0 : i64, scratch_operands = 0 : i64, tpu.core_type = #tpu.core_type<tc>, window_params = [{pipeline_mode = #tpu.pipeline_mode<synchronous>, transform_indices = @transform_0, window_bounds = array<i64: 128, 128>}, {pipeline_mode = #tpu.pipeline_mode<synchronous>, transform_indices = @transform_1, window_bounds = array<i64: 128, 128>}, {pipeline_mode = #tpu.pipeline_mode<synchronous>, transform_indices = @transform_2, window_bounds = array<i64: 1, 128>}, {pipeline_mode = #tpu.pipeline_mode<synchronous>, transform_indices = @transform_3, window_bounds = array<i64: 1, 128>}, {pipeline_mode = #tpu.pipeline_mode<synchronous>, transform_indices = @transform_4, window_bounds = array<i64: 1, 128>}, {pipeline_mode = #tpu.pipeline_mode<synchronous>, transform_indices = @transform_5, window_bounds = array<i64: 128, 128>}]} {
    %c0 = arith.constant 0 : index
    %c0_0 = arith.constant 0 : index
    %0 = vector.load %arg1[%c0, %c0_0] : memref<128x128xbf16, #tpu.memory_space<vmem>>, vector<128x128xbf16>
    %c0_1 = arith.constant 0 : index
    %c0_2 = arith.constant 0 : index
    %1 = vector.load %arg2[%c0_1, %c0_2] : memref<128x128xbf16, #tpu.memory_space<vmem>>, vector<128x128xbf16>
    %cst = arith.constant dense<0.000000e+00> : vector<128x128xf32>
    %2 = tpu.matmul %0, %1, %cst {dimension_numbers = #tpu.dot_dimension_numbers<[1], [0], [0], [1], [0, 0, 1, 1], [], []>} : vector<128x128xbf16>, vector<128x128xbf16>, vector<128x128xf32> -> vector<128x128xf32>
    %c0_3 = arith.constant 0 : index
    %c0_4 = arith.constant 0 : index
    %3 = vector.load %arg3[%c0_3, %c0_4] : memref<1x128xf32, #tpu.memory_space<vmem>>, vector<1x128xf32>
    %4 = vector.broadcast %3 : vector<1x128xf32> to vector<128x128xf32>
    %5 = arith.addf %2, %4 : vector<128x128xf32>
    %cst_5 = arith.constant 0.000000e+00 : f32
    %6 = vector.broadcast %cst_5 : f32 to vector<128x128xf32>
    %7 = arith.maximumf %5, %6 : vector<128x128xf32>
    %cst_6 = arith.constant dense<0.000000e+00> : vector<128xf32>
    %8 = vector.multi_reduction <add>, %7, %cst_6 [0] : vector<128x128xf32> to vector<128xf32>
    %9 = vector.shape_cast %8 : vector<128xf32> to vector<1x128xf32>
    %10 = arith.mulf %7, %7 : vector<128x128xf32>
    %cst_7 = arith.constant dense<0.000000e+00> : vector<128xf32>
    %11 = vector.multi_reduction <add>, %10, %cst_7 [0] : vector<128x128xf32> to vector<128xf32>
    %12 = vector.shape_cast %11 : vector<128xf32> to vector<1x128xf32>
    %cst_8 = arith.constant 7.812500e-03 : f32
    %13 = vector.broadcast %cst_8 : f32 to vector<1x128xf32>
    %14 = arith.mulf %9, %13 : vector<1x128xf32>
    %cst_9 = arith.constant 7.812500e-03 : f32
    %15 = vector.broadcast %cst_9 : f32 to vector<1x128xf32>
    %16 = arith.mulf %12, %15 : vector<1x128xf32>
    %17 = arith.mulf %14, %14 : vector<1x128xf32>
    %18 = arith.subf %16, %17 : vector<1x128xf32>
    %cst_10 = arith.constant 0.000000e+00 : f32
    %19 = vector.broadcast %cst_10 : f32 to vector<1x128xf32>
    %20 = arith.maximumf %18, %19 : vector<1x128xf32>
    %cst_11 = arith.constant 9.99999974E-6 : f32
    %21 = vector.broadcast %cst_11 : f32 to vector<1x128xf32>
    %22 = arith.addf %20, %21 : vector<1x128xf32>
    %23 = math.rsqrt %22 : vector<1x128xf32>
    %c0_12 = arith.constant 0 : index
    %c0_13 = arith.constant 0 : index
    %24 = vector.load %arg4[%c0_12, %c0_13] : memref<1x128xf32, #tpu.memory_space<vmem>>, vector<1x128xf32>
    %25 = arith.mulf %23, %24 : vector<1x128xf32>
    %c0_14 = arith.constant 0 : index
    %c0_15 = arith.constant 0 : index
    %26 = vector.load %arg5[%c0_14, %c0_15] : memref<1x128xf32, #tpu.memory_space<vmem>>, vector<1x128xf32>
    %27 = arith.mulf %14, %25 : vector<1x128xf32>
    %28 = arith.subf %26, %27 : vector<1x128xf32>
    %29 = vector.broadcast %25 : vector<1x128xf32> to vector<128x128xf32>
    %30 = arith.mulf %7, %29 : vector<128x128xf32>
    %31 = vector.broadcast %28 : vector<1x128xf32> to vector<128x128xf32>
    %32 = arith.addf %30, %31 : vector<128x128xf32>
    %33 = arith.truncf %32 : vector<128x128xf32> to vector<128x128xbf16>
    %c0_16 = arith.constant 0 : index
    %c0_17 = arith.constant 0 : index
    %34 = vector.load %arg6[%c0_16, %c0_17] : memref<128x128xbf16, #tpu.memory_space<vmem>>, vector<128x128xbf16>
    tpu.vector_store %arg6[%c0_16, %c0_17], %33 {strides = array<i32>} : memref<128x128xbf16, #tpu.memory_space<vmem>>, vector<128x128xbf16>,
    return
  }
  func.func @transform_0(%arg0: i32) -> (i32, i32) {
    %c0_i32 = arith.constant 0 : i32
    %c0_i32_0 = arith.constant 0 : i32
    %c0_i32_1 = arith.constant 0 : i32
    return %c0_i32, %c0_i32_0 : i32, i32
  }
  func.func @transform_1(%arg0: i32) -> (i32, i32) {
    %c0_i32 = arith.constant 0 : i32
    %c0_i32_0 = arith.constant 0 : i32
    %c0_i32_1 = arith.constant 0 : i32
    return %c0_i32, %c0_i32_0 : i32, i32
  }
  func.func @transform_2(%arg0: i32) -> (i32, i32) {
    %c0_i32 = arith.constant 0 : i32
    %c0_i32_0 = arith.constant 0 : i32
    %c0_i32_1 = arith.constant 0 : i32
    return %c0_i32, %c0_i32_0 : i32, i32
  }
  func.func @transform_3(%arg0: i32) -> (i32, i32) {
    %c0_i32 = arith.constant 0 : i32
    %c0_i32_0 = arith.constant 0 : i32
    %c0_i32_1 = arith.constant 0 : i32
    return %c0_i32, %c0_i32_0 : i32, i32
  }
  func.func @transform_4(%arg0: i32) -> (i32, i32) {
    %c0_i32 = arith.constant 0 : i32
    %c0_i32_0 = arith.constant 0 : i32
    %c0_i32_1 = arith.constant 0 : i32
    return %c0_i32, %c0_i32_0 : i32, i32
  }
  func.func @transform_5(%arg0: i32) -> (i32, i32) {
    %c0_i32 = arith.constant 0 : i32
    %c0_i32_0 = arith.constant 0 : i32
    %c0_i32_1 = arith.constant 0 : i32
    return %c0_i32, %c0_i32_0 : i32, i32
  }
}

module attributes {stable_mosaic.version = 11 : i64} {
  func.func @_fused_layer_kernel(%arg0: i32, %arg1: memref<32x896xbf16, #tpu.memory_space<vmem>>, %arg2: memref<896x128xbf16, #tpu.memory_space<vmem>>, %arg3: memref<1x128xf32, #tpu.memory_space<vmem>>, %arg4: memref<1x128xf32, #tpu.memory_space<vmem>>, %arg5: memref<1x128xf32, #tpu.memory_space<vmem>>, %arg6: memref<32x128xbf16, #tpu.memory_space<vmem>>) attributes {dimension_semantics = [#tpu.dimension_semantics<arbitrary>], iteration_bounds = array<i64: 1>, scalar_prefetch = 0 : i64, scratch_operands = 0 : i64, tpu.core_type = #tpu.core_type<tc>, window_params = [{pipeline_mode = #tpu.pipeline_mode<synchronous>, transform_indices = @transform_0, window_bounds = array<i64: 32, 896>}, {pipeline_mode = #tpu.pipeline_mode<synchronous>, transform_indices = @transform_1, window_bounds = array<i64: 896, 128>}, {pipeline_mode = #tpu.pipeline_mode<synchronous>, transform_indices = @transform_2, window_bounds = array<i64: 1, 128>}, {pipeline_mode = #tpu.pipeline_mode<synchronous>, transform_indices = @transform_3, window_bounds = array<i64: 1, 128>}, {pipeline_mode = #tpu.pipeline_mode<synchronous>, transform_indices = @transform_4, window_bounds = array<i64: 1, 128>}, {pipeline_mode = #tpu.pipeline_mode<synchronous>, transform_indices = @transform_5, window_bounds = array<i64: 32, 128>}]} {
    %c0 = arith.constant 0 : index
    %c0_0 = arith.constant 0 : index
    %0 = vector.load %arg1[%c0, %c0_0] : memref<32x896xbf16, #tpu.memory_space<vmem>>, vector<32x896xbf16>
    %c0_1 = arith.constant 0 : index
    %c0_2 = arith.constant 0 : index
    %1 = vector.load %arg2[%c0_1, %c0_2] : memref<896x128xbf16, #tpu.memory_space<vmem>>, vector<896x128xbf16>
    %cst = arith.constant dense<0.000000e+00> : vector<32x128xf32>
    %2 = tpu.matmul %0, %1, %cst {dimension_numbers = #tpu.dot_dimension_numbers<[1], [0], [0], [1], [0, 0, 1, 1], [], []>} : vector<32x896xbf16>, vector<896x128xbf16>, vector<32x128xf32> -> vector<32x128xf32>
    %c0_3 = arith.constant 0 : index
    %c0_4 = arith.constant 0 : index
    %3 = vector.load %arg3[%c0_3, %c0_4] : memref<1x128xf32, #tpu.memory_space<vmem>>, vector<1x128xf32>
    %4 = vector.broadcast %3 : vector<1x128xf32> to vector<32x128xf32>
    %5 = arith.addf %2, %4 : vector<32x128xf32>
    %cst_5 = arith.constant 0.000000e+00 : f32
    %6 = vector.broadcast %cst_5 : f32 to vector<32x128xf32>
    %7 = arith.maximumf %5, %6 : vector<32x128xf32>
    %cst_6 = arith.constant dense<0.000000e+00> : vector<128xf32>
    %8 = vector.multi_reduction <add>, %7, %cst_6 [0] : vector<32x128xf32> to vector<128xf32>
    %9 = vector.shape_cast %8 : vector<128xf32> to vector<1x128xf32>
    %10 = arith.mulf %7, %7 : vector<32x128xf32>
    %cst_7 = arith.constant dense<0.000000e+00> : vector<128xf32>
    %11 = vector.multi_reduction <add>, %10, %cst_7 [0] : vector<32x128xf32> to vector<128xf32>
    %12 = vector.shape_cast %11 : vector<128xf32> to vector<1x128xf32>
    %cst_8 = arith.constant 3.125000e-02 : f32
    %13 = vector.broadcast %cst_8 : f32 to vector<1x128xf32>
    %14 = arith.mulf %9, %13 : vector<1x128xf32>
    %cst_9 = arith.constant 3.125000e-02 : f32
    %15 = vector.broadcast %cst_9 : f32 to vector<1x128xf32>
    %16 = arith.mulf %12, %15 : vector<1x128xf32>
    %17 = arith.mulf %14, %14 : vector<1x128xf32>
    %18 = arith.subf %16, %17 : vector<1x128xf32>
    %cst_10 = arith.constant 0.000000e+00 : f32
    %19 = vector.broadcast %cst_10 : f32 to vector<1x128xf32>
    %20 = arith.maximumf %18, %19 : vector<1x128xf32>
    %cst_11 = arith.constant 9.99999974E-6 : f32
    %21 = vector.broadcast %cst_11 : f32 to vector<1x128xf32>
    %22 = arith.addf %20, %21 : vector<1x128xf32>
    %23 = math.rsqrt %22 : vector<1x128xf32>
    %c0_12 = arith.constant 0 : index
    %c0_13 = arith.constant 0 : index
    %24 = vector.load %arg4[%c0_12, %c0_13] : memref<1x128xf32, #tpu.memory_space<vmem>>, vector<1x128xf32>
    %25 = arith.mulf %23, %24 : vector<1x128xf32>
    %c0_14 = arith.constant 0 : index
    %c0_15 = arith.constant 0 : index
    %26 = vector.load %arg5[%c0_14, %c0_15] : memref<1x128xf32, #tpu.memory_space<vmem>>, vector<1x128xf32>
    %27 = arith.mulf %14, %25 : vector<1x128xf32>
    %28 = arith.subf %26, %27 : vector<1x128xf32>
    %29 = vector.broadcast %25 : vector<1x128xf32> to vector<32x128xf32>
    %30 = arith.mulf %7, %29 : vector<32x128xf32>
    %31 = vector.broadcast %28 : vector<1x128xf32> to vector<32x128xf32>
    %32 = arith.addf %30, %31 : vector<32x128xf32>
    %33 = arith.truncf %32 : vector<32x128xf32> to vector<32x128xbf16>
    %c0_16 = arith.constant 0 : index
    %c0_17 = arith.constant 0 : index
    %34 = vector.load %arg6[%c0_16, %c0_17] : memref<32x128xbf16, #tpu.memory_space<vmem>>, vector<32x128xbf16>
    tpu.vector_store %arg6[%c0_16, %c0_17], %33 {strides = array<i32>} : memref<32x128xbf16, #tpu.memory_space<vmem>>, vector<32x128xbf16>,
    return
  }
  func.func @transform_0(%arg0: i32) -> (i32, i32) {
    %c0_i32 = arith.constant 0 : i32
    %c0_i32_0 = arith.constant 0 : i32
    %c0_i32_1 = arith.constant 0 : i32
    return %c0_i32, %c0_i32_0 : i32, i32
  }
  func.func @transform_1(%arg0: i32) -> (i32, i32) {
    %c0_i32 = arith.constant 0 : i32
    %c0_i32_0 = arith.constant 0 : i32
    %c0_i32_1 = arith.constant 0 : i32
    return %c0_i32, %c0_i32_0 : i32, i32
  }
  func.func @transform_2(%arg0: i32) -> (i32, i32) {
    %c0_i32 = arith.constant 0 : i32
    %c0_i32_0 = arith.constant 0 : i32
    %c0_i32_1 = arith.constant 0 : i32
    return %c0_i32, %c0_i32_0 : i32, i32
  }
  func.func @transform_3(%arg0: i32) -> (i32, i32) {
    %c0_i32 = arith.constant 0 : i32
    %c0_i32_0 = arith.constant 0 : i32
    %c0_i32_1 = arith.constant 0 : i32
    return %c0_i32, %c0_i32_0 : i32, i32
  }
  func.func @transform_4(%arg0: i32) -> (i32, i32) {
    %c0_i32 = arith.constant 0 : i32
    %c0_i32_0 = arith.constant 0 : i32
    %c0_i32_1 = arith.constant 0 : i32
    return %c0_i32, %c0_i32_0 : i32, i32
  }
  func.func @transform_5(%arg0: i32) -> (i32, i32) {
    %c0_i32 = arith.constant 0 : i32
    %c0_i32_0 = arith.constant 0 : i32
    %c0_i32_1 = arith.constant 0 : i32
    return %c0_i32, %c0_i32_0 : i32, i32
  }
}

module attributes {stable_mosaic.version = 11 : i64} {
  func.func @_fused_layer_kernel(%arg0: i32, %arg1: memref<8x1664xbf16, #tpu.memory_space<vmem>>, %arg2: memref<1664x128xbf16, #tpu.memory_space<vmem>>, %arg3: memref<1x128xf32, #tpu.memory_space<vmem>>, %arg4: memref<1x128xf32, #tpu.memory_space<vmem>>, %arg5: memref<1x128xf32, #tpu.memory_space<vmem>>, %arg6: memref<8x128xbf16, #tpu.memory_space<vmem>>) attributes {dimension_semantics = [#tpu.dimension_semantics<arbitrary>], iteration_bounds = array<i64: 1>, scalar_prefetch = 0 : i64, scratch_operands = 0 : i64, tpu.core_type = #tpu.core_type<tc>, window_params = [{pipeline_mode = #tpu.pipeline_mode<synchronous>, transform_indices = @transform_0, window_bounds = array<i64: 8, 1664>}, {pipeline_mode = #tpu.pipeline_mode<synchronous>, transform_indices = @transform_1, window_bounds = array<i64: 1664, 128>}, {pipeline_mode = #tpu.pipeline_mode<synchronous>, transform_indices = @transform_2, window_bounds = array<i64: 1, 128>}, {pipeline_mode = #tpu.pipeline_mode<synchronous>, transform_indices = @transform_3, window_bounds = array<i64: 1, 128>}, {pipeline_mode = #tpu.pipeline_mode<synchronous>, transform_indices = @transform_4, window_bounds = array<i64: 1, 128>}, {pipeline_mode = #tpu.pipeline_mode<synchronous>, transform_indices = @transform_5, window_bounds = array<i64: 8, 128>}]} {
    %c0 = arith.constant 0 : index
    %c0_0 = arith.constant 0 : index
    %0 = vector.load %arg1[%c0, %c0_0] : memref<8x1664xbf16, #tpu.memory_space<vmem>>, vector<8x1664xbf16>
    %c0_1 = arith.constant 0 : index
    %c0_2 = arith.constant 0 : index
    %1 = vector.load %arg2[%c0_1, %c0_2] : memref<1664x128xbf16, #tpu.memory_space<vmem>>, vector<1664x128xbf16>
    %cst = arith.constant dense<0.000000e+00> : vector<8x128xf32>
    %2 = tpu.matmul %0, %1, %cst {dimension_numbers = #tpu.dot_dimension_numbers<[1], [0], [0], [1], [0, 0, 1, 1], [], []>} : vector<8x1664xbf16>, vector<1664x128xbf16>, vector<8x128xf32> -> vector<8x128xf32>
    %c0_3 = arith.constant 0 : index
    %c0_4 = arith.constant 0 : index
    %3 = vector.load %arg3[%c0_3, %c0_4] : memref<1x128xf32, #tpu.memory_space<vmem>>, vector<1x128xf32>
    %4 = vector.broadcast %3 : vector<1x128xf32> to vector<8x128xf32>
    %5 = arith.addf %2, %4 : vector<8x128xf32>
    %cst_5 = arith.constant 0.000000e+00 : f32
    %6 = vector.broadcast %cst_5 : f32 to vector<8x128xf32>
    %7 = arith.maximumf %5, %6 : vector<8x128xf32>
    %cst_6 = arith.constant dense<0.000000e+00> : vector<128xf32>
    %8 = vector.multi_reduction <add>, %7, %cst_6 [0] : vector<8x128xf32> to vector<128xf32>
    %9 = vector.shape_cast %8 : vector<128xf32> to vector<1x128xf32>
    %10 = arith.mulf %7, %7 : vector<8x128xf32>
    %cst_7 = arith.constant dense<0.000000e+00> : vector<128xf32>
    %11 = vector.multi_reduction <add>, %10, %cst_7 [0] : vector<8x128xf32> to vector<128xf32>
    %12 = vector.shape_cast %11 : vector<128xf32> to vector<1x128xf32>
    %cst_8 = arith.constant 1.250000e-01 : f32
    %13 = vector.broadcast %cst_8 : f32 to vector<1x128xf32>
    %14 = arith.mulf %9, %13 : vector<1x128xf32>
    %cst_9 = arith.constant 1.250000e-01 : f32
    %15 = vector.broadcast %cst_9 : f32 to vector<1x128xf32>
    %16 = arith.mulf %12, %15 : vector<1x128xf32>
    %17 = arith.mulf %14, %14 : vector<1x128xf32>
    %18 = arith.subf %16, %17 : vector<1x128xf32>
    %cst_10 = arith.constant 0.000000e+00 : f32
    %19 = vector.broadcast %cst_10 : f32 to vector<1x128xf32>
    %20 = arith.maximumf %18, %19 : vector<1x128xf32>
    %cst_11 = arith.constant 9.99999974E-6 : f32
    %21 = vector.broadcast %cst_11 : f32 to vector<1x128xf32>
    %22 = arith.addf %20, %21 : vector<1x128xf32>
    %23 = math.rsqrt %22 : vector<1x128xf32>
    %c0_12 = arith.constant 0 : index
    %c0_13 = arith.constant 0 : index
    %24 = vector.load %arg4[%c0_12, %c0_13] : memref<1x128xf32, #tpu.memory_space<vmem>>, vector<1x128xf32>
    %25 = arith.mulf %23, %24 : vector<1x128xf32>
    %c0_14 = arith.constant 0 : index
    %c0_15 = arith.constant 0 : index
    %26 = vector.load %arg5[%c0_14, %c0_15] : memref<1x128xf32, #tpu.memory_space<vmem>>, vector<1x128xf32>
    %27 = arith.mulf %14, %25 : vector<1x128xf32>
    %28 = arith.subf %26, %27 : vector<1x128xf32>
    %29 = vector.broadcast %25 : vector<1x128xf32> to vector<8x128xf32>
    %30 = arith.mulf %7, %29 : vector<8x128xf32>
    %31 = vector.broadcast %28 : vector<1x128xf32> to vector<8x128xf32>
    %32 = arith.addf %30, %31 : vector<8x128xf32>
    %cst_16 = arith.constant 0.000000e+00 : f32
    %33 = vector.broadcast %cst_16 : f32 to vector<8x128xf32>
    %34 = arith.cmpf oge, %32, %33 : vector<8x128xf32>
    %cst_17 = arith.constant 1.000000e+00 : f32
    %cst_18 = arith.constant -1.000000e+00 : f32
    %35 = vector.broadcast %cst_17 : f32 to vector<8x128xf32>
    %36 = vector.broadcast %cst_18 : f32 to vector<8x128xf32>
    %37 = arith.select %34, %35, %36 : vector<8x128xi1>, vector<8x128xf32>
    %38 = arith.truncf %37 : vector<8x128xf32> to vector<8x128xbf16>
    %c0_19 = arith.constant 0 : index
    %c0_20 = arith.constant 0 : index
    %39 = vector.load %arg6[%c0_19, %c0_20] : memref<8x128xbf16, #tpu.memory_space<vmem>>, vector<8x128xbf16>
    tpu.vector_store %arg6[%c0_19, %c0_20], %38 {strides = array<i32>} : memref<8x128xbf16, #tpu.memory_space<vmem>>, vector<8x128xbf16>,
    return
  }
  func.func @transform_0(%arg0: i32) -> (i32, i32) {
    %c0_i32 = arith.constant 0 : i32
    %c0_i32_0 = arith.constant 0 : i32
    %c0_i32_1 = arith.constant 0 : i32
    return %c0_i32, %c0_i32_0 : i32, i32
  }
  func.func @transform_1(%arg0: i32) -> (i32, i32) {
    %c0_i32 = arith.constant 0 : i32
    %c0_i32_0 = arith.constant 0 : i32
    %c0_i32_1 = arith.constant 0 : i32
    return %c0_i32, %c0_i32_0 : i32, i32
  }
  func.func @transform_2(%arg0: i32) -> (i32, i32) {
    %c0_i32 = arith.constant 0 : i32
    %c0_i32_0 = arith.constant 0 : i32
    %c0_i32_1 = arith.constant 0 : i32
    return %c0_i32, %c0_i32_0 : i32, i32
  }
  func.func @transform_3(%arg0: i32) -> (i32, i32) {
    %c0_i32 = arith.constant 0 : i32
    %c0_i32_0 = arith.constant 0 : i32
    %c0_i32_1 = arith.constant 0 : i32
    return %c0_i32, %c0_i32_0 : i32, i32
  }
  func.func @transform_4(%arg0: i32) -> (i32, i32) {
    %c0_i32 = arith.constant 0 : i32
    %c0_i32_0 = arith.constant 0 : i32
    %c0_i32_1 = arith.constant 0 : i32
    return %c0_i32, %c0_i32_0 : i32, i32
  }
  func.func @transform_5(%arg0: i32) -> (i32, i32) {
    %c0_i32 = arith.constant 0 : i32
    %c0_i32_0 = arith.constant 0 : i32
    %c0_i32_1 = arith.constant 0 : i32
    return %c0_i32, %c0_i32_0 : i32, i32
  }
}

module attributes {stable_mosaic.version = 11 : i64} {
  func.func @_fused_layer_kernel(%arg0: i32, %arg1: memref<8x1152xbf16, #tpu.memory_space<vmem>>, %arg2: memref<1152x512xbf16, #tpu.memory_space<vmem>>, %arg3: memref<1x512xf32, #tpu.memory_space<vmem>>, %arg4: memref<1x128xf32, #tpu.memory_space<vmem>>, %arg5: memref<1x128xf32, #tpu.memory_space<vmem>>, %arg6: memref<8x512xbf16, #tpu.memory_space<vmem>>) attributes {dimension_semantics = [#tpu.dimension_semantics<arbitrary>], iteration_bounds = array<i64: 1>, scalar_prefetch = 0 : i64, scratch_operands = 0 : i64, tpu.core_type = #tpu.core_type<tc>, window_params = [{pipeline_mode = #tpu.pipeline_mode<synchronous>, transform_indices = @transform_0, window_bounds = array<i64: 8, 1152>}, {pipeline_mode = #tpu.pipeline_mode<synchronous>, transform_indices = @transform_1, window_bounds = array<i64: 1152, 512>}, {pipeline_mode = #tpu.pipeline_mode<synchronous>, transform_indices = @transform_2, window_bounds = array<i64: 1, 512>}, {pipeline_mode = #tpu.pipeline_mode<synchronous>, transform_indices = @transform_3, window_bounds = array<i64: 1, 128>}, {pipeline_mode = #tpu.pipeline_mode<synchronous>, transform_indices = @transform_4, window_bounds = array<i64: 1, 128>}, {pipeline_mode = #tpu.pipeline_mode<synchronous>, transform_indices = @transform_5, window_bounds = array<i64: 8, 512>}]} {
    %c0 = arith.constant 0 : index
    %c0_0 = arith.constant 0 : index
    %0 = vector.load %arg1[%c0, %c0_0] : memref<8x1152xbf16, #tpu.memory_space<vmem>>, vector<8x1152xbf16>
    %c0_1 = arith.constant 0 : index
    %c0_2 = arith.constant 0 : index
    %1 = vector.load %arg2[%c0_1, %c0_2] : memref<1152x512xbf16, #tpu.memory_space<vmem>>, vector<1152x512xbf16>
    %cst = arith.constant dense<0.000000e+00> : vector<8x512xf32>
    %2 = tpu.matmul %0, %1, %cst {dimension_numbers = #tpu.dot_dimension_numbers<[1], [0], [0], [1], [0, 0, 1, 1], [], []>} : vector<8x1152xbf16>, vector<1152x512xbf16>, vector<8x512xf32> -> vector<8x512xf32>
    %cst_3 = arith.constant dense<0.000000e+00> : vector<512xf32>
    %3 = vector.multi_reduction <add>, %2, %cst_3 [0] : vector<8x512xf32> to vector<512xf32>
    %4 = vector.shape_cast %3 : vector<512xf32> to vector<1x512xf32>
    %5 = arith.mulf %2, %2 : vector<8x512xf32>
    %cst_4 = arith.constant dense<0.000000e+00> : vector<512xf32>
    %6 = vector.multi_reduction <add>, %5, %cst_4 [0] : vector<8x512xf32> to vector<512xf32>
    %7 = vector.shape_cast %6 : vector<512xf32> to vector<1x512xf32>
    %8 = vector.extract_strided_slice %4 {offsets = [0, 0], sizes = [1, 128], strides = [1, 1]} : vector<1x512xf32> to vector<1x128xf32>
    %cst_5 = arith.constant 0.000000e+00 : f32
    %9 = vector.broadcast %cst_5 : f32 to vector<1x128xf32>
    %10 = arith.addf %9, %8 : vector<1x128xf32>
    %11 = vector.extract_strided_slice %4 {offsets = [0, 128], sizes = [1, 128], strides = [1, 1]} : vector<1x512xf32> to vector<1x128xf32>
    %12 = arith.addf %10, %11 : vector<1x128xf32>
    %13 = vector.extract_strided_slice %4 {offsets = [0, 256], sizes = [1, 128], strides = [1, 1]} : vector<1x512xf32> to vector<1x128xf32>
    %14 = arith.addf %12, %13 : vector<1x128xf32>
    %15 = vector.extract_strided_slice %4 {offsets = [0, 384], sizes = [1, 128], strides = [1, 1]} : vector<1x512xf32> to vector<1x128xf32>
    %16 = arith.addf %14, %15 : vector<1x128xf32>
    %17 = vector.extract_strided_slice %7 {offsets = [0, 0], sizes = [1, 128], strides = [1, 1]} : vector<1x512xf32> to vector<1x128xf32>
    %cst_6 = arith.constant 0.000000e+00 : f32
    %18 = vector.broadcast %cst_6 : f32 to vector<1x128xf32>
    %19 = arith.addf %18, %17 : vector<1x128xf32>
    %20 = vector.extract_strided_slice %7 {offsets = [0, 128], sizes = [1, 128], strides = [1, 1]} : vector<1x512xf32> to vector<1x128xf32>
    %21 = arith.addf %19, %20 : vector<1x128xf32>
    %22 = vector.extract_strided_slice %7 {offsets = [0, 256], sizes = [1, 128], strides = [1, 1]} : vector<1x512xf32> to vector<1x128xf32>
    %23 = arith.addf %21, %22 : vector<1x128xf32>
    %24 = vector.extract_strided_slice %7 {offsets = [0, 384], sizes = [1, 128], strides = [1, 1]} : vector<1x512xf32> to vector<1x128xf32>
    %25 = arith.addf %23, %24 : vector<1x128xf32>
    %cst_7 = arith.constant 3.125000e-02 : f32
    %26 = vector.broadcast %cst_7 : f32 to vector<1x128xf32>
    %27 = arith.mulf %16, %26 : vector<1x128xf32>
    %cst_8 = arith.constant 3.125000e-02 : f32
    %28 = vector.broadcast %cst_8 : f32 to vector<1x128xf32>
    %29 = arith.mulf %25, %28 : vector<1x128xf32>
    %30 = arith.mulf %27, %27 : vector<1x128xf32>
    %31 = arith.subf %29, %30 : vector<1x128xf32>
    %cst_9 = arith.constant 0.000000e+00 : f32
    %32 = vector.broadcast %cst_9 : f32 to vector<1x128xf32>
    %33 = arith.maximumf %31, %32 : vector<1x128xf32>
    %cst_10 = arith.constant 9.99999974E-6 : f32
    %34 = vector.broadcast %cst_10 : f32 to vector<1x128xf32>
    %35 = arith.addf %33, %34 : vector<1x128xf32>
    %36 = math.rsqrt %35 : vector<1x128xf32>
    %c0_11 = arith.constant 0 : index
    %c0_12 = arith.constant 0 : index
    %37 = vector.load %arg4[%c0_11, %c0_12] : memref<1x128xf32, #tpu.memory_space<vmem>>, vector<1x128xf32>
    %38 = arith.mulf %36, %37 : vector<1x128xf32>
    %c0_13 = arith.constant 0 : index
    %c0_14 = arith.constant 0 : index
    %39 = vector.load %arg5[%c0_13, %c0_14] : memref<1x128xf32, #tpu.memory_space<vmem>>, vector<1x128xf32>
    %40 = arith.mulf %27, %38 : vector<1x128xf32>
    %41 = arith.subf %39, %40 : vector<1x128xf32>
    %42 = tpu.concatenate %38, %38, %38, %38 in 1 : vector<1x128xf32>, vector<1x128xf32>, vector<1x128xf32>, vector<1x128xf32> -> vector<1x512xf32>
    %43 = tpu.concatenate %41, %41, %41, %41 in 1 : vector<1x128xf32>, vector<1x128xf32>, vector<1x128xf32>, vector<1x128xf32> -> vector<1x512xf32>
    %44 = vector.broadcast %42 : vector<1x512xf32> to vector<8x512xf32>
    %45 = arith.mulf %2, %44 : vector<8x512xf32>
    %46 = vector.broadcast %43 : vector<1x512xf32> to vector<8x512xf32>
    %47 = arith.addf %45, %46 : vector<8x512xf32>
    %cst_15 = arith.constant 0.000000e+00 : f32
    %48 = vector.broadcast %cst_15 : f32 to vector<8x512xf32>
    %49 = arith.maximumf %47, %48 : vector<8x512xf32>
    %50 = arith.truncf %49 : vector<8x512xf32> to vector<8x512xbf16>
    %c0_16 = arith.constant 0 : index
    %c0_17 = arith.constant 0 : index
    %51 = vector.load %arg6[%c0_16, %c0_17] : memref<8x512xbf16, #tpu.memory_space<vmem>>, vector<8x512xbf16>
    tpu.vector_store %arg6[%c0_16, %c0_17], %50 {strides = array<i32>} : memref<8x512xbf16, #tpu.memory_space<vmem>>, vector<8x512xbf16>,
    return
  }
  func.func @transform_0(%arg0: i32) -> (i32, i32) {
    %c0_i32 = arith.constant 0 : i32
    %c0_i32_0 = arith.constant 0 : i32
    %c0_i32_1 = arith.constant 0 : i32
    return %c0_i32, %c0_i32_0 : i32, i32
  }
  func.func @transform_1(%arg0: i32) -> (i32, i32) {
    %c0_i32 = arith.constant 0 : i32
    %c0_i32_0 = arith.constant 0 : i32
    %c0_i32_1 = arith.constant 0 : i32
    return %c0_i32, %c0_i32_0 : i32, i32
  }
  func.func @transform_2(%arg0: i32) -> (i32, i32) {
    %c0_i32 = arith.constant 0 : i32
    %c0_i32_0 = arith.constant 0 : i32
    %c0_i32_1 = arith.constant 0 : i32
    return %c0_i32, %c0_i32_0 : i32, i32
  }
  func.func @transform_3(%arg0: i32) -> (i32, i32) {
    %c0_i32 = arith.constant 0 : i32
    %c0_i32_0 = arith.constant 0 : i32
    %c0_i32_1 = arith.constant 0 : i32
    return %c0_i32, %c0_i32_0 : i32, i32
  }
  func.func @transform_4(%arg0: i32) -> (i32, i32) {
    %c0_i32 = arith.constant 0 : i32
    %c0_i32_0 = arith.constant 0 : i32
    %c0_i32_1 = arith.constant 0 : i32
    return %c0_i32, %c0_i32_0 : i32, i32
  }
  func.func @transform_5(%arg0: i32) -> (i32, i32) {
    %c0_i32 = arith.constant 0 : i32
    %c0_i32_0 = arith.constant 0 : i32
    %c0_i32_1 = arith.constant 0 : i32
    return %c0_i32, %c0_i32_0 : i32, i32
  }
}

module attributes {stable_mosaic.version = 11 : i64} {
  func.func @_fused_layer_kernel(%arg0: i32, %arg1: memref<32x640xbf16, #tpu.memory_space<vmem>>, %arg2: memref<640x512xbf16, #tpu.memory_space<vmem>>, %arg3: memref<1x512xf32, #tpu.memory_space<vmem>>, %arg4: memref<1x128xf32, #tpu.memory_space<vmem>>, %arg5: memref<1x128xf32, #tpu.memory_space<vmem>>, %arg6: memref<32x512xbf16, #tpu.memory_space<vmem>>) attributes {dimension_semantics = [#tpu.dimension_semantics<arbitrary>], iteration_bounds = array<i64: 1>, scalar_prefetch = 0 : i64, scratch_operands = 0 : i64, tpu.core_type = #tpu.core_type<tc>, window_params = [{pipeline_mode = #tpu.pipeline_mode<synchronous>, transform_indices = @transform_0, window_bounds = array<i64: 32, 640>}, {pipeline_mode = #tpu.pipeline_mode<synchronous>, transform_indices = @transform_1, window_bounds = array<i64: 640, 512>}, {pipeline_mode = #tpu.pipeline_mode<synchronous>, transform_indices = @transform_2, window_bounds = array<i64: 1, 512>}, {pipeline_mode = #tpu.pipeline_mode<synchronous>, transform_indices = @transform_3, window_bounds = array<i64: 1, 128>}, {pipeline_mode = #tpu.pipeline_mode<synchronous>, transform_indices = @transform_4, window_bounds = array<i64: 1, 128>}, {pipeline_mode = #tpu.pipeline_mode<synchronous>, transform_indices = @transform_5, window_bounds = array<i64: 32, 512>}]} {
    %c0 = arith.constant 0 : index
    %c0_0 = arith.constant 0 : index
    %0 = vector.load %arg1[%c0, %c0_0] : memref<32x640xbf16, #tpu.memory_space<vmem>>, vector<32x640xbf16>
    %c0_1 = arith.constant 0 : index
    %c0_2 = arith.constant 0 : index
    %1 = vector.load %arg2[%c0_1, %c0_2] : memref<640x512xbf16, #tpu.memory_space<vmem>>, vector<640x512xbf16>
    %cst = arith.constant dense<0.000000e+00> : vector<32x512xf32>
    %2 = tpu.matmul %0, %1, %cst {dimension_numbers = #tpu.dot_dimension_numbers<[1], [0], [0], [1], [0, 0, 1, 1], [], []>} : vector<32x640xbf16>, vector<640x512xbf16>, vector<32x512xf32> -> vector<32x512xf32>
    %cst_3 = arith.constant dense<0.000000e+00> : vector<512xf32>
    %3 = vector.multi_reduction <add>, %2, %cst_3 [0] : vector<32x512xf32> to vector<512xf32>
    %4 = vector.shape_cast %3 : vector<512xf32> to vector<1x512xf32>
    %5 = arith.mulf %2, %2 : vector<32x512xf32>
    %cst_4 = arith.constant dense<0.000000e+00> : vector<512xf32>
    %6 = vector.multi_reduction <add>, %5, %cst_4 [0] : vector<32x512xf32> to vector<512xf32>
    %7 = vector.shape_cast %6 : vector<512xf32> to vector<1x512xf32>
    %8 = vector.extract_strided_slice %4 {offsets = [0, 0], sizes = [1, 128], strides = [1, 1]} : vector<1x512xf32> to vector<1x128xf32>
    %cst_5 = arith.constant 0.000000e+00 : f32
    %9 = vector.broadcast %cst_5 : f32 to vector<1x128xf32>
    %10 = arith.addf %9, %8 : vector<1x128xf32>
    %11 = vector.extract_strided_slice %4 {offsets = [0, 128], sizes = [1, 128], strides = [1, 1]} : vector<1x512xf32> to vector<1x128xf32>
    %12 = arith.addf %10, %11 : vector<1x128xf32>
    %13 = vector.extract_strided_slice %4 {offsets = [0, 256], sizes = [1, 128], strides = [1, 1]} : vector<1x512xf32> to vector<1x128xf32>
    %14 = arith.addf %12, %13 : vector<1x128xf32>
    %15 = vector.extract_strided_slice %4 {offsets = [0, 384], sizes = [1, 128], strides = [1, 1]} : vector<1x512xf32> to vector<1x128xf32>
    %16 = arith.addf %14, %15 : vector<1x128xf32>
    %17 = vector.extract_strided_slice %7 {offsets = [0, 0], sizes = [1, 128], strides = [1, 1]} : vector<1x512xf32> to vector<1x128xf32>
    %cst_6 = arith.constant 0.000000e+00 : f32
    %18 = vector.broadcast %cst_6 : f32 to vector<1x128xf32>
    %19 = arith.addf %18, %17 : vector<1x128xf32>
    %20 = vector.extract_strided_slice %7 {offsets = [0, 128], sizes = [1, 128], strides = [1, 1]} : vector<1x512xf32> to vector<1x128xf32>
    %21 = arith.addf %19, %20 : vector<1x128xf32>
    %22 = vector.extract_strided_slice %7 {offsets = [0, 256], sizes = [1, 128], strides = [1, 1]} : vector<1x512xf32> to vector<1x128xf32>
    %23 = arith.addf %21, %22 : vector<1x128xf32>
    %24 = vector.extract_strided_slice %7 {offsets = [0, 384], sizes = [1, 128], strides = [1, 1]} : vector<1x512xf32> to vector<1x128xf32>
    %25 = arith.addf %23, %24 : vector<1x128xf32>
    %cst_7 = arith.constant 7.812500e-03 : f32
    %26 = vector.broadcast %cst_7 : f32 to vector<1x128xf32>
    %27 = arith.mulf %16, %26 : vector<1x128xf32>
    %cst_8 = arith.constant 7.812500e-03 : f32
    %28 = vector.broadcast %cst_8 : f32 to vector<1x128xf32>
    %29 = arith.mulf %25, %28 : vector<1x128xf32>
    %30 = arith.mulf %27, %27 : vector<1x128xf32>
    %31 = arith.subf %29, %30 : vector<1x128xf32>
    %cst_9 = arith.constant 0.000000e+00 : f32
    %32 = vector.broadcast %cst_9 : f32 to vector<1x128xf32>
    %33 = arith.maximumf %31, %32 : vector<1x128xf32>
    %cst_10 = arith.constant 9.99999974E-6 : f32
    %34 = vector.broadcast %cst_10 : f32 to vector<1x128xf32>
    %35 = arith.addf %33, %34 : vector<1x128xf32>
    %36 = math.rsqrt %35 : vector<1x128xf32>
    %c0_11 = arith.constant 0 : index
    %c0_12 = arith.constant 0 : index
    %37 = vector.load %arg4[%c0_11, %c0_12] : memref<1x128xf32, #tpu.memory_space<vmem>>, vector<1x128xf32>
    %38 = arith.mulf %36, %37 : vector<1x128xf32>
    %c0_13 = arith.constant 0 : index
    %c0_14 = arith.constant 0 : index
    %39 = vector.load %arg5[%c0_13, %c0_14] : memref<1x128xf32, #tpu.memory_space<vmem>>, vector<1x128xf32>
    %40 = arith.mulf %27, %38 : vector<1x128xf32>
    %41 = arith.subf %39, %40 : vector<1x128xf32>
    %42 = tpu.concatenate %38, %38, %38, %38 in 1 : vector<1x128xf32>, vector<1x128xf32>, vector<1x128xf32>, vector<1x128xf32> -> vector<1x512xf32>
    %43 = tpu.concatenate %41, %41, %41, %41 in 1 : vector<1x128xf32>, vector<1x128xf32>, vector<1x128xf32>, vector<1x128xf32> -> vector<1x512xf32>
    %44 = vector.broadcast %42 : vector<1x512xf32> to vector<32x512xf32>
    %45 = arith.mulf %2, %44 : vector<32x512xf32>
    %46 = vector.broadcast %43 : vector<1x512xf32> to vector<32x512xf32>
    %47 = arith.addf %45, %46 : vector<32x512xf32>
    %cst_15 = arith.constant 0.000000e+00 : f32
    %48 = vector.broadcast %cst_15 : f32 to vector<32x512xf32>
    %49 = arith.maximumf %47, %48 : vector<32x512xf32>
    %50 = arith.truncf %49 : vector<32x512xf32> to vector<32x512xbf16>
    %c0_16 = arith.constant 0 : index
    %c0_17 = arith.constant 0 : index
    %51 = vector.load %arg6[%c0_16, %c0_17] : memref<32x512xbf16, #tpu.memory_space<vmem>>, vector<32x512xbf16>
    tpu.vector_store %arg6[%c0_16, %c0_17], %50 {strides = array<i32>} : memref<32x512xbf16, #tpu.memory_space<vmem>>, vector<32x512xbf16>,
    return
  }
  func.func @transform_0(%arg0: i32) -> (i32, i32) {
    %c0_i32 = arith.constant 0 : i32
    %c0_i32_0 = arith.constant 0 : i32
    %c0_i32_1 = arith.constant 0 : i32
    return %c0_i32, %c0_i32_0 : i32, i32
  }
  func.func @transform_1(%arg0: i32) -> (i32, i32) {
    %c0_i32 = arith.constant 0 : i32
    %c0_i32_0 = arith.constant 0 : i32
    %c0_i32_1 = arith.constant 0 : i32
    return %c0_i32, %c0_i32_0 : i32, i32
  }
  func.func @transform_2(%arg0: i32) -> (i32, i32) {
    %c0_i32 = arith.constant 0 : i32
    %c0_i32_0 = arith.constant 0 : i32
    %c0_i32_1 = arith.constant 0 : i32
    return %c0_i32, %c0_i32_0 : i32, i32
  }
  func.func @transform_3(%arg0: i32) -> (i32, i32) {
    %c0_i32 = arith.constant 0 : i32
    %c0_i32_0 = arith.constant 0 : i32
    %c0_i32_1 = arith.constant 0 : i32
    return %c0_i32, %c0_i32_0 : i32, i32
  }
  func.func @transform_4(%arg0: i32) -> (i32, i32) {
    %c0_i32 = arith.constant 0 : i32
    %c0_i32_0 = arith.constant 0 : i32
    %c0_i32_1 = arith.constant 0 : i32
    return %c0_i32, %c0_i32_0 : i32, i32
  }
  func.func @transform_5(%arg0: i32) -> (i32, i32) {
    %c0_i32 = arith.constant 0 : i32
    %c0_i32_0 = arith.constant 0 : i32
    %c0_i32_1 = arith.constant 0 : i32
    return %c0_i32, %c0_i32_0 : i32, i32
  }
}

module attributes {stable_mosaic.version = 11 : i64} {
  func.func @_fused_layer_kernel(%arg0: i32, %arg1: memref<128x384xbf16, #tpu.memory_space<vmem>>, %arg2: memref<384x512xbf16, #tpu.memory_space<vmem>>, %arg3: memref<1x512xf32, #tpu.memory_space<vmem>>, %arg4: memref<1x128xf32, #tpu.memory_space<vmem>>, %arg5: memref<1x128xf32, #tpu.memory_space<vmem>>, %arg6: memref<128x512xf32, #tpu.memory_space<vmem>>) attributes {dimension_semantics = [#tpu.dimension_semantics<arbitrary>], iteration_bounds = array<i64: 1>, scalar_prefetch = 0 : i64, scratch_operands = 0 : i64, tpu.core_type = #tpu.core_type<tc>, window_params = [{pipeline_mode = #tpu.pipeline_mode<synchronous>, transform_indices = @transform_0, window_bounds = array<i64: 128, 384>}, {pipeline_mode = #tpu.pipeline_mode<synchronous>, transform_indices = @transform_1, window_bounds = array<i64: 384, 512>}, {pipeline_mode = #tpu.pipeline_mode<synchronous>, transform_indices = @transform_2, window_bounds = array<i64: 1, 512>}, {pipeline_mode = #tpu.pipeline_mode<synchronous>, transform_indices = @transform_3, window_bounds = array<i64: 1, 128>}, {pipeline_mode = #tpu.pipeline_mode<synchronous>, transform_indices = @transform_4, window_bounds = array<i64: 1, 128>}, {pipeline_mode = #tpu.pipeline_mode<synchronous>, transform_indices = @transform_5, window_bounds = array<i64: 128, 512>}]} {
    %c0 = arith.constant 0 : index
    %c0_0 = arith.constant 0 : index
    %0 = vector.load %arg1[%c0, %c0_0] : memref<128x384xbf16, #tpu.memory_space<vmem>>, vector<128x384xbf16>
    %c0_1 = arith.constant 0 : index
    %c0_2 = arith.constant 0 : index
    %1 = vector.load %arg2[%c0_1, %c0_2] : memref<384x512xbf16, #tpu.memory_space<vmem>>, vector<384x512xbf16>
    %cst = arith.constant dense<0.000000e+00> : vector<128x512xf32>
    %2 = tpu.matmul %0, %1, %cst {dimension_numbers = #tpu.dot_dimension_numbers<[1], [0], [0], [1], [0, 0, 1, 1], [], []>} : vector<128x384xbf16>, vector<384x512xbf16>, vector<128x512xf32> -> vector<128x512xf32>
    %cst_3 = arith.constant dense<0.000000e+00> : vector<512xf32>
    %3 = vector.multi_reduction <add>, %2, %cst_3 [0] : vector<128x512xf32> to vector<512xf32>
    %4 = vector.shape_cast %3 : vector<512xf32> to vector<1x512xf32>
    %5 = arith.mulf %2, %2 : vector<128x512xf32>
    %cst_4 = arith.constant dense<0.000000e+00> : vector<512xf32>
    %6 = vector.multi_reduction <add>, %5, %cst_4 [0] : vector<128x512xf32> to vector<512xf32>
    %7 = vector.shape_cast %6 : vector<512xf32> to vector<1x512xf32>
    %8 = vector.extract_strided_slice %4 {offsets = [0, 0], sizes = [1, 128], strides = [1, 1]} : vector<1x512xf32> to vector<1x128xf32>
    %cst_5 = arith.constant 0.000000e+00 : f32
    %9 = vector.broadcast %cst_5 : f32 to vector<1x128xf32>
    %10 = arith.addf %9, %8 : vector<1x128xf32>
    %11 = vector.extract_strided_slice %4 {offsets = [0, 128], sizes = [1, 128], strides = [1, 1]} : vector<1x512xf32> to vector<1x128xf32>
    %12 = arith.addf %10, %11 : vector<1x128xf32>
    %13 = vector.extract_strided_slice %4 {offsets = [0, 256], sizes = [1, 128], strides = [1, 1]} : vector<1x512xf32> to vector<1x128xf32>
    %14 = arith.addf %12, %13 : vector<1x128xf32>
    %15 = vector.extract_strided_slice %4 {offsets = [0, 384], sizes = [1, 128], strides = [1, 1]} : vector<1x512xf32> to vector<1x128xf32>
    %16 = arith.addf %14, %15 : vector<1x128xf32>
    %17 = vector.extract_strided_slice %7 {offsets = [0, 0], sizes = [1, 128], strides = [1, 1]} : vector<1x512xf32> to vector<1x128xf32>
    %cst_6 = arith.constant 0.000000e+00 : f32
    %18 = vector.broadcast %cst_6 : f32 to vector<1x128xf32>
    %19 = arith.addf %18, %17 : vector<1x128xf32>
    %20 = vector.extract_strided_slice %7 {offsets = [0, 128], sizes = [1, 128], strides = [1, 1]} : vector<1x512xf32> to vector<1x128xf32>
    %21 = arith.addf %19, %20 : vector<1x128xf32>
    %22 = vector.extract_strided_slice %7 {offsets = [0, 256], sizes = [1, 128], strides = [1, 1]} : vector<1x512xf32> to vector<1x128xf32>
    %23 = arith.addf %21, %22 : vector<1x128xf32>
    %24 = vector.extract_strided_slice %7 {offsets = [0, 384], sizes = [1, 128], strides = [1, 1]} : vector<1x512xf32> to vector<1x128xf32>
    %25 = arith.addf %23, %24 : vector<1x128xf32>
    %cst_7 = arith.constant 0.001953125 : f32
    %26 = vector.broadcast %cst_7 : f32 to vector<1x128xf32>
    %27 = arith.mulf %16, %26 : vector<1x128xf32>
    %cst_8 = arith.constant 0.001953125 : f32
    %28 = vector.broadcast %cst_8 : f32 to vector<1x128xf32>
    %29 = arith.mulf %25, %28 : vector<1x128xf32>
    %30 = arith.mulf %27, %27 : vector<1x128xf32>
    %31 = arith.subf %29, %30 : vector<1x128xf32>
    %cst_9 = arith.constant 0.000000e+00 : f32
    %32 = vector.broadcast %cst_9 : f32 to vector<1x128xf32>
    %33 = arith.maximumf %31, %32 : vector<1x128xf32>
    %cst_10 = arith.constant 9.99999974E-6 : f32
    %34 = vector.broadcast %cst_10 : f32 to vector<1x128xf32>
    %35 = arith.addf %33, %34 : vector<1x128xf32>
    %36 = math.rsqrt %35 : vector<1x128xf32>
    %c0_11 = arith.constant 0 : index
    %c0_12 = arith.constant 0 : index
    %37 = vector.load %arg4[%c0_11, %c0_12] : memref<1x128xf32, #tpu.memory_space<vmem>>, vector<1x128xf32>
    %38 = arith.mulf %36, %37 : vector<1x128xf32>
    %c0_13 = arith.constant 0 : index
    %c0_14 = arith.constant 0 : index
    %39 = vector.load %arg5[%c0_13, %c0_14] : memref<1x128xf32, #tpu.memory_space<vmem>>, vector<1x128xf32>
    %40 = arith.mulf %27, %38 : vector<1x128xf32>
    %41 = arith.subf %39, %40 : vector<1x128xf32>
    %42 = tpu.concatenate %38, %38, %38, %38 in 1 : vector<1x128xf32>, vector<1x128xf32>, vector<1x128xf32>, vector<1x128xf32> -> vector<1x512xf32>
    %43 = tpu.concatenate %41, %41, %41, %41 in 1 : vector<1x128xf32>, vector<1x128xf32>, vector<1x128xf32>, vector<1x128xf32> -> vector<1x512xf32>
    %44 = vector.broadcast %42 : vector<1x512xf32> to vector<128x512xf32>
    %45 = arith.mulf %2, %44 : vector<128x512xf32>
    %46 = vector.broadcast %43 : vector<1x512xf32> to vector<128x512xf32>
    %47 = arith.addf %45, %46 : vector<128x512xf32>
    %cst_15 = arith.constant 0.000000e+00 : f32
    %48 = vector.broadcast %cst_15 : f32 to vector<128x512xf32>
    %49 = arith.maximumf %47, %48 : vector<128x512xf32>
    %c0_16 = arith.constant 0 : index
    %c0_17 = arith.constant 0 : index
    %50 = vector.load %arg6[%c0_16, %c0_17] : memref<128x512xf32, #tpu.memory_space<vmem>>, vector<128x512xf32>
    tpu.vector_store %arg6[%c0_16, %c0_17], %49 {strides = array<i32>} : memref<128x512xf32, #tpu.memory_space<vmem>>, vector<128x512xf32>,
    return
  }
  func.func @transform_0(%arg0: i32) -> (i32, i32) {
    %c0_i32 = arith.constant 0 : i32
    %c0_i32_0 = arith.constant 0 : i32
    %c0_i32_1 = arith.constant 0 : i32
    return %c0_i32, %c0_i32_0 : i32, i32
  }
  func.func @transform_1(%arg0: i32) -> (i32, i32) {
    %c0_i32 = arith.constant 0 : i32
    %c0_i32_0 = arith.constant 0 : i32
    %c0_i32_1 = arith.constant 0 : i32
    return %c0_i32, %c0_i32_0 : i32, i32
  }
  func.func @transform_2(%arg0: i32) -> (i32, i32) {
    %c0_i32 = arith.constant 0 : i32
    %c0_i32_0 = arith.constant 0 : i32
    %c0_i32_1 = arith.constant 0 : i32
    return %c0_i32, %c0_i32_0 : i32, i32
  }
  func.func @transform_3(%arg0: i32) -> (i32, i32) {
    %c0_i32 = arith.constant 0 : i32
    %c0_i32_0 = arith.constant 0 : i32
    %c0_i32_1 = arith.constant 0 : i32
    return %c0_i32, %c0_i32_0 : i32, i32
  }
  func.func @transform_4(%arg0: i32) -> (i32, i32) {
    %c0_i32 = arith.constant 0 : i32
    %c0_i32_0 = arith.constant 0 : i32
    %c0_i32_1 = arith.constant 0 : i32
    return %c0_i32, %c0_i32_0 : i32, i32
  }
  func.func @transform_5(%arg0: i32) -> (i32, i32) {
    %c0_i32 = arith.constant 0 : i32
    %c0_i32_0 = arith.constant 0 : i32
    %c0_i32_1 = arith.constant 0 : i32
    return %c0_i32, %c0_i32_0 : i32, i32
  }
}

</mosaic_0001>

<llo_original>
// kernel: _lambda_.6
$region0: #{_lambda_.6}
  #allocation0 [shape = 'u32[]', space=smem, size = 0x4, offset = 0x4, fixed_abs, tag = 'smem constant byte address 0x4 - core index']
  #allocation1 [shape = 'u32[144,128]{1,0:T(1,128)}', space=vmem, size = 0x12000, scoped, tag = 'internal scratch']
  %s0 = inlined_call_operand.vmem [shape: bf16[128,128], index: 0, kind: input, shape index: {}]
  %s1 = inlined_call_operand.vmem [shape: bf16[128,128], index: 1, kind: input, shape index: {}]
  %s2 = inlined_call_operand.vmem [shape: f32[1,128], index: 2, kind: input, shape index: {}]
  %s3 = inlined_call_operand.vmem [shape: f32[1,128], index: 3, kind: input, shape index: {}]
  %s4 = inlined_call_operand.vmem [shape: f32[1,128], index: 4, kind: input, shape index: {}]
  %s5 = inlined_call_operand.vmem [shape: bf16[128,128], index: 5, kind: output, shape index: {}]
  %s6 = sld [smem:[#allocation0]]
  $region30: #{_lambda_.6} parent=0
    _
  %s8 = ssub.s32 1, %s6
  %s9 = scalar_select 0, %s8, %s6
  // Predicated region
  $region2: #{_lambda_.6} parent=0 // pred_check
    _
  $region3: #{_lambda_.6} parent=0 // pred_check_branch
    %11 = sbr.rel (0) target = $region5
  $region4: #{_lambda_.6} parent=0 // pred_region
    _
  $region5: #{_lambda_.6} parent=0 // pred_fallthru
    _
  // Predicated region
  $region6: #{_lambda_.6} parent=0 // pred_check
    _
  $region7: #{_lambda_.6} parent=0 // pred_check_branch
    %13 = sbr.rel (0) target = $region9
  $region8: #{_lambda_.6} parent=0 // pred_region
    _
  $region9: #{_lambda_.6} parent=0 // pred_fallthru
    _
  // Predicated region
  $region10: #{_lambda_.6} parent=0 // pred_check
    _
  $region11: #{_lambda_.6} parent=0 // pred_check_branch
    %15 = sbr.rel (0) target = $region13
  $region12: #{_lambda_.6} parent=0 // pred_region
    _
  $region13: #{_lambda_.6} parent=0 // pred_fallthru
    _
  // Predicated region
  $region14: #{_lambda_.6} parent=0 // pred_check
    _
  $region15: #{_lambda_.6} parent=0 // pred_check_branch
    %17 = sbr.rel (0) target = $region17
  $region16: #{_lambda_.6} parent=0 // pred_region
    _
  $region17: #{_lambda_.6} parent=0 // pred_fallthru
    _
  // Predicated region
  $region18: #{_lambda_.6} parent=0 // pred_check
    _
  $region19: #{_lambda_.6} parent=0 // pred_check_branch
    %19 = sbr.rel (0) target = $region21
  $region20: #{_lambda_.6} parent=0 // pred_region
    _
  $region21: #{_lambda_.6} parent=0 // pred_fallthru
    _
  %v21 = vld [vmem:[%s0] sm:$0xf]
  %v22 = vld [vmem:[%s0 + $0x4] sm:$0xf]
  %v23 = vld [vmem:[%s0 + $0x8] sm:$0xf]
  %v24 = vld [vmem:[%s0 + $0xc] sm:$0xf]
  %v25 = vld [vmem:[%s0 + $0x10] sm:$0xf]
  %v26 = vld [vmem:[%s0 + $0x14] sm:$0xf]
  %v27 = vld [vmem:[%s0 + $0x18] sm:$0xf]
  %v28 = vld [vmem:[%s0 + $0x1c] sm:$0xf]
  %v29 = vld [vmem:[%s0 + $0x20] sm:$0xf]
  %v30 = vld [vmem:[%s0 + $0x24] sm:$0xf]
  %v31 = vld [vmem:[%s0 + $0x28] sm:$0xf]
  %v32 = vld [vmem:[%s0 + $0x2c] sm:$0xf]
  %v33 = vld [vmem:[%s0 + $0x30] sm:$0xf]
  %v34 = vld [vmem:[%s0 + $0x34] sm:$0xf]
  %v35 = vld [vmem:[%s0 + $0x38] sm:$0xf]
  %v36 = vld [vmem:[%s0 + $0x3c] sm:$0xf]
  %v37 = vld [vmem:[%s1] sm:$0xf]
  %v38 = vld [vmem:[%s1 + $0x4] sm:$0xf]
  %v39 = vld [vmem:[%s1 + $0x8] sm:$0xf]
  %v40 = vld [vmem:[%s1 + $0xc] sm:$0xf]
  %v41 = vld [vmem:[%s1 + $0x10] sm:$0xf]
  %v42 = vld [vmem:[%s1 + $0x14] sm:$0xf]
  %v43 = vld [vmem:[%s1 + $0x18] sm:$0xf]
  %v44 = vld [vmem:[%s1 + $0x1c] sm:$0xf]
  %v45 = vld [vmem:[%s1 + $0x20] sm:$0xf]
  %v46 = vld [vmem:[%s1 + $0x24] sm:$0xf]
  %v47 = vld [vmem:[%s1 + $0x28] sm:$0xf]
  %v48 = vld [vmem:[%s1 + $0x2c] sm:$0xf]
  %v49 = vld [vmem:[%s1 + $0x30] sm:$0xf]
  %v50 = vld [vmem:[%s1 + $0x34] sm:$0xf]
  %v51 = vld [vmem:[%s1 + $0x38] sm:$0xf]
  %v52 = vld [vmem:[%s1 + $0x3c] sm:$0xf]
  %v53 = vld [vmem:[%s2] sm:$0x1]
  %v55 = vlaneseq
  %v56 = vshrl.u32 %v55, 7
  %v57 = vsub.s32 0, %v56
  %v58 = vrot.slane %v53, %v57
  %v76 = vunpack.c.l.b16 %v21
  %v77 = vunpack.c.l.b16 %v22
  %v78 = vunpack.c.l.b16 %v23
  %v79 = vunpack.c.l.b16 %v24
  %v80 = vunpack.c.l.b16 %v25
  %v81 = vunpack.c.l.b16 %v26
  %v82 = vunpack.c.l.b16 %v27
  %v83 = vunpack.c.l.b16 %v28
  %v84 = vunpack.c.l.b16 %v29
  %v85 = vunpack.c.l.b16 %v30
  %v86 = vunpack.c.l.b16 %v31
  %v87 = vunpack.c.l.b16 %v32
  %v88 = vunpack.c.l.b16 %v33
  %v89 = vunpack.c.l.b16 %v34
  %v90 = vunpack.c.l.b16 %v35
  %v91 = vunpack.c.l.b16 %v36
  %v92 = vpack.c.b16 %v77, %v76
  %v93 = vpack.c.b16 %v79, %v78
  %v94 = vpack.c.b16 %v81, %v80
  %v95 = vpack.c.b16 %v83, %v82
  %v96 = vpack.c.b16 %v85, %v84
  %v97 = vpack.c.b16 %v87, %v86
  %v98 = vpack.c.b16 %v89, %v88
  %v99 = vpack.c.b16 %v91, %v90
  %v124 = vunpack.c.l.b16 %v37
  %v125 = vunpack.c.l.b16 %v38
  %v126 = vunpack.c.l.b16 %v39
  %v127 = vunpack.c.l.b16 %v40
  %v128 = vunpack.c.l.b16 %v41
  %v129 = vunpack.c.l.b16 %v42
  %v130 = vunpack.c.l.b16 %v43
  %v131 = vunpack.c.l.b16 %v44
  %v132 = vunpack.c.l.b16 %v45
  %v133 = vunpack.c.l.b16 %v46
  %v134 = vunpack.c.l.b16 %v47
  %v135 = vunpack.c.l.b16 %v48
  %v136 = vunpack.c.l.b16 %v49
  %v137 = vunpack.c.l.b16 %v50
  %v138 = vunpack.c.l.b16 %v51
  %v139 = vunpack.c.l.b16 %v52
  %v140 = vpack.c.b16 %v125, %v124
  %v141 = vpack.c.b16 %v127, %v126
  %v142 = vpack.c.b16 %v129, %v128
  %v143 = vpack.c.b16 %v131, %v130
  %v144 = vpack.c.b16 %v133, %v132
  %v145 = vpack.c.b16 %v135, %v134
  %v146 = vpack.c.b16 %v137, %v136
  %v147 = vpack.c.b16 %v139, %v138
  %156 = vmatprep.subr.bf16.mxu0 0
  %157 = vmatpush1.bf16.msra.mxu0 %v140
  %158 = vmatprep.subr.bf16.mxu0 0
  %159 = vmatpush1.bf16.msra.mxu0 %v141
  %160 = vmatprep.subr.bf16.mxu0 0
  %161 = vmatpush1.bf16.msra.mxu0 %v142
  %162 = vmatprep.subr.bf16.mxu0 0
  %163 = vmatpush1.bf16.msra.mxu0 %v143
  %164 = vmatprep.subr.bf16.mxu0 0
  %165 = vmatpush1.bf16.msra.mxu0 %v144
  %166 = vmatprep.subr.bf16.mxu0 0
  %167 = vmatpush1.bf16.msra.mxu0 %v145
  %168 = vmatprep.subr.bf16.mxu0 0
  %169 = vmatpush1.bf16.msra.mxu0 %v146
  %170 = vmatprep.subr.bf16.mxu0 0
  %171 = vmatpush1.bf16.msra.mxu0 %v147
  %172 = vmatprep.subr.bf16.mxu0 0
  %173 = vmatpush1.bf16.msra.mxu0 0
  %174 = vmatprep.subr.bf16.mxu0 0
  %175 = vmatpush1.bf16.msra.mxu0 0
  %176 = vmatprep.subr.bf16.mxu0 0
  %177 = vmatpush1.bf16.msra.mxu0 0
  %178 = vmatprep.subr.bf16.mxu0 0
  %179 = vmatpush1.bf16.msra.mxu0 0
  %180 = vmatprep.subr.bf16.mxu0 0
  %181 = vmatpush1.bf16.msra.mxu0 0
  %182 = vmatprep.subr.bf16.mxu0 0
  %183 = vmatpush1.bf16.msra.mxu0 0
  %184 = vmatprep.subr.bf16.mxu0 0
  %185 = vmatpush1.bf16.msra.mxu0 0
  %186 = vmatprep.subr.bf16.mxu0 0
  %187 = vmatpush1.bf16.msra.mxu0 0
  %188 = vmatprep.mubr.bf16.mxu0 0
  %189 = vmatmul.mubr.bf16.gmra.mrb[0].mxu0 %v92
  %v190 = vpop.f32.mrb[0].mxu0
  %v191 = vadd.f32 %v58, %v190
  %v192 = vpop.f32.mrb[0].mxu0
  %v193 = vpop.f32.mrb[0].mxu0
  %v194 = vadd.f32 %v58, %v193
  %v195 = vpop.f32.mrb[0].mxu0
  %196 = vmatprep.mubr.bf16.mxu0 0
  %197 = vmatmul.mubr.bf16.gmra.mrb[0].mxu0 %v93
  %v198 = vpop.f32.mrb[0].mxu0
  %v199 = vadd.f32 %v58, %v198
  %v200 = vpop.f32.mrb[0].mxu0
  %v201 = vpop.f32.mrb[0].mxu0
  %v202 = vadd.f32 %v58, %v201
  %v203 = vpop.f32.mrb[0].mxu0
  %204 = vmatprep.mubr.bf16.mxu0 0
  %205 = vmatmul.mubr.bf16.gmra.mrb[0].mxu0 %v94
  %v206 = vpop.f32.mrb[0].mxu0
  %v207 = vadd.f32 %v58, %v206
  %v208 = vpop.f32.mrb[0].mxu0
  %v209 = vpop.f32.mrb[0].mxu0
  %v210 = vadd.f32 %v58, %v209
  %v211 = vpop.f32.mrb[0].mxu0
  %212 = vmatprep.mubr.bf16.mxu0 0
  %213 = vmatmul.mubr.bf16.gmra.mrb[0].mxu0 %v95
  %v214 = vpop.f32.mrb[0].mxu0
  %v215 = vadd.f32 %v58, %v214
  %v216 = vpop.f32.mrb[0].mxu0
  %v217 = vpop.f32.mrb[0].mxu0
  %v218 = vadd.f32 %v58, %v217
  %v219 = vpop.f32.mrb[0].mxu0
  %220 = vmatprep.mubr.bf16.mxu0 0
  %221 = vmatmul.mubr.bf16.gmra.mrb[0].mxu0 %v96
  %v222 = vpop.f32.mrb[0].mxu0
  %v223 = vadd.f32 %v58, %v222
  %v224 = vpop.f32.mrb[0].mxu0
  %v225 = vpop.f32.mrb[0].mxu0
  %v226 = vadd.f32 %v58, %v225
  %v227 = vpop.f32.mrb[0].mxu0
  %228 = vmatprep.mubr.bf16.mxu0 0
  %229 = vmatmul.mubr.bf16.gmra.mrb[0].mxu0 %v97
  %v230 = vpop.f32.mrb[0].mxu0
  %v231 = vadd.f32 %v58, %v230
  %v232 = vpop.f32.mrb[0].mxu0
  %v233 = vpop.f32.mrb[0].mxu0
  %v234 = vadd.f32 %v58, %v233
  %v235 = vpop.f32.mrb[0].mxu0
  %236 = vmatprep.mubr.bf16.mxu0 0
  %237 = vmatmul.mubr.bf16.gmra.mrb[0].mxu0 %v98
  %v238 = vpop.f32.mrb[0].mxu0
  %v239 = vadd.f32 %v58, %v238
  %v240 = vpop.f32.mrb[0].mxu0
  %v241 = vpop.f32.mrb[0].mxu0
  %v242 = vadd.f32 %v58, %v241
  %v243 = vpop.f32.mrb[0].mxu0
  %244 = vmatprep.mubr.bf16.mxu0 0
  %245 = vmatmul.mubr.bf16.gmra.mrb[0].mxu0 %v99
  %v246 = vpop.f32.mrb[0].mxu0
  %v247 = vadd.f32 %v58, %v246
  %v248 = vpop.f32.mrb[0].mxu0
  %v249 = vpop.f32.mrb[0].mxu0
  %v250 = vadd.f32 %v58, %v249
  %v251 = vpop.f32.mrb[0].mxu0
  %252 = vdwg.mxu0
  %v253 = vmax.f32 %v191, 0.0
  %v254 = vmax.f32 %v194, 0.0
  %v255 = vmax.f32 %v199, 0.0
  %v256 = vmax.f32 %v202, 0.0
  %v257 = vmax.f32 %v207, 0.0
  %v258 = vmax.f32 %v210, 0.0
  %v259 = vmax.f32 %v215, 0.0
  %v260 = vmax.f32 %v218, 0.0
  %v261 = vmax.f32 %v223, 0.0
  %v262 = vmax.f32 %v226, 0.0
  %v263 = vmax.f32 %v231, 0.0
  %v264 = vmax.f32 %v234, 0.0
  %v265 = vmax.f32 %v239, 0.0
  %v266 = vmax.f32 %v242, 0.0
  %v267 = vmax.f32 %v247, 0.0
  %v268 = vmax.f32 %v250, 0.0
  %v269 = vadd.f32 %v253, %v254
  %v270 = vadd.f32 %v269, %v255
  %v271 = vadd.f32 %v270, %v256
  %v272 = vadd.f32 %v271, %v257
  %v273 = vadd.f32 %v272, %v258
  %v274 = vadd.f32 %v273, %v259
  %v275 = vadd.f32 %v274, %v260
  %v276 = vadd.f32 %v275, %v261
  %v277 = vadd.f32 %v276, %v262
  %v278 = vadd.f32 %v277, %v263
  %v279 = vadd.f32 %v278, %v264
  %v280 = vadd.f32 %v279, %v265
  %v281 = vadd.f32 %v280, %v266
  %v282 = vadd.f32 %v281, %v267
  %v283 = vadd.f32 %v282, %v268
  %v284 = vrot.slane %v283, 4
  %v285 = vadd.f32 %v283, %v284
  %v286 = vrot.slane %v285, 2
  %v287 = vadd.f32 %v285, %v286
  %v288 = vrot.slane %v287, 1
  %v289 = vadd.f32 %v287, %v288
  %v290 = vmul.f32 %v253, %v253
  %v291 = vmul.f32 %v254, %v254
  %v292 = vmul.f32 %v255, %v255
  %v293 = vmul.f32 %v256, %v256
  %v294 = vmul.f32 %v257, %v257
  %v295 = vmul.f32 %v258, %v258
  %v296 = vmul.f32 %v259, %v259
  %v297 = vmul.f32 %v260, %v260
  %v298 = vmul.f32 %v261, %v261
  %v299 = vmul.f32 %v262, %v262
  %v300 = vmul.f32 %v263, %v263
  %v301 = vmul.f32 %v264, %v264
  %v302 = vmul.f32 %v265, %v265
  %v303 = vmul.f32 %v266, %v266
  %v304 = vmul.f32 %v267, %v267
  %v305 = vmul.f32 %v268, %v268
  %v306 = vadd.f32 %v290, %v291
  %v307 = vadd.f32 %v306, %v292
  %v308 = vadd.f32 %v307, %v293
  %v309 = vadd.f32 %v308, %v294
  %v310 = vadd.f32 %v309, %v295
  %v311 = vadd.f32 %v310, %v296
  %v312 = vadd.f32 %v311, %v297
  %v313 = vadd.f32 %v312, %v298
  %v314 = vadd.f32 %v313, %v299
  %v315 = vadd.f32 %v314, %v300
  %v316 = vadd.f32 %v315, %v301
  %v317 = vadd.f32 %v316, %v302
  %v318 = vadd.f32 %v317, %v303
  %v319 = vadd.f32 %v318, %v304
  %v320 = vadd.f32 %v319, %v305
  %v321 = vrot.slane %v320, 4
  %v322 = vadd.f32 %v320, %v321
  %v323 = vrot.slane %v322, 2
  %v324 = vadd.f32 %v322, %v323
  %v325 = vrot.slane %v324, 1
  %v326 = vadd.f32 %v324, %v325
  %v327 = vmul.f32 %v289, 0.0078125
  %v328 = vmul.f32 %v326, 0.0078125
  %v329 = vmul.f32 %v327, %v327
  %v330 = vsub.f32 %v328, %v329
  %v331 = vmax.f32 %v330, 0.0
  %v332 = vadd.f32 %v331, 1e-05
  %v333 = vrsqrt.pop %v332
  %v334 = vld [vmem:[%s3] sm:$0x1]
  %v335 = vmul.f32 %v333, %v334
  %v336 = vld [vmem:[%s4] sm:$0x1]
  %v337 = vmul.f32 %v327, %v335
  %v338 = vsub.f32 %v336, %v337
  %v339 = vlaneseq
  %v340 = vshrl.u32 %v339, 7
  %v341 = vsub.s32 0, %v340
  %v342 = vrot.slane %v335, %v341
  %v343 = vmul.f32 %v253, %v342
  %v344 = vmul.f32 %v254, %v342
  %v345 = vmul.f32 %v255, %v342
  %v346 = vmul.f32 %v256, %v342
  %v347 = vmul.f32 %v257, %v342
  %v348 = vmul.f32 %v258, %v342
  %v349 = vmul.f32 %v259, %v342
  %v350 = vmul.f32 %v260, %v342
  %v351 = vmul.f32 %v261, %v342
  %v352 = vmul.f32 %v262, %v342
  %v353 = vmul.f32 %v263, %v342
  %v354 = vmul.f32 %v264, %v342
  %v355 = vmul.f32 %v265, %v342
  %v356 = vmul.f32 %v266, %v342
  %v357 = vmul.f32 %v267, %v342
  %v358 = vmul.f32 %v268, %v342
  %v360 = vlaneseq
  %v361 = vshrl.u32 %v360, 7
  %v362 = vsub.s32 0, %v361
  %v363 = vrot.slane %v338, %v362
  %v365 = vadd.f32 %v343, %v363
  %v366 = vadd.f32 %v344, %v363
  %v367 = vadd.f32 %v345, %v363
  %v368 = vadd.f32 %v346, %v363
  %v369 = vadd.f32 %v347, %v363
  %v370 = vadd.f32 %v348, %v363
  %v371 = vadd.f32 %v349, %v363
  %v372 = vadd.f32 %v350, %v363
  %v373 = vadd.f32 %v351, %v363
  %v374 = vadd.f32 %v352, %v363
  %v375 = vadd.f32 %v353, %v363
  %v376 = vadd.f32 %v354, %v363
  %v377 = vadd.f32 %v355, %v363
  %v378 = vadd.f32 %v356, %v363
  %v379 = vadd.f32 %v357, %v363
  %v380 = vadd.f32 %v358, %v363
  %v381 = vpack.c.bf16 %v366, %v365
  %v382 = vpack.c.bf16 %v368, %v367
  %v383 = vpack.c.bf16 %v370, %v369
  %v384 = vpack.c.bf16 %v372, %v371
  %v385 = vpack.c.bf16 %v374, %v373
  %v386 = vpack.c.bf16 %v376, %v375
  %v387 = vpack.c.bf16 %v378, %v377
  %v388 = vpack.c.bf16 %v380, %v379
  %v397 = vunpack.c.l.b16 %v381
  %v398 = vunpack.c.h.b16 %v381
  %v399 = vunpack.c.l.b16 %v382
  %v400 = vunpack.c.h.b16 %v382
  %v401 = vunpack.c.l.b16 %v383
  %v402 = vunpack.c.h.b16 %v383
  %v403 = vunpack.c.l.b16 %v384
  %v404 = vunpack.c.h.b16 %v384
  %v405 = vunpack.c.l.b16 %v385
  %v406 = vunpack.c.h.b16 %v385
  %v407 = vunpack.c.l.b16 %v386
  %v408 = vunpack.c.h.b16 %v386
  %v409 = vunpack.c.l.b16 %v387
  %v410 = vunpack.c.h.b16 %v387
  %v411 = vunpack.c.l.b16 %v388
  %v412 = vunpack.c.h.b16 %v388
  %v413 = vpack.c.b16 %v397, %v397
  %v414 = vpack.c.b16 %v398, %v398
  %v415 = vpack.c.b16 %v399, %v399
  %v416 = vpack.c.b16 %v400, %v400
  %v417 = vpack.c.b16 %v401, %v401
  %v418 = vpack.c.b16 %v402, %v402
  %v419 = vpack.c.b16 %v403, %v403
  %v420 = vpack.c.b16 %v404, %v404
  %v421 = vpack.c.b16 %v405, %v405
  %v422 = vpack.c.b16 %v406, %v406
  %v423 = vpack.c.b16 %v407, %v407
  %v424 = vpack.c.b16 %v408, %v408
  %v425 = vpack.c.b16 %v409, %v409
  %v426 = vpack.c.b16 %v410, %v410
  %v427 = vpack.c.b16 %v411, %v411
  %v428 = vpack.c.b16 %v412, %v412
  %445 = vst [vmem:[%s5] sm:$0xf] %v413
  %446 = vst [vmem:[%s5 + $0x4] sm:$0xf] %v414
  %447 = vst [vmem:[%s5 + $0x8] sm:$0xf] %v415
  %448 = vst [vmem:[%s5 + $0xc] sm:$0xf] %v416
  %449 = vst [vmem:[%s5 + $0x10] sm:$0xf] %v417
  %450 = vst [vmem:[%s5 + $0x14] sm:$0xf] %v418
  %451 = vst [vmem:[%s5 + $0x18] sm:$0xf] %v419
  %452 = vst [vmem:[%s5 + $0x1c] sm:$0xf] %v420
  %453 = vst [vmem:[%s5 + $0x20] sm:$0xf] %v421
  %454 = vst [vmem:[%s5 + $0x24] sm:$0xf] %v422
  %455 = vst [vmem:[%s5 + $0x28] sm:$0xf] %v423
  %456 = vst [vmem:[%s5 + $0x2c] sm:$0xf] %v424
  %457 = vst [vmem:[%s5 + $0x30] sm:$0xf] %v425
  %458 = vst [vmem:[%s5 + $0x34] sm:$0xf] %v426
  %459 = vst [vmem:[%s5 + $0x38] sm:$0xf] %v427
  %460 = vst [vmem:[%s5 + $0x3c] sm:$0xf] %v428
  // Predicated region
  $region22: #{_lambda_.6} parent=0 // pred_check
    _
  $region23: #{_lambda_.6} parent=0 // pred_check_branch
    %462 = sbr.rel (0) target = $region25
  $region24: #{_lambda_.6} parent=0 // pred_region
    _
  $region25: #{_lambda_.6} parent=0 // pred_fallthru
    _
  // Predicated region
  $region26: #{_lambda_.6} parent=0 // pred_check
    _
  $region27: #{_lambda_.6} parent=0 // pred_check_branch
    %464 = sbr.rel (0) target = $region29
  $region28: #{_lambda_.6} parent=0 // pred_region
    _
  $region29: #{_lambda_.6} parent=0 // pred_fallthru
    _

// kernel: _lambda_.7
$region0: #{_lambda_.7}
  #allocation0 [shape = 'u32[]', space=smem, size = 0x4, offset = 0x4, fixed_abs, tag = 'smem constant byte address 0x4 - core index']
  #allocation1 [shape = 'u32[144,128]{1,0:T(1,128)}', space=vmem, size = 0x12000, scoped, tag = 'internal scratch']
  %s0 = inlined_call_operand.vmem [shape: bf16[32,896], index: 0, kind: input, shape index: {}]
  %s1 = inlined_call_operand.vmem [shape: bf16[896,128], index: 1, kind: input, shape index: {}]
  %s2 = inlined_call_operand.vmem [shape: f32[1,128], index: 2, kind: input, shape index: {}]
  %s3 = inlined_call_operand.vmem [shape: f32[1,128], index: 3, kind: input, shape index: {}]
  %s4 = inlined_call_operand.vmem [shape: f32[1,128], index: 4, kind: input, shape index: {}]
  %s5 = inlined_call_operand.vmem [shape: bf16[32,128], index: 5, kind: output, shape index: {}]
  %s6 = sld [smem:[#allocation0]]
  $region30: #{_lambda_.7} parent=0
    _
  %s8 = ssub.s32 1, %s6
  %s9 = scalar_select 0, %s8, %s6
  // Predicated region
  $region2: #{_lambda_.7} parent=0 // pred_check
    _
  $region3: #{_lambda_.7} parent=0 // pred_check_branch
    %11 = sbr.rel (0) target = $region5
  $region4: #{_lambda_.7} parent=0 // pred_region
    _
  $region5: #{_lambda_.7} parent=0 // pred_fallthru
    _
  // Predicated region
  $region6: #{_lambda_.7} parent=0 // pred_check
    _
  $region7: #{_lambda_.7} parent=0 // pred_check_branch
    %13 = sbr.rel (0) target = $region9
  $region8: #{_lambda_.7} parent=0 // pred_region
    _
  $region9: #{_lambda_.7} parent=0 // pred_fallthru
    _
  // Predicated region
  $region10: #{_lambda_.7} parent=0 // pred_check
    _
  $region11: #{_lambda_.7} parent=0 // pred_check_branch
    %15 = sbr.rel (0) target = $region13
  $region12: #{_lambda_.7} parent=0 // pred_region
    _
  $region13: #{_lambda_.7} parent=0 // pred_fallthru
    _
  // Predicated region
  $region14: #{_lambda_.7} parent=0 // pred_check
    _
  $region15: #{_lambda_.7} parent=0 // pred_check_branch
    %17 = sbr.rel (0) target = $region17
  $region16: #{_lambda_.7} parent=0 // pred_region
    _
  $region17: #{_lambda_.7} parent=0 // pred_fallthru
    _
  // Predicated region
  $region18: #{_lambda_.7} parent=0 // pred_check
    _
  $region19: #{_lambda_.7} parent=0 // pred_check_branch
    %19 = sbr.rel (0) target = $region21
  $region20: #{_lambda_.7} parent=0 // pred_region
    _
  $region21: #{_lambda_.7} parent=0 // pred_fallthru
    _
  %v21 = vld [vmem:[%s0] sm:$0xff]
  %v22 = vld [vmem:[%s0 + $0x8] sm:$0xff]
  %v23 = vld [vmem:[%s0 + $0x10] sm:$0xff]
  %v24 = vld [vmem:[%s0 + $0x18] sm:$0xf]
  %v25 = vld [vmem:[%s0 + $0x1c] sm:$0xff]
  %v26 = vld [vmem:[%s0 + $0x24] sm:$0xff]
  %v27 = vld [vmem:[%s0 + $0x2c] sm:$0xff]
  %v28 = vld [vmem:[%s0 + $0x34] sm:$0xf]
  %v29 = vld [vmem:[%s0 + $0x38] sm:$0xff]
  %v30 = vld [vmem:[%s0 + $0x40] sm:$0xff]
  %v31 = vld [vmem:[%s0 + $0x48] sm:$0xff]
  %v32 = vld [vmem:[%s0 + $0x50] sm:$0xf]
  %v33 = vld [vmem:[%s0 + $0x54] sm:$0xff]
  %v34 = vld [vmem:[%s0 + $0x5c] sm:$0xff]
  %v35 = vld [vmem:[%s0 + $0x64] sm:$0xff]
  %v36 = vld [vmem:[%s0 + $0x6c] sm:$0xf]
  %v37 = vld [vmem:[%s1] sm:$0xf]
  %v38 = vld [vmem:[%s1 + $0x4] sm:$0xf]
  %v39 = vld [vmem:[%s1 + $0x8] sm:$0xf]
  %v40 = vld [vmem:[%s1 + $0xc] sm:$0xf]
  %v41 = vld [vmem:[%s1 + $0x10] sm:$0xf]
  %v42 = vld [vmem:[%s1 + $0x14] sm:$0xf]
  %v43 = vld [vmem:[%s1 + $0x18] sm:$0xf]
  %v44 = vld [vmem:[%s1 + $0x1c] sm:$0xf]
  %v45 = vld [vmem:[%s1 + $0x20] sm:$0xf]
  %v46 = vld [vmem:[%s1 + $0x24] sm:$0xf]
  %v47 = vld [vmem:[%s1 + $0x28] sm:$0xf]
  %v48 = vld [vmem:[%s1 + $0x2c] sm:$0xf]
  %v49 = vld [vmem:[%s1 + $0x30] sm:$0xf]
  %v50 = vld [vmem:[%s1 + $0x34] sm:$0xf]
  %v51 = vld [vmem:[%s1 + $0x38] sm:$0xf]
  %v52 = vld [vmem:[%s1 + $0x3c] sm:$0xf]
  %v53 = vld [vmem:[%s1 + $0x40] sm:$0xf]
  %v54 = vld [vmem:[%s1 + $0x44] sm:$0xf]
  %v55 = vld [vmem:[%s1 + $0x48] sm:$0xf]
  %v56 = vld [vmem:[%s1 + $0x4c] sm:$0xf]
  %v57 = vld [vmem:[%s1 + $0x50] sm:$0xf]
  %v58 = vld [vmem:[%s1 + $0x54] sm:$0xf]
  %v59 = vld [vmem:[%s1 + $0x58] sm:$0xf]
  %v60 = vld [vmem:[%s1 + $0x5c] sm:$0xf]
  %v61 = vld [vmem:[%s1 + $0x60] sm:$0xf]
  %v62 = vld [vmem:[%s1 + $0x64] sm:$0xf]
  %v63 = vld [vmem:[%s1 + $0x68] sm:$0xf]
  %v64 = vld [vmem:[%s1 + $0x6c] sm:$0xf]
  %v65 = vld [vmem:[%s1 + $0x70] sm:$0xf]
  %v66 = vld [vmem:[%s1 + $0x74] sm:$0xf]
  %v67 = vld [vmem:[%s1 + $0x78] sm:$0xf]
  %v68 = vld [vmem:[%s1 + $0x7c] sm:$0xf]
  %v69 = vld [vmem:[%s1 + $0x80] sm:$0xf]
  %v70 = vld [vmem:[%s1 + $0x84] sm:$0xf]
  %v71 = vld [vmem:[%s1 + $0x88] sm:$0xf]
  %v72 = vld [vmem:[%s1 + $0x8c] sm:$0xf]
  %v73 = vld [vmem:[%s1 + $0x90] sm:$0xf]
  %v74 = vld [vmem:[%s1 + $0x94] sm:$0xf]
  %v75 = vld [vmem:[%s1 + $0x98] sm:$0xf]
  %v76 = vld [vmem:[%s1 + $0x9c] sm:$0xf]
  %v77 = vld [vmem:[%s1 + $0xa0] sm:$0xf]
  %v78 = vld [vmem:[%s1 + $0xa4] sm:$0xf]
  %v79 = vld [vmem:[%s1 + $0xa8] sm:$0xf]
  %v80 = vld [vmem:[%s1 + $0xac] sm:$0xf]
  %v81 = vld [vmem:[%s1 + $0xb0] sm:$0xf]
  %v82 = vld [vmem:[%s1 + $0xb4] sm:$0xf]
  %v83 = vld [vmem:[%s1 + $0xb8] sm:$0xf]
  %v84 = vld [vmem:[%s1 + $0xbc] sm:$0xf]
  %v85 = vld [vmem:[%s1 + $0xc0] sm:$0xf]
  %v86 = vld [vmem:[%s1 + $0xc4] sm:$0xf]
  %v87 = vld [vmem:[%s1 + $0xc8] sm:$0xf]
  %v88 = vld [vmem:[%s1 + $0xcc] sm:$0xf]
  %v89 = vld [vmem:[%s1 + $0xd0] sm:$0xf]
  %v90 = vld [vmem:[%s1 + $0xd4] sm:$0xf]
  %v91 = vld [vmem:[%s1 + $0xd8] sm:$0xf]
  %v92 = vld [vmem:[%s1 + $0xdc] sm:$0xf]
  %v93 = vld [vmem:[%s1 + $0xe0] sm:$0xf]
  %v94 = vld [vmem:[%s1 + $0xe4] sm:$0xf]
  %v95 = vld [vmem:[%s1 + $0xe8] sm:$0xf]
  %v96 = vld [vmem:[%s1 + $0xec] sm:$0xf]
  %v97 = vld [vmem:[%s1 + $0xf0] sm:$0xf]
  %v98 = vld [vmem:[%s1 + $0xf4] sm:$0xf]
  %v99 = vld [vmem:[%s1 + $0xf8] sm:$0xf]
  %v100 = vld [vmem:[%s1 + $0xfc] sm:$0xf]
  %v101 = vld [vmem:[%s1 + $0x100] sm:$0xf]
  %v102 = vld [vmem:[%s1 + $0x104] sm:$0xf]
  %v103 = vld [vmem:[%s1 + $0x108] sm:$0xf]
  %v104 = vld [vmem:[%s1 + $0x10c] sm:$0xf]
  %v105 = vld [vmem:[%s1 + $0x110] sm:$0xf]
  %v106 = vld [vmem:[%s1 + $0x114] sm:$0xf]
  %v107 = vld [vmem:[%s1 + $0x118] sm:$0xf]
  %v108 = vld [vmem:[%s1 + $0x11c] sm:$0xf]
  %v109 = vld [vmem:[%s1 + $0x120] sm:$0xf]
  %v110 = vld [vmem:[%s1 + $0x124] sm:$0xf]
  %v111 = vld [vmem:[%s1 + $0x128] sm:$0xf]
  %v112 = vld [vmem:[%s1 + $0x12c] sm:$0xf]
  %v113 = vld [vmem:[%s1 + $0x130] sm:$0xf]
  %v114 = vld [vmem:[%s1 + $0x134] sm:$0xf]
  %v115 = vld [vmem:[%s1 + $0x138] sm:$0xf]
  %v116 = vld [vmem:[%s1 + $0x13c] sm:$0xf]
  %v117 = vld [vmem:[%s1 + $0x140] sm:$0xf]
  %v118 = vld [vmem:[%s1 + $0x144] sm:$0xf]
  %v119 = vld [vmem:[%s1 + $0x148] sm:$0xf]
  %v120 = vld [vmem:[%s1 + $0x14c] sm:$0xf]
  %v121 = vld [vmem:[%s1 + $0x150] sm:$0xf]
  %v122 = vld [vmem:[%s1 + $0x154] sm:$0xf]
  %v123 = vld [vmem:[%s1 + $0x158] sm:$0xf]
  %v124 = vld [vmem:[%s1 + $0x15c] sm:$0xf]
  %v125 = vld [vmem:[%s1 + $0x160] sm:$0xf]
  %v126 = vld [vmem:[%s1 + $0x164] sm:$0xf]
  %v127 = vld [vmem:[%s1 + $0x168] sm:$0xf]
  %v128 = vld [vmem:[%s1 + $0x16c] sm:$0xf]
  %v129 = vld [vmem:[%s1 + $0x170] sm:$0xf]
  %v130 = vld [vmem:[%s1 + $0x174] sm:$0xf]
  %v131 = vld [vmem:[%s1 + $0x178] sm:$0xf]
  %v132 = vld [vmem:[%s1 + $0x17c] sm:$0xf]
  %v133 = vld [vmem:[%s1 + $0x180] sm:$0xf]
  %v134 = vld [vmem:[%s1 + $0x184] sm:$0xf]
  %v135 = vld [vmem:[%s1 + $0x188] sm:$0xf]
  %v136 = vld [vmem:[%s1 + $0x18c] sm:$0xf]
  %v137 = vld [vmem:[%s1 + $0x190] sm:$0xf]
  %v138 = vld [vmem:[%s1 + $0x194] sm:$0xf]
  %v139 = vld [vmem:[%s1 + $0x198] sm:$0xf]
  %v140 = vld [vmem:[%s1 + $0x19c] sm:$0xf]
  %v141 = vld [vmem:[%s1 + $0x1a0] sm:$0xf]
  %v142 = vld [vmem:[%s1 + $0x1a4] sm:$0xf]
  %v143 = vld [vmem:[%s1 + $0x1a8] sm:$0xf]
  %v144 = vld [vmem:[%s1 + $0x1ac] sm:$0xf]
  %v145 = vld [vmem:[%s1 + $0x1b0] sm:$0xf]
  %v146 = vld [vmem:[%s1 + $0x1b4] sm:$0xf]
  %v147 = vld [vmem:[%s1 + $0x1b8] sm:$0xf]
  %v148 = vld [vmem:[%s1 + $0x1bc] sm:$0xf]
  %v149 = vld [vmem:[%s2] sm:$0x1]
  %v151 = vlaneseq
  %v152 = vshrl.u32 %v151, 7
  %v153 = vsub.s32 0, %v152
  %v154 = vrot.slane %v149, %v153
  %v172 = vunpack.c.l.b16 %v21
  %v173 = vunpack.c.h.b16 %v21
  %v174 = vunpack.c.l.b16 %v22
  %v175 = vunpack.c.h.b16 %v22
  %v176 = vunpack.c.l.b16 %v23
  %v177 = vunpack.c.h.b16 %v23
  %v178 = vunpack.c.l.b16 %v24
  %v179 = vunpack.c.l.b16 %v25
  %v180 = vunpack.c.h.b16 %v25
  %v181 = vunpack.c.l.b16 %v26
  %v182 = vunpack.c.h.b16 %v26
  %v183 = vunpack.c.l.b16 %v27
  %v184 = vunpack.c.h.b16 %v27
  %v185 = vunpack.c.l.b16 %v28
  %v186 = vunpack.c.l.b16 %v29
  %v187 = vunpack.c.h.b16 %v29
  %v188 = vunpack.c.l.b16 %v30
  %v189 = vunpack.c.h.b16 %v30
  %v190 = vunpack.c.l.b16 %v31
  %v191 = vunpack.c.h.b16 %v31
  %v192 = vunpack.c.l.b16 %v32
  %v193 = vunpack.c.l.b16 %v33
  %v194 = vunpack.c.h.b16 %v33
  %v195 = vunpack.c.l.b16 %v34
  %v196 = vunpack.c.h.b16 %v34
  %v197 = vunpack.c.l.b16 %v35
  %v198 = vunpack.c.h.b16 %v35
  %v199 = vunpack.c.l.b16 %v36
  %v200 = vpack.c.b16 %v179, %v172
  %v201 = vpack.c.b16 %v180, %v173
  %v202 = vpack.c.b16 %v181, %v174
  %v203 = vpack.c.b16 %v182, %v175
  %v204 = vpack.c.b16 %v183, %v176
  %v205 = vpack.c.b16 %v184, %v177
  %v206 = vpack.c.b16 %v185, %v178
  %v207 = vpack.c.b16 %v193, %v186
  %v208 = vpack.c.b16 %v194, %v187
  %v209 = vpack.c.b16 %v195, %v188
  %v210 = vpack.c.b16 %v196, %v189
  %v211 = vpack.c.b16 %v197, %v190
  %v212 = vpack.c.b16 %v198, %v191
  %v213 = vpack.c.b16 %v199, %v192
  %v340 = vunpack.c.l.b16 %v37
  %v341 = vunpack.c.l.b16 %v38
  %v342 = vunpack.c.l.b16 %v39
  %v343 = vunpack.c.l.b16 %v40
  %v344 = vunpack.c.l.b16 %v41
  %v345 = vunpack.c.l.b16 %v42
  %v346 = vunpack.c.l.b16 %v43
  %v347 = vunpack.c.l.b16 %v44
  %v348 = vunpack.c.l.b16 %v45
  %v349 = vunpack.c.l.b16 %v46
  %v350 = vunpack.c.l.b16 %v47
  %v351 = vunpack.c.l.b16 %v48
  %v352 = vunpack.c.l.b16 %v49
  %v353 = vunpack.c.l.b16 %v50
  %v354 = vunpack.c.l.b16 %v51
  %v355 = vunpack.c.l.b16 %v52
  %v356 = vunpack.c.l.b16 %v53
  %v357 = vunpack.c.l.b16 %v54
  %v358 = vunpack.c.l.b16 %v55
  %v359 = vunpack.c.l.b16 %v56
  %v360 = vunpack.c.l.b16 %v57
  %v361 = vunpack.c.l.b16 %v58
  %v362 = vunpack.c.l.b16 %v59
  %v363 = vunpack.c.l.b16 %v60
  %v364 = vunpack.c.l.b16 %v61
  %v365 = vunpack.c.l.b16 %v62
  %v366 = vunpack.c.l.b16 %v63
  %v367 = vunpack.c.l.b16 %v64
  %v368 = vunpack.c.l.b16 %v65
  %v369 = vunpack.c.l.b16 %v66
  %v370 = vunpack.c.l.b16 %v67
  %v371 = vunpack.c.l.b16 %v68
  %v372 = vunpack.c.l.b16 %v69
  %v373 = vunpack.c.l.b16 %v70
  %v374 = vunpack.c.l.b16 %v71
  %v375 = vunpack.c.l.b16 %v72
  %v376 = vunpack.c.l.b16 %v73
  %v377 = vunpack.c.l.b16 %v74
  %v378 = vunpack.c.l.b16 %v75
  %v379 = vunpack.c.l.b16 %v76
  %v380 = vunpack.c.l.b16 %v77
  %v381 = vunpack.c.l.b16 %v78
  %v382 = vunpack.c.l.b16 %v79
  %v383 = vunpack.c.l.b16 %v80
  %v384 = vunpack.c.l.b16 %v81
  %v385 = vunpack.c.l.b16 %v82
  %v386 = vunpack.c.l.b16 %v83
  %v387 = vunpack.c.l.b16 %v84
  %v388 = vunpack.c.l.b16 %v85
  %v389 = vunpack.c.l.b16 %v86
  %v390 = vunpack.c.l.b16 %v87
  %v391 = vunpack.c.l.b16 %v88
  %v392 = vunpack.c.l.b16 %v89
  %v393 = vunpack.c.l.b16 %v90
  %v394 = vunpack.c.l.b16 %v91
  %v395 = vunpack.c.l.b16 %v92
  %v396 = vunpack.c.l.b16 %v93
  %v397 = vunpack.c.l.b16 %v94
  %v398 = vunpack.c.l.b16 %v95
  %v399 = vunpack.c.l.b16 %v96
  %v400 = vunpack.c.l.b16 %v97
  %v401 = vunpack.c.l.b16 %v98
  %v402 = vunpack.c.l.b16 %v99
  %v403 = vunpack.c.l.b16 %v100
  %v404 = vunpack.c.l.b16 %v101
  %v405 = vunpack.c.l.b16 %v102
  %v406 = vunpack.c.l.b16 %v103
  %v407 = vunpack.c.l.b16 %v104
  %v408 = vunpack.c.l.b16 %v105
  %v409 = vunpack.c.l.b16 %v106
  %v410 = vunpack.c.l.b16 %v107
  %v411 = vunpack.c.l.b16 %v108
  %v412 = vunpack.c.l.b16 %v109
  %v413 = vunpack.c.l.b16 %v110
  %v414 = vunpack.c.l.b16 %v111
  %v415 = vunpack.c.l.b16 %v112
  %v416 = vunpack.c.l.b16 %v113
  %v417 = vunpack.c.l.b16 %v114
  %v418 = vunpack.c.l.b16 %v115
  %v419 = vunpack.c.l.b16 %v116
  %v420 = vunpack.c.l.b16 %v117
  %v421 = vunpack.c.l.b16 %v118
  %v422 = vunpack.c.l.b16 %v119
  %v423 = vunpack.c.l.b16 %v120
  %v424 = vunpack.c.l.b16 %v121
  %v425 = vunpack.c.l.b16 %v122
  %v426 = vunpack.c.l.b16 %v123
  %v427 = vunpack.c.l.b16 %v124
  %v428 = vunpack.c.l.b16 %v125
  %v429 = vunpack.c.l.b16 %v126
  %v430 = vunpack.c.l.b16 %v127
  %v431 = vunpack.c.l.b16 %v128
  %v432 = vunpack.c.l.b16 %v129
  %v433 = vunpack.c.l.b16 %v130
  %v434 = vunpack.c.l.b16 %v131
  %v435 = vunpack.c.l.b16 %v132
  %v436 = vunpack.c.l.b16 %v133
  %v437 = vunpack.c.l.b16 %v134
  %v438 = vunpack.c.l.b16 %v135
  %v439 = vunpack.c.l.b16 %v136
  %v440 = vunpack.c.l.b16 %v137
  %v441 = vunpack.c.l.b16 %v138
  %v442 = vunpack.c.l.b16 %v139
  %v443 = vunpack.c.l.b16 %v140
  %v444 = vunpack.c.l.b16 %v141
  %v445 = vunpack.c.l.b16 %v142
  %v446 = vunpack.c.l.b16 %v143
  %v447 = vunpack.c.l.b16 %v144
  %v448 = vunpack.c.l.b16 %v145
  %v449 = vunpack.c.l.b16 %v146
  %v450 = vunpack.c.l.b16 %v147
  %v451 = vunpack.c.l.b16 %v148
  %v452 = vpack.c.b16 %v341, %v340
  %v453 = vpack.c.b16 %v343, %v342
  %v454 = vpack.c.b16 %v345, %v344
  %v455 = vpack.c.b16 %v347, %v346
  %v456 = vpack.c.b16 %v349, %v348
  %v457 = vpack.c.b16 %v351, %v350
  %v458 = vpack.c.b16 %v353, %v352
  %v459 = vpack.c.b16 %v355, %v354
  %v460 = vpack.c.b16 %v357, %v356
  %v461 = vpack.c.b16 %v359, %v358
  %v462 = vpack.c.b16 %v361, %v360
  %v463 = vpack.c.b16 %v363, %v362
  %v464 = vpack.c.b16 %v365, %v364
  %v465 = vpack.c.b16 %v367, %v366
  %v466 = vpack.c.b16 %v369, %v368
  %v467 = vpack.c.b16 %v371, %v370
  %v468 = vpack.c.b16 %v373, %v372
  %v469 = vpack.c.b16 %v375, %v374
  %v470 = vpack.c.b16 %v377, %v376
  %v471 = vpack.c.b16 %v379, %v378
  %v472 = vpack.c.b16 %v381, %v380
  %v473 = vpack.c.b16 %v383, %v382
  %v474 = vpack.c.b16 %v385, %v384
  %v475 = vpack.c.b16 %v387, %v386
  %v476 = vpack.c.b16 %v389, %v388
  %v477 = vpack.c.b16 %v391, %v390
  %v478 = vpack.c.b16 %v393, %v392
  %v479 = vpack.c.b16 %v395, %v394
  %v480 = vpack.c.b16 %v397, %v396
  %v481 = vpack.c.b16 %v399, %v398
  %v482 = vpack.c.b16 %v401, %v400
  %v483 = vpack.c.b16 %v403, %v402
  %v484 = vpack.c.b16 %v405, %v404
  %v485 = vpack.c.b16 %v407, %v406
  %v486 = vpack.c.b16 %v409, %v408
  %v487 = vpack.c.b16 %v411, %v410
  %v488 = vpack.c.b16 %v413, %v412
  %v489 = vpack.c.b16 %v415, %v414
  %v490 = vpack.c.b16 %v417, %v416
  %v491 = vpack.c.b16 %v419, %v418
  %v492 = vpack.c.b16 %v421, %v420
  %v493 = vpack.c.b16 %v423, %v422
  %v494 = vpack.c.b16 %v425, %v424
  %v495 = vpack.c.b16 %v427, %v426
  %v496 = vpack.c.b16 %v429, %v428
  %v497 = vpack.c.b16 %v431, %v430
  %v498 = vpack.c.b16 %v433, %v432
  %v499 = vpack.c.b16 %v435, %v434
  %v500 = vpack.c.b16 %v437, %v436
  %v501 = vpack.c.b16 %v439, %v438
  %v502 = vpack.c.b16 %v441, %v440
  %v503 = vpack.c.b16 %v443, %v442
  %v504 = vpack.c.b16 %v445, %v444
  %v505 = vpack.c.b16 %v447, %v446
  %v506 = vpack.c.b16 %v449, %v448
  %v507 = vpack.c.b16 %v451, %v450
  %564 = vmatprep.subr.bf16.mxu0 0
  %565 = vmatpush1.bf16.msra.mxu0 %v452
  %566 = vmatprep.subr.bf16.mxu0 0
  %567 = vmatpush1.bf16.msra.mxu0 %v453
  %568 = vmatprep.subr.bf16.mxu0 0
  %569 = vmatpush1.bf16.msra.mxu0 %v454
  %570 = vmatprep.subr.bf16.mxu0 0
  %571 = vmatpush1.bf16.msra.mxu0 %v455
  %572 = vmatprep.subr.bf16.mxu0 0
  %573 = vmatpush1.bf16.msra.mxu0 %v456
  %574 = vmatprep.subr.bf16.mxu0 0
  %575 = vmatpush1.bf16.msra.mxu0 %v457
  %576 = vmatprep.subr.bf16.mxu0 0
  %577 = vmatpush1.bf16.msra.mxu0 %v458
  %578 = vmatprep.subr.bf16.mxu0 0
  %579 = vmatpush1.bf16.msra.mxu0 %v459
  %580 = vmatprep.subr.bf16.mxu0 0
  %581 = vmatpush1.bf16.msra.mxu0 %v460
  %582 = vmatprep.subr.bf16.mxu0 0
  %583 = vmatpush1.bf16.msra.mxu0 %v461
  %584 = vmatprep.subr.bf16.mxu0 0
  %585 = vmatpush1.bf16.msra.mxu0 %v462
  %586 = vmatprep.subr.bf16.mxu0 0
  %587 = vmatpush1.bf16.msra.mxu0 %v463
  %588 = vmatprep.subr.bf16.mxu0 0
  %589 = vmatpush1.bf16.msra.mxu0 %v464
  %590 = vmatprep.subr.bf16.mxu0 0
  %591 = vmatpush1.bf16.msra.mxu0 %v465
  %592 = vmatprep.subr.bf16.mxu0 0
  %593 = vmatpush1.bf16.msra.mxu0 %v466
  %594 = vmatprep.subr.bf16.mxu0 0
  %595 = vmatpush1.bf16.msra.mxu0 %v467
  %596 = vmatprep.mubr.bf16.mxu0 %v201
  %597 = vmatmul.mubr.bf16.gmra.mrb[0].mxu0 %v200
  %v598 = vpop.f32.mrb[0].mxu0
  %v599 = vadd.f32 %v154, %v598
  %v600 = vpop.f32.mrb[0].mxu0
  %v601 = vpop.f32.mrb[0].mxu0
  %v602 = vadd.f32 %v154, %v601
  %v603 = vpop.f32.mrb[0].mxu0
  %604 = vmatprep.mubr.bf16.mxu0 %v208
  %605 = vmatmul.mubr.bf16.gmra.mrb[0].mxu0 %v207
  %v606 = vpop.f32.mrb[0].mxu0
  %v607 = vadd.f32 %v154, %v606
  %v608 = vpop.f32.mrb[0].mxu0
  %v609 = vpop.f32.mrb[0].mxu0
  %v610 = vadd.f32 %v154, %v609
  %v611 = vpop.f32.mrb[0].mxu0
  %612 = vdwg.mxu0
  %613 = vmatprep.subr.bf16.mxu0 0
  %614 = vmatpush1.bf16.msra.mxu0 %v468
  %615 = vmatprep.subr.bf16.mxu0 0
  %616 = vmatpush1.bf16.msra.mxu0 %v469
  %617 = vmatprep.subr.bf16.mxu0 0
  %618 = vmatpush1.bf16.msra.mxu0 %v470
  %619 = vmatprep.subr.bf16.mxu0 0
  %620 = vmatpush1.bf16.msra.mxu0 %v471
  %621 = vmatprep.subr.bf16.mxu0 0
  %622 = vmatpush1.bf16.msra.mxu0 %v472
  %623 = vmatprep.subr.bf16.mxu0 0
  %624 = vmatpush1.bf16.msra.mxu0 %v473
  %625 = vmatprep.subr.bf16.mxu0 0
  %626 = vmatpush1.bf16.msra.mxu0 %v474
  %627 = vmatprep.subr.bf16.mxu0 0
  %628 = vmatpush1.bf16.msra.mxu0 %v475
  %629 = vmatprep.subr.bf16.mxu0 0
  %630 = vmatpush1.bf16.msra.mxu0 %v476
  %631 = vmatprep.subr.bf16.mxu0 0
  %632 = vmatpush1.bf16.msra.mxu0 %v477
  %633 = vmatprep.subr.bf16.mxu0 0
  %634 = vmatpush1.bf16.msra.mxu0 %v478
  %635 = vmatprep.subr.bf16.mxu0 0
  %636 = vmatpush1.bf16.msra.mxu0 %v479
  %637 = vmatprep.subr.bf16.mxu0 0
  %638 = vmatpush1.bf16.msra.mxu0 %v480
  %639 = vmatprep.subr.bf16.mxu0 0
  %640 = vmatpush1.bf16.msra.mxu0 %v481
  %641 = vmatprep.subr.bf16.mxu0 0
  %642 = vmatpush1.bf16.msra.mxu0 %v482
  %643 = vmatprep.subr.bf16.mxu0 0
  %644 = vmatpush1.bf16.msra.mxu0 %v483
  %645 = vmatprep.mubr.bf16.mxu0 %v203
  %646 = vmatmul.mubr.bf16.gmra.mrb[0].mxu0 %v202
  %v647 = vpop.f32.mrb[0].mxu0
  %v648 = vadd.f32 %v599, %v647
  %v649 = vpop.f32.mrb[0].mxu0
  %v650 = vpop.f32.mrb[0].mxu0
  %v651 = vadd.f32 %v602, %v650
  %v652 = vpop.f32.mrb[0].mxu0
  %653 = vmatprep.mubr.bf16.mxu0 %v210
  %654 = vmatmul.mubr.bf16.gmra.mrb[0].mxu0 %v209
  %v655 = vpop.f32.mrb[0].mxu0
  %v656 = vadd.f32 %v607, %v655
  %v657 = vpop.f32.mrb[0].mxu0
  %v658 = vpop.f32.mrb[0].mxu0
  %v659 = vadd.f32 %v610, %v658
  %v660 = vpop.f32.mrb[0].mxu0
  %661 = vdwg.mxu0
  %662 = vmatprep.subr.bf16.mxu0 0
  %663 = vmatpush1.bf16.msra.mxu0 %v484
  %664 = vmatprep.subr.bf16.mxu0 0
  %665 = vmatpush1.bf16.msra.mxu0 %v485
  %666 = vmatprep.subr.bf16.mxu0 0
  %667 = vmatpush1.bf16.msra.mxu0 %v486
  %668 = vmatprep.subr.bf16.mxu0 0
  %669 = vmatpush1.bf16.msra.mxu0 %v487
  %670 = vmatprep.subr.bf16.mxu0 0
  %671 = vmatpush1.bf16.msra.mxu0 %v488
  %672 = vmatprep.subr.bf16.mxu0 0
  %673 = vmatpush1.bf16.msra.mxu0 %v489
  %674 = vmatprep.subr.bf16.mxu0 0
  %675 = vmatpush1.bf16.msra.mxu0 %v490
  %676 = vmatprep.subr.bf16.mxu0 0
  %677 = vmatpush1.bf16.msra.mxu0 %v491
  %678 = vmatprep.subr.bf16.mxu0 0
  %679 = vmatpush1.bf16.msra.mxu0 %v492
  %680 = vmatprep.subr.bf16.mxu0 0
  %681 = vmatpush1.bf16.msra.mxu0 %v493
  %682 = vmatprep.subr.bf16.mxu0 0
  %683 = vmatpush1.bf16.msra.mxu0 %v494
  %684 = vmatprep.subr.bf16.mxu0 0
  %685 = vmatpush1.bf16.msra.mxu0 %v495
  %686 = vmatprep.subr.bf16.mxu0 0
  %687 = vmatpush1.bf16.msra.mxu0 %v496
  %688 = vmatprep.subr.bf16.mxu0 0
  %689 = vmatpush1.bf16.msra.mxu0 %v497
  %690 = vmatprep.subr.bf16.mxu0 0
  %691 = vmatpush1.bf16.msra.mxu0 %v498
  %692 = vmatprep.subr.bf16.mxu0 0
  %693 = vmatpush1.bf16.msra.mxu0 %v499
  %694 = vmatprep.mubr.bf16.mxu0 %v205
  %695 = vmatmul.mubr.bf16.gmra.mrb[0].mxu0 %v204
  %v696 = vpop.f32.mrb[0].mxu0
  %v697 = vadd.f32 %v648, %v696
  %v698 = vpop.f32.mrb[0].mxu0
  %v699 = vpop.f32.mrb[0].mxu0
  %v700 = vadd.f32 %v651, %v699
  %v701 = vpop.f32.mrb[0].mxu0
  %702 = vmatprep.mubr.bf16.mxu0 %v212
  %703 = vmatmul.mubr.bf16.gmra.mrb[0].mxu0 %v211
  %v704 = vpop.f32.mrb[0].mxu0
  %v705 = vadd.f32 %v656, %v704
  %v706 = vpop.f32.mrb[0].mxu0
  %v707 = vpop.f32.mrb[0].mxu0
  %v708 = vadd.f32 %v659, %v707
  %v709 = vpop.f32.mrb[0].mxu0
  %710 = vdwg.mxu0
  %711 = vmatprep.subr.bf16.mxu0 0
  %712 = vmatpush1.bf16.msra.mxu0 %v500
  %713 = vmatprep.subr.bf16.mxu0 0
  %714 = vmatpush1.bf16.msra.mxu0 %v501
  %715 = vmatprep.subr.bf16.mxu0 0
  %716 = vmatpush1.bf16.msra.mxu0 %v502
  %717 = vmatprep.subr.bf16.mxu0 0
  %718 = vmatpush1.bf16.msra.mxu0 %v503
  %719 = vmatprep.subr.bf16.mxu0 0
  %720 = vmatpush1.bf16.msra.mxu0 %v504
  %721 = vmatprep.subr.bf16.mxu0 0
  %722 = vmatpush1.bf16.msra.mxu0 %v505
  %723 = vmatprep.subr.bf16.mxu0 0
  %724 = vmatpush1.bf16.msra.mxu0 %v506
  %725 = vmatprep.subr.bf16.mxu0 0
  %726 = vmatpush1.bf16.msra.mxu0 %v507
  %727 = vmatprep.subr.bf16.mxu0 0
  %728 = vmatpush1.bf16.msra.mxu0 0
  %729 = vmatprep.subr.bf16.mxu0 0
  %730 = vmatpush1.bf16.msra.mxu0 0
  %731 = vmatprep.subr.bf16.mxu0 0
  %732 = vmatpush1.bf16.msra.mxu0 0
  %733 = vmatprep.subr.bf16.mxu0 0
  %734 = vmatpush1.bf16.msra.mxu0 0
  %735 = vmatprep.subr.bf16.mxu0 0
  %736 = vmatpush1.bf16.msra.mxu0 0
  %737 = vmatprep.subr.bf16.mxu0 0
  %738 = vmatpush1.bf16.msra.mxu0 0
  %739 = vmatprep.subr.bf16.mxu0 0
  %740 = vmatpush1.bf16.msra.mxu0 0
  %741 = vmatprep.subr.bf16.mxu0 0
  %742 = vmatpush1.bf16.msra.mxu0 0
  %743 = vmatprep.mubr.bf16.mxu0 0
  %744 = vmatmul.mubr.bf16.gmra.mrb[0].mxu0 %v206
  %v745 = vpop.f32.mrb[0].mxu0
  %v746 = vadd.f32 %v697, %v745
  %v747 = vpop.f32.mrb[0].mxu0
  %v748 = vpop.f32.mrb[0].mxu0
  %v749 = vadd.f32 %v700, %v748
  %v750 = vpop.f32.mrb[0].mxu0
  %751 = vmatprep.mubr.bf16.mxu0 0
  %752 = vmatmul.mubr.bf16.gmra.mrb[0].mxu0 %v213
  %v753 = vpop.f32.mrb[0].mxu0
  %v754 = vadd.f32 %v705, %v753
  %v755 = vpop.f32.mrb[0].mxu0
  %v756 = vpop.f32.mrb[0].mxu0
  %v757 = vadd.f32 %v708, %v756
  %v758 = vpop.f32.mrb[0].mxu0
  %759 = vdwg.mxu0
  %v760 = vmax.f32 %v746, 0.0
  %v761 = vmax.f32 %v749, 0.0
  %v762 = vmax.f32 %v754, 0.0
  %v763 = vmax.f32 %v757, 0.0
  %v764 = vadd.f32 %v760, %v761
  %v765 = vadd.f32 %v764, %v762
  %v766 = vadd.f32 %v765, %v763
  %v767 = vrot.slane %v766, 4
  %v768 = vadd.f32 %v766, %v767
  %v769 = vrot.slane %v768, 2
  %v770 = vadd.f32 %v768, %v769
  %v771 = vrot.slane %v770, 1
  %v772 = vadd.f32 %v770, %v771
  %v773 = vmul.f32 %v760, %v760
  %v774 = vmul.f32 %v761, %v761
  %v775 = vmul.f32 %v762, %v762
  %v776 = vmul.f32 %v763, %v763
  %v777 = vadd.f32 %v773, %v774
  %v778 = vadd.f32 %v777, %v775
  %v779 = vadd.f32 %v778, %v776
  %v780 = vrot.slane %v779, 4
  %v781 = vadd.f32 %v779, %v780
  %v782 = vrot.slane %v781, 2
  %v783 = vadd.f32 %v781, %v782
  %v784 = vrot.slane %v783, 1
  %v785 = vadd.f32 %v783, %v784
  %v786 = vmul.f32 %v772, 0.03125
  %v787 = vmul.f32 %v785, 0.03125
  %v788 = vmul.f32 %v786, %v786
  %v789 = vsub.f32 %v787, %v788
  %v790 = vmax.f32 %v789, 0.0
  %v791 = vadd.f32 %v790, 1e-05
  %v792 = vrsqrt.pop %v791
  %v793 = vld [vmem:[%s3] sm:$0x1]
  %v794 = vmul.f32 %v792, %v793
  %v795 = vld [vmem:[%s4] sm:$0x1]
  %v796 = vmul.f32 %v786, %v794
  %v797 = vsub.f32 %v795, %v796
  %v798 = vlaneseq
  %v799 = vshrl.u32 %v798, 7
  %v800 = vsub.s32 0, %v799
  %v801 = vrot.slane %v794, %v800
  %v802 = vmul.f32 %v760, %v801
  %v803 = vmul.f32 %v761, %v801
  %v804 = vmul.f32 %v762, %v801
  %v805 = vmul.f32 %v763, %v801
  %v807 = vlaneseq
  %v808 = vshrl.u32 %v807, 7
  %v809 = vsub.s32 0, %v808
  %v810 = vrot.slane %v797, %v809
  %v812 = vadd.f32 %v802, %v810
  %v813 = vadd.f32 %v803, %v810
  %v814 = vadd.f32 %v804, %v810
  %v815 = vadd.f32 %v805, %v810
  %v816 = vpack.c.bf16 %v813, %v812
  %v817 = vpack.c.bf16 %v815, %v814
  %v820 = vunpack.c.l.b16 %v816
  %v821 = vunpack.c.h.b16 %v816
  %v822 = vunpack.c.l.b16 %v817
  %v823 = vunpack.c.h.b16 %v817
  %v824 = vpack.c.b16 %v820, %v820
  %v825 = vpack.c.b16 %v821, %v821
  %v826 = vpack.c.b16 %v822, %v822
  %v827 = vpack.c.b16 %v823, %v823
  %832 = vst [vmem:[%s5] sm:$0xf] %v824
  %833 = vst [vmem:[%s5 + $0x4] sm:$0xf] %v825
  %834 = vst [vmem:[%s5 + $0x8] sm:$0xf] %v826
  %835 = vst [vmem:[%s5 + $0xc] sm:$0xf] %v827
  // Predicated region
  $region22: #{_lambda_.7} parent=0 // pred_check
    _
  $region23: #{_lambda_.7} parent=0 // pred_check_branch
    %837 = sbr.rel (0) target = $region25
  $region24: #{_lambda_.7} parent=0 // pred_region
    _
  $region25: #{_lambda_.7} parent=0 // pred_fallthru
    _
  // Predicated region
  $region26: #{_lambda_.7} parent=0 // pred_check
    _
  $region27: #{_lambda_.7} parent=0 // pred_check_branch
    %839 = sbr.rel (0) target = $region29
  $region28: #{_lambda_.7} parent=0 // pred_region
    _
  $region29: #{_lambda_.7} parent=0 // pred_fallthru
    _

// kernel: _lambda_.8
$region0: #{_lambda_.8}
  #allocation0 [shape = 'u32[]', space=smem, size = 0x4, offset = 0x4, fixed_abs, tag = 'smem constant byte address 0x4 - core index']
  #allocation1 [shape = 'u32[144,128]{1,0:T(1,128)}', space=vmem, size = 0x12000, scoped, tag = 'internal scratch']
  %s0 = inlined_call_operand.vmem [shape: bf16[8,1664], index: 0, kind: input, shape index: {}]
  %s1 = inlined_call_operand.vmem [shape: bf16[1664,128], index: 1, kind: input, shape index: {}]
  %s2 = inlined_call_operand.vmem [shape: f32[1,128], index: 2, kind: input, shape index: {}]
  %s3 = inlined_call_operand.vmem [shape: f32[1,128], index: 3, kind: input, shape index: {}]
  %s4 = inlined_call_operand.vmem [shape: f32[1,128], index: 4, kind: input, shape index: {}]
  %s5 = inlined_call_operand.vmem [shape: bf16[8,128], index: 5, kind: output, shape index: {}]
  %s6 = sld [smem:[#allocation0]]
  $region30: #{_lambda_.8} parent=0
    _
  %s8 = ssub.s32 1, %s6
  %s9 = scalar_select 0, %s8, %s6
  // Predicated region
  $region2: #{_lambda_.8} parent=0 // pred_check
    _
  $region3: #{_lambda_.8} parent=0 // pred_check_branch
    %11 = sbr.rel (0) target = $region5
  $region4: #{_lambda_.8} parent=0 // pred_region
    _
  $region5: #{_lambda_.8} parent=0 // pred_fallthru
    _
  // Predicated region
  $region6: #{_lambda_.8} parent=0 // pred_check
    _
  $region7: #{_lambda_.8} parent=0 // pred_check_branch
    %13 = sbr.rel (0) target = $region9
  $region8: #{_lambda_.8} parent=0 // pred_region
    _
  $region9: #{_lambda_.8} parent=0 // pred_fallthru
    _
  // Predicated region
  $region10: #{_lambda_.8} parent=0 // pred_check
    _
  $region11: #{_lambda_.8} parent=0 // pred_check_branch
    %15 = sbr.rel (0) target = $region13
  $region12: #{_lambda_.8} parent=0 // pred_region
    _
  $region13: #{_lambda_.8} parent=0 // pred_fallthru
    _
  // Predicated region
  $region14: #{_lambda_.8} parent=0 // pred_check
    _
  $region15: #{_lambda_.8} parent=0 // pred_check_branch
    %17 = sbr.rel (0) target = $region17
  $region16: #{_lambda_.8} parent=0 // pred_region
    _
  $region17: #{_lambda_.8} parent=0 // pred_fallthru
    _
  // Predicated region
  $region18: #{_lambda_.8} parent=0 // pred_check
    _
  $region19: #{_lambda_.8} parent=0 // pred_check_branch
    %19 = sbr.rel (0) target = $region21
  $region20: #{_lambda_.8} parent=0 // pred_region
    _
  $region21: #{_lambda_.8} parent=0 // pred_fallthru
    _
  %v21 = vld [vmem:[%s0] sm:$0xff]
  %v22 = vld [vmem:[%s0 + $0x8] sm:$0xff]
  %v23 = vld [vmem:[%s0 + $0x10] sm:$0xff]
  %v24 = vld [vmem:[%s0 + $0x18] sm:$0xff]
  %v25 = vld [vmem:[%s0 + $0x20] sm:$0xff]
  %v26 = vld [vmem:[%s0 + $0x28] sm:$0xff]
  %v27 = vld [vmem:[%s0 + $0x30] sm:$0xf]
  %v28 = vld [vmem:[%s1] sm:$0xf]
  %v29 = vld [vmem:[%s1 + $0x4] sm:$0xf]
  %v30 = vld [vmem:[%s1 + $0x8] sm:$0xf]
  %v31 = vld [vmem:[%s1 + $0xc] sm:$0xf]
  %v32 = vld [vmem:[%s1 + $0x10] sm:$0xf]
  %v33 = vld [vmem:[%s1 + $0x14] sm:$0xf]
  %v34 = vld [vmem:[%s1 + $0x18] sm:$0xf]
  %v35 = vld [vmem:[%s1 + $0x1c] sm:$0xf]
  %v36 = vld [vmem:[%s1 + $0x20] sm:$0xf]
  %v37 = vld [vmem:[%s1 + $0x24] sm:$0xf]
  %v38 = vld [vmem:[%s1 + $0x28] sm:$0xf]
  %v39 = vld [vmem:[%s1 + $0x2c] sm:$0xf]
  %v40 = vld [vmem:[%s1 + $0x30] sm:$0xf]
  %v41 = vld [vmem:[%s1 + $0x34] sm:$0xf]
  %v42 = vld [vmem:[%s1 + $0x38] sm:$0xf]
  %v43 = vld [vmem:[%s1 + $0x3c] sm:$0xf]
  %v44 = vld [vmem:[%s1 + $0x40] sm:$0xf]
  %v45 = vld [vmem:[%s1 + $0x44] sm:$0xf]
  %v46 = vld [vmem:[%s1 + $0x48] sm:$0xf]
  %v47 = vld [vmem:[%s1 + $0x4c] sm:$0xf]
  %v48 = vld [vmem:[%s1 + $0x50] sm:$0xf]
  %v49 = vld [vmem:[%s1 + $0x54] sm:$0xf]
  %v50 = vld [vmem:[%s1 + $0x58] sm:$0xf]
  %v51 = vld [vmem:[%s1 + $0x5c] sm:$0xf]
  %v52 = vld [vmem:[%s1 + $0x60] sm:$0xf]
  %v53 = vld [vmem:[%s1 + $0x64] sm:$0xf]
  %v54 = vld [vmem:[%s1 + $0x68] sm:$0xf]
  %v55 = vld [vmem:[%s1 + $0x6c] sm:$0xf]
  %v56 = vld [vmem:[%s1 + $0x70] sm:$0xf]
  %v57 = vld [vmem:[%s1 + $0x74] sm:$0xf]
  %v58 = vld [vmem:[%s1 + $0x78] sm:$0xf]
  %v59 = vld [vmem:[%s1 + $0x7c] sm:$0xf]
  %v60 = vld [vmem:[%s1 + $0x80] sm:$0xf]
  %v61 = vld [vmem:[%s1 + $0x84] sm:$0xf]
  %v62 = vld [vmem:[%s1 + $0x88] sm:$0xf]
  %v63 = vld [vmem:[%s1 + $0x8c] sm:$0xf]
  %v64 = vld [vmem:[%s1 + $0x90] sm:$0xf]
  %v65 = vld [vmem:[%s1 + $0x94] sm:$0xf]
  %v66 = vld [vmem:[%s1 + $0x98] sm:$0xf]
  %v67 = vld [vmem:[%s1 + $0x9c] sm:$0xf]
  %v68 = vld [vmem:[%s1 + $0xa0] sm:$0xf]
  %v69 = vld [vmem:[%s1 + $0xa4] sm:$0xf]
  %v70 = vld [vmem:[%s1 + $0xa8] sm:$0xf]
  %v71 = vld [vmem:[%s1 + $0xac] sm:$0xf]
  %v72 = vld [vmem:[%s1 + $0xb0] sm:$0xf]
  %v73 = vld [vmem:[%s1 + $0xb4] sm:$0xf]
  %v74 = vld [vmem:[%s1 + $0xb8] sm:$0xf]
  %v75 = vld [vmem:[%s1 + $0xbc] sm:$0xf]
  %v76 = vld [vmem:[%s1 + $0xc0] sm:$0xf]
  %v77 = vld [vmem:[%s1 + $0xc4] sm:$0xf]
  %v78 = vld [vmem:[%s1 + $0xc8] sm:$0xf]
  %v79 = vld [vmem:[%s1 + $0xcc] sm:$0xf]
  %v80 = vld [vmem:[%s1 + $0xd0] sm:$0xf]
  %v81 = vld [vmem:[%s1 + $0xd4] sm:$0xf]
  %v82 = vld [vmem:[%s1 + $0xd8] sm:$0xf]
  %v83 = vld [vmem:[%s1 + $0xdc] sm:$0xf]
  %v84 = vld [vmem:[%s1 + $0xe0] sm:$0xf]
  %v85 = vld [vmem:[%s1 + $0xe4] sm:$0xf]
  %v86 = vld [vmem:[%s1 + $0xe8] sm:$0xf]
  %v87 = vld [vmem:[%s1 + $0xec] sm:$0xf]
  %v88 = vld [vmem:[%s1 + $0xf0] sm:$0xf]
  %v89 = vld [vmem:[%s1 + $0xf4] sm:$0xf]
  %v90 = vld [vmem:[%s1 + $0xf8] sm:$0xf]
  %v91 = vld [vmem:[%s1 + $0xfc] sm:$0xf]
  %v92 = vld [vmem:[%s1 + $0x100] sm:$0xf]
  %v93 = vld [vmem:[%s1 + $0x104] sm:$0xf]
  %v94 = vld [vmem:[%s1 + $0x108] sm:$0xf]
  %v95 = vld [vmem:[%s1 + $0x10c] sm:$0xf]
  %v96 = vld [vmem:[%s1 + $0x110] sm:$0xf]
  %v97 = vld [vmem:[%s1 + $0x114] sm:$0xf]
  %v98 = vld [vmem:[%s1 + $0x118] sm:$0xf]
  %v99 = vld [vmem:[%s1 + $0x11c] sm:$0xf]
  %v100 = vld [vmem:[%s1 + $0x120] sm:$0xf]
  %v101 = vld [vmem:[%s1 + $0x124] sm:$0xf]
  %v102 = vld [vmem:[%s1 + $0x128] sm:$0xf]
  %v103 = vld [vmem:[%s1 + $0x12c] sm:$0xf]
  %v104 = vld [vmem:[%s1 + $0x130] sm:$0xf]
  %v105 = vld [vmem:[%s1 + $0x134] sm:$0xf]
  %v106 = vld [vmem:[%s1 + $0x138] sm:$0xf]
  %v107 = vld [vmem:[%s1 + $0x13c] sm:$0xf]
  %v108 = vld [vmem:[%s1 + $0x140] sm:$0xf]
  %v109 = vld [vmem:[%s1 + $0x144] sm:$0xf]
  %v110 = vld [vmem:[%s1 + $0x148] sm:$0xf]
  %v111 = vld [vmem:[%s1 + $0x14c] sm:$0xf]
  %v112 = vld [vmem:[%s1 + $0x150] sm:$0xf]
  %v113 = vld [vmem:[%s1 + $0x154] sm:$0xf]
  %v114 = vld [vmem:[%s1 + $0x158] sm:$0xf]
  %v115 = vld [vmem:[%s1 + $0x15c] sm:$0xf]
  %v116 = vld [vmem:[%s1 + $0x160] sm:$0xf]
  %v117 = vld [vmem:[%s1 + $0x164] sm:$0xf]
  %v118 = vld [vmem:[%s1 + $0x168] sm:$0xf]
  %v119 = vld [vmem:[%s1 + $0x16c] sm:$0xf]
  %v120 = vld [vmem:[%s1 + $0x170] sm:$0xf]
  %v121 = vld [vmem:[%s1 + $0x174] sm:$0xf]
  %v122 = vld [vmem:[%s1 + $0x178] sm:$0xf]
  %v123 = vld [vmem:[%s1 + $0x17c] sm:$0xf]
  %v124 = vld [vmem:[%s1 + $0x180] sm:$0xf]
  %v125 = vld [vmem:[%s1 + $0x184] sm:$0xf]
  %v126 = vld [vmem:[%s1 + $0x188] sm:$0xf]
  %v127 = vld [vmem:[%s1 + $0x18c] sm:$0xf]
  %v128 = vld [vmem:[%s1 + $0x190] sm:$0xf]
  %v129 = vld [vmem:[%s1 + $0x194] sm:$0xf]
  %v130 = vld [vmem:[%s1 + $0x198] sm:$0xf]
  %v131 = vld [vmem:[%s1 + $0x19c] sm:$0xf]
  %v132 = vld [vmem:[%s1 + $0x1a0] sm:$0xf]
  %v133 = vld [vmem:[%s1 + $0x1a4] sm:$0xf]
  %v134 = vld [vmem:[%s1 + $0x1a8] sm:$0xf]
  %v135 = vld [vmem:[%s1 + $0x1ac] sm:$0xf]
  %v136 = vld [vmem:[%s1 + $0x1b0] sm:$0xf]
  %v137 = vld [vmem:[%s1 + $0x1b4] sm:$0xf]
  %v138 = vld [vmem:[%s1 + $0x1b8] sm:$0xf]
  %v139 = vld [vmem:[%s1 + $0x1bc] sm:$0xf]
  %v140 = vld [vmem:[%s1 + $0x1c0] sm:$0xf]
  %v141 = vld [vmem:[%s1 + $0x1c4] sm:$0xf]
  %v142 = vld [vmem:[%s1 + $0x1c8] sm:$0xf]
  %v143 = vld [vmem:[%s1 + $0x1cc] sm:$0xf]
  %v144 = vld [vmem:[%s1 + $0x1d0] sm:$0xf]
  %v145 = vld [vmem:[%s1 + $0x1d4] sm:$0xf]
  %v146 = vld [vmem:[%s1 + $0x1d8] sm:$0xf]
  %v147 = vld [vmem:[%s1 + $0x1dc] sm:$0xf]
  %v148 = vld [vmem:[%s1 + $0x1e0] sm:$0xf]
  %v149 = vld [vmem:[%s1 + $0x1e4] sm:$0xf]
  %v150 = vld [vmem:[%s1 + $0x1e8] sm:$0xf]
  %v151 = vld [vmem:[%s1 + $0x1ec] sm:$0xf]
  %v152 = vld [vmem:[%s1 + $0x1f0] sm:$0xf]
  %v153 = vld [vmem:[%s1 + $0x1f4] sm:$0xf]
  %v154 = vld [vmem:[%s1 + $0x1f8] sm:$0xf]
  %v155 = vld [vmem:[%s1 + $0x1fc] sm:$0xf]
  %v156 = vld [vmem:[%s1 + $0x200] sm:$0xf]
  %v157 = vld [vmem:[%s1 + $0x204] sm:$0xf]
  %v158 = vld [vmem:[%s1 + $0x208] sm:$0xf]
  %v159 = vld [vmem:[%s1 + $0x20c] sm:$0xf]
  %v160 = vld [vmem:[%s1 + $0x210] sm:$0xf]
  %v161 = vld [vmem:[%s1 + $0x214] sm:$0xf]
  %v162 = vld [vmem:[%s1 + $0x218] sm:$0xf]
  %v163 = vld [vmem:[%s1 + $0x21c] sm:$0xf]
  %v164 = vld [vmem:[%s1 + $0x220] sm:$0xf]
  %v165 = vld [vmem:[%s1 + $0x224] sm:$0xf]
  %v166 = vld [vmem:[%s1 + $0x228] sm:$0xf]
  %v167 = vld [vmem:[%s1 + $0x22c] sm:$0xf]
  %v168 = vld [vmem:[%s1 + $0x230] sm:$0xf]
  %v169 = vld [vmem:[%s1 + $0x234] sm:$0xf]
  %v170 = vld [vmem:[%s1 + $0x238] sm:$0xf]
  %v171 = vld [vmem:[%s1 + $0x23c] sm:$0xf]
  %v172 = vld [vmem:[%s1 + $0x240] sm:$0xf]
  %v173 = vld [vmem:[%s1 + $0x244] sm:$0xf]
  %v174 = vld [vmem:[%s1 + $0x248] sm:$0xf]
  %v175 = vld [vmem:[%s1 + $0x24c] sm:$0xf]
  %v176 = vld [vmem:[%s1 + $0x250] sm:$0xf]
  %v177 = vld [vmem:[%s1 + $0x254] sm:$0xf]
  %v178 = vld [vmem:[%s1 + $0x258] sm:$0xf]
  %v179 = vld [vmem:[%s1 + $0x25c] sm:$0xf]
  %v180 = vld [vmem:[%s1 + $0x260] sm:$0xf]
  %v181 = vld [vmem:[%s1 + $0x264] sm:$0xf]
  %v182 = vld [vmem:[%s1 + $0x268] sm:$0xf]
  %v183 = vld [vmem:[%s1 + $0x26c] sm:$0xf]
  %v184 = vld [vmem:[%s1 + $0x270] sm:$0xf]
  %v185 = vld [vmem:[%s1 + $0x274] sm:$0xf]
  %v186 = vld [vmem:[%s1 + $0x278] sm:$0xf]
  %v187 = vld [vmem:[%s1 + $0x27c] sm:$0xf]
  %v188 = vld [vmem:[%s1 + $0x280] sm:$0xf]
  %v189 = vld [vmem:[%s1 + $0x284] sm:$0xf]
  %v190 = vld [vmem:[%s1 + $0x288] sm:$0xf]
  %v191 = vld [vmem:[%s1 + $0x28c] sm:$0xf]
  %v192 = vld [vmem:[%s1 + $0x290] sm:$0xf]
  %v193 = vld [vmem:[%s1 + $0x294] sm:$0xf]
  %v194 = vld [vmem:[%s1 + $0x298] sm:$0xf]
  %v195 = vld [vmem:[%s1 + $0x29c] sm:$0xf]
  %v196 = vld [vmem:[%s1 + $0x2a0] sm:$0xf]
  %v197 = vld [vmem:[%s1 + $0x2a4] sm:$0xf]
  %v198 = vld [vmem:[%s1 + $0x2a8] sm:$0xf]
  %v199 = vld [vmem:[%s1 + $0x2ac] sm:$0xf]
  %v200 = vld [vmem:[%s1 + $0x2b0] sm:$0xf]
  %v201 = vld [vmem:[%s1 + $0x2b4] sm:$0xf]
  %v202 = vld [vmem:[%s1 + $0x2b8] sm:$0xf]
  %v203 = vld [vmem:[%s1 + $0x2bc] sm:$0xf]
  %v204 = vld [vmem:[%s1 + $0x2c0] sm:$0xf]
  %v205 = vld [vmem:[%s1 + $0x2c4] sm:$0xf]
  %v206 = vld [vmem:[%s1 + $0x2c8] sm:$0xf]
  %v207 = vld [vmem:[%s1 + $0x2cc] sm:$0xf]
  %v208 = vld [vmem:[%s1 + $0x2d0] sm:$0xf]
  %v209 = vld [vmem:[%s1 + $0x2d4] sm:$0xf]
  %v210 = vld [vmem:[%s1 + $0x2d8] sm:$0xf]
  %v211 = vld [vmem:[%s1 + $0x2dc] sm:$0xf]
  %v212 = vld [vmem:[%s1 + $0x2e0] sm:$0xf]
  %v213 = vld [vmem:[%s1 + $0x2e4] sm:$0xf]
  %v214 = vld [vmem:[%s1 + $0x2e8] sm:$0xf]
  %v215 = vld [vmem:[%s1 + $0x2ec] sm:$0xf]
  %v216 = vld [vmem:[%s1 + $0x2f0] sm:$0xf]
  %v217 = vld [vmem:[%s1 + $0x2f4] sm:$0xf]
  %v218 = vld [vmem:[%s1 + $0x2f8] sm:$0xf]
  %v219 = vld [vmem:[%s1 + $0x2fc] sm:$0xf]
  %v220 = vld [vmem:[%s1 + $0x300] sm:$0xf]
  %v221 = vld [vmem:[%s1 + $0x304] sm:$0xf]
  %v222 = vld [vmem:[%s1 + $0x308] sm:$0xf]
  %v223 = vld [vmem:[%s1 + $0x30c] sm:$0xf]
  %v224 = vld [vmem:[%s1 + $0x310] sm:$0xf]
  %v225 = vld [vmem:[%s1 + $0x314] sm:$0xf]
  %v226 = vld [vmem:[%s1 + $0x318] sm:$0xf]
  %v227 = vld [vmem:[%s1 + $0x31c] sm:$0xf]
  %v228 = vld [vmem:[%s1 + $0x320] sm:$0xf]
  %v229 = vld [vmem:[%s1 + $0x324] sm:$0xf]
  %v230 = vld [vmem:[%s1 + $0x328] sm:$0xf]
  %v231 = vld [vmem:[%s1 + $0x32c] sm:$0xf]
  %v232 = vld [vmem:[%s1 + $0x330] sm:$0xf]
  %v233 = vld [vmem:[%s1 + $0x334] sm:$0xf]
  %v234 = vld [vmem:[%s1 + $0x338] sm:$0xf]
  %v235 = vld [vmem:[%s1 + $0x33c] sm:$0xf]
  %v236 = vld [vmem:[%s2] sm:$0x1]
  %v238 = vlaneseq
  %v239 = vshrl.u32 %v238, 7
  %v240 = vsub.s32 0, %v239
  %v241 = vrot.slane %v236, %v240
  %v250 = vunpack.c.l.b16 %v21
  %v251 = vunpack.c.h.b16 %v21
  %v252 = vunpack.c.l.b16 %v22
  %v253 = vunpack.c.h.b16 %v22
  %v254 = vunpack.c.l.b16 %v23
  %v255 = vunpack.c.h.b16 %v23
  %v256 = vunpack.c.l.b16 %v24
  %v257 = vunpack.c.h.b16 %v24
  %v258 = vunpack.c.l.b16 %v25
  %v259 = vunpack.c.h.b16 %v25
  %v260 = vunpack.c.l.b16 %v26
  %v261 = vunpack.c.h.b16 %v26
  %v262 = vunpack.c.l.b16 %v27
  %v263 = vpack.c.b16 %v250, %v250
  %v264 = vpack.c.b16 %v251, %v251
  %v265 = vpack.c.b16 %v252, %v252
  %v266 = vpack.c.b16 %v253, %v253
  %v267 = vpack.c.b16 %v254, %v254
  %v268 = vpack.c.b16 %v255, %v255
  %v269 = vpack.c.b16 %v256, %v256
  %v270 = vpack.c.b16 %v257, %v257
  %v271 = vpack.c.b16 %v258, %v258
  %v272 = vpack.c.b16 %v259, %v259
  %v273 = vpack.c.b16 %v260, %v260
  %v274 = vpack.c.b16 %v261, %v261
  %v275 = vpack.c.b16 %v262, %v262
  %v497 = vunpack.c.l.b16 %v28
  %v498 = vunpack.c.l.b16 %v29
  %v499 = vunpack.c.l.b16 %v30
  %v500 = vunpack.c.l.b16 %v31
  %v501 = vunpack.c.l.b16 %v32
  %v502 = vunpack.c.l.b16 %v33
  %v503 = vunpack.c.l.b16 %v34
  %v504 = vunpack.c.l.b16 %v35
  %v505 = vunpack.c.l.b16 %v36
  %v506 = vunpack.c.l.b16 %v37
  %v507 = vunpack.c.l.b16 %v38
  %v508 = vunpack.c.l.b16 %v39
  %v509 = vunpack.c.l.b16 %v40
  %v510 = vunpack.c.l.b16 %v41
  %v511 = vunpack.c.l.b16 %v42
  %v512 = vunpack.c.l.b16 %v43
  %v513 = vunpack.c.l.b16 %v44
  %v514 = vunpack.c.l.b16 %v45
  %v515 = vunpack.c.l.b16 %v46
  %v516 = vunpack.c.l.b16 %v47
  %v517 = vunpack.c.l.b16 %v48
  %v518 = vunpack.c.l.b16 %v49
  %v519 = vunpack.c.l.b16 %v50
  %v520 = vunpack.c.l.b16 %v51
  %v521 = vunpack.c.l.b16 %v52
  %v522 = vunpack.c.l.b16 %v53
  %v523 = vunpack.c.l.b16 %v54
  %v524 = vunpack.c.l.b16 %v55
  %v525 = vunpack.c.l.b16 %v56
  %v526 = vunpack.c.l.b16 %v57
  %v527 = vunpack.c.l.b16 %v58
  %v528 = vunpack.c.l.b16 %v59
  %v529 = vunpack.c.l.b16 %v60
  %v530 = vunpack.c.l.b16 %v61
  %v531 = vunpack.c.l.b16 %v62
  %v532 = vunpack.c.l.b16 %v63
  %v533 = vunpack.c.l.b16 %v64
  %v534 = vunpack.c.l.b16 %v65
  %v535 = vunpack.c.l.b16 %v66
  %v536 = vunpack.c.l.b16 %v67
  %v537 = vunpack.c.l.b16 %v68
  %v538 = vunpack.c.l.b16 %v69
  %v539 = vunpack.c.l.b16 %v70
  %v540 = vunpack.c.l.b16 %v71
  %v541 = vunpack.c.l.b16 %v72
  %v542 = vunpack.c.l.b16 %v73
  %v543 = vunpack.c.l.b16 %v74
  %v544 = vunpack.c.l.b16 %v75
  %v545 = vunpack.c.l.b16 %v76
  %v546 = vunpack.c.l.b16 %v77
  %v547 = vunpack.c.l.b16 %v78
  %v548 = vunpack.c.l.b16 %v79
  %v549 = vunpack.c.l.b16 %v80
  %v550 = vunpack.c.l.b16 %v81
  %v551 = vunpack.c.l.b16 %v82
  %v552 = vunpack.c.l.b16 %v83
  %v553 = vunpack.c.l.b16 %v84
  %v554 = vunpack.c.l.b16 %v85
  %v555 = vunpack.c.l.b16 %v86
  %v556 = vunpack.c.l.b16 %v87
  %v557 = vunpack.c.l.b16 %v88
  %v558 = vunpack.c.l.b16 %v89
  %v559 = vunpack.c.l.b16 %v90
  %v560 = vunpack.c.l.b16 %v91
  %v561 = vunpack.c.l.b16 %v92
  %v562 = vunpack.c.l.b16 %v93
  %v563 = vunpack.c.l.b16 %v94
  %v564 = vunpack.c.l.b16 %v95
  %v565 = vunpack.c.l.b16 %v96
  %v566 = vunpack.c.l.b16 %v97
  %v567 = vunpack.c.l.b16 %v98
  %v568 = vunpack.c.l.b16 %v99
  %v569 = vunpack.c.l.b16 %v100
  %v570 = vunpack.c.l.b16 %v101
  %v571 = vunpack.c.l.b16 %v102
  %v572 = vunpack.c.l.b16 %v103
  %v573 = vunpack.c.l.b16 %v104
  %v574 = vunpack.c.l.b16 %v105
  %v575 = vunpack.c.l.b16 %v106
  %v576 = vunpack.c.l.b16 %v107
  %v577 = vunpack.c.l.b16 %v108
  %v578 = vunpack.c.l.b16 %v109
  %v579 = vunpack.c.l.b16 %v110
  %v580 = vunpack.c.l.b16 %v111
  %v581 = vunpack.c.l.b16 %v112
  %v582 = vunpack.c.l.b16 %v113
  %v583 = vunpack.c.l.b16 %v114
  %v584 = vunpack.c.l.b16 %v115
  %v585 = vunpack.c.l.b16 %v116
  %v586 = vunpack.c.l.b16 %v117
  %v587 = vunpack.c.l.b16 %v118
  %v588 = vunpack.c.l.b16 %v119
  %v589 = vunpack.c.l.b16 %v120
  %v590 = vunpack.c.l.b16 %v121
  %v591 = vunpack.c.l.b16 %v122
  %v592 = vunpack.c.l.b16 %v123
  %v593 = vunpack.c.l.b16 %v124
  %v594 = vunpack.c.l.b16 %v125
  %v595 = vunpack.c.l.b16 %v126
  %v596 = vunpack.c.l.b16 %v127
  %v597 = vunpack.c.l.b16 %v128
  %v598 = vunpack.c.l.b16 %v129
  %v599 = vunpack.c.l.b16 %v130
  %v600 = vunpack.c.l.b16 %v131
  %v601 = vunpack.c.l.b16 %v132
  %v602 = vunpack.c.l.b16 %v133
  %v603 = vunpack.c.l.b16 %v134
  %v604 = vunpack.c.l.b16 %v135
  %v605 = vunpack.c.l.b16 %v136
  %v606 = vunpack.c.l.b16 %v137
  %v607 = vunpack.c.l.b16 %v138
  %v608 = vunpack.c.l.b16 %v139
  %v609 = vunpack.c.l.b16 %v140
  %v610 = vunpack.c.l.b16 %v141
  %v611 = vunpack.c.l.b16 %v142
  %v612 = vunpack.c.l.b16 %v143
  %v613 = vunpack.c.l.b16 %v144
  %v614 = vunpack.c.l.b16 %v145
  %v615 = vunpack.c.l.b16 %v146
  %v616 = vunpack.c.l.b16 %v147
  %v617 = vunpack.c.l.b16 %v148
  %v618 = vunpack.c.l.b16 %v149
  %v619 = vunpack.c.l.b16 %v150
  %v620 = vunpack.c.l.b16 %v151
  %v621 = vunpack.c.l.b16 %v152
  %v622 = vunpack.c.l.b16 %v153
  %v623 = vunpack.c.l.b16 %v154
  %v624 = vunpack.c.l.b16 %v155
  %v625 = vunpack.c.l.b16 %v156
  %v626 = vunpack.c.l.b16 %v157
  %v627 = vunpack.c.l.b16 %v158
  %v628 = vunpack.c.l.b16 %v159
  %v629 = vunpack.c.l.b16 %v160
  %v630 = vunpack.c.l.b16 %v161
  %v631 = vunpack.c.l.b16 %v162
  %v632 = vunpack.c.l.b16 %v163
  %v633 = vunpack.c.l.b16 %v164
  %v634 = vunpack.c.l.b16 %v165
  %v635 = vunpack.c.l.b16 %v166
  %v636 = vunpack.c.l.b16 %v167
  %v637 = vunpack.c.l.b16 %v168
  %v638 = vunpack.c.l.b16 %v169
  %v639 = vunpack.c.l.b16 %v170
  %v640 = vunpack.c.l.b16 %v171
  %v641 = vunpack.c.l.b16 %v172
  %v642 = vunpack.c.l.b16 %v173
  %v643 = vunpack.c.l.b16 %v174
  %v644 = vunpack.c.l.b16 %v175
  %v645 = vunpack.c.l.b16 %v176
  %v646 = vunpack.c.l.b16 %v177
  %v647 = vunpack.c.l.b16 %v178
  %v648 = vunpack.c.l.b16 %v179
  %v649 = vunpack.c.l.b16 %v180
  %v650 = vunpack.c.l.b16 %v181
  %v651 = vunpack.c.l.b16 %v182
  %v652 = vunpack.c.l.b16 %v183
  %v653 = vunpack.c.l.b16 %v184
  %v654 = vunpack.c.l.b16 %v185
  %v655 = vunpack.c.l.b16 %v186
  %v656 = vunpack.c.l.b16 %v187
  %v657 = vunpack.c.l.b16 %v188
  %v658 = vunpack.c.l.b16 %v189
  %v659 = vunpack.c.l.b16 %v190
  %v660 = vunpack.c.l.b16 %v191
  %v661 = vunpack.c.l.b16 %v192
  %v662 = vunpack.c.l.b16 %v193
  %v663 = vunpack.c.l.b16 %v194
  %v664 = vunpack.c.l.b16 %v195
  %v665 = vunpack.c.l.b16 %v196
  %v666 = vunpack.c.l.b16 %v197
  %v667 = vunpack.c.l.b16 %v198
  %v668 = vunpack.c.l.b16 %v199
  %v669 = vunpack.c.l.b16 %v200
  %v670 = vunpack.c.l.b16 %v201
  %v671 = vunpack.c.l.b16 %v202
  %v672 = vunpack.c.l.b16 %v203
  %v673 = vunpack.c.l.b16 %v204
  %v674 = vunpack.c.l.b16 %v205
  %v675 = vunpack.c.l.b16 %v206
  %v676 = vunpack.c.l.b16 %v207
  %v677 = vunpack.c.l.b16 %v208
  %v678 = vunpack.c.l.b16 %v209
  %v679 = vunpack.c.l.b16 %v210
  %v680 = vunpack.c.l.b16 %v211
  %v681 = vunpack.c.l.b16 %v212
  %v682 = vunpack.c.l.b16 %v213
  %v683 = vunpack.c.l.b16 %v214
  %v684 = vunpack.c.l.b16 %v215
  %v685 = vunpack.c.l.b16 %v216
  %v686 = vunpack.c.l.b16 %v217
  %v687 = vunpack.c.l.b16 %v218
  %v688 = vunpack.c.l.b16 %v219
  %v689 = vunpack.c.l.b16 %v220
  %v690 = vunpack.c.l.b16 %v221
  %v691 = vunpack.c.l.b16 %v222
  %v692 = vunpack.c.l.b16 %v223
  %v693 = vunpack.c.l.b16 %v224
  %v694 = vunpack.c.l.b16 %v225
  %v695 = vunpack.c.l.b16 %v226
  %v696 = vunpack.c.l.b16 %v227
  %v697 = vunpack.c.l.b16 %v228
  %v698 = vunpack.c.l.b16 %v229
  %v699 = vunpack.c.l.b16 %v230
  %v700 = vunpack.c.l.b16 %v231
  %v701 = vunpack.c.l.b16 %v232
  %v702 = vunpack.c.l.b16 %v233
  %v703 = vunpack.c.l.b16 %v234
  %v704 = vunpack.c.l.b16 %v235
  %v705 = vpack.c.b16 %v498, %v497
  %v706 = vpack.c.b16 %v500, %v499
  %v707 = vpack.c.b16 %v502, %v501
  %v708 = vpack.c.b16 %v504, %v503
  %v709 = vpack.c.b16 %v506, %v505
  %v710 = vpack.c.b16 %v508, %v507
  %v711 = vpack.c.b16 %v510, %v509
  %v712 = vpack.c.b16 %v512, %v511
  %v713 = vpack.c.b16 %v514, %v513
  %v714 = vpack.c.b16 %v516, %v515
  %v715 = vpack.c.b16 %v518, %v517
  %v716 = vpack.c.b16 %v520, %v519
  %v717 = vpack.c.b16 %v522, %v521
  %v718 = vpack.c.b16 %v524, %v523
  %v719 = vpack.c.b16 %v526, %v525
  %v720 = vpack.c.b16 %v528, %v527
  %v721 = vpack.c.b16 %v530, %v529
  %v722 = vpack.c.b16 %v532, %v531
  %v723 = vpack.c.b16 %v534, %v533
  %v724 = vpack.c.b16 %v536, %v535
  %v725 = vpack.c.b16 %v538, %v537
  %v726 = vpack.c.b16 %v540, %v539
  %v727 = vpack.c.b16 %v542, %v541
  %v728 = vpack.c.b16 %v544, %v543
  %v729 = vpack.c.b16 %v546, %v545
  %v730 = vpack.c.b16 %v548, %v547
  %v731 = vpack.c.b16 %v550, %v549
  %v732 = vpack.c.b16 %v552, %v551
  %v733 = vpack.c.b16 %v554, %v553
  %v734 = vpack.c.b16 %v556, %v555
  %v735 = vpack.c.b16 %v558, %v557
  %v736 = vpack.c.b16 %v560, %v559
  %v737 = vpack.c.b16 %v562, %v561
  %v738 = vpack.c.b16 %v564, %v563
  %v739 = vpack.c.b16 %v566, %v565
  %v740 = vpack.c.b16 %v568, %v567
  %v741 = vpack.c.b16 %v570, %v569
  %v742 = vpack.c.b16 %v572, %v571
  %v743 = vpack.c.b16 %v574, %v573
  %v744 = vpack.c.b16 %v576, %v575
  %v745 = vpack.c.b16 %v578, %v577
  %v746 = vpack.c.b16 %v580, %v579
  %v747 = vpack.c.b16 %v582, %v581
  %v748 = vpack.c.b16 %v584, %v583
  %v749 = vpack.c.b16 %v586, %v585
  %v750 = vpack.c.b16 %v588, %v587
  %v751 = vpack.c.b16 %v590, %v589
  %v752 = vpack.c.b16 %v592, %v591
  %v753 = vpack.c.b16 %v594, %v593
  %v754 = vpack.c.b16 %v596, %v595
  %v755 = vpack.c.b16 %v598, %v597
  %v756 = vpack.c.b16 %v600, %v599
  %v757 = vpack.c.b16 %v602, %v601
  %v758 = vpack.c.b16 %v604, %v603
  %v759 = vpack.c.b16 %v606, %v605
  %v760 = vpack.c.b16 %v608, %v607
  %v761 = vpack.c.b16 %v610, %v609
  %v762 = vpack.c.b16 %v612, %v611
  %v763 = vpack.c.b16 %v614, %v613
  %v764 = vpack.c.b16 %v616, %v615
  %v765 = vpack.c.b16 %v618, %v617
  %v766 = vpack.c.b16 %v620, %v619
  %v767 = vpack.c.b16 %v622, %v621
  %v768 = vpack.c.b16 %v624, %v623
  %v769 = vpack.c.b16 %v626, %v625
  %v770 = vpack.c.b16 %v628, %v627
  %v771 = vpack.c.b16 %v630, %v629
  %v772 = vpack.c.b16 %v632, %v631
  %v773 = vpack.c.b16 %v634, %v633
  %v774 = vpack.c.b16 %v636, %v635
  %v775 = vpack.c.b16 %v638, %v637
  %v776 = vpack.c.b16 %v640, %v639
  %v777 = vpack.c.b16 %v642, %v641
  %v778 = vpack.c.b16 %v644, %v643
  %v779 = vpack.c.b16 %v646, %v645
  %v780 = vpack.c.b16 %v648, %v647
  %v781 = vpack.c.b16 %v650, %v649
  %v782 = vpack.c.b16 %v652, %v651
  %v783 = vpack.c.b16 %v654, %v653
  %v784 = vpack.c.b16 %v656, %v655
  %v785 = vpack.c.b16 %v658, %v657
  %v786 = vpack.c.b16 %v660, %v659
  %v787 = vpack.c.b16 %v662, %v661
  %v788 = vpack.c.b16 %v664, %v663
  %v789 = vpack.c.b16 %v666, %v665
  %v790 = vpack.c.b16 %v668, %v667
  %v791 = vpack.c.b16 %v670, %v669
  %v792 = vpack.c.b16 %v672, %v671
  %v793 = vpack.c.b16 %v674, %v673
  %v794 = vpack.c.b16 %v676, %v675
  %v795 = vpack.c.b16 %v678, %v677
  %v796 = vpack.c.b16 %v680, %v679
  %v797 = vpack.c.b16 %v682, %v681
  %v798 = vpack.c.b16 %v684, %v683
  %v799 = vpack.c.b16 %v686, %v685
  %v800 = vpack.c.b16 %v688, %v687
  %v801 = vpack.c.b16 %v690, %v689
  %v802 = vpack.c.b16 %v692, %v691
  %v803 = vpack.c.b16 %v694, %v693
  %v804 = vpack.c.b16 %v696, %v695
  %v805 = vpack.c.b16 %v698, %v697
  %v806 = vpack.c.b16 %v700, %v699
  %v807 = vpack.c.b16 %v702, %v701
  %v808 = vpack.c.b16 %v704, %v703
  %913 = vmatprep.subr.bf16.mxu0 0
  %914 = vmatpush1.bf16.msra.mxu0 %v705
  %915 = vmatprep.subr.bf16.mxu0 0
  %916 = vmatpush1.bf16.msra.mxu0 %v706
  %917 = vmatprep.subr.bf16.mxu0 0
  %918 = vmatpush1.bf16.msra.mxu0 %v707
  %919 = vmatprep.subr.bf16.mxu0 0
  %920 = vmatpush1.bf16.msra.mxu0 %v708
  %921 = vmatprep.subr.bf16.mxu0 0
  %922 = vmatpush1.bf16.msra.mxu0 %v709
  %923 = vmatprep.subr.bf16.mxu0 0
  %924 = vmatpush1.bf16.msra.mxu0 %v710
  %925 = vmatprep.subr.bf16.mxu0 0
  %926 = vmatpush1.bf16.msra.mxu0 %v711
  %927 = vmatprep.subr.bf16.mxu0 0
  %928 = vmatpush1.bf16.msra.mxu0 %v712
  %929 = vmatprep.subr.bf16.mxu0 0
  %930 = vmatpush1.bf16.msra.mxu0 %v713
  %931 = vmatprep.subr.bf16.mxu0 0
  %932 = vmatpush1.bf16.msra.mxu0 %v714
  %933 = vmatprep.subr.bf16.mxu0 0
  %934 = vmatpush1.bf16.msra.mxu0 %v715
  %935 = vmatprep.subr.bf16.mxu0 0
  %936 = vmatpush1.bf16.msra.mxu0 %v716
  %937 = vmatprep.subr.bf16.mxu0 0
  %938 = vmatpush1.bf16.msra.mxu0 %v717
  %939 = vmatprep.subr.bf16.mxu0 0
  %940 = vmatpush1.bf16.msra.mxu0 %v718
  %941 = vmatprep.subr.bf16.mxu0 0
  %942 = vmatpush1.bf16.msra.mxu0 %v719
  %943 = vmatprep.subr.bf16.mxu0 0
  %944 = vmatpush1.bf16.msra.mxu0 %v720
  %945 = vmatprep.mubr.bf16.mxu0 %v264
  %946 = vmatmul.mubr.bf16.gmra.mrb[0].mxu0 %v263
  %v947 = vpop.f32.mrb[0].mxu0
  %v948 = vadd.f32 %v241, %v947
  %v949 = vpop.f32.mrb[0].mxu0
  %v950 = vpop.f32.mrb[0].mxu0
  %v951 = vpop.f32.mrb[0].mxu0
  %952 = vdwg.mxu0
  %953 = vmatprep.subr.bf16.mxu0 0
  %954 = vmatpush1.bf16.msra.mxu0 %v721
  %955 = vmatprep.subr.bf16.mxu0 0
  %956 = vmatpush1.bf16.msra.mxu0 %v722
  %957 = vmatprep.subr.bf16.mxu0 0
  %958 = vmatpush1.bf16.msra.mxu0 %v723
  %959 = vmatprep.subr.bf16.mxu0 0
  %960 = vmatpush1.bf16.msra.mxu0 %v724
  %961 = vmatprep.subr.bf16.mxu0 0
  %962 = vmatpush1.bf16.msra.mxu0 %v725
  %963 = vmatprep.subr.bf16.mxu0 0
  %964 = vmatpush1.bf16.msra.mxu0 %v726
  %965 = vmatprep.subr.bf16.mxu0 0
  %966 = vmatpush1.bf16.msra.mxu0 %v727
  %967 = vmatprep.subr.bf16.mxu0 0
  %968 = vmatpush1.bf16.msra.mxu0 %v728
  %969 = vmatprep.subr.bf16.mxu0 0
  %970 = vmatpush1.bf16.msra.mxu0 %v729
  %971 = vmatprep.subr.bf16.mxu0 0
  %972 = vmatpush1.bf16.msra.mxu0 %v730
  %973 = vmatprep.subr.bf16.mxu0 0
  %974 = vmatpush1.bf16.msra.mxu0 %v731
  %975 = vmatprep.subr.bf16.mxu0 0
  %976 = vmatpush1.bf16.msra.mxu0 %v732
  %977 = vmatprep.subr.bf16.mxu0 0
  %978 = vmatpush1.bf16.msra.mxu0 %v733
  %979 = vmatprep.subr.bf16.mxu0 0
  %980 = vmatpush1.bf16.msra.mxu0 %v734
  %981 = vmatprep.subr.bf16.mxu0 0
  %982 = vmatpush1.bf16.msra.mxu0 %v735
  %983 = vmatprep.subr.bf16.mxu0 0
  %984 = vmatpush1.bf16.msra.mxu0 %v736
  %985 = vmatprep.mubr.bf16.mxu0 %v266
  %986 = vmatmul.mubr.bf16.gmra.mrb[0].mxu0 %v265
  %v987 = vpop.f32.mrb[0].mxu0
  %v988 = vadd.f32 %v948, %v987
  %v989 = vpop.f32.mrb[0].mxu0
  %v990 = vpop.f32.mrb[0].mxu0
  %v991 = vpop.f32.mrb[0].mxu0
  %992 = vdwg.mxu0
  %993 = vmatprep.subr.bf16.mxu0 0
  %994 = vmatpush1.bf16.msra.mxu0 %v737
  %995 = vmatprep.subr.bf16.mxu0 0
  %996 = vmatpush1.bf16.msra.mxu0 %v738
  %997 = vmatprep.subr.bf16.mxu0 0
  %998 = vmatpush1.bf16.msra.mxu0 %v739
  %999 = vmatprep.subr.bf16.mxu0 0
  %1000 = vmatpush1.bf16.msra.mxu0 %v740
  %1001 = vmatprep.subr.bf16.mxu0 0
  %1002 = vmatpush1.bf16.msra.mxu0 %v741
  %1003 = vmatprep.subr.bf16.mxu0 0
  %1004 = vmatpush1.bf16.msra.mxu0 %v742
  %1005 = vmatprep.subr.bf16.mxu0 0
  %1006 = vmatpush1.bf16.msra.mxu0 %v743
  %1007 = vmatprep.subr.bf16.mxu0 0
  %1008 = vmatpush1.bf16.msra.mxu0 %v744
  %1009 = vmatprep.subr.bf16.mxu0 0
  %1010 = vmatpush1.bf16.msra.mxu0 %v745
  %1011 = vmatprep.subr.bf16.mxu0 0
  %1012 = vmatpush1.bf16.msra.mxu0 %v746
  %1013 = vmatprep.subr.bf16.mxu0 0
  %1014 = vmatpush1.bf16.msra.mxu0 %v747
  %1015 = vmatprep.subr.bf16.mxu0 0
  %1016 = vmatpush1.bf16.msra.mxu0 %v748
  %1017 = vmatprep.subr.bf16.mxu0 0
  %1018 = vmatpush1.bf16.msra.mxu0 %v749
  %1019 = vmatprep.subr.bf16.mxu0 0
  %1020 = vmatpush1.bf16.msra.mxu0 %v750
  %1021 = vmatprep.subr.bf16.mxu0 0
  %1022 = vmatpush1.bf16.msra.mxu0 %v751
  %1023 = vmatprep.subr.bf16.mxu0 0
  %1024 = vmatpush1.bf16.msra.mxu0 %v752
  %1025 = vmatprep.mubr.bf16.mxu0 %v268
  %1026 = vmatmul.mubr.bf16.gmra.mrb[0].mxu0 %v267
  %v1027 = vpop.f32.mrb[0].mxu0
  %v1028 = vadd.f32 %v988, %v1027
  %v1029 = vpop.f32.mrb[0].mxu0
  %v1030 = vpop.f32.mrb[0].mxu0
  %v1031 = vpop.f32.mrb[0].mxu0
  %1032 = vdwg.mxu0
  %1033 = vmatprep.subr.bf16.mxu0 0
  %1034 = vmatpush1.bf16.msra.mxu0 %v753
  %1035 = vmatprep.subr.bf16.mxu0 0
  %1036 = vmatpush1.bf16.msra.mxu0 %v754
  %1037 = vmatprep.subr.bf16.mxu0 0
  %1038 = vmatpush1.bf16.msra.mxu0 %v755
  %1039 = vmatprep.subr.bf16.mxu0 0
  %1040 = vmatpush1.bf16.msra.mxu0 %v756
  %1041 = vmatprep.subr.bf16.mxu0 0
  %1042 = vmatpush1.bf16.msra.mxu0 %v757
  %1043 = vmatprep.subr.bf16.mxu0 0
  %1044 = vmatpush1.bf16.msra.mxu0 %v758
  %1045 = vmatprep.subr.bf16.mxu0 0
  %1046 = vmatpush1.bf16.msra.mxu0 %v759
  %1047 = vmatprep.subr.bf16.mxu0 0
  %1048 = vmatpush1.bf16.msra.mxu0 %v760
  %1049 = vmatprep.subr.bf16.mxu0 0
  %1050 = vmatpush1.bf16.msra.mxu0 %v761
  %1051 = vmatprep.subr.bf16.mxu0 0
  %1052 = vmatpush1.bf16.msra.mxu0 %v762
  %1053 = vmatprep.subr.bf16.mxu0 0
  %1054 = vmatpush1.bf16.msra.mxu0 %v763
  %1055 = vmatprep.subr.bf16.mxu0 0
  %1056 = vmatpush1.bf16.msra.mxu0 %v764
  %1057 = vmatprep.subr.bf16.mxu0 0
  %1058 = vmatpush1.bf16.msra.mxu0 %v765
  %1059 = vmatprep.subr.bf16.mxu0 0
  %1060 = vmatpush1.bf16.msra.mxu0 %v766
  %1061 = vmatprep.subr.bf16.mxu0 0
  %1062 = vmatpush1.bf16.msra.mxu0 %v767
  %1063 = vmatprep.subr.bf16.mxu0 0
  %1064 = vmatpush1.bf16.msra.mxu0 %v768
  %1065 = vmatprep.mubr.bf16.mxu0 %v270
  %1066 = vmatmul.mubr.bf16.gmra.mrb[0].mxu0 %v269
  %v1067 = vpop.f32.mrb[0].mxu0
  %v1068 = vadd.f32 %v1028, %v1067
  %v1069 = vpop.f32.mrb[0].mxu0
  %v1070 = vpop.f32.mrb[0].mxu0
  %v1071 = vpop.f32.mrb[0].mxu0
  %1072 = vdwg.mxu0
  %1073 = vmatprep.subr.bf16.mxu0 0
  %1074 = vmatpush1.bf16.msra.mxu0 %v769
  %1075 = vmatprep.subr.bf16.mxu0 0
  %1076 = vmatpush1.bf16.msra.mxu0 %v770
  %1077 = vmatprep.subr.bf16.mxu0 0
  %1078 = vmatpush1.bf16.msra.mxu0 %v771
  %1079 = vmatprep.subr.bf16.mxu0 0
  %1080 = vmatpush1.bf16.msra.mxu0 %v772
  %1081 = vmatprep.subr.bf16.mxu0 0
  %1082 = vmatpush1.bf16.msra.mxu0 %v773
  %1083 = vmatprep.subr.bf16.mxu0 0
  %1084 = vmatpush1.bf16.msra.mxu0 %v774
  %1085 = vmatprep.subr.bf16.mxu0 0
  %1086 = vmatpush1.bf16.msra.mxu0 %v775
  %1087 = vmatprep.subr.bf16.mxu0 0
  %1088 = vmatpush1.bf16.msra.mxu0 %v776
  %1089 = vmatprep.subr.bf16.mxu0 0
  %1090 = vmatpush1.bf16.msra.mxu0 %v777
  %1091 = vmatprep.subr.bf16.mxu0 0
  %1092 = vmatpush1.bf16.msra.mxu0 %v778
  %1093 = vmatprep.subr.bf16.mxu0 0
  %1094 = vmatpush1.bf16.msra.mxu0 %v779
  %1095 = vmatprep.subr.bf16.mxu0 0
  %1096 = vmatpush1.bf16.msra.mxu0 %v780
  %1097 = vmatprep.subr.bf16.mxu0 0
  %1098 = vmatpush1.bf16.msra.mxu0 %v781
  %1099 = vmatprep.subr.bf16.mxu0 0
  %1100 = vmatpush1.bf16.msra.mxu0 %v782
  %1101 = vmatprep.subr.bf16.mxu0 0
  %1102 = vmatpush1.bf16.msra.mxu0 %v783
  %1103 = vmatprep.subr.bf16.mxu0 0
  %1104 = vmatpush1.bf16.msra.mxu0 %v784
  %1105 = vmatprep.mubr.bf16.mxu0 %v272
  %1106 = vmatmul.mubr.bf16.gmra.mrb[0].mxu0 %v271
  %v1107 = vpop.f32.mrb[0].mxu0
  %v1108 = vadd.f32 %v1068, %v1107
  %v1109 = vpop.f32.mrb[0].mxu0
  %v1110 = vpop.f32.mrb[0].mxu0
  %v1111 = vpop.f32.mrb[0].mxu0
  %1112 = vdwg.mxu0
  %1113 = vmatprep.subr.bf16.mxu0 0
  %1114 = vmatpush1.bf16.msra.mxu0 %v785
  %1115 = vmatprep.subr.bf16.mxu0 0
  %1116 = vmatpush1.bf16.msra.mxu0 %v786
  %1117 = vmatprep.subr.bf16.mxu0 0
  %1118 = vmatpush1.bf16.msra.mxu0 %v787
  %1119 = vmatprep.subr.bf16.mxu0 0
  %1120 = vmatpush1.bf16.msra.mxu0 %v788
  %1121 = vmatprep.subr.bf16.mxu0 0
  %1122 = vmatpush1.bf16.msra.mxu0 %v789
  %1123 = vmatprep.subr.bf16.mxu0 0
  %1124 = vmatpush1.bf16.msra.mxu0 %v790
  %1125 = vmatprep.subr.bf16.mxu0 0
  %1126 = vmatpush1.bf16.msra.mxu0 %v791
  %1127 = vmatprep.subr.bf16.mxu0 0
  %1128 = vmatpush1.bf16.msra.mxu0 %v792
  %1129 = vmatprep.subr.bf16.mxu0 0
  %1130 = vmatpush1.bf16.msra.mxu0 %v793
  %1131 = vmatprep.subr.bf16.mxu0 0
  %1132 = vmatpush1.bf16.msra.mxu0 %v794
  %1133 = vmatprep.subr.bf16.mxu0 0
  %1134 = vmatpush1.bf16.msra.mxu0 %v795
  %1135 = vmatprep.subr.bf16.mxu0 0
  %1136 = vmatpush1.bf16.msra.mxu0 %v796
  %1137 = vmatprep.subr.bf16.mxu0 0
  %1138 = vmatpush1.bf16.msra.mxu0 %v797
  %1139 = vmatprep.subr.bf16.mxu0 0
  %1140 = vmatpush1.bf16.msra.mxu0 %v798
  %1141 = vmatprep.subr.bf16.mxu0 0
  %1142 = vmatpush1.bf16.msra.mxu0 %v799
  %1143 = vmatprep.subr.bf16.mxu0 0
  %1144 = vmatpush1.bf16.msra.mxu0 %v800
  %1145 = vmatprep.mubr.bf16.mxu0 %v274
  %1146 = vmatmul.mubr.bf16.gmra.mrb[0].mxu0 %v273
  %v1147 = vpop.f32.mrb[0].mxu0
  %v1148 = vadd.f32 %v1108, %v1147
  %v1149 = vpop.f32.mrb[0].mxu0
  %v1150 = vpop.f32.mrb[0].mxu0
  %v1151 = vpop.f32.mrb[0].mxu0
  %1152 = vdwg.mxu0
  %1153 = vmatprep.subr.bf16.mxu0 0
  %1154 = vmatpush1.bf16.msra.mxu0 %v801
  %1155 = vmatprep.subr.bf16.mxu0 0
  %1156 = vmatpush1.bf16.msra.mxu0 %v802
  %1157 = vmatprep.subr.bf16.mxu0 0
  %1158 = vmatpush1.bf16.msra.mxu0 %v803
  %1159 = vmatprep.subr.bf16.mxu0 0
  %1160 = vmatpush1.bf16.msra.mxu0 %v804
  %1161 = vmatprep.subr.bf16.mxu0 0
  %1162 = vmatpush1.bf16.msra.mxu0 %v805
  %1163 = vmatprep.subr.bf16.mxu0 0
  %1164 = vmatpush1.bf16.msra.mxu0 %v806
  %1165 = vmatprep.subr.bf16.mxu0 0
  %1166 = vmatpush1.bf16.msra.mxu0 %v807
  %1167 = vmatprep.subr.bf16.mxu0 0
  %1168 = vmatpush1.bf16.msra.mxu0 %v808
  %1169 = vmatprep.subr.bf16.mxu0 0
  %1170 = vmatpush1.bf16.msra.mxu0 0
  %1171 = vmatprep.subr.bf16.mxu0 0
  %1172 = vmatpush1.bf16.msra.mxu0 0
  %1173 = vmatprep.subr.bf16.mxu0 0
  %1174 = vmatpush1.bf16.msra.mxu0 0
  %1175 = vmatprep.subr.bf16.mxu0 0
  %1176 = vmatpush1.bf16.msra.mxu0 0
  %1177 = vmatprep.subr.bf16.mxu0 0
  %1178 = vmatpush1.bf16.msra.mxu0 0
  %1179 = vmatprep.subr.bf16.mxu0 0
  %1180 = vmatpush1.bf16.msra.mxu0 0
  %1181 = vmatprep.subr.bf16.mxu0 0
  %1182 = vmatpush1.bf16.msra.mxu0 0
  %1183 = vmatprep.subr.bf16.mxu0 0
  %1184 = vmatpush1.bf16.msra.mxu0 0
  %1185 = vmatprep.mubr.bf16.mxu0 0
  %1186 = vmatmul.mubr.bf16.gmra.mrb[0].mxu0 %v275
  %v1187 = vpop.f32.mrb[0].mxu0
  %v1188 = vadd.f32 %v1148, %v1187
  %v1189 = vpop.f32.mrb[0].mxu0
  %v1190 = vpop.f32.mrb[0].mxu0
  %v1191 = vpop.f32.mrb[0].mxu0
  %1192 = vdwg.mxu0
  %v1193 = vmax.f32 %v1188, 0.0
  %v1194 = vrot.slane %v1193, 4
  %v1195 = vadd.f32 %v1193, %v1194
  %v1196 = vrot.slane %v1195, 2
  %v1197 = vadd.f32 %v1195, %v1196
  %v1198 = vrot.slane %v1197, 1
  %v1199 = vadd.f32 %v1197, %v1198
  %v1200 = vmul.f32 %v1193, %v1193
  %v1201 = vrot.slane %v1200, 4
  %v1202 = vadd.f32 %v1200, %v1201
  %v1203 = vrot.slane %v1202, 2
  %v1204 = vadd.f32 %v1202, %v1203
  %v1205 = vrot.slane %v1204, 1
  %v1206 = vadd.f32 %v1204, %v1205
  %v1207 = vmul.f32 %v1199, 0.125
  %v1208 = vmul.f32 %v1206, 0.125
  %v1209 = vmul.f32 %v1207, %v1207
  %v1210 = vsub.f32 %v1208, %v1209
  %v1211 = vmax.f32 %v1210, 0.0
  %v1212 = vadd.f32 %v1211, 1e-05
  %v1213 = vrsqrt.pop %v1212
  %v1214 = vld [vmem:[%s3] sm:$0x1]
  %v1215 = vmul.f32 %v1213, %v1214
  %v1216 = vld [vmem:[%s4] sm:$0x1]
  %v1217 = vmul.f32 %v1207, %v1215
  %v1218 = vsub.f32 %v1216, %v1217
  %v1219 = vlaneseq
  %v1220 = vshrl.u32 %v1219, 7
  %v1221 = vsub.s32 0, %v1220
  %v1222 = vrot.slane %v1215, %v1221
  %v1223 = vmul.f32 %v1193, %v1222
  %v1225 = vlaneseq
  %v1226 = vshrl.u32 %v1225, 7
  %v1227 = vsub.s32 0, %v1226
  %v1228 = vrot.slane %v1218, %v1227
  %v1230 = vadd.f32 %v1223, %v1228
  %vm1231 = vcmp.ge.f32.partialorder %v1230, 0.0
  %v1232 = vsel %vm1231, 1.0, -1.0
  %v1233 = vpack.c.bf16 %v1232, %v1232
  %1234 = vst [vmem:[%s5] sm:$0xf] %v1233
  // Predicated region
  $region22: #{_lambda_.8} parent=0 // pred_check
    _
  $region23: #{_lambda_.8} parent=0 // pred_check_branch
    %1236 = sbr.rel (0) target = $region25
  $region24: #{_lambda_.8} parent=0 // pred_region
    _
  $region25: #{_lambda_.8} parent=0 // pred_fallthru
    _
  // Predicated region
  $region26: #{_lambda_.8} parent=0 // pred_check
    _
  $region27: #{_lambda_.8} parent=0 // pred_check_branch
    %1238 = sbr.rel (0) target = $region29
  $region28: #{_lambda_.8} parent=0 // pred_region
    _
  $region29: #{_lambda_.8} parent=0 // pred_fallthru
    _

// kernel: _lambda_.9
$region0: #{_lambda_.9}
  #allocation0 [shape = 'u32[]', space=smem, size = 0x4, offset = 0x4, fixed_abs, tag = 'smem constant byte address 0x4 - core index']
  #allocation1 [shape = 'u32[144,128]{1,0:T(1,128)}', space=vmem, size = 0x12000, scoped, tag = 'internal scratch']
  %s0 = inlined_call_operand.vmem [shape: bf16[8,1152], index: 0, kind: input, shape index: {}]
  %s1 = inlined_call_operand.vmem [shape: bf16[1152,512], index: 1, kind: input, shape index: {}]
  %s2 = inlined_call_operand.vmem [shape: f32[1,512], index: 2, kind: input, shape index: {}]
  %s3 = inlined_call_operand.vmem [shape: f32[1,128], index: 3, kind: input, shape index: {}]
  %s4 = inlined_call_operand.vmem [shape: f32[1,128], index: 4, kind: input, shape index: {}]
  %s5 = inlined_call_operand.vmem [shape: bf16[8,512], index: 5, kind: output, shape index: {}]
  %s6 = sld [smem:[#allocation0]]
  $region30: #{_lambda_.9} parent=0
    _
  %s8 = ssub.s32 1, %s6
  %s9 = scalar_select 0, %s8, %s6
  // Predicated region
  $region2: #{_lambda_.9} parent=0 // pred_check
    _
  $region3: #{_lambda_.9} parent=0 // pred_check_branch
    %11 = sbr.rel (0) target = $region5
  $region4: #{_lambda_.9} parent=0 // pred_region
    _
  $region5: #{_lambda_.9} parent=0 // pred_fallthru
    _
  // Predicated region
  $region6: #{_lambda_.9} parent=0 // pred_check
    _
  $region7: #{_lambda_.9} parent=0 // pred_check_branch
    %13 = sbr.rel (0) target = $region9
  $region8: #{_lambda_.9} parent=0 // pred_region
    _
  $region9: #{_lambda_.9} parent=0 // pred_fallthru
    _
  // Predicated region
  $region10: #{_lambda_.9} parent=0 // pred_check
    _
  $region11: #{_lambda_.9} parent=0 // pred_check_branch
    %15 = sbr.rel (0) target = $region13
  $region12: #{_lambda_.9} parent=0 // pred_region
    _
  $region13: #{_lambda_.9} parent=0 // pred_fallthru
    _
  // Predicated region
  $region14: #{_lambda_.9} parent=0 // pred_check
    _
  $region15: #{_lambda_.9} parent=0 // pred_check_branch
    %17 = sbr.rel (0) target = $region17
  $region16: #{_lambda_.9} parent=0 // pred_region
    _
  $region17: #{_lambda_.9} parent=0 // pred_fallthru
    _
  // Predicated region
  $region18: #{_lambda_.9} parent=0 // pred_check
    _
  $region19: #{_lambda_.9} parent=0 // pred_check_branch
    %19 = sbr.rel (0) target = $region21
  $region20: #{_lambda_.9} parent=0 // pred_region
    _
  $region21: #{_lambda_.9} parent=0 // pred_fallthru
    _
  %v21 = vld [vmem:[%s0] sm:$0xff]
  %v22 = vld [vmem:[%s0 + $0x8] sm:$0xff]
  %v23 = vld [vmem:[%s0 + $0x10] sm:$0xff]
  %v24 = vld [vmem:[%s0 + $0x18] sm:$0xff]
  %v25 = vld [vmem:[%s0 + $0x20] sm:$0xf]
  %v26 = vld [vmem:[%s1] sm:$0xff]
  %v27 = vld [vmem:[%s1 + $0x8] sm:$0xff]
  %v28 = vld [vmem:[%s1 + $0x10] sm:$0xff]
  %v29 = vld [vmem:[%s1 + $0x18] sm:$0xff]
  %v30 = vld [vmem:[%s1 + $0x20] sm:$0xff]
  %v31 = vld [vmem:[%s1 + $0x28] sm:$0xff]
  %v32 = vld [vmem:[%s1 + $0x30] sm:$0xff]
  %v33 = vld [vmem:[%s1 + $0x38] sm:$0xff]
  %v34 = vld [vmem:[%s1 + $0x40] sm:$0xff]
  %v35 = vld [vmem:[%s1 + $0x48] sm:$0xff]
  %v36 = vld [vmem:[%s1 + $0x50] sm:$0xff]
  %v37 = vld [vmem:[%s1 + $0x58] sm:$0xff]
  %v38 = vld [vmem:[%s1 + $0x60] sm:$0xff]
  %v39 = vld [vmem:[%s1 + $0x68] sm:$0xff]
  %v40 = vld [vmem:[%s1 + $0x70] sm:$0xff]
  %v41 = vld [vmem:[%s1 + $0x78] sm:$0xff]
  %v42 = vld [vmem:[%s1 + $0x80] sm:$0xff]
  %v43 = vld [vmem:[%s1 + $0x88] sm:$0xff]
  %v44 = vld [vmem:[%s1 + $0x90] sm:$0xff]
  %v45 = vld [vmem:[%s1 + $0x98] sm:$0xff]
  %v46 = vld [vmem:[%s1 + $0xa0] sm:$0xff]
  %v47 = vld [vmem:[%s1 + $0xa8] sm:$0xff]
  %v48 = vld [vmem:[%s1 + $0xb0] sm:$0xff]
  %v49 = vld [vmem:[%s1 + $0xb8] sm:$0xff]
  %v50 = vld [vmem:[%s1 + $0xc0] sm:$0xff]
  %v51 = vld [vmem:[%s1 + $0xc8] sm:$0xff]
  %v52 = vld [vmem:[%s1 + $0xd0] sm:$0xff]
  %v53 = vld [vmem:[%s1 + $0xd8] sm:$0xff]
  %v54 = vld [vmem:[%s1 + $0xe0] sm:$0xff]
  %v55 = vld [vmem:[%s1 + $0xe8] sm:$0xff]
  %v56 = vld [vmem:[%s1 + $0xf0] sm:$0xff]
  %v57 = vld [vmem:[%s1 + $0xf8] sm:$0xff]
  %v58 = vld [vmem:[%s1 + $0x100] sm:$0xff]
  %v59 = vld [vmem:[%s1 + $0x108] sm:$0xff]
  %v60 = vld [vmem:[%s1 + $0x110] sm:$0xff]
  %v61 = vld [vmem:[%s1 + $0x118] sm:$0xff]
  %v62 = vld [vmem:[%s1 + $0x120] sm:$0xff]
  %v63 = vld [vmem:[%s1 + $0x128] sm:$0xff]
  %v64 = vld [vmem:[%s1 + $0x130] sm:$0xff]
  %v65 = vld [vmem:[%s1 + $0x138] sm:$0xff]
  %v66 = vld [vmem:[%s1 + $0x140] sm:$0xff]
  %v67 = vld [vmem:[%s1 + $0x148] sm:$0xff]
  %v68 = vld [vmem:[%s1 + $0x150] sm:$0xff]
  %v69 = vld [vmem:[%s1 + $0x158] sm:$0xff]
  %v70 = vld [vmem:[%s1 + $0x160] sm:$0xff]
  %v71 = vld [vmem:[%s1 + $0x168] sm:$0xff]
  %v72 = vld [vmem:[%s1 + $0x170] sm:$0xff]
  %v73 = vld [vmem:[%s1 + $0x178] sm:$0xff]
  %v74 = vld [vmem:[%s1 + $0x180] sm:$0xff]
  %v75 = vld [vmem:[%s1 + $0x188] sm:$0xff]
  %v76 = vld [vmem:[%s1 + $0x190] sm:$0xff]
  %v77 = vld [vmem:[%s1 + $0x198] sm:$0xff]
  %v78 = vld [vmem:[%s1 + $0x1a0] sm:$0xff]
  %v79 = vld [vmem:[%s1 + $0x1a8] sm:$0xff]
  %v80 = vld [vmem:[%s1 + $0x1b0] sm:$0xff]
  %v81 = vld [vmem:[%s1 + $0x1b8] sm:$0xff]
  %v82 = vld [vmem:[%s1 + $0x1c0] sm:$0xff]
  %v83 = vld [vmem:[%s1 + $0x1c8] sm:$0xff]
  %v84 = vld [vmem:[%s1 + $0x1d0] sm:$0xff]
  %v85 = vld [vmem:[%s1 + $0x1d8] sm:$0xff]
  %v86 = vld [vmem:[%s1 + $0x1e0] sm:$0xff]
  %v87 = vld [vmem:[%s1 + $0x1e8] sm:$0xff]
  %v88 = vld [vmem:[%s1 + $0x1f0] sm:$0xff]
  %v89 = vld [vmem:[%s1 + $0x1f8] sm:$0xff]
  %v90 = vld [vmem:[%s1 + $0x200] sm:$0xff]
  %v91 = vld [vmem:[%s1 + $0x208] sm:$0xff]
  %v92 = vld [vmem:[%s1 + $0x210] sm:$0xff]
  %v93 = vld [vmem:[%s1 + $0x218] sm:$0xff]
  %v94 = vld [vmem:[%s1 + $0x220] sm:$0xff]
  %v95 = vld [vmem:[%s1 + $0x228] sm:$0xff]
  %v96 = vld [vmem:[%s1 + $0x230] sm:$0xff]
  %v97 = vld [vmem:[%s1 + $0x238] sm:$0xff]
  %v98 = vld [vmem:[%s1 + $0x240] sm:$0xff]
  %v99 = vld [vmem:[%s1 + $0x248] sm:$0xff]
  %v100 = vld [vmem:[%s1 + $0x250] sm:$0xff]
  %v101 = vld [vmem:[%s1 + $0x258] sm:$0xff]
  %v102 = vld [vmem:[%s1 + $0x260] sm:$0xff]
  %v103 = vld [vmem:[%s1 + $0x268] sm:$0xff]
  %v104 = vld [vmem:[%s1 + $0x270] sm:$0xff]
  %v105 = vld [vmem:[%s1 + $0x278] sm:$0xff]
  %v106 = vld [vmem:[%s1 + $0x280] sm:$0xff]
  %v107 = vld [vmem:[%s1 + $0x288] sm:$0xff]
  %v108 = vld [vmem:[%s1 + $0x290] sm:$0xff]
  %v109 = vld [vmem:[%s1 + $0x298] sm:$0xff]
  %v110 = vld [vmem:[%s1 + $0x2a0] sm:$0xff]
  %v111 = vld [vmem:[%s1 + $0x2a8] sm:$0xff]
  %v112 = vld [vmem:[%s1 + $0x2b0] sm:$0xff]
  %v113 = vld [vmem:[%s1 + $0x2b8] sm:$0xff]
  %v114 = vld [vmem:[%s1 + $0x2c0] sm:$0xff]
  %v115 = vld [vmem:[%s1 + $0x2c8] sm:$0xff]
  %v116 = vld [vmem:[%s1 + $0x2d0] sm:$0xff]
  %v117 = vld [vmem:[%s1 + $0x2d8] sm:$0xff]
  %v118 = vld [vmem:[%s1 + $0x2e0] sm:$0xff]
  %v119 = vld [vmem:[%s1 + $0x2e8] sm:$0xff]
  %v120 = vld [vmem:[%s1 + $0x2f0] sm:$0xff]
  %v121 = vld [vmem:[%s1 + $0x2f8] sm:$0xff]
  %v122 = vld [vmem:[%s1 + $0x300] sm:$0xff]
  %v123 = vld [vmem:[%s1 + $0x308] sm:$0xff]
  %v124 = vld [vmem:[%s1 + $0x310] sm:$0xff]
  %v125 = vld [vmem:[%s1 + $0x318] sm:$0xff]
  %v126 = vld [vmem:[%s1 + $0x320] sm:$0xff]
  %v127 = vld [vmem:[%s1 + $0x328] sm:$0xff]
  %v128 = vld [vmem:[%s1 + $0x330] sm:$0xff]
  %v129 = vld [vmem:[%s1 + $0x338] sm:$0xff]
  %v130 = vld [vmem:[%s1 + $0x340] sm:$0xff]
  %v131 = vld [vmem:[%s1 + $0x348] sm:$0xff]
  %v132 = vld [vmem:[%s1 + $0x350] sm:$0xff]
  %v133 = vld [vmem:[%s1 + $0x358] sm:$0xff]
  %v134 = vld [vmem:[%s1 + $0x360] sm:$0xff]
  %v135 = vld [vmem:[%s1 + $0x368] sm:$0xff]
  %v136 = vld [vmem:[%s1 + $0x370] sm:$0xff]
  %v137 = vld [vmem:[%s1 + $0x378] sm:$0xff]
  %v138 = vld [vmem:[%s1 + $0x380] sm:$0xff]
  %v139 = vld [vmem:[%s1 + $0x388] sm:$0xff]
  %v140 = vld [vmem:[%s1 + $0x390] sm:$0xff]
  %v141 = vld [vmem:[%s1 + $0x398] sm:$0xff]
  %v142 = vld [vmem:[%s1 + $0x3a0] sm:$0xff]
  %v143 = vld [vmem:[%s1 + $0x3a8] sm:$0xff]
  %v144 = vld [vmem:[%s1 + $0x3b0] sm:$0xff]
  %v145 = vld [vmem:[%s1 + $0x3b8] sm:$0xff]
  %v146 = vld [vmem:[%s1 + $0x3c0] sm:$0xff]
  %v147 = vld [vmem:[%s1 + $0x3c8] sm:$0xff]
  %v148 = vld [vmem:[%s1 + $0x3d0] sm:$0xff]
  %v149 = vld [vmem:[%s1 + $0x3d8] sm:$0xff]
  %v150 = vld [vmem:[%s1 + $0x3e0] sm:$0xff]
  %v151 = vld [vmem:[%s1 + $0x3e8] sm:$0xff]
  %v152 = vld [vmem:[%s1 + $0x3f0] sm:$0xff]
  %v153 = vld [vmem:[%s1 + $0x3f8] sm:$0xff]
  %v154 = vld [vmem:[%s1 + $0x400] sm:$0xff]
  %v155 = vld [vmem:[%s1 + $0x408] sm:$0xff]
  %v156 = vld [vmem:[%s1 + $0x410] sm:$0xff]
  %v157 = vld [vmem:[%s1 + $0x418] sm:$0xff]
  %v158 = vld [vmem:[%s1 + $0x420] sm:$0xff]
  %v159 = vld [vmem:[%s1 + $0x428] sm:$0xff]
  %v160 = vld [vmem:[%s1 + $0x430] sm:$0xff]
  %v161 = vld [vmem:[%s1 + $0x438] sm:$0xff]
  %v162 = vld [vmem:[%s1 + $0x440] sm:$0xff]
  %v163 = vld [vmem:[%s1 + $0x448] sm:$0xff]
  %v164 = vld [vmem:[%s1 + $0x450] sm:$0xff]
  %v165 = vld [vmem:[%s1 + $0x458] sm:$0xff]
  %v166 = vld [vmem:[%s1 + $0x460] sm:$0xff]
  %v167 = vld [vmem:[%s1 + $0x468] sm:$0xff]
  %v168 = vld [vmem:[%s1 + $0x470] sm:$0xff]
  %v169 = vld [vmem:[%s1 + $0x478] sm:$0xff]
  %v170 = vld [vmem:[%s1 + $0x480] sm:$0xff]
  %v171 = vld [vmem:[%s1 + $0x488] sm:$0xff]
  %v172 = vld [vmem:[%s1 + $0x490] sm:$0xff]
  %v173 = vld [vmem:[%s1 + $0x498] sm:$0xff]
  %v174 = vld [vmem:[%s1 + $0x4a0] sm:$0xff]
  %v175 = vld [vmem:[%s1 + $0x4a8] sm:$0xff]
  %v176 = vld [vmem:[%s1 + $0x4b0] sm:$0xff]
  %v177 = vld [vmem:[%s1 + $0x4b8] sm:$0xff]
  %v178 = vld [vmem:[%s1 + $0x4c0] sm:$0xff]
  %v179 = vld [vmem:[%s1 + $0x4c8] sm:$0xff]
  %v180 = vld [vmem:[%s1 + $0x4d0] sm:$0xff]
  %v181 = vld [vmem:[%s1 + $0x4d8] sm:$0xff]
  %v182 = vld [vmem:[%s1 + $0x4e0] sm:$0xff]
  %v183 = vld [vmem:[%s1 + $0x4e8] sm:$0xff]
  %v184 = vld [vmem:[%s1 + $0x4f0] sm:$0xff]
  %v185 = vld [vmem:[%s1 + $0x4f8] sm:$0xff]
  %v186 = vld [vmem:[%s1 + $0x500] sm:$0xff]
  %v187 = vld [vmem:[%s1 + $0x508] sm:$0xff]
  %v188 = vld [vmem:[%s1 + $0x510] sm:$0xff]
  %v189 = vld [vmem:[%s1 + $0x518] sm:$0xff]
  %v190 = vld [vmem:[%s1 + $0x520] sm:$0xff]
  %v191 = vld [vmem:[%s1 + $0x528] sm:$0xff]
  %v192 = vld [vmem:[%s1 + $0x530] sm:$0xff]
  %v193 = vld [vmem:[%s1 + $0x538] sm:$0xff]
  %v194 = vld [vmem:[%s1 + $0x540] sm:$0xff]
  %v195 = vld [vmem:[%s1 + $0x548] sm:$0xff]
  %v196 = vld [vmem:[%s1 + $0x550] sm:$0xff]
  %v197 = vld [vmem:[%s1 + $0x558] sm:$0xff]
  %v198 = vld [vmem:[%s1 + $0x560] sm:$0xff]
  %v199 = vld [vmem:[%s1 + $0x568] sm:$0xff]
  %v200 = vld [vmem:[%s1 + $0x570] sm:$0xff]
  %v201 = vld [vmem:[%s1 + $0x578] sm:$0xff]
  %v202 = vld [vmem:[%s1 + $0x580] sm:$0xff]
  %v203 = vld [vmem:[%s1 + $0x588] sm:$0xff]
  %v204 = vld [vmem:[%s1 + $0x590] sm:$0xff]
  %v205 = vld [vmem:[%s1 + $0x598] sm:$0xff]
  %v206 = vld [vmem:[%s1 + $0x5a0] sm:$0xff]
  %v207 = vld [vmem:[%s1 + $0x5a8] sm:$0xff]
  %v208 = vld [vmem:[%s1 + $0x5b0] sm:$0xff]
  %v209 = vld [vmem:[%s1 + $0x5b8] sm:$0xff]
  %v210 = vld [vmem:[%s1 + $0x5c0] sm:$0xff]
  %v211 = vld [vmem:[%s1 + $0x5c8] sm:$0xff]
  %v212 = vld [vmem:[%s1 + $0x5d0] sm:$0xff]
  %v213 = vld [vmem:[%s1 + $0x5d8] sm:$0xff]
  %v214 = vld [vmem:[%s1 + $0x5e0] sm:$0xff]
  %v215 = vld [vmem:[%s1 + $0x5e8] sm:$0xff]
  %v216 = vld [vmem:[%s1 + $0x5f0] sm:$0xff]
  %v217 = vld [vmem:[%s1 + $0x5f8] sm:$0xff]
  %v218 = vld [vmem:[%s1 + $0x600] sm:$0xff]
  %v219 = vld [vmem:[%s1 + $0x608] sm:$0xff]
  %v220 = vld [vmem:[%s1 + $0x610] sm:$0xff]
  %v221 = vld [vmem:[%s1 + $0x618] sm:$0xff]
  %v222 = vld [vmem:[%s1 + $0x620] sm:$0xff]
  %v223 = vld [vmem:[%s1 + $0x628] sm:$0xff]
  %v224 = vld [vmem:[%s1 + $0x630] sm:$0xff]
  %v225 = vld [vmem:[%s1 + $0x638] sm:$0xff]
  %v226 = vld [vmem:[%s1 + $0x640] sm:$0xff]
  %v227 = vld [vmem:[%s1 + $0x648] sm:$0xff]
  %v228 = vld [vmem:[%s1 + $0x650] sm:$0xff]
  %v229 = vld [vmem:[%s1 + $0x658] sm:$0xff]
  %v230 = vld [vmem:[%s1 + $0x660] sm:$0xff]
  %v231 = vld [vmem:[%s1 + $0x668] sm:$0xff]
  %v232 = vld [vmem:[%s1 + $0x670] sm:$0xff]
  %v233 = vld [vmem:[%s1 + $0x678] sm:$0xff]
  %v234 = vld [vmem:[%s1 + $0x680] sm:$0xff]
  %v235 = vld [vmem:[%s1 + $0x688] sm:$0xff]
  %v236 = vld [vmem:[%s1 + $0x690] sm:$0xff]
  %v237 = vld [vmem:[%s1 + $0x698] sm:$0xff]
  %v238 = vld [vmem:[%s1 + $0x6a0] sm:$0xff]
  %v239 = vld [vmem:[%s1 + $0x6a8] sm:$0xff]
  %v240 = vld [vmem:[%s1 + $0x6b0] sm:$0xff]
  %v241 = vld [vmem:[%s1 + $0x6b8] sm:$0xff]
  %v242 = vld [vmem:[%s1 + $0x6c0] sm:$0xff]
  %v243 = vld [vmem:[%s1 + $0x6c8] sm:$0xff]
  %v244 = vld [vmem:[%s1 + $0x6d0] sm:$0xff]
  %v245 = vld [vmem:[%s1 + $0x6d8] sm:$0xff]
  %v246 = vld [vmem:[%s1 + $0x6e0] sm:$0xff]
  %v247 = vld [vmem:[%s1 + $0x6e8] sm:$0xff]
  %v248 = vld [vmem:[%s1 + $0x6f0] sm:$0xff]
  %v249 = vld [vmem:[%s1 + $0x6f8] sm:$0xff]
  %v250 = vld [vmem:[%s1 + $0x700] sm:$0xff]
  %v251 = vld [vmem:[%s1 + $0x708] sm:$0xff]
  %v252 = vld [vmem:[%s1 + $0x710] sm:$0xff]
  %v253 = vld [vmem:[%s1 + $0x718] sm:$0xff]
  %v254 = vld [vmem:[%s1 + $0x720] sm:$0xff]
  %v255 = vld [vmem:[%s1 + $0x728] sm:$0xff]
  %v256 = vld [vmem:[%s1 + $0x730] sm:$0xff]
  %v257 = vld [vmem:[%s1 + $0x738] sm:$0xff]
  %v258 = vld [vmem:[%s1 + $0x740] sm:$0xff]
  %v259 = vld [vmem:[%s1 + $0x748] sm:$0xff]
  %v260 = vld [vmem:[%s1 + $0x750] sm:$0xff]
  %v261 = vld [vmem:[%s1 + $0x758] sm:$0xff]
  %v262 = vld [vmem:[%s1 + $0x760] sm:$0xff]
  %v263 = vld [vmem:[%s1 + $0x768] sm:$0xff]
  %v264 = vld [vmem:[%s1 + $0x770] sm:$0xff]
  %v265 = vld [vmem:[%s1 + $0x778] sm:$0xff]
  %v266 = vld [vmem:[%s1 + $0x780] sm:$0xff]
  %v267 = vld [vmem:[%s1 + $0x788] sm:$0xff]
  %v268 = vld [vmem:[%s1 + $0x790] sm:$0xff]
  %v269 = vld [vmem:[%s1 + $0x798] sm:$0xff]
  %v270 = vld [vmem:[%s1 + $0x7a0] sm:$0xff]
  %v271 = vld [vmem:[%s1 + $0x7a8] sm:$0xff]
  %v272 = vld [vmem:[%s1 + $0x7b0] sm:$0xff]
  %v273 = vld [vmem:[%s1 + $0x7b8] sm:$0xff]
  %v274 = vld [vmem:[%s1 + $0x7c0] sm:$0xff]
  %v275 = vld [vmem:[%s1 + $0x7c8] sm:$0xff]
  %v276 = vld [vmem:[%s1 + $0x7d0] sm:$0xff]
  %v277 = vld [vmem:[%s1 + $0x7d8] sm:$0xff]
  %v278 = vld [vmem:[%s1 + $0x7e0] sm:$0xff]
  %v279 = vld [vmem:[%s1 + $0x7e8] sm:$0xff]
  %v280 = vld [vmem:[%s1 + $0x7f0] sm:$0xff]
  %v281 = vld [vmem:[%s1 + $0x7f8] sm:$0xff]
  %v282 = vld [vmem:[%s1 + $0x800] sm:$0xff]
  %v283 = vld [vmem:[%s1 + $0x808] sm:$0xff]
  %v284 = vld [vmem:[%s1 + $0x810] sm:$0xff]
  %v285 = vld [vmem:[%s1 + $0x818] sm:$0xff]
  %v286 = vld [vmem:[%s1 + $0x820] sm:$0xff]
  %v287 = vld [vmem:[%s1 + $0x828] sm:$0xff]
  %v288 = vld [vmem:[%s1 + $0x830] sm:$0xff]
  %v289 = vld [vmem:[%s1 + $0x838] sm:$0xff]
  %v290 = vld [vmem:[%s1 + $0x840] sm:$0xff]
  %v291 = vld [vmem:[%s1 + $0x848] sm:$0xff]
  %v292 = vld [vmem:[%s1 + $0x850] sm:$0xff]
  %v293 = vld [vmem:[%s1 + $0x858] sm:$0xff]
  %v294 = vld [vmem:[%s1 + $0x860] sm:$0xff]
  %v295 = vld [vmem:[%s1 + $0x868] sm:$0xff]
  %v296 = vld [vmem:[%s1 + $0x870] sm:$0xff]
  %v297 = vld [vmem:[%s1 + $0x878] sm:$0xff]
  %v298 = vld [vmem:[%s1 + $0x880] sm:$0xff]
  %v299 = vld [vmem:[%s1 + $0x888] sm:$0xff]
  %v300 = vld [vmem:[%s1 + $0x890] sm:$0xff]
  %v301 = vld [vmem:[%s1 + $0x898] sm:$0xff]
  %v302 = vld [vmem:[%s1 + $0x8a0] sm:$0xff]
  %v303 = vld [vmem:[%s1 + $0x8a8] sm:$0xff]
  %v304 = vld [vmem:[%s1 + $0x8b0] sm:$0xff]
  %v305 = vld [vmem:[%s1 + $0x8b8] sm:$0xff]
  %v306 = vld [vmem:[%s1 + $0x8c0] sm:$0xff]
  %v307 = vld [vmem:[%s1 + $0x8c8] sm:$0xff]
  %v308 = vld [vmem:[%s1 + $0x8d0] sm:$0xff]
  %v309 = vld [vmem:[%s1 + $0x8d8] sm:$0xff]
  %v310 = vld [vmem:[%s1 + $0x8e0] sm:$0xff]
  %v311 = vld [vmem:[%s1 + $0x8e8] sm:$0xff]
  %v312 = vld [vmem:[%s1 + $0x8f0] sm:$0xff]
  %v313 = vld [vmem:[%s1 + $0x8f8] sm:$0xff]
  %v319 = vunpack.c.l.b16 %v21
  %v320 = vunpack.c.h.b16 %v21
  %v321 = vunpack.c.l.b16 %v22
  %v322 = vunpack.c.h.b16 %v22
  %v323 = vunpack.c.l.b16 %v23
  %v324 = vunpack.c.h.b16 %v23
  %v325 = vunpack.c.l.b16 %v24
  %v326 = vunpack.c.h.b16 %v24
  %v327 = vunpack.c.l.b16 %v25
  %v328 = vpack.c.b16 %v319, %v319
  %v329 = vpack.c.b16 %v320, %v320
  %v330 = vpack.c.b16 %v321, %v321
  %v331 = vpack.c.b16 %v322, %v322
  %v332 = vpack.c.b16 %v323, %v323
  %v333 = vpack.c.b16 %v324, %v324
  %v334 = vpack.c.b16 %v325, %v325
  %v335 = vpack.c.b16 %v326, %v326
  %v336 = vpack.c.b16 %v327, %v327
  %v634 = vunpack.c.l.b16 %v26
  %v635 = vunpack.c.h.b16 %v26
  %v636 = vunpack.c.l.b16 %v27
  %v637 = vunpack.c.h.b16 %v27
  %v638 = vunpack.c.l.b16 %v28
  %v639 = vunpack.c.h.b16 %v28
  %v640 = vunpack.c.l.b16 %v29
  %v641 = vunpack.c.h.b16 %v29
  %v642 = vunpack.c.l.b16 %v30
  %v643 = vunpack.c.h.b16 %v30
  %v644 = vunpack.c.l.b16 %v31
  %v645 = vunpack.c.h.b16 %v31
  %v646 = vunpack.c.l.b16 %v32
  %v647 = vunpack.c.h.b16 %v32
  %v648 = vunpack.c.l.b16 %v33
  %v649 = vunpack.c.h.b16 %v33
  %v650 = vunpack.c.l.b16 %v34
  %v651 = vunpack.c.h.b16 %v34
  %v652 = vunpack.c.l.b16 %v35
  %v653 = vunpack.c.h.b16 %v35
  %v654 = vunpack.c.l.b16 %v36
  %v655 = vunpack.c.h.b16 %v36
  %v656 = vunpack.c.l.b16 %v37
  %v657 = vunpack.c.h.b16 %v37
  %v658 = vunpack.c.l.b16 %v38
  %v659 = vunpack.c.h.b16 %v38
  %v660 = vunpack.c.l.b16 %v39
  %v661 = vunpack.c.h.b16 %v39
  %v662 = vunpack.c.l.b16 %v40
  %v663 = vunpack.c.h.b16 %v40
  %v664 = vunpack.c.l.b16 %v41
  %v665 = vunpack.c.h.b16 %v41
  %v666 = vunpack.c.l.b16 %v42
  %v667 = vunpack.c.h.b16 %v42
  %v668 = vunpack.c.l.b16 %v43
  %v669 = vunpack.c.h.b16 %v43
  %v670 = vunpack.c.l.b16 %v44
  %v671 = vunpack.c.h.b16 %v44
  %v672 = vunpack.c.l.b16 %v45
  %v673 = vunpack.c.h.b16 %v45
  %v674 = vunpack.c.l.b16 %v46
  %v675 = vunpack.c.h.b16 %v46
  %v676 = vunpack.c.l.b16 %v47
  %v677 = vunpack.c.h.b16 %v47
  %v678 = vunpack.c.l.b16 %v48
  %v679 = vunpack.c.h.b16 %v48
  %v680 = vunpack.c.l.b16 %v49
  %v681 = vunpack.c.h.b16 %v49
  %v682 = vunpack.c.l.b16 %v50
  %v683 = vunpack.c.h.b16 %v50
  %v684 = vunpack.c.l.b16 %v51
  %v685 = vunpack.c.h.b16 %v51
  %v686 = vunpack.c.l.b16 %v52
  %v687 = vunpack.c.h.b16 %v52
  %v688 = vunpack.c.l.b16 %v53
  %v689 = vunpack.c.h.b16 %v53
  %v690 = vunpack.c.l.b16 %v54
  %v691 = vunpack.c.h.b16 %v54
  %v692 = vunpack.c.l.b16 %v55
  %v693 = vunpack.c.h.b16 %v55
  %v694 = vunpack.c.l.b16 %v56
  %v695 = vunpack.c.h.b16 %v56
  %v696 = vunpack.c.l.b16 %v57
  %v697 = vunpack.c.h.b16 %v57
  %v698 = vunpack.c.l.b16 %v58
  %v699 = vunpack.c.h.b16 %v58
  %v700 = vunpack.c.l.b16 %v59
  %v701 = vunpack.c.h.b16 %v59
  %v702 = vunpack.c.l.b16 %v60
  %v703 = vunpack.c.h.b16 %v60
  %v704 = vunpack.c.l.b16 %v61
  %v705 = vunpack.c.h.b16 %v61
  %v706 = vunpack.c.l.b16 %v62
  %v707 = vunpack.c.h.b16 %v62
  %v708 = vunpack.c.l.b16 %v63
  %v709 = vunpack.c.h.b16 %v63
  %v710 = vunpack.c.l.b16 %v64
  %v711 = vunpack.c.h.b16 %v64
  %v712 = vunpack.c.l.b16 %v65
  %v713 = vunpack.c.h.b16 %v65
  %v714 = vunpack.c.l.b16 %v66
  %v715 = vunpack.c.h.b16 %v66
  %v716 = vunpack.c.l.b16 %v67
  %v717 = vunpack.c.h.b16 %v67
  %v718 = vunpack.c.l.b16 %v68
  %v719 = vunpack.c.h.b16 %v68
  %v720 = vunpack.c.l.b16 %v69
  %v721 = vunpack.c.h.b16 %v69
  %v722 = vunpack.c.l.b16 %v70
  %v723 = vunpack.c.h.b16 %v70
  %v724 = vunpack.c.l.b16 %v71
  %v725 = vunpack.c.h.b16 %v71
  %v726 = vunpack.c.l.b16 %v72
  %v727 = vunpack.c.h.b16 %v72
  %v728 = vunpack.c.l.b16 %v73
  %v729 = vunpack.c.h.b16 %v73
  %v730 = vunpack.c.l.b16 %v74
  %v731 = vunpack.c.h.b16 %v74
  %v732 = vunpack.c.l.b16 %v75
  %v733 = vunpack.c.h.b16 %v75
  %v734 = vunpack.c.l.b16 %v76
  %v735 = vunpack.c.h.b16 %v76
  %v736 = vunpack.c.l.b16 %v77
  %v737 = vunpack.c.h.b16 %v77
  %v738 = vunpack.c.l.b16 %v78
  %v739 = vunpack.c.h.b16 %v78
  %v740 = vunpack.c.l.b16 %v79
  %v741 = vunpack.c.h.b16 %v79
  %v742 = vunpack.c.l.b16 %v80
  %v743 = vunpack.c.h.b16 %v80
  %v744 = vunpack.c.l.b16 %v81
  %v745 = vunpack.c.h.b16 %v81
  %v746 = vunpack.c.l.b16 %v82
  %v747 = vunpack.c.h.b16 %v82
  %v748 = vunpack.c.l.b16 %v83
  %v749 = vunpack.c.h.b16 %v83
  %v750 = vunpack.c.l.b16 %v84
  %v751 = vunpack.c.h.b16 %v84
  %v752 = vunpack.c.l.b16 %v85
  %v753 = vunpack.c.h.b16 %v85
  %v754 = vunpack.c.l.b16 %v86
  %v755 = vunpack.c.h.b16 %v86
  %v756 = vunpack.c.l.b16 %v87
  %v757 = vunpack.c.h.b16 %v87
  %v758 = vunpack.c.l.b16 %v88
  %v759 = vunpack.c.h.b16 %v88
  %v760 = vunpack.c.l.b16 %v89
  %v761 = vunpack.c.h.b16 %v89
  %v762 = vunpack.c.l.b16 %v90
  %v763 = vunpack.c.h.b16 %v90
  %v764 = vunpack.c.l.b16 %v91
  %v765 = vunpack.c.h.b16 %v91
  %v766 = vunpack.c.l.b16 %v92
  %v767 = vunpack.c.h.b16 %v92
  %v768 = vunpack.c.l.b16 %v93
  %v769 = vunpack.c.h.b16 %v93
  %v770 = vunpack.c.l.b16 %v94
  %v771 = vunpack.c.h.b16 %v94
  %v772 = vunpack.c.l.b16 %v95
  %v773 = vunpack.c.h.b16 %v95
  %v774 = vunpack.c.l.b16 %v96
  %v775 = vunpack.c.h.b16 %v96
  %v776 = vunpack.c.l.b16 %v97
  %v777 = vunpack.c.h.b16 %v97
  %v778 = vunpack.c.l.b16 %v98
  %v779 = vunpack.c.h.b16 %v98
  %v780 = vunpack.c.l.b16 %v99
  %v781 = vunpack.c.h.b16 %v99
  %v782 = vunpack.c.l.b16 %v100
  %v783 = vunpack.c.h.b16 %v100
  %v784 = vunpack.c.l.b16 %v101
  %v785 = vunpack.c.h.b16 %v101
  %v786 = vunpack.c.l.b16 %v102
  %v787 = vunpack.c.h.b16 %v102
  %v788 = vunpack.c.l.b16 %v103
  %v789 = vunpack.c.h.b16 %v103
  %v790 = vunpack.c.l.b16 %v104
  %v791 = vunpack.c.h.b16 %v104
  %v792 = vunpack.c.l.b16 %v105
  %v793 = vunpack.c.h.b16 %v105
  %v794 = vunpack.c.l.b16 %v106
  %v795 = vunpack.c.h.b16 %v106
  %v796 = vunpack.c.l.b16 %v107
  %v797 = vunpack.c.h.b16 %v107
  %v798 = vunpack.c.l.b16 %v108
  %v799 = vunpack.c.h.b16 %v108
  %v800 = vunpack.c.l.b16 %v109
  %v801 = vunpack.c.h.b16 %v109
  %v802 = vunpack.c.l.b16 %v110
  %v803 = vunpack.c.h.b16 %v110
  %v804 = vunpack.c.l.b16 %v111
  %v805 = vunpack.c.h.b16 %v111
  %v806 = vunpack.c.l.b16 %v112
  %v807 = vunpack.c.h.b16 %v112
  %v808 = vunpack.c.l.b16 %v113
  %v809 = vunpack.c.h.b16 %v113
  %v810 = vunpack.c.l.b16 %v114
  %v811 = vunpack.c.h.b16 %v114
  %v812 = vunpack.c.l.b16 %v115
  %v813 = vunpack.c.h.b16 %v115
  %v814 = vunpack.c.l.b16 %v116
  %v815 = vunpack.c.h.b16 %v116
  %v816 = vunpack.c.l.b16 %v117
  %v817 = vunpack.c.h.b16 %v117
  %v818 = vunpack.c.l.b16 %v118
  %v819 = vunpack.c.h.b16 %v118
  %v820 = vunpack.c.l.b16 %v119
  %v821 = vunpack.c.h.b16 %v119
  %v822 = vunpack.c.l.b16 %v120
  %v823 = vunpack.c.h.b16 %v120
  %v824 = vunpack.c.l.b16 %v121
  %v825 = vunpack.c.h.b16 %v121
  %v826 = vunpack.c.l.b16 %v122
  %v827 = vunpack.c.h.b16 %v122
  %v828 = vunpack.c.l.b16 %v123
  %v829 = vunpack.c.h.b16 %v123
  %v830 = vunpack.c.l.b16 %v124
  %v831 = vunpack.c.h.b16 %v124
  %v832 = vunpack.c.l.b16 %v125
  %v833 = vunpack.c.h.b16 %v125
  %v834 = vunpack.c.l.b16 %v126
  %v835 = vunpack.c.h.b16 %v126
  %v836 = vunpack.c.l.b16 %v127
  %v837 = vunpack.c.h.b16 %v127
  %v838 = vunpack.c.l.b16 %v128
  %v839 = vunpack.c.h.b16 %v128
  %v840 = vunpack.c.l.b16 %v129
  %v841 = vunpack.c.h.b16 %v129
  %v842 = vunpack.c.l.b16 %v130
  %v843 = vunpack.c.h.b16 %v130
  %v844 = vunpack.c.l.b16 %v131
  %v845 = vunpack.c.h.b16 %v131
  %v846 = vunpack.c.l.b16 %v132
  %v847 = vunpack.c.h.b16 %v132
  %v848 = vunpack.c.l.b16 %v133
  %v849 = vunpack.c.h.b16 %v133
  %v850 = vunpack.c.l.b16 %v134
  %v851 = vunpack.c.h.b16 %v134
  %v852 = vunpack.c.l.b16 %v135
  %v853 = vunpack.c.h.b16 %v135
  %v854 = vunpack.c.l.b16 %v136
  %v855 = vunpack.c.h.b16 %v136
  %v856 = vunpack.c.l.b16 %v137
  %v857 = vunpack.c.h.b16 %v137
  %v858 = vunpack.c.l.b16 %v138
  %v859 = vunpack.c.h.b16 %v138
  %v860 = vunpack.c.l.b16 %v139
  %v861 = vunpack.c.h.b16 %v139
  %v862 = vunpack.c.l.b16 %v140
  %v863 = vunpack.c.h.b16 %v140
  %v864 = vunpack.c.l.b16 %v141
  %v865 = vunpack.c.h.b16 %v141
  %v866 = vunpack.c.l.b16 %v142
  %v867 = vunpack.c.h.b16 %v142
  %v868 = vunpack.c.l.b16 %v143
  %v869 = vunpack.c.h.b16 %v143
  %v870 = vunpack.c.l.b16 %v144
  %v871 = vunpack.c.h.b16 %v144
  %v872 = vunpack.c.l.b16 %v145
  %v873 = vunpack.c.h.b16 %v145
  %v874 = vunpack.c.l.b16 %v146
  %v875 = vunpack.c.h.b16 %v146
  %v876 = vunpack.c.l.b16 %v147
  %v877 = vunpack.c.h.b16 %v147
  %v878 = vunpack.c.l.b16 %v148
  %v879 = vunpack.c.h.b16 %v148
  %v880 = vunpack.c.l.b16 %v149
  %v881 = vunpack.c.h.b16 %v149
  %v882 = vunpack.c.l.b16 %v150
  %v883 = vunpack.c.h.b16 %v150
  %v884 = vunpack.c.l.b16 %v151
  %v885 = vunpack.c.h.b16 %v151
  %v886 = vunpack.c.l.b16 %v152
  %v887 = vunpack.c.h.b16 %v152
  %v888 = vunpack.c.l.b16 %v153
  %v889 = vunpack.c.h.b16 %v153
  %v890 = vunpack.c.l.b16 %v154
  %v891 = vunpack.c.h.b16 %v154
  %v892 = vunpack.c.l.b16 %v155
  %v893 = vunpack.c.h.b16 %v155
  %v894 = vunpack.c.l.b16 %v156
  %v895 = vunpack.c.h.b16 %v156
  %v896 = vunpack.c.l.b16 %v157
  %v897 = vunpack.c.h.b16 %v157
  %v898 = vunpack.c.l.b16 %v158
  %v899 = vunpack.c.h.b16 %v158
  %v900 = vunpack.c.l.b16 %v159
  %v901 = vunpack.c.h.b16 %v159
  %v902 = vunpack.c.l.b16 %v160
  %v903 = vunpack.c.h.b16 %v160
  %v904 = vunpack.c.l.b16 %v161
  %v905 = vunpack.c.h.b16 %v161
  %v906 = vunpack.c.l.b16 %v162
  %v907 = vunpack.c.h.b16 %v162
  %v908 = vunpack.c.l.b16 %v163
  %v909 = vunpack.c.h.b16 %v163
  %v910 = vunpack.c.l.b16 %v164
  %v911 = vunpack.c.h.b16 %v164
  %v912 = vunpack.c.l.b16 %v165
  %v913 = vunpack.c.h.b16 %v165
  %v914 = vunpack.c.l.b16 %v166
  %v915 = vunpack.c.h.b16 %v166
  %v916 = vunpack.c.l.b16 %v167
  %v917 = vunpack.c.h.b16 %v167
  %v918 = vunpack.c.l.b16 %v168
  %v919 = vunpack.c.h.b16 %v168
  %v920 = vunpack.c.l.b16 %v169
  %v921 = vunpack.c.h.b16 %v169
  %v922 = vunpack.c.l.b16 %v170
  %v923 = vunpack.c.h.b16 %v170
  %v924 = vunpack.c.l.b16 %v171
  %v925 = vunpack.c.h.b16 %v171
  %v926 = vunpack.c.l.b16 %v172
  %v927 = vunpack.c.h.b16 %v172
  %v928 = vunpack.c.l.b16 %v173
  %v929 = vunpack.c.h.b16 %v173
  %v930 = vunpack.c.l.b16 %v174
  %v931 = vunpack.c.h.b16 %v174
  %v932 = vunpack.c.l.b16 %v175
  %v933 = vunpack.c.h.b16 %v175
  %v934 = vunpack.c.l.b16 %v176
  %v935 = vunpack.c.h.b16 %v176
  %v936 = vunpack.c.l.b16 %v177
  %v937 = vunpack.c.h.b16 %v177
  %v938 = vunpack.c.l.b16 %v178
  %v939 = vunpack.c.h.b16 %v178
  %v940 = vunpack.c.l.b16 %v179
  %v941 = vunpack.c.h.b16 %v179
  %v942 = vunpack.c.l.b16 %v180
  %v943 = vunpack.c.h.b16 %v180
  %v944 = vunpack.c.l.b16 %v181
  %v945 = vunpack.c.h.b16 %v181
  %v946 = vunpack.c.l.b16 %v182
  %v947 = vunpack.c.h.b16 %v182
  %v948 = vunpack.c.l.b16 %v183
  %v949 = vunpack.c.h.b16 %v183
  %v950 = vunpack.c.l.b16 %v184
  %v951 = vunpack.c.h.b16 %v184
  %v952 = vunpack.c.l.b16 %v185
  %v953 = vunpack.c.h.b16 %v185
  %v954 = vunpack.c.l.b16 %v186
  %v955 = vunpack.c.h.b16 %v186
  %v956 = vunpack.c.l.b16 %v187
  %v957 = vunpack.c.h.b16 %v187
  %v958 = vunpack.c.l.b16 %v188
  %v959 = vunpack.c.h.b16 %v188
  %v960 = vunpack.c.l.b16 %v189
  %v961 = vunpack.c.h.b16 %v189
  %v962 = vunpack.c.l.b16 %v190
  %v963 = vunpack.c.h.b16 %v190
  %v964 = vunpack.c.l.b16 %v191
  %v965 = vunpack.c.h.b16 %v191
  %v966 = vunpack.c.l.b16 %v192
  %v967 = vunpack.c.h.b16 %v192
  %v968 = vunpack.c.l.b16 %v193
  %v969 = vunpack.c.h.b16 %v193
  %v970 = vunpack.c.l.b16 %v194
  %v971 = vunpack.c.h.b16 %v194
  %v972 = vunpack.c.l.b16 %v195
  %v973 = vunpack.c.h.b16 %v195
  %v974 = vunpack.c.l.b16 %v196
  %v975 = vunpack.c.h.b16 %v196
  %v976 = vunpack.c.l.b16 %v197
  %v977 = vunpack.c.h.b16 %v197
  %v978 = vunpack.c.l.b16 %v198
  %v979 = vunpack.c.h.b16 %v198
  %v980 = vunpack.c.l.b16 %v199
  %v981 = vunpack.c.h.b16 %v199
  %v982 = vunpack.c.l.b16 %v200
  %v983 = vunpack.c.h.b16 %v200
  %v984 = vunpack.c.l.b16 %v201
  %v985 = vunpack.c.h.b16 %v201
  %v986 = vunpack.c.l.b16 %v202
  %v987 = vunpack.c.h.b16 %v202
  %v988 = vunpack.c.l.b16 %v203
  %v989 = vunpack.c.h.b16 %v203
  %v990 = vunpack.c.l.b16 %v204
  %v991 = vunpack.c.h.b16 %v204
  %v992 = vunpack.c.l.b16 %v205
  %v993 = vunpack.c.h.b16 %v205
  %v994 = vunpack.c.l.b16 %v206
  %v995 = vunpack.c.h.b16 %v206
  %v996 = vunpack.c.l.b16 %v207
  %v997 = vunpack.c.h.b16 %v207
  %v998 = vunpack.c.l.b16 %v208
  %v999 = vunpack.c.h.b16 %v208
  %v1000 = vunpack.c.l.b16 %v209
  %v1001 = vunpack.c.h.b16 %v209
  %v1002 = vunpack.c.l.b16 %v210
  %v1003 = vunpack.c.h.b16 %v210
  %v1004 = vunpack.c.l.b16 %v211
  %v1005 = vunpack.c.h.b16 %v211
  %v1006 = vunpack.c.l.b16 %v212
  %v1007 = vunpack.c.h.b16 %v212
  %v1008 = vunpack.c.l.b16 %v213
  %v1009 = vunpack.c.h.b16 %v213
  %v1010 = vunpack.c.l.b16 %v214
  %v1011 = vunpack.c.h.b16 %v214
  %v1012 = vunpack.c.l.b16 %v215
  %v1013 = vunpack.c.h.b16 %v215
  %v1014 = vunpack.c.l.b16 %v216
  %v1015 = vunpack.c.h.b16 %v216
  %v1016 = vunpack.c.l.b16 %v217
  %v1017 = vunpack.c.h.b16 %v217
  %v1018 = vunpack.c.l.b16 %v218
  %v1019 = vunpack.c.h.b16 %v218
  %v1020 = vunpack.c.l.b16 %v219
  %v1021 = vunpack.c.h.b16 %v219
  %v1022 = vunpack.c.l.b16 %v220
  %v1023 = vunpack.c.h.b16 %v220
  %v1024 = vunpack.c.l.b16 %v221
  %v1025 = vunpack.c.h.b16 %v221
  %v1026 = vunpack.c.l.b16 %v222
  %v1027 = vunpack.c.h.b16 %v222
  %v1028 = vunpack.c.l.b16 %v223
  %v1029 = vunpack.c.h.b16 %v223
  %v1030 = vunpack.c.l.b16 %v224
  %v1031 = vunpack.c.h.b16 %v224
  %v1032 = vunpack.c.l.b16 %v225
  %v1033 = vunpack.c.h.b16 %v225
  %v1034 = vunpack.c.l.b16 %v226
  %v1035 = vunpack.c.h.b16 %v226
  %v1036 = vunpack.c.l.b16 %v227
  %v1037 = vunpack.c.h.b16 %v227
  %v1038 = vunpack.c.l.b16 %v228
  %v1039 = vunpack.c.h.b16 %v228
  %v1040 = vunpack.c.l.b16 %v229
  %v1041 = vunpack.c.h.b16 %v229
  %v1042 = vunpack.c.l.b16 %v230
  %v1043 = vunpack.c.h.b16 %v230
  %v1044 = vunpack.c.l.b16 %v231
  %v1045 = vunpack.c.h.b16 %v231
  %v1046 = vunpack.c.l.b16 %v232
  %v1047 = vunpack.c.h.b16 %v232
  %v1048 = vunpack.c.l.b16 %v233
  %v1049 = vunpack.c.h.b16 %v233
  %v1050 = vunpack.c.l.b16 %v234
  %v1051 = vunpack.c.h.b16 %v234
  %v1052 = vunpack.c.l.b16 %v235
  %v1053 = vunpack.c.h.b16 %v235
  %v1054 = vunpack.c.l.b16 %v236
  %v1055 = vunpack.c.h.b16 %v236
  %v1056 = vunpack.c.l.b16 %v237
  %v1057 = vunpack.c.h.b16 %v237
  %v1058 = vunpack.c.l.b16 %v238
  %v1059 = vunpack.c.h.b16 %v238
  %v1060 = vunpack.c.l.b16 %v239
  %v1061 = vunpack.c.h.b16 %v239
  %v1062 = vunpack.c.l.b16 %v240
  %v1063 = vunpack.c.h.b16 %v240
  %v1064 = vunpack.c.l.b16 %v241
  %v1065 = vunpack.c.h.b16 %v241
  %v1066 = vunpack.c.l.b16 %v242
  %v1067 = vunpack.c.h.b16 %v242
  %v1068 = vunpack.c.l.b16 %v243
  %v1069 = vunpack.c.h.b16 %v243
  %v1070 = vunpack.c.l.b16 %v244
  %v1071 = vunpack.c.h.b16 %v244
  %v1072 = vunpack.c.l.b16 %v245
  %v1073 = vunpack.c.h.b16 %v245
  %v1074 = vunpack.c.l.b16 %v246
  %v1075 = vunpack.c.h.b16 %v246
  %v1076 = vunpack.c.l.b16 %v247
  %v1077 = vunpack.c.h.b16 %v247
  %v1078 = vunpack.c.l.b16 %v248
  %v1079 = vunpack.c.h.b16 %v248
  %v1080 = vunpack.c.l.b16 %v249
  %v1081 = vunpack.c.h.b16 %v249
  %v1082 = vunpack.c.l.b16 %v250
  %v1083 = vunpack.c.h.b16 %v250
  %v1084 = vunpack.c.l.b16 %v251
  %v1085 = vunpack.c.h.b16 %v251
  %v1086 = vunpack.c.l.b16 %v252
  %v1087 = vunpack.c.h.b16 %v252
  %v1088 = vunpack.c.l.b16 %v253
  %v1089 = vunpack.c.h.b16 %v253
  %v1090 = vunpack.c.l.b16 %v254
  %v1091 = vunpack.c.h.b16 %v254
  %v1092 = vunpack.c.l.b16 %v255
  %v1093 = vunpack.c.h.b16 %v255
  %v1094 = vunpack.c.l.b16 %v256
  %v1095 = vunpack.c.h.b16 %v256
  %v1096 = vunpack.c.l.b16 %v257
  %v1097 = vunpack.c.h.b16 %v257
  %v1098 = vunpack.c.l.b16 %v258
  %v1099 = vunpack.c.h.b16 %v258
  %v1100 = vunpack.c.l.b16 %v259
  %v1101 = vunpack.c.h.b16 %v259
  %v1102 = vunpack.c.l.b16 %v260
  %v1103 = vunpack.c.h.b16 %v260
  %v1104 = vunpack.c.l.b16 %v261
  %v1105 = vunpack.c.h.b16 %v261
  %v1106 = vunpack.c.l.b16 %v262
  %v1107 = vunpack.c.h.b16 %v262
  %v1108 = vunpack.c.l.b16 %v263
  %v1109 = vunpack.c.h.b16 %v263
  %v1110 = vunpack.c.l.b16 %v264
  %v1111 = vunpack.c.h.b16 %v264
  %v1112 = vunpack.c.l.b16 %v265
  %v1113 = vunpack.c.h.b16 %v265
  %v1114 = vunpack.c.l.b16 %v266
  %v1115 = vunpack.c.h.b16 %v266
  %v1116 = vunpack.c.l.b16 %v267
  %v1117 = vunpack.c.h.b16 %v267
  %v1118 = vunpack.c.l.b16 %v268
  %v1119 = vunpack.c.h.b16 %v268
  %v1120 = vunpack.c.l.b16 %v269
  %v1121 = vunpack.c.h.b16 %v269
  %v1122 = vunpack.c.l.b16 %v270
  %v1123 = vunpack.c.h.b16 %v270
  %v1124 = vunpack.c.l.b16 %v271
  %v1125 = vunpack.c.h.b16 %v271
  %v1126 = vunpack.c.l.b16 %v272
  %v1127 = vunpack.c.h.b16 %v272
  %v1128 = vunpack.c.l.b16 %v273
  %v1129 = vunpack.c.h.b16 %v273
  %v1130 = vunpack.c.l.b16 %v274
  %v1131 = vunpack.c.h.b16 %v274
  %v1132 = vunpack.c.l.b16 %v275
  %v1133 = vunpack.c.h.b16 %v275
  %v1134 = vunpack.c.l.b16 %v276
  %v1135 = vunpack.c.h.b16 %v276
  %v1136 = vunpack.c.l.b16 %v277
  %v1137 = vunpack.c.h.b16 %v277
  %v1138 = vunpack.c.l.b16 %v278
  %v1139 = vunpack.c.h.b16 %v278
  %v1140 = vunpack.c.l.b16 %v279
  %v1141 = vunpack.c.h.b16 %v279
  %v1142 = vunpack.c.l.b16 %v280
  %v1143 = vunpack.c.h.b16 %v280
  %v1144 = vunpack.c.l.b16 %v281
  %v1145 = vunpack.c.h.b16 %v281
  %v1146 = vunpack.c.l.b16 %v282
  %v1147 = vunpack.c.h.b16 %v282
  %v1148 = vunpack.c.l.b16 %v283
  %v1149 = vunpack.c.h.b16 %v283
  %v1150 = vunpack.c.l.b16 %v284
  %v1151 = vunpack.c.h.b16 %v284
  %v1152 = vunpack.c.l.b16 %v285
  %v1153 = vunpack.c.h.b16 %v285
  %v1154 = vunpack.c.l.b16 %v286
  %v1155 = vunpack.c.h.b16 %v286
  %v1156 = vunpack.c.l.b16 %v287
  %v1157 = vunpack.c.h.b16 %v287
  %v1158 = vunpack.c.l.b16 %v288
  %v1159 = vunpack.c.h.b16 %v288
  %v1160 = vunpack.c.l.b16 %v289
  %v1161 = vunpack.c.h.b16 %v289
  %v1162 = vunpack.c.l.b16 %v290
  %v1163 = vunpack.c.h.b16 %v290
  %v1164 = vunpack.c.l.b16 %v291
  %v1165 = vunpack.c.h.b16 %v291
  %v1166 = vunpack.c.l.b16 %v292
  %v1167 = vunpack.c.h.b16 %v292
  %v1168 = vunpack.c.l.b16 %v293
  %v1169 = vunpack.c.h.b16 %v293
  %v1170 = vunpack.c.l.b16 %v294
  %v1171 = vunpack.c.h.b16 %v294
  %v1172 = vunpack.c.l.b16 %v295
  %v1173 = vunpack.c.h.b16 %v295
  %v1174 = vunpack.c.l.b16 %v296
  %v1175 = vunpack.c.h.b16 %v296
  %v1176 = vunpack.c.l.b16 %v297
  %v1177 = vunpack.c.h.b16 %v297
  %v1178 = vunpack.c.l.b16 %v298
  %v1179 = vunpack.c.h.b16 %v298
  %v1180 = vunpack.c.l.b16 %v299
  %v1181 = vunpack.c.h.b16 %v299
  %v1182 = vunpack.c.l.b16 %v300
  %v1183 = vunpack.c.h.b16 %v300
  %v1184 = vunpack.c.l.b16 %v301
  %v1185 = vunpack.c.h.b16 %v301
  %v1186 = vunpack.c.l.b16 %v302
  %v1187 = vunpack.c.h.b16 %v302
  %v1188 = vunpack.c.l.b16 %v303
  %v1189 = vunpack.c.h.b16 %v303
  %v1190 = vunpack.c.l.b16 %v304
  %v1191 = vunpack.c.h.b16 %v304
  %v1192 = vunpack.c.l.b16 %v305
  %v1193 = vunpack.c.h.b16 %v305
  %v1194 = vunpack.c.l.b16 %v306
  %v1195 = vunpack.c.h.b16 %v306
  %v1196 = vunpack.c.l.b16 %v307
  %v1197 = vunpack.c.h.b16 %v307
  %v1198 = vunpack.c.l.b16 %v308
  %v1199 = vunpack.c.h.b16 %v308
  %v1200 = vunpack.c.l.b16 %v309
  %v1201 = vunpack.c.h.b16 %v309
  %v1202 = vunpack.c.l.b16 %v310
  %v1203 = vunpack.c.h.b16 %v310
  %v1204 = vunpack.c.l.b16 %v311
  %v1205 = vunpack.c.h.b16 %v311
  %v1206 = vunpack.c.l.b16 %v312
  %v1207 = vunpack.c.h.b16 %v312
  %v1208 = vunpack.c.l.b16 %v313
  %v1209 = vunpack.c.h.b16 %v313
  %v1210 = vpack.c.b16 %v638, %v634
  %v1211 = vpack.c.b16 %v639, %v635
  %v1212 = vpack.c.b16 %v640, %v636
  %v1213 = vpack.c.b16 %v641, %v637
  %v1214 = vpack.c.b16 %v646, %v642
  %v1215 = vpack.c.b16 %v647, %v643
  %v1216 = vpack.c.b16 %v648, %v644
  %v1217 = vpack.c.b16 %v649, %v645
  %v1218 = vpack.c.b16 %v654, %v650
  %v1219 = vpack.c.b16 %v655, %v651
  %v1220 = vpack.c.b16 %v656, %v652
  %v1221 = vpack.c.b16 %v657, %v653
  %v1222 = vpack.c.b16 %v662, %v658
  %v1223 = vpack.c.b16 %v663, %v659
  %v1224 = vpack.c.b16 %v664, %v660
  %v1225 = vpack.c.b16 %v665, %v661
  %v1226 = vpack.c.b16 %v670, %v666
  %v1227 = vpack.c.b16 %v671, %v667
  %v1228 = vpack.c.b16 %v672, %v668
  %v1229 = vpack.c.b16 %v673, %v669
  %v1230 = vpack.c.b16 %v678, %v674
  %v1231 = vpack.c.b16 %v679, %v675
  %v1232 = vpack.c.b16 %v680, %v676
  %v1233 = vpack.c.b16 %v681, %v677
  %v1234 = vpack.c.b16 %v686, %v682
  %v1235 = vpack.c.b16 %v687, %v683
  %v1236 = vpack.c.b16 %v688, %v684
  %v1237 = vpack.c.b16 %v689, %v685
  %v1238 = vpack.c.b16 %v694, %v690
  %v1239 = vpack.c.b16 %v695, %v691
  %v1240 = vpack.c.b16 %v696, %v692
  %v1241 = vpack.c.b16 %v697, %v693
  %v1242 = vpack.c.b16 %v702, %v698
  %v1243 = vpack.c.b16 %v703, %v699
  %v1244 = vpack.c.b16 %v704, %v700
  %v1245 = vpack.c.b16 %v705, %v701
  %v1246 = vpack.c.b16 %v710, %v706
  %v1247 = vpack.c.b16 %v711, %v707
  %v1248 = vpack.c.b16 %v712, %v708
  %v1249 = vpack.c.b16 %v713, %v709
  %v1250 = vpack.c.b16 %v718, %v714
  %v1251 = vpack.c.b16 %v719, %v715
  %v1252 = vpack.c.b16 %v720, %v716
  %v1253 = vpack.c.b16 %v721, %v717
  %v1254 = vpack.c.b16 %v726, %v722
  %v1255 = vpack.c.b16 %v727, %v723
  %v1256 = vpack.c.b16 %v728, %v724
  %v1257 = vpack.c.b16 %v729, %v725
  %v1258 = vpack.c.b16 %v734, %v730
  %v1259 = vpack.c.b16 %v735, %v731
  %v1260 = vpack.c.b16 %v736, %v732
  %v1261 = vpack.c.b16 %v737, %v733
  %v1262 = vpack.c.b16 %v742, %v738
  %v1263 = vpack.c.b16 %v743, %v739
  %v1264 = vpack.c.b16 %v744, %v740
  %v1265 = vpack.c.b16 %v745, %v741
  %v1266 = vpack.c.b16 %v750, %v746
  %v1267 = vpack.c.b16 %v751, %v747
  %v1268 = vpack.c.b16 %v752, %v748
  %v1269 = vpack.c.b16 %v753, %v749
  %v1270 = vpack.c.b16 %v758, %v754
  %v1271 = vpack.c.b16 %v759, %v755
  %v1272 = vpack.c.b16 %v760, %v756
  %v1273 = vpack.c.b16 %v761, %v757
  %v1274 = vpack.c.b16 %v766, %v762
  %v1275 = vpack.c.b16 %v767, %v763
  %v1276 = vpack.c.b16 %v768, %v764
  %v1277 = vpack.c.b16 %v769, %v765
  %v1278 = vpack.c.b16 %v774, %v770
  %v1279 = vpack.c.b16 %v775, %v771
  %v1280 = vpack.c.b16 %v776, %v772
  %v1281 = vpack.c.b16 %v777, %v773
  %v1282 = vpack.c.b16 %v782, %v778
  %v1283 = vpack.c.b16 %v783, %v779
  %v1284 = vpack.c.b16 %v784, %v780
  %v1285 = vpack.c.b16 %v785, %v781
  %v1286 = vpack.c.b16 %v790, %v786
  %v1287 = vpack.c.b16 %v791, %v787
  %v1288 = vpack.c.b16 %v792, %v788
  %v1289 = vpack.c.b16 %v793, %v789
  %v1290 = vpack.c.b16 %v798, %v794
  %v1291 = vpack.c.b16 %v799, %v795
  %v1292 = vpack.c.b16 %v800, %v796
  %v1293 = vpack.c.b16 %v801, %v797
  %v1294 = vpack.c.b16 %v806, %v802
  %v1295 = vpack.c.b16 %v807, %v803
  %v1296 = vpack.c.b16 %v808, %v804
  %v1297 = vpack.c.b16 %v809, %v805
  %v1298 = vpack.c.b16 %v814, %v810
  %v1299 = vpack.c.b16 %v815, %v811
  %v1300 = vpack.c.b16 %v816, %v812
  %v1301 = vpack.c.b16 %v817, %v813
  %v1302 = vpack.c.b16 %v822, %v818
  %v1303 = vpack.c.b16 %v823, %v819
  %v1304 = vpack.c.b16 %v824, %v820
  %v1305 = vpack.c.b16 %v825, %v821
  %v1306 = vpack.c.b16 %v830, %v826
  %v1307 = vpack.c.b16 %v831, %v827
  %v1308 = vpack.c.b16 %v832, %v828
  %v1309 = vpack.c.b16 %v833, %v829
  %v1310 = vpack.c.b16 %v838, %v834
  %v1311 = vpack.c.b16 %v839, %v835
  %v1312 = vpack.c.b16 %v840, %v836
  %v1313 = vpack.c.b16 %v841, %v837
  %v1314 = vpack.c.b16 %v846, %v842
  %v1315 = vpack.c.b16 %v847, %v843
  %v1316 = vpack.c.b16 %v848, %v844
  %v1317 = vpack.c.b16 %v849, %v845
  %v1318 = vpack.c.b16 %v854, %v850
  %v1319 = vpack.c.b16 %v855, %v851
  %v1320 = vpack.c.b16 %v856, %v852
  %v1321 = vpack.c.b16 %v857, %v853
  %v1322 = vpack.c.b16 %v862, %v858
  %v1323 = vpack.c.b16 %v863, %v859
  %v1324 = vpack.c.b16 %v864, %v860
  %v1325 = vpack.c.b16 %v865, %v861
  %v1326 = vpack.c.b16 %v870, %v866
  %v1327 = vpack.c.b16 %v871, %v867
  %v1328 = vpack.c.b16 %v872, %v868
  %v1329 = vpack.c.b16 %v873, %v869
  %v1330 = vpack.c.b16 %v878, %v874
  %v1331 = vpack.c.b16 %v879, %v875
  %v1332 = vpack.c.b16 %v880, %v876
  %v1333 = vpack.c.b16 %v881, %v877
  %v1334 = vpack.c.b16 %v886, %v882
  %v1335 = vpack.c.b16 %v887, %v883
  %v1336 = vpack.c.b16 %v888, %v884
  %v1337 = vpack.c.b16 %v889, %v885
  %v1338 = vpack.c.b16 %v894, %v890
  %v1339 = vpack.c.b16 %v895, %v891
  %v1340 = vpack.c.b16 %v896, %v892
  %v1341 = vpack.c.b16 %v897, %v893
  %v1342 = vpack.c.b16 %v902, %v898
  %v1343 = vpack.c.b16 %v903, %v899
  %v1344 = vpack.c.b16 %v904, %v900
  %v1345 = vpack.c.b16 %v905, %v901
  %v1346 = vpack.c.b16 %v910, %v906
  %v1347 = vpack.c.b16 %v911, %v907
  %v1348 = vpack.c.b16 %v912, %v908
  %v1349 = vpack.c.b16 %v913, %v909
  %v1350 = vpack.c.b16 %v918, %v914
  %v1351 = vpack.c.b16 %v919, %v915
  %v1352 = vpack.c.b16 %v920, %v916
  %v1353 = vpack.c.b16 %v921, %v917
  %v1354 = vpack.c.b16 %v926, %v922
  %v1355 = vpack.c.b16 %v927, %v923
  %v1356 = vpack.c.b16 %v928, %v924
  %v1357 = vpack.c.b16 %v929, %v925
  %v1358 = vpack.c.b16 %v934, %v930
  %v1359 = vpack.c.b16 %v935, %v931
  %v1360 = vpack.c.b16 %v936, %v932
  %v1361 = vpack.c.b16 %v937, %v933
  %v1362 = vpack.c.b16 %v942, %v938
  %v1363 = vpack.c.b16 %v943, %v939
  %v1364 = vpack.c.b16 %v944, %v940
  %v1365 = vpack.c.b16 %v945, %v941
  %v1366 = vpack.c.b16 %v950, %v946
  %v1367 = vpack.c.b16 %v951, %v947
  %v1368 = vpack.c.b16 %v952, %v948
  %v1369 = vpack.c.b16 %v953, %v949
  %v1370 = vpack.c.b16 %v958, %v954
  %v1371 = vpack.c.b16 %v959, %v955
  %v1372 = vpack.c.b16 %v960, %v956
  %v1373 = vpack.c.b16 %v961, %v957
  %v1374 = vpack.c.b16 %v966, %v962
  %v1375 = vpack.c.b16 %v967, %v963
  %v1376 = vpack.c.b16 %v968, %v964
  %v1377 = vpack.c.b16 %v969, %v965
  %v1378 = vpack.c.b16 %v974, %v970
  %v1379 = vpack.c.b16 %v975, %v971
  %v1380 = vpack.c.b16 %v976, %v972
  %v1381 = vpack.c.b16 %v977, %v973
  %v1382 = vpack.c.b16 %v982, %v978
  %v1383 = vpack.c.b16 %v983, %v979
  %v1384 = vpack.c.b16 %v984, %v980
  %v1385 = vpack.c.b16 %v985, %v981
  %v1386 = vpack.c.b16 %v990, %v986
  %v1387 = vpack.c.b16 %v991, %v987
  %v1388 = vpack.c.b16 %v992, %v988
  %v1389 = vpack.c.b16 %v993, %v989
  %v1390 = vpack.c.b16 %v998, %v994
  %v1391 = vpack.c.b16 %v999, %v995
  %v1392 = vpack.c.b16 %v1000, %v996
  %v1393 = vpack.c.b16 %v1001, %v997
  %v1394 = vpack.c.b16 %v1006, %v1002
  %v1395 = vpack.c.b16 %v1007, %v1003
  %v1396 = vpack.c.b16 %v1008, %v1004
  %v1397 = vpack.c.b16 %v1009, %v1005
  %v1398 = vpack.c.b16 %v1014, %v1010
  %v1399 = vpack.c.b16 %v1015, %v1011
  %v1400 = vpack.c.b16 %v1016, %v1012
  %v1401 = vpack.c.b16 %v1017, %v1013
  %v1402 = vpack.c.b16 %v1022, %v1018
  %v1403 = vpack.c.b16 %v1023, %v1019
  %v1404 = vpack.c.b16 %v1024, %v1020
  %v1405 = vpack.c.b16 %v1025, %v1021
  %v1406 = vpack.c.b16 %v1030, %v1026
  %v1407 = vpack.c.b16 %v1031, %v1027
  %v1408 = vpack.c.b16 %v1032, %v1028
  %v1409 = vpack.c.b16 %v1033, %v1029
  %v1410 = vpack.c.b16 %v1038, %v1034
  %v1411 = vpack.c.b16 %v1039, %v1035
  %v1412 = vpack.c.b16 %v1040, %v1036
  %v1413 = vpack.c.b16 %v1041, %v1037
  %v1414 = vpack.c.b16 %v1046, %v1042
  %v1415 = vpack.c.b16 %v1047, %v1043
  %v1416 = vpack.c.b16 %v1048, %v1044
  %v1417 = vpack.c.b16 %v1049, %v1045
  %v1418 = vpack.c.b16 %v1054, %v1050
  %v1419 = vpack.c.b16 %v1055, %v1051
  %v1420 = vpack.c.b16 %v1056, %v1052
  %v1421 = vpack.c.b16 %v1057, %v1053
  %v1422 = vpack.c.b16 %v1062, %v1058
  %v1423 = vpack.c.b16 %v1063, %v1059
  %v1424 = vpack.c.b16 %v1064, %v1060
  %v1425 = vpack.c.b16 %v1065, %v1061
  %v1426 = vpack.c.b16 %v1070, %v1066
  %v1427 = vpack.c.b16 %v1071, %v1067
  %v1428 = vpack.c.b16 %v1072, %v1068
  %v1429 = vpack.c.b16 %v1073, %v1069
  %v1430 = vpack.c.b16 %v1078, %v1074
  %v1431 = vpack.c.b16 %v1079, %v1075
  %v1432 = vpack.c.b16 %v1080, %v1076
  %v1433 = vpack.c.b16 %v1081, %v1077
  %v1434 = vpack.c.b16 %v1086, %v1082
  %v1435 = vpack.c.b16 %v1087, %v1083
  %v1436 = vpack.c.b16 %v1088, %v1084
  %v1437 = vpack.c.b16 %v1089, %v1085
  %v1438 = vpack.c.b16 %v1094, %v1090
  %v1439 = vpack.c.b16 %v1095, %v1091
  %v1440 = vpack.c.b16 %v1096, %v1092
  %v1441 = vpack.c.b16 %v1097, %v1093
  %v1442 = vpack.c.b16 %v1102, %v1098
  %v1443 = vpack.c.b16 %v1103, %v1099
  %v1444 = vpack.c.b16 %v1104, %v1100
  %v1445 = vpack.c.b16 %v1105, %v1101
  %v1446 = vpack.c.b16 %v1110, %v1106
  %v1447 = vpack.c.b16 %v1111, %v1107
  %v1448 = vpack.c.b16 %v1112, %v1108
  %v1449 = vpack.c.b16 %v1113, %v1109
  %v1450 = vpack.c.b16 %v1118, %v1114
  %v1451 = vpack.c.b16 %v1119, %v1115
  %v1452 = vpack.c.b16 %v1120, %v1116
  %v1453 = vpack.c.b16 %v1121, %v1117
  %v1454 = vpack.c.b16 %v1126, %v1122
  %v1455 = vpack.c.b16 %v1127, %v1123
  %v1456 = vpack.c.b16 %v1128, %v1124
  %v1457 = vpack.c.b16 %v1129, %v1125
  %v1458 = vpack.c.b16 %v1134, %v1130
  %v1459 = vpack.c.b16 %v1135, %v1131
  %v1460 = vpack.c.b16 %v1136, %v1132
  %v1461 = vpack.c.b16 %v1137, %v1133
  %v1462 = vpack.c.b16 %v1142, %v1138
  %v1463 = vpack.c.b16 %v1143, %v1139
  %v1464 = vpack.c.b16 %v1144, %v1140
  %v1465 = vpack.c.b16 %v1145, %v1141
  %v1466 = vpack.c.b16 %v1150, %v1146
  %v1467 = vpack.c.b16 %v1151, %v1147
  %v1468 = vpack.c.b16 %v1152, %v1148
  %v1469 = vpack.c.b16 %v1153, %v1149
  %v1470 = vpack.c.b16 %v1158, %v1154
  %v1471 = vpack.c.b16 %v1159, %v1155
  %v1472 = vpack.c.b16 %v1160, %v1156
  %v1473 = vpack.c.b16 %v1161, %v1157
  %v1474 = vpack.c.b16 %v1166, %v1162
  %v1475 = vpack.c.b16 %v1167, %v1163
  %v1476 = vpack.c.b16 %v1168, %v1164
  %v1477 = vpack.c.b16 %v1169, %v1165
  %v1478 = vpack.c.b16 %v1174, %v1170
  %v1479 = vpack.c.b16 %v1175, %v1171
  %v1480 = vpack.c.b16 %v1176, %v1172
  %v1481 = vpack.c.b16 %v1177, %v1173
  %v1482 = vpack.c.b16 %v1182, %v1178
  %v1483 = vpack.c.b16 %v1183, %v1179
  %v1484 = vpack.c.b16 %v1184, %v1180
  %v1485 = vpack.c.b16 %v1185, %v1181
  %v1486 = vpack.c.b16 %v1190, %v1186
  %v1487 = vpack.c.b16 %v1191, %v1187
  %v1488 = vpack.c.b16 %v1192, %v1188
  %v1489 = vpack.c.b16 %v1193, %v1189
  %v1490 = vpack.c.b16 %v1198, %v1194
  %v1491 = vpack.c.b16 %v1199, %v1195
  %v1492 = vpack.c.b16 %v1200, %v1196
  %v1493 = vpack.c.b16 %v1201, %v1197
  %v1494 = vpack.c.b16 %v1206, %v1202
  %v1495 = vpack.c.b16 %v1207, %v1203
  %v1496 = vpack.c.b16 %v1208, %v1204
  %v1497 = vpack.c.b16 %v1209, %v1205
  %1786 = vmatprep.subr.bf16.mxu0 %v1211
  %1787 = vmatpush1.bf16.msra.mxu0 %v1210
  %1788 = vmatprep.subr.bf16.mxu0 %v1215
  %1789 = vmatpush1.bf16.msra.mxu0 %v1214
  %1790 = vmatprep.subr.bf16.mxu0 %v1219
  %1791 = vmatpush1.bf16.msra.mxu0 %v1218
  %1792 = vmatprep.subr.bf16.mxu0 %v1223
  %1793 = vmatpush1.bf16.msra.mxu0 %v1222
  %1794 = vmatprep.subr.bf16.mxu0 %v1227
  %1795 = vmatpush1.bf16.msra.mxu0 %v1226
  %1796 = vmatprep.subr.bf16.mxu0 %v1231
  %1797 = vmatpush1.bf16.msra.mxu0 %v1230
  %1798 = vmatprep.subr.bf16.mxu0 %v1235
  %1799 = vmatpush1.bf16.msra.mxu0 %v1234
  %1800 = vmatprep.subr.bf16.mxu0 %v1239
  %1801 = vmatpush1.bf16.msra.mxu0 %v1238
  %1802 = vmatprep.subr.bf16.mxu0 %v1243
  %1803 = vmatpush1.bf16.msra.mxu0 %v1242
  %1804 = vmatprep.subr.bf16.mxu0 %v1247
  %1805 = vmatpush1.bf16.msra.mxu0 %v1246
  %1806 = vmatprep.subr.bf16.mxu0 %v1251
  %1807 = vmatpush1.bf16.msra.mxu0 %v1250
  %1808 = vmatprep.subr.bf16.mxu0 %v1255
  %1809 = vmatpush1.bf16.msra.mxu0 %v1254
  %1810 = vmatprep.subr.bf16.mxu0 %v1259
  %1811 = vmatpush1.bf16.msra.mxu0 %v1258
  %1812 = vmatprep.subr.bf16.mxu0 %v1263
  %1813 = vmatpush1.bf16.msra.mxu0 %v1262
  %1814 = vmatprep.subr.bf16.mxu0 %v1267
  %1815 = vmatpush1.bf16.msra.mxu0 %v1266
  %1816 = vmatprep.subr.bf16.mxu0 %v1271
  %1817 = vmatpush1.bf16.msra.mxu0 %v1270
  %1818 = vmatprep.mubr.bf16.mxu0 %v329
  %1819 = vmatmul.mubr.bf16.gmra.mrb[0].mxu0 %v328
  %v1820 = vpop.f32.mrb[0].mxu0
  %v1821 = vadd.f32 0.0, %v1820
  %v1822 = vpop.f32.mrb[0].mxu0
  %v1823 = vadd.f32 0.0, %v1822
  %v1824 = vpop.f32.mrb[0].mxu0
  %v1825 = vpop.f32.mrb[0].mxu0
  %1826 = vdwg.mxu0
  %1827 = vmatprep.subr.bf16.mxu0 %v1275
  %1828 = vmatpush1.bf16.msra.mxu0 %v1274
  %1829 = vmatprep.subr.bf16.mxu0 %v1279
  %1830 = vmatpush1.bf16.msra.mxu0 %v1278
  %1831 = vmatprep.subr.bf16.mxu0 %v1283
  %1832 = vmatpush1.bf16.msra.mxu0 %v1282
  %1833 = vmatprep.subr.bf16.mxu0 %v1287
  %1834 = vmatpush1.bf16.msra.mxu0 %v1286
  %1835 = vmatprep.subr.bf16.mxu0 %v1291
  %1836 = vmatpush1.bf16.msra.mxu0 %v1290
  %1837 = vmatprep.subr.bf16.mxu0 %v1295
  %1838 = vmatpush1.bf16.msra.mxu0 %v1294
  %1839 = vmatprep.subr.bf16.mxu0 %v1299
  %1840 = vmatpush1.bf16.msra.mxu0 %v1298
  %1841 = vmatprep.subr.bf16.mxu0 %v1303
  %1842 = vmatpush1.bf16.msra.mxu0 %v1302
  %1843 = vmatprep.subr.bf16.mxu0 %v1307
  %1844 = vmatpush1.bf16.msra.mxu0 %v1306
  %1845 = vmatprep.subr.bf16.mxu0 %v1311
  %1846 = vmatpush1.bf16.msra.mxu0 %v1310
  %1847 = vmatprep.subr.bf16.mxu0 %v1315
  %1848 = vmatpush1.bf16.msra.mxu0 %v1314
  %1849 = vmatprep.subr.bf16.mxu0 %v1319
  %1850 = vmatpush1.bf16.msra.mxu0 %v1318
  %1851 = vmatprep.subr.bf16.mxu0 %v1323
  %1852 = vmatpush1.bf16.msra.mxu0 %v1322
  %1853 = vmatprep.subr.bf16.mxu0 %v1327
  %1854 = vmatpush1.bf16.msra.mxu0 %v1326
  %1855 = vmatprep.subr.bf16.mxu0 %v1331
  %1856 = vmatpush1.bf16.msra.mxu0 %v1330
  %1857 = vmatprep.subr.bf16.mxu0 %v1335
  %1858 = vmatpush1.bf16.msra.mxu0 %v1334
  %1859 = vmatprep.mubr.bf16.mxu0 %v331
  %1860 = vmatmul.mubr.bf16.gmra.mrb[0].mxu0 %v330
  %v1861 = vpop.f32.mrb[0].mxu0
  %v1862 = vadd.f32 %v1821, %v1861
  %v1863 = vpop.f32.mrb[0].mxu0
  %v1864 = vadd.f32 %v1823, %v1863
  %v1865 = vpop.f32.mrb[0].mxu0
  %v1866 = vpop.f32.mrb[0].mxu0
  %1867 = vdwg.mxu0
  %1868 = vmatprep.subr.bf16.mxu0 %v1339
  %1869 = vmatpush1.bf16.msra.mxu0 %v1338
  %1870 = vmatprep.subr.bf16.mxu0 %v1343
  %1871 = vmatpush1.bf16.msra.mxu0 %v1342
  %1872 = vmatprep.subr.bf16.mxu0 %v1347
  %1873 = vmatpush1.bf16.msra.mxu0 %v1346
  %1874 = vmatprep.subr.bf16.mxu0 %v1351
  %1875 = vmatpush1.bf16.msra.mxu0 %v1350
  %1876 = vmatprep.subr.bf16.mxu0 %v1355
  %1877 = vmatpush1.bf16.msra.mxu0 %v1354
  %1878 = vmatprep.subr.bf16.mxu0 %v1359
  %1879 = vmatpush1.bf16.msra.mxu0 %v1358
  %1880 = vmatprep.subr.bf16.mxu0 %v1363
  %1881 = vmatpush1.bf16.msra.mxu0 %v1362
  %1882 = vmatprep.subr.bf16.mxu0 %v1367
  %1883 = vmatpush1.bf16.msra.mxu0 %v1366
  %1884 = vmatprep.subr.bf16.mxu0 %v1371
  %1885 = vmatpush1.bf16.msra.mxu0 %v1370
  %1886 = vmatprep.subr.bf16.mxu0 %v1375
  %1887 = vmatpush1.bf16.msra.mxu0 %v1374
  %1888 = vmatprep.subr.bf16.mxu0 %v1379
  %1889 = vmatpush1.bf16.msra.mxu0 %v1378
  %1890 = vmatprep.subr.bf16.mxu0 %v1383
  %1891 = vmatpush1.bf16.msra.mxu0 %v1382
  %1892 = vmatprep.subr.bf16.mxu0 %v1387
  %1893 = vmatpush1.bf16.msra.mxu0 %v1386
  %1894 = vmatprep.subr.bf16.mxu0 %v1391
  %1895 = vmatpush1.bf16.msra.mxu0 %v1390
  %1896 = vmatprep.subr.bf16.mxu0 %v1395
  %1897 = vmatpush1.bf16.msra.mxu0 %v1394
  %1898 = vmatprep.subr.bf16.mxu0 %v1399
  %1899 = vmatpush1.bf16.msra.mxu0 %v1398
  %1900 = vmatprep.mubr.bf16.mxu0 %v333
  %1901 = vmatmul.mubr.bf16.gmra.mrb[0].mxu0 %v332
  %v1902 = vpop.f32.mrb[0].mxu0
  %v1903 = vadd.f32 %v1862, %v1902
  %v1904 = vpop.f32.mrb[0].mxu0
  %v1905 = vadd.f32 %v1864, %v1904
  %v1906 = vpop.f32.mrb[0].mxu0
  %v1907 = vpop.f32.mrb[0].mxu0
  %1908 = vdwg.mxu0
  %1909 = vmatprep.subr.bf16.mxu0 %v1403
  %1910 = vmatpush1.bf16.msra.mxu0 %v1402
  %1911 = vmatprep.subr.bf16.mxu0 %v1407
  %1912 = vmatpush1.bf16.msra.mxu0 %v1406
  %1913 = vmatprep.subr.bf16.mxu0 %v1411
  %1914 = vmatpush1.bf16.msra.mxu0 %v1410
  %1915 = vmatprep.subr.bf16.mxu0 %v1415
  %1916 = vmatpush1.bf16.msra.mxu0 %v1414
  %1917 = vmatprep.subr.bf16.mxu0 %v1419
  %1918 = vmatpush1.bf16.msra.mxu0 %v1418
  %1919 = vmatprep.subr.bf16.mxu0 %v1423
  %1920 = vmatpush1.bf16.msra.mxu0 %v1422
  %1921 = vmatprep.subr.bf16.mxu0 %v1427
  %1922 = vmatpush1.bf16.msra.mxu0 %v1426
  %1923 = vmatprep.subr.bf16.mxu0 %v1431
  %1924 = vmatpush1.bf16.msra.mxu0 %v1430
  %1925 = vmatprep.subr.bf16.mxu0 %v1435
  %1926 = vmatpush1.bf16.msra.mxu0 %v1434
  %1927 = vmatprep.subr.bf16.mxu0 %v1439
  %1928 = vmatpush1.bf16.msra.mxu0 %v1438
  %1929 = vmatprep.subr.bf16.mxu0 %v1443
  %1930 = vmatpush1.bf16.msra.mxu0 %v1442
  %1931 = vmatprep.subr.bf16.mxu0 %v1447
  %1932 = vmatpush1.bf16.msra.mxu0 %v1446
  %1933 = vmatprep.subr.bf16.mxu0 %v1451
  %1934 = vmatpush1.bf16.msra.mxu0 %v1450
  %1935 = vmatprep.subr.bf16.mxu0 %v1455
  %1936 = vmatpush1.bf16.msra.mxu0 %v1454
  %1937 = vmatprep.subr.bf16.mxu0 %v1459
  %1938 = vmatpush1.bf16.msra.mxu0 %v1458
  %1939 = vmatprep.subr.bf16.mxu0 %v1463
  %1940 = vmatpush1.bf16.msra.mxu0 %v1462
  %1941 = vmatprep.mubr.bf16.mxu0 %v335
  %1942 = vmatmul.mubr.bf16.gmra.mrb[0].mxu0 %v334
  %v1943 = vpop.f32.mrb[0].mxu0
  %v1944 = vadd.f32 %v1903, %v1943
  %v1945 = vpop.f32.mrb[0].mxu0
  %v1946 = vadd.f32 %v1905, %v1945
  %v1947 = vpop.f32.mrb[0].mxu0
  %v1948 = vpop.f32.mrb[0].mxu0
  %1949 = vdwg.mxu0
  %1950 = vmatprep.subr.bf16.mxu0 %v1467
  %1951 = vmatpush1.bf16.msra.mxu0 %v1466
  %1952 = vmatprep.subr.bf16.mxu0 %v1471
  %1953 = vmatpush1.bf16.msra.mxu0 %v1470
  %1954 = vmatprep.subr.bf16.mxu0 %v1475
  %1955 = vmatpush1.bf16.msra.mxu0 %v1474
  %1956 = vmatprep.subr.bf16.mxu0 %v1479
  %1957 = vmatpush1.bf16.msra.mxu0 %v1478
  %1958 = vmatprep.subr.bf16.mxu0 %v1483
  %1959 = vmatpush1.bf16.msra.mxu0 %v1482
  %1960 = vmatprep.subr.bf16.mxu0 %v1487
  %1961 = vmatpush1.bf16.msra.mxu0 %v1486
  %1962 = vmatprep.subr.bf16.mxu0 %v1491
  %1963 = vmatpush1.bf16.msra.mxu0 %v1490
  %1964 = vmatprep.subr.bf16.mxu0 %v1495
  %1965 = vmatpush1.bf16.msra.mxu0 %v1494
  %1966 = vmatprep.subr.bf16.mxu0 0
  %1967 = vmatpush1.bf16.msra.mxu0 0
  %1968 = vmatprep.subr.bf16.mxu0 0
  %1969 = vmatpush1.bf16.msra.mxu0 0
  %1970 = vmatprep.subr.bf16.mxu0 0
  %1971 = vmatpush1.bf16.msra.mxu0 0
  %1972 = vmatprep.subr.bf16.mxu0 0
  %1973 = vmatpush1.bf16.msra.mxu0 0
  %1974 = vmatprep.subr.bf16.mxu0 0
  %1975 = vmatpush1.bf16.msra.mxu0 0
  %1976 = vmatprep.subr.bf16.mxu0 0
  %1977 = vmatpush1.bf16.msra.mxu0 0
  %1978 = vmatprep.subr.bf16.mxu0 0
  %1979 = vmatpush1.bf16.msra.mxu0 0
  %1980 = vmatprep.subr.bf16.mxu0 0
  %1981 = vmatpush1.bf16.msra.mxu0 0
  %1982 = vmatprep.mubr.bf16.mxu0 0
  %1983 = vmatmul.mubr.bf16.gmra.mrb[0].mxu0 %v336
  %v1984 = vpop.f32.mrb[0].mxu0
  %v1985 = vadd.f32 %v1944, %v1984
  %v1986 = vpop.f32.mrb[0].mxu0
  %v1987 = vadd.f32 %v1946, %v1986
  %v1988 = vpop.f32.mrb[0].mxu0
  %v1989 = vpop.f32.mrb[0].mxu0
  %1990 = vdwg.mxu0
  %1991 = vmatprep.subr.bf16.mxu0 %v1213
  %1992 = vmatpush1.bf16.msra.mxu0 %v1212
  %1993 = vmatprep.subr.bf16.mxu0 %v1217
  %1994 = vmatpush1.bf16.msra.mxu0 %v1216
  %1995 = vmatprep.subr.bf16.mxu0 %v1221
  %1996 = vmatpush1.bf16.msra.mxu0 %v1220
  %1997 = vmatprep.subr.bf16.mxu0 %v1225
  %1998 = vmatpush1.bf16.msra.mxu0 %v1224
  %1999 = vmatprep.subr.bf16.mxu0 %v1229
  %2000 = vmatpush1.bf16.msra.mxu0 %v1228
  %2001 = vmatprep.subr.bf16.mxu0 %v1233
  %2002 = vmatpush1.bf16.msra.mxu0 %v1232
  %2003 = vmatprep.subr.bf16.mxu0 %v1237
  %2004 = vmatpush1.bf16.msra.mxu0 %v1236
  %2005 = vmatprep.subr.bf16.mxu0 %v1241
  %2006 = vmatpush1.bf16.msra.mxu0 %v1240
  %2007 = vmatprep.subr.bf16.mxu0 %v1245
  %2008 = vmatpush1.bf16.msra.mxu0 %v1244
  %2009 = vmatprep.subr.bf16.mxu0 %v1249
  %2010 = vmatpush1.bf16.msra.mxu0 %v1248
  %2011 = vmatprep.subr.bf16.mxu0 %v1253
  %2012 = vmatpush1.bf16.msra.mxu0 %v1252
  %2013 = vmatprep.subr.bf16.mxu0 %v1257
  %2014 = vmatpush1.bf16.msra.mxu0 %v1256
  %2015 = vmatprep.subr.bf16.mxu0 %v1261
  %2016 = vmatpush1.bf16.msra.mxu0 %v1260
  %2017 = vmatprep.subr.bf16.mxu0 %v1265
  %2018 = vmatpush1.bf16.msra.mxu0 %v1264
  %2019 = vmatprep.subr.bf16.mxu0 %v1269
  %2020 = vmatpush1.bf16.msra.mxu0 %v1268
  %2021 = vmatprep.subr.bf16.mxu0 %v1273
  %2022 = vmatpush1.bf16.msra.mxu0 %v1272
  %2023 = vmatprep.mubr.bf16.mxu0 %v329
  %2024 = vmatmul.mubr.bf16.gmra.mrb[0].mxu0 %v328
  %v2025 = vpop.f32.mrb[0].mxu0
  %v2026 = vadd.f32 0.0, %v2025
  %v2027 = vpop.f32.mrb[0].mxu0
  %v2028 = vadd.f32 0.0, %v2027
  %v2029 = vpop.f32.mrb[0].mxu0
  %v2030 = vpop.f32.mrb[0].mxu0
  %2031 = vdwg.mxu0
  %2032 = vmatprep.subr.bf16.mxu0 %v1277
  %2033 = vmatpush1.bf16.msra.mxu0 %v1276
  %2034 = vmatprep.subr.bf16.mxu0 %v1281
  %2035 = vmatpush1.bf16.msra.mxu0 %v1280
  %2036 = vmatprep.subr.bf16.mxu0 %v1285
  %2037 = vmatpush1.bf16.msra.mxu0 %v1284
  %2038 = vmatprep.subr.bf16.mxu0 %v1289
  %2039 = vmatpush1.bf16.msra.mxu0 %v1288
  %2040 = vmatprep.subr.bf16.mxu0 %v1293
  %2041 = vmatpush1.bf16.msra.mxu0 %v1292
  %2042 = vmatprep.subr.bf16.mxu0 %v1297
  %2043 = vmatpush1.bf16.msra.mxu0 %v1296
  %2044 = vmatprep.subr.bf16.mxu0 %v1301
  %2045 = vmatpush1.bf16.msra.mxu0 %v1300
  %2046 = vmatprep.subr.bf16.mxu0 %v1305
  %2047 = vmatpush1.bf16.msra.mxu0 %v1304
  %2048 = vmatprep.subr.bf16.mxu0 %v1309
  %2049 = vmatpush1.bf16.msra.mxu0 %v1308
  %2050 = vmatprep.subr.bf16.mxu0 %v1313
  %2051 = vmatpush1.bf16.msra.mxu0 %v1312
  %2052 = vmatprep.subr.bf16.mxu0 %v1317
  %2053 = vmatpush1.bf16.msra.mxu0 %v1316
  %2054 = vmatprep.subr.bf16.mxu0 %v1321
  %2055 = vmatpush1.bf16.msra.mxu0 %v1320
  %2056 = vmatprep.subr.bf16.mxu0 %v1325
  %2057 = vmatpush1.bf16.msra.mxu0 %v1324
  %2058 = vmatprep.subr.bf16.mxu0 %v1329
  %2059 = vmatpush1.bf16.msra.mxu0 %v1328
  %2060 = vmatprep.subr.bf16.mxu0 %v1333
  %2061 = vmatpush1.bf16.msra.mxu0 %v1332
  %2062 = vmatprep.subr.bf16.mxu0 %v1337
  %2063 = vmatpush1.bf16.msra.mxu0 %v1336
  %2064 = vmatprep.mubr.bf16.mxu0 %v331
  %2065 = vmatmul.mubr.bf16.gmra.mrb[0].mxu0 %v330
  %v2066 = vpop.f32.mrb[0].mxu0
  %v2067 = vadd.f32 %v2026, %v2066
  %v2068 = vpop.f32.mrb[0].mxu0
  %v2069 = vadd.f32 %v2028, %v2068
  %v2070 = vpop.f32.mrb[0].mxu0
  %v2071 = vpop.f32.mrb[0].mxu0
  %2072 = vdwg.mxu0
  %2073 = vmatprep.subr.bf16.mxu0 %v1341
  %2074 = vmatpush1.bf16.msra.mxu0 %v1340
  %2075 = vmatprep.subr.bf16.mxu0 %v1345
  %2076 = vmatpush1.bf16.msra.mxu0 %v1344
  %2077 = vmatprep.subr.bf16.mxu0 %v1349
  %2078 = vmatpush1.bf16.msra.mxu0 %v1348
  %2079 = vmatprep.subr.bf16.mxu0 %v1353
  %2080 = vmatpush1.bf16.msra.mxu0 %v1352
  %2081 = vmatprep.subr.bf16.mxu0 %v1357
  %2082 = vmatpush1.bf16.msra.mxu0 %v1356
  %2083 = vmatprep.subr.bf16.mxu0 %v1361
  %2084 = vmatpush1.bf16.msra.mxu0 %v1360
  %2085 = vmatprep.subr.bf16.mxu0 %v1365
  %2086 = vmatpush1.bf16.msra.mxu0 %v1364
  %2087 = vmatprep.subr.bf16.mxu0 %v1369
  %2088 = vmatpush1.bf16.msra.mxu0 %v1368
  %2089 = vmatprep.subr.bf16.mxu0 %v1373
  %2090 = vmatpush1.bf16.msra.mxu0 %v1372
  %2091 = vmatprep.subr.bf16.mxu0 %v1377
  %2092 = vmatpush1.bf16.msra.mxu0 %v1376
  %2093 = vmatprep.subr.bf16.mxu0 %v1381
  %2094 = vmatpush1.bf16.msra.mxu0 %v1380
  %2095 = vmatprep.subr.bf16.mxu0 %v1385
  %2096 = vmatpush1.bf16.msra.mxu0 %v1384
  %2097 = vmatprep.subr.bf16.mxu0 %v1389
  %2098 = vmatpush1.bf16.msra.mxu0 %v1388
  %2099 = vmatprep.subr.bf16.mxu0 %v1393
  %2100 = vmatpush1.bf16.msra.mxu0 %v1392
  %2101 = vmatprep.subr.bf16.mxu0 %v1397
  %2102 = vmatpush1.bf16.msra.mxu0 %v1396
  %2103 = vmatprep.subr.bf16.mxu0 %v1401
  %2104 = vmatpush1.bf16.msra.mxu0 %v1400
  %2105 = vmatprep.mubr.bf16.mxu0 %v333
  %2106 = vmatmul.mubr.bf16.gmra.mrb[0].mxu0 %v332
  %v2107 = vpop.f32.mrb[0].mxu0
  %v2108 = vadd.f32 %v2067, %v2107
  %v2109 = vpop.f32.mrb[0].mxu0
  %v2110 = vadd.f32 %v2069, %v2109
  %v2111 = vpop.f32.mrb[0].mxu0
  %v2112 = vpop.f32.mrb[0].mxu0
  %2113 = vdwg.mxu0
  %2114 = vmatprep.subr.bf16.mxu0 %v1405
  %2115 = vmatpush1.bf16.msra.mxu0 %v1404
  %2116 = vmatprep.subr.bf16.mxu0 %v1409
  %2117 = vmatpush1.bf16.msra.mxu0 %v1408
  %2118 = vmatprep.subr.bf16.mxu0 %v1413
  %2119 = vmatpush1.bf16.msra.mxu0 %v1412
  %2120 = vmatprep.subr.bf16.mxu0 %v1417
  %2121 = vmatpush1.bf16.msra.mxu0 %v1416
  %2122 = vmatprep.subr.bf16.mxu0 %v1421
  %2123 = vmatpush1.bf16.msra.mxu0 %v1420
  %2124 = vmatprep.subr.bf16.mxu0 %v1425
  %2125 = vmatpush1.bf16.msra.mxu0 %v1424
  %2126 = vmatprep.subr.bf16.mxu0 %v1429
  %2127 = vmatpush1.bf16.msra.mxu0 %v1428
  %2128 = vmatprep.subr.bf16.mxu0 %v1433
  %2129 = vmatpush1.bf16.msra.mxu0 %v1432
  %2130 = vmatprep.subr.bf16.mxu0 %v1437
  %2131 = vmatpush1.bf16.msra.mxu0 %v1436
  %2132 = vmatprep.subr.bf16.mxu0 %v1441
  %2133 = vmatpush1.bf16.msra.mxu0 %v1440
  %2134 = vmatprep.subr.bf16.mxu0 %v1445
  %2135 = vmatpush1.bf16.msra.mxu0 %v1444
  %2136 = vmatprep.subr.bf16.mxu0 %v1449
  %2137 = vmatpush1.bf16.msra.mxu0 %v1448
  %2138 = vmatprep.subr.bf16.mxu0 %v1453
  %2139 = vmatpush1.bf16.msra.mxu0 %v1452
  %2140 = vmatprep.subr.bf16.mxu0 %v1457
  %2141 = vmatpush1.bf16.msra.mxu0 %v1456
  %2142 = vmatprep.subr.bf16.mxu0 %v1461
  %2143 = vmatpush1.bf16.msra.mxu0 %v1460
  %2144 = vmatprep.subr.bf16.mxu0 %v1465
  %2145 = vmatpush1.bf16.msra.mxu0 %v1464
  %2146 = vmatprep.mubr.bf16.mxu0 %v335
  %2147 = vmatmul.mubr.bf16.gmra.mrb[0].mxu0 %v334
  %v2148 = vpop.f32.mrb[0].mxu0
  %v2149 = vadd.f32 %v2108, %v2148
  %v2150 = vpop.f32.mrb[0].mxu0
  %v2151 = vadd.f32 %v2110, %v2150
  %v2152 = vpop.f32.mrb[0].mxu0
  %v2153 = vpop.f32.mrb[0].mxu0
  %2154 = vdwg.mxu0
  %2155 = vmatprep.subr.bf16.mxu0 %v1469
  %2156 = vmatpush1.bf16.msra.mxu0 %v1468
  %2157 = vmatprep.subr.bf16.mxu0 %v1473
  %2158 = vmatpush1.bf16.msra.mxu0 %v1472
  %2159 = vmatprep.subr.bf16.mxu0 %v1477
  %2160 = vmatpush1.bf16.msra.mxu0 %v1476
  %2161 = vmatprep.subr.bf16.mxu0 %v1481
  %2162 = vmatpush1.bf16.msra.mxu0 %v1480
  %2163 = vmatprep.subr.bf16.mxu0 %v1485
  %2164 = vmatpush1.bf16.msra.mxu0 %v1484
  %2165 = vmatprep.subr.bf16.mxu0 %v1489
  %2166 = vmatpush1.bf16.msra.mxu0 %v1488
  %2167 = vmatprep.subr.bf16.mxu0 %v1493
  %2168 = vmatpush1.bf16.msra.mxu0 %v1492
  %2169 = vmatprep.subr.bf16.mxu0 %v1497
  %2170 = vmatpush1.bf16.msra.mxu0 %v1496
  %2171 = vmatprep.subr.bf16.mxu0 0
  %2172 = vmatpush1.bf16.msra.mxu0 0
  %2173 = vmatprep.subr.bf16.mxu0 0
  %2174 = vmatpush1.bf16.msra.mxu0 0
  %2175 = vmatprep.subr.bf16.mxu0 0
  %2176 = vmatpush1.bf16.msra.mxu0 0
  %2177 = vmatprep.subr.bf16.mxu0 0
  %2178 = vmatpush1.bf16.msra.mxu0 0
  %2179 = vmatprep.subr.bf16.mxu0 0
  %2180 = vmatpush1.bf16.msra.mxu0 0
  %2181 = vmatprep.subr.bf16.mxu0 0
  %2182 = vmatpush1.bf16.msra.mxu0 0
  %2183 = vmatprep.subr.bf16.mxu0 0
  %2184 = vmatpush1.bf16.msra.mxu0 0
  %2185 = vmatprep.subr.bf16.mxu0 0
  %2186 = vmatpush1.bf16.msra.mxu0 0
  %2187 = vmatprep.mubr.bf16.mxu0 0
  %2188 = vmatmul.mubr.bf16.gmra.mrb[0].mxu0 %v336
  %v2189 = vpop.f32.mrb[0].mxu0
  %v2190 = vadd.f32 %v2149, %v2189
  %v2191 = vpop.f32.mrb[0].mxu0
  %v2192 = vadd.f32 %v2151, %v2191
  %v2193 = vpop.f32.mrb[0].mxu0
  %v2194 = vpop.f32.mrb[0].mxu0
  %2195 = vdwg.mxu0
  %v2196 = vrot.slane %v1985, 4
  %v2197 = vadd.f32 %v1985, %v2196
  %v2198 = vrot.slane %v2197, 2
  %v2199 = vadd.f32 %v2197, %v2198
  %v2200 = vrot.slane %v2199, 1
  %v2201 = vadd.f32 %v2199, %v2200
  %v2202 = vrot.slane %v1987, 4
  %v2203 = vadd.f32 %v1987, %v2202
  %v2204 = vrot.slane %v2203, 2
  %v2205 = vadd.f32 %v2203, %v2204
  %v2206 = vrot.slane %v2205, 1
  %v2207 = vadd.f32 %v2205, %v2206
  %v2208 = vrot.slane %v2190, 4
  %v2209 = vadd.f32 %v2190, %v2208
  %v2210 = vrot.slane %v2209, 2
  %v2211 = vadd.f32 %v2209, %v2210
  %v2212 = vrot.slane %v2211, 1
  %v2213 = vadd.f32 %v2211, %v2212
  %v2214 = vrot.slane %v2192, 4
  %v2215 = vadd.f32 %v2192, %v2214
  %v2216 = vrot.slane %v2215, 2
  %v2217 = vadd.f32 %v2215, %v2216
  %v2218 = vrot.slane %v2217, 1
  %v2219 = vadd.f32 %v2217, %v2218
  %v2220 = vmul.f32 %v1985, %v1985
  %v2221 = vmul.f32 %v1987, %v1987
  %v2222 = vmul.f32 %v2190, %v2190
  %v2223 = vmul.f32 %v2192, %v2192
  %v2224 = vrot.slane %v2220, 4
  %v2225 = vadd.f32 %v2220, %v2224
  %v2226 = vrot.slane %v2225, 2
  %v2227 = vadd.f32 %v2225, %v2226
  %v2228 = vrot.slane %v2227, 1
  %v2229 = vadd.f32 %v2227, %v2228
  %v2230 = vrot.slane %v2221, 4
  %v2231 = vadd.f32 %v2221, %v2230
  %v2232 = vrot.slane %v2231, 2
  %v2233 = vadd.f32 %v2231, %v2232
  %v2234 = vrot.slane %v2233, 1
  %v2235 = vadd.f32 %v2233, %v2234
  %v2236 = vrot.slane %v2222, 4
  %v2237 = vadd.f32 %v2222, %v2236
  %v2238 = vrot.slane %v2237, 2
  %v2239 = vadd.f32 %v2237, %v2238
  %v2240 = vrot.slane %v2239, 1
  %v2241 = vadd.f32 %v2239, %v2240
  %v2242 = vrot.slane %v2223, 4
  %v2243 = vadd.f32 %v2223, %v2242
  %v2244 = vrot.slane %v2243, 2
  %v2245 = vadd.f32 %v2243, %v2244
  %v2246 = vrot.slane %v2245, 1
  %v2247 = vadd.f32 %v2245, %v2246
  %v2248 = vadd.f32 %v2201, 0.0
  %v2249 = vadd.f32 %v2248, %v2207
  %v2250 = vadd.f32 %v2249, %v2213
  %v2251 = vadd.f32 %v2250, %v2219
  %v2252 = vadd.f32 %v2229, 0.0
  %v2253 = vadd.f32 %v2252, %v2235
  %v2254 = vadd.f32 %v2253, %v2241
  %v2255 = vadd.f32 %v2254, %v2247
  %v2256 = vmul.f32 %v2251, 0.03125
  %v2257 = vmul.f32 %v2255, 0.03125
  %v2258 = vmul.f32 %v2256, %v2256
  %v2259 = vsub.f32 %v2257, %v2258
  %v2260 = vmax.f32 %v2259, 0.0
  %v2261 = vadd.f32 %v2260, 1e-05
  %v2262 = vrsqrt.pop %v2261
  %v2263 = vld [vmem:[%s3] sm:$0x1]
  %v2264 = vmul.f32 %v2262, %v2263
  %v2265 = vld [vmem:[%s4] sm:$0x1]
  %v2266 = vmul.f32 %v2256, %v2264
  %v2267 = vsub.f32 %v2265, %v2266
  %v2268 = vlaneseq
  %v2269 = vshrl.u32 %v2268, 7
  %v2270 = vsub.s32 0, %v2269
  %v2271 = vrot.slane %v2264, %v2270
  %v2272 = vmul.f32 %v1985, %v2271
  %v2273 = vmul.f32 %v1987, %v2271
  %v2274 = vmul.f32 %v2190, %v2271
  %v2275 = vmul.f32 %v2192, %v2271
  %v2276 = vlaneseq
  %v2277 = vshrl.u32 %v2276, 7
  %v2278 = vsub.s32 0, %v2277
  %v2279 = vrot.slane %v2267, %v2278
  %v2280 = vadd.f32 %v2272, %v2279
  %v2281 = vadd.f32 %v2273, %v2279
  %v2282 = vadd.f32 %v2274, %v2279
  %v2283 = vadd.f32 %v2275, %v2279
  %v2284 = vmax.f32 %v2280, 0.0
  %v2285 = vmax.f32 %v2281, 0.0
  %v2286 = vmax.f32 %v2282, 0.0
  %v2287 = vmax.f32 %v2283, 0.0
  %v2288 = vpack.c.bf16 %v2284, %v2284
  %v2289 = vpack.c.bf16 %v2285, %v2285
  %v2290 = vpack.c.bf16 %v2286, %v2286
  %v2291 = vpack.c.bf16 %v2287, %v2287
  %v2296 = vunpack.c.l.b16 %v2288
  %v2297 = vunpack.c.l.b16 %v2289
  %v2298 = vunpack.c.l.b16 %v2290
  %v2299 = vunpack.c.l.b16 %v2291
  %v2300 = vpack.c.b16 %v2297, %v2296
  %v2301 = vpack.c.b16 %v2299, %v2298
  %2304 = vst [vmem:[%s5] sm:$0xff] %v2300
  %2305 = vst [vmem:[%s5 + $0x8] sm:$0xff] %v2301
  // Predicated region
  $region22: #{_lambda_.9} parent=0 // pred_check
    _
  $region23: #{_lambda_.9} parent=0 // pred_check_branch
    %2307 = sbr.rel (0) target = $region25
  $region24: #{_lambda_.9} parent=0 // pred_region
    _
  $region25: #{_lambda_.9} parent=0 // pred_fallthru
    _
  // Predicated region
  $region26: #{_lambda_.9} parent=0 // pred_check
    _
  $region27: #{_lambda_.9} parent=0 // pred_check_branch
    %2309 = sbr.rel (0) target = $region29
  $region28: #{_lambda_.9} parent=0 // pred_region
    _
  $region29: #{_lambda_.9} parent=0 // pred_fallthru
    _

// kernel: _lambda_.10
$region0: #{_lambda_.10}
  #allocation0 [shape = 'u32[]', space=smem, size = 0x4, offset = 0x4, fixed_abs, tag = 'smem constant byte address 0x4 - core index']
  #allocation1 [shape = 'u32[144,128]{1,0:T(1,128)}', space=vmem, size = 0x12000, scoped, tag = 'internal scratch']
  %s0 = inlined_call_operand.vmem [shape: bf16[32,640], index: 0, kind: input, shape index: {}]
  %s1 = inlined_call_operand.vmem [shape: bf16[640,512], index: 1, kind: input, shape index: {}]
  %s2 = inlined_call_operand.vmem [shape: f32[1,512], index: 2, kind: input, shape index: {}]
  %s3 = inlined_call_operand.vmem [shape: f32[1,128], index: 3, kind: input, shape index: {}]
  %s4 = inlined_call_operand.vmem [shape: f32[1,128], index: 4, kind: input, shape index: {}]
  %s5 = inlined_call_operand.vmem [shape: bf16[32,512], index: 5, kind: output, shape index: {}]
  %s6 = sld [smem:[#allocation0]]
  $region30: #{_lambda_.10} parent=0
    _
  %s8 = ssub.s32 1, %s6
  %s9 = scalar_select 0, %s8, %s6
  // Predicated region
  $region2: #{_lambda_.10} parent=0 // pred_check
    _
  $region3: #{_lambda_.10} parent=0 // pred_check_branch
    %11 = sbr.rel (0) target = $region5
  $region4: #{_lambda_.10} parent=0 // pred_region
    _
  $region5: #{_lambda_.10} parent=0 // pred_fallthru
    _
  // Predicated region
  $region6: #{_lambda_.10} parent=0 // pred_check
    _
  $region7: #{_lambda_.10} parent=0 // pred_check_branch
    %13 = sbr.rel (0) target = $region9
  $region8: #{_lambda_.10} parent=0 // pred_region
    _
  $region9: #{_lambda_.10} parent=0 // pred_fallthru
    _
  // Predicated region
  $region10: #{_lambda_.10} parent=0 // pred_check
    _
  $region11: #{_lambda_.10} parent=0 // pred_check_branch
    %15 = sbr.rel (0) target = $region13
  $region12: #{_lambda_.10} parent=0 // pred_region
    _
  $region13: #{_lambda_.10} parent=0 // pred_fallthru
    _
  // Predicated region
  $region14: #{_lambda_.10} parent=0 // pred_check
    _
  $region15: #{_lambda_.10} parent=0 // pred_check_branch
    %17 = sbr.rel (0) target = $region17
  $region16: #{_lambda_.10} parent=0 // pred_region
    _
  $region17: #{_lambda_.10} parent=0 // pred_fallthru
    _
  // Predicated region
  $region18: #{_lambda_.10} parent=0 // pred_check
    _
  $region19: #{_lambda_.10} parent=0 // pred_check_branch
    %19 = sbr.rel (0) target = $region21
  $region20: #{_lambda_.10} parent=0 // pred_region
    _
  $region21: #{_lambda_.10} parent=0 // pred_fallthru
    _
  %v21 = vld [vmem:[%s0] sm:$0xff]
  %v22 = vld [vmem:[%s0 + $0x8] sm:$0xff]
  %v23 = vld [vmem:[%s0 + $0x10] sm:$0xf]
  %v24 = vld [vmem:[%s0 + $0x14] sm:$0xff]
  %v25 = vld [vmem:[%s0 + $0x1c] sm:$0xff]
  %v26 = vld [vmem:[%s0 + $0x24] sm:$0xf]
  %v27 = vld [vmem:[%s0 + $0x28] sm:$0xff]
  %v28 = vld [vmem:[%s0 + $0x30] sm:$0xff]
  %v29 = vld [vmem:[%s0 + $0x38] sm:$0xf]
  %v30 = vld [vmem:[%s0 + $0x3c] sm:$0xff]
  %v31 = vld [vmem:[%s0 + $0x44] sm:$0xff]
  %v32 = vld [vmem:[%s0 + $0x4c] sm:$0xf]
  %v33 = vld [vmem:[%s1] sm:$0xff]
  %v34 = vld [vmem:[%s1 + $0x8] sm:$0xff]
  %v35 = vld [vmem:[%s1 + $0x10] sm:$0xff]
  %v36 = vld [vmem:[%s1 + $0x18] sm:$0xff]
  %v37 = vld [vmem:[%s1 + $0x20] sm:$0xff]
  %v38 = vld [vmem:[%s1 + $0x28] sm:$0xff]
  %v39 = vld [vmem:[%s1 + $0x30] sm:$0xff]
  %v40 = vld [vmem:[%s1 + $0x38] sm:$0xff]
  %v41 = vld [vmem:[%s1 + $0x40] sm:$0xff]
  %v42 = vld [vmem:[%s1 + $0x48] sm:$0xff]
  %v43 = vld [vmem:[%s1 + $0x50] sm:$0xff]
  %v44 = vld [vmem:[%s1 + $0x58] sm:$0xff]
  %v45 = vld [vmem:[%s1 + $0x60] sm:$0xff]
  %v46 = vld [vmem:[%s1 + $0x68] sm:$0xff]
  %v47 = vld [vmem:[%s1 + $0x70] sm:$0xff]
  %v48 = vld [vmem:[%s1 + $0x78] sm:$0xff]
  %v49 = vld [vmem:[%s1 + $0x80] sm:$0xff]
  %v50 = vld [vmem:[%s1 + $0x88] sm:$0xff]
  %v51 = vld [vmem:[%s1 + $0x90] sm:$0xff]
  %v52 = vld [vmem:[%s1 + $0x98] sm:$0xff]
  %v53 = vld [vmem:[%s1 + $0xa0] sm:$0xff]
  %v54 = vld [vmem:[%s1 + $0xa8] sm:$0xff]
  %v55 = vld [vmem:[%s1 + $0xb0] sm:$0xff]
  %v56 = vld [vmem:[%s1 + $0xb8] sm:$0xff]
  %v57 = vld [vmem:[%s1 + $0xc0] sm:$0xff]
  %v58 = vld [vmem:[%s1 + $0xc8] sm:$0xff]
  %v59 = vld [vmem:[%s1 + $0xd0] sm:$0xff]
  %v60 = vld [vmem:[%s1 + $0xd8] sm:$0xff]
  %v61 = vld [vmem:[%s1 + $0xe0] sm:$0xff]
  %v62 = vld [vmem:[%s1 + $0xe8] sm:$0xff]
  %v63 = vld [vmem:[%s1 + $0xf0] sm:$0xff]
  %v64 = vld [vmem:[%s1 + $0xf8] sm:$0xff]
  %v65 = vld [vmem:[%s1 + $0x100] sm:$0xff]
  %v66 = vld [vmem:[%s1 + $0x108] sm:$0xff]
  %v67 = vld [vmem:[%s1 + $0x110] sm:$0xff]
  %v68 = vld [vmem:[%s1 + $0x118] sm:$0xff]
  %v69 = vld [vmem:[%s1 + $0x120] sm:$0xff]
  %v70 = vld [vmem:[%s1 + $0x128] sm:$0xff]
  %v71 = vld [vmem:[%s1 + $0x130] sm:$0xff]
  %v72 = vld [vmem:[%s1 + $0x138] sm:$0xff]
  %v73 = vld [vmem:[%s1 + $0x140] sm:$0xff]
  %v74 = vld [vmem:[%s1 + $0x148] sm:$0xff]
  %v75 = vld [vmem:[%s1 + $0x150] sm:$0xff]
  %v76 = vld [vmem:[%s1 + $0x158] sm:$0xff]
  %v77 = vld [vmem:[%s1 + $0x160] sm:$0xff]
  %v78 = vld [vmem:[%s1 + $0x168] sm:$0xff]
  %v79 = vld [vmem:[%s1 + $0x170] sm:$0xff]
  %v80 = vld [vmem:[%s1 + $0x178] sm:$0xff]
  %v81 = vld [vmem:[%s1 + $0x180] sm:$0xff]
  %v82 = vld [vmem:[%s1 + $0x188] sm:$0xff]
  %v83 = vld [vmem:[%s1 + $0x190] sm:$0xff]
  %v84 = vld [vmem:[%s1 + $0x198] sm:$0xff]
  %v85 = vld [vmem:[%s1 + $0x1a0] sm:$0xff]
  %v86 = vld [vmem:[%s1 + $0x1a8] sm:$0xff]
  %v87 = vld [vmem:[%s1 + $0x1b0] sm:$0xff]
  %v88 = vld [vmem:[%s1 + $0x1b8] sm:$0xff]
  %v89 = vld [vmem:[%s1 + $0x1c0] sm:$0xff]
  %v90 = vld [vmem:[%s1 + $0x1c8] sm:$0xff]
  %v91 = vld [vmem:[%s1 + $0x1d0] sm:$0xff]
  %v92 = vld [vmem:[%s1 + $0x1d8] sm:$0xff]
  %v93 = vld [vmem:[%s1 + $0x1e0] sm:$0xff]
  %v94 = vld [vmem:[%s1 + $0x1e8] sm:$0xff]
  %v95 = vld [vmem:[%s1 + $0x1f0] sm:$0xff]
  %v96 = vld [vmem:[%s1 + $0x1f8] sm:$0xff]
  %v97 = vld [vmem:[%s1 + $0x200] sm:$0xff]
  %v98 = vld [vmem:[%s1 + $0x208] sm:$0xff]
  %v99 = vld [vmem:[%s1 + $0x210] sm:$0xff]
  %v100 = vld [vmem:[%s1 + $0x218] sm:$0xff]
  %v101 = vld [vmem:[%s1 + $0x220] sm:$0xff]
  %v102 = vld [vmem:[%s1 + $0x228] sm:$0xff]
  %v103 = vld [vmem:[%s1 + $0x230] sm:$0xff]
  %v104 = vld [vmem:[%s1 + $0x238] sm:$0xff]
  %v105 = vld [vmem:[%s1 + $0x240] sm:$0xff]
  %v106 = vld [vmem:[%s1 + $0x248] sm:$0xff]
  %v107 = vld [vmem:[%s1 + $0x250] sm:$0xff]
  %v108 = vld [vmem:[%s1 + $0x258] sm:$0xff]
  %v109 = vld [vmem:[%s1 + $0x260] sm:$0xff]
  %v110 = vld [vmem:[%s1 + $0x268] sm:$0xff]
  %v111 = vld [vmem:[%s1 + $0x270] sm:$0xff]
  %v112 = vld [vmem:[%s1 + $0x278] sm:$0xff]
  %v113 = vld [vmem:[%s1 + $0x280] sm:$0xff]
  %v114 = vld [vmem:[%s1 + $0x288] sm:$0xff]
  %v115 = vld [vmem:[%s1 + $0x290] sm:$0xff]
  %v116 = vld [vmem:[%s1 + $0x298] sm:$0xff]
  %v117 = vld [vmem:[%s1 + $0x2a0] sm:$0xff]
  %v118 = vld [vmem:[%s1 + $0x2a8] sm:$0xff]
  %v119 = vld [vmem:[%s1 + $0x2b0] sm:$0xff]
  %v120 = vld [vmem:[%s1 + $0x2b8] sm:$0xff]
  %v121 = vld [vmem:[%s1 + $0x2c0] sm:$0xff]
  %v122 = vld [vmem:[%s1 + $0x2c8] sm:$0xff]
  %v123 = vld [vmem:[%s1 + $0x2d0] sm:$0xff]
  %v124 = vld [vmem:[%s1 + $0x2d8] sm:$0xff]
  %v125 = vld [vmem:[%s1 + $0x2e0] sm:$0xff]
  %v126 = vld [vmem:[%s1 + $0x2e8] sm:$0xff]
  %v127 = vld [vmem:[%s1 + $0x2f0] sm:$0xff]
  %v128 = vld [vmem:[%s1 + $0x2f8] sm:$0xff]
  %v129 = vld [vmem:[%s1 + $0x300] sm:$0xff]
  %v130 = vld [vmem:[%s1 + $0x308] sm:$0xff]
  %v131 = vld [vmem:[%s1 + $0x310] sm:$0xff]
  %v132 = vld [vmem:[%s1 + $0x318] sm:$0xff]
  %v133 = vld [vmem:[%s1 + $0x320] sm:$0xff]
  %v134 = vld [vmem:[%s1 + $0x328] sm:$0xff]
  %v135 = vld [vmem:[%s1 + $0x330] sm:$0xff]
  %v136 = vld [vmem:[%s1 + $0x338] sm:$0xff]
  %v137 = vld [vmem:[%s1 + $0x340] sm:$0xff]
  %v138 = vld [vmem:[%s1 + $0x348] sm:$0xff]
  %v139 = vld [vmem:[%s1 + $0x350] sm:$0xff]
  %v140 = vld [vmem:[%s1 + $0x358] sm:$0xff]
  %v141 = vld [vmem:[%s1 + $0x360] sm:$0xff]
  %v142 = vld [vmem:[%s1 + $0x368] sm:$0xff]
  %v143 = vld [vmem:[%s1 + $0x370] sm:$0xff]
  %v144 = vld [vmem:[%s1 + $0x378] sm:$0xff]
  %v145 = vld [vmem:[%s1 + $0x380] sm:$0xff]
  %v146 = vld [vmem:[%s1 + $0x388] sm:$0xff]
  %v147 = vld [vmem:[%s1 + $0x390] sm:$0xff]
  %v148 = vld [vmem:[%s1 + $0x398] sm:$0xff]
  %v149 = vld [vmem:[%s1 + $0x3a0] sm:$0xff]
  %v150 = vld [vmem:[%s1 + $0x3a8] sm:$0xff]
  %v151 = vld [vmem:[%s1 + $0x3b0] sm:$0xff]
  %v152 = vld [vmem:[%s1 + $0x3b8] sm:$0xff]
  %v153 = vld [vmem:[%s1 + $0x3c0] sm:$0xff]
  %v154 = vld [vmem:[%s1 + $0x3c8] sm:$0xff]
  %v155 = vld [vmem:[%s1 + $0x3d0] sm:$0xff]
  %v156 = vld [vmem:[%s1 + $0x3d8] sm:$0xff]
  %v157 = vld [vmem:[%s1 + $0x3e0] sm:$0xff]
  %v158 = vld [vmem:[%s1 + $0x3e8] sm:$0xff]
  %v159 = vld [vmem:[%s1 + $0x3f0] sm:$0xff]
  %v160 = vld [vmem:[%s1 + $0x3f8] sm:$0xff]
  %v161 = vld [vmem:[%s1 + $0x400] sm:$0xff]
  %v162 = vld [vmem:[%s1 + $0x408] sm:$0xff]
  %v163 = vld [vmem:[%s1 + $0x410] sm:$0xff]
  %v164 = vld [vmem:[%s1 + $0x418] sm:$0xff]
  %v165 = vld [vmem:[%s1 + $0x420] sm:$0xff]
  %v166 = vld [vmem:[%s1 + $0x428] sm:$0xff]
  %v167 = vld [vmem:[%s1 + $0x430] sm:$0xff]
  %v168 = vld [vmem:[%s1 + $0x438] sm:$0xff]
  %v169 = vld [vmem:[%s1 + $0x440] sm:$0xff]
  %v170 = vld [vmem:[%s1 + $0x448] sm:$0xff]
  %v171 = vld [vmem:[%s1 + $0x450] sm:$0xff]
  %v172 = vld [vmem:[%s1 + $0x458] sm:$0xff]
  %v173 = vld [vmem:[%s1 + $0x460] sm:$0xff]
  %v174 = vld [vmem:[%s1 + $0x468] sm:$0xff]
  %v175 = vld [vmem:[%s1 + $0x470] sm:$0xff]
  %v176 = vld [vmem:[%s1 + $0x478] sm:$0xff]
  %v177 = vld [vmem:[%s1 + $0x480] sm:$0xff]
  %v178 = vld [vmem:[%s1 + $0x488] sm:$0xff]
  %v179 = vld [vmem:[%s1 + $0x490] sm:$0xff]
  %v180 = vld [vmem:[%s1 + $0x498] sm:$0xff]
  %v181 = vld [vmem:[%s1 + $0x4a0] sm:$0xff]
  %v182 = vld [vmem:[%s1 + $0x4a8] sm:$0xff]
  %v183 = vld [vmem:[%s1 + $0x4b0] sm:$0xff]
  %v184 = vld [vmem:[%s1 + $0x4b8] sm:$0xff]
  %v185 = vld [vmem:[%s1 + $0x4c0] sm:$0xff]
  %v186 = vld [vmem:[%s1 + $0x4c8] sm:$0xff]
  %v187 = vld [vmem:[%s1 + $0x4d0] sm:$0xff]
  %v188 = vld [vmem:[%s1 + $0x4d8] sm:$0xff]
  %v189 = vld [vmem:[%s1 + $0x4e0] sm:$0xff]
  %v190 = vld [vmem:[%s1 + $0x4e8] sm:$0xff]
  %v191 = vld [vmem:[%s1 + $0x4f0] sm:$0xff]
  %v192 = vld [vmem:[%s1 + $0x4f8] sm:$0xff]
  %v205 = vunpack.c.l.b16 %v21
  %v206 = vunpack.c.h.b16 %v21
  %v207 = vunpack.c.l.b16 %v22
  %v208 = vunpack.c.h.b16 %v22
  %v209 = vunpack.c.l.b16 %v23
  %v210 = vunpack.c.l.b16 %v24
  %v211 = vunpack.c.h.b16 %v24
  %v212 = vunpack.c.l.b16 %v25
  %v213 = vunpack.c.h.b16 %v25
  %v214 = vunpack.c.l.b16 %v26
  %v215 = vunpack.c.l.b16 %v27
  %v216 = vunpack.c.h.b16 %v27
  %v217 = vunpack.c.l.b16 %v28
  %v218 = vunpack.c.h.b16 %v28
  %v219 = vunpack.c.l.b16 %v29
  %v220 = vunpack.c.l.b16 %v30
  %v221 = vunpack.c.h.b16 %v30
  %v222 = vunpack.c.l.b16 %v31
  %v223 = vunpack.c.h.b16 %v31
  %v224 = vunpack.c.l.b16 %v32
  %v225 = vpack.c.b16 %v210, %v205
  %v226 = vpack.c.b16 %v211, %v206
  %v227 = vpack.c.b16 %v212, %v207
  %v228 = vpack.c.b16 %v213, %v208
  %v229 = vpack.c.b16 %v214, %v209
  %v230 = vpack.c.b16 %v220, %v215
  %v231 = vpack.c.b16 %v221, %v216
  %v232 = vpack.c.b16 %v222, %v217
  %v233 = vpack.c.b16 %v223, %v218
  %v234 = vpack.c.b16 %v224, %v219
  %v405 = vunpack.c.l.b16 %v33
  %v406 = vunpack.c.h.b16 %v33
  %v407 = vunpack.c.l.b16 %v34
  %v408 = vunpack.c.h.b16 %v34
  %v409 = vunpack.c.l.b16 %v35
  %v410 = vunpack.c.h.b16 %v35
  %v411 = vunpack.c.l.b16 %v36
  %v412 = vunpack.c.h.b16 %v36
  %v413 = vunpack.c.l.b16 %v37
  %v414 = vunpack.c.h.b16 %v37
  %v415 = vunpack.c.l.b16 %v38
  %v416 = vunpack.c.h.b16 %v38
  %v417 = vunpack.c.l.b16 %v39
  %v418 = vunpack.c.h.b16 %v39
  %v419 = vunpack.c.l.b16 %v40
  %v420 = vunpack.c.h.b16 %v40
  %v421 = vunpack.c.l.b16 %v41
  %v422 = vunpack.c.h.b16 %v41
  %v423 = vunpack.c.l.b16 %v42
  %v424 = vunpack.c.h.b16 %v42
  %v425 = vunpack.c.l.b16 %v43
  %v426 = vunpack.c.h.b16 %v43
  %v427 = vunpack.c.l.b16 %v44
  %v428 = vunpack.c.h.b16 %v44
  %v429 = vunpack.c.l.b16 %v45
  %v430 = vunpack.c.h.b16 %v45
  %v431 = vunpack.c.l.b16 %v46
  %v432 = vunpack.c.h.b16 %v46
  %v433 = vunpack.c.l.b16 %v47
  %v434 = vunpack.c.h.b16 %v47
  %v435 = vunpack.c.l.b16 %v48
  %v436 = vunpack.c.h.b16 %v48
  %v437 = vunpack.c.l.b16 %v49
  %v438 = vunpack.c.h.b16 %v49
  %v439 = vunpack.c.l.b16 %v50
  %v440 = vunpack.c.h.b16 %v50
  %v441 = vunpack.c.l.b16 %v51
  %v442 = vunpack.c.h.b16 %v51
  %v443 = vunpack.c.l.b16 %v52
  %v444 = vunpack.c.h.b16 %v52
  %v445 = vunpack.c.l.b16 %v53
  %v446 = vunpack.c.h.b16 %v53
  %v447 = vunpack.c.l.b16 %v54
  %v448 = vunpack.c.h.b16 %v54
  %v449 = vunpack.c.l.b16 %v55
  %v450 = vunpack.c.h.b16 %v55
  %v451 = vunpack.c.l.b16 %v56
  %v452 = vunpack.c.h.b16 %v56
  %v453 = vunpack.c.l.b16 %v57
  %v454 = vunpack.c.h.b16 %v57
  %v455 = vunpack.c.l.b16 %v58
  %v456 = vunpack.c.h.b16 %v58
  %v457 = vunpack.c.l.b16 %v59
  %v458 = vunpack.c.h.b16 %v59
  %v459 = vunpack.c.l.b16 %v60
  %v460 = vunpack.c.h.b16 %v60
  %v461 = vunpack.c.l.b16 %v61
  %v462 = vunpack.c.h.b16 %v61
  %v463 = vunpack.c.l.b16 %v62
  %v464 = vunpack.c.h.b16 %v62
  %v465 = vunpack.c.l.b16 %v63
  %v466 = vunpack.c.h.b16 %v63
  %v467 = vunpack.c.l.b16 %v64
  %v468 = vunpack.c.h.b16 %v64
  %v469 = vunpack.c.l.b16 %v65
  %v470 = vunpack.c.h.b16 %v65
  %v471 = vunpack.c.l.b16 %v66
  %v472 = vunpack.c.h.b16 %v66
  %v473 = vunpack.c.l.b16 %v67
  %v474 = vunpack.c.h.b16 %v67
  %v475 = vunpack.c.l.b16 %v68
  %v476 = vunpack.c.h.b16 %v68
  %v477 = vunpack.c.l.b16 %v69
  %v478 = vunpack.c.h.b16 %v69
  %v479 = vunpack.c.l.b16 %v70
  %v480 = vunpack.c.h.b16 %v70
  %v481 = vunpack.c.l.b16 %v71
  %v482 = vunpack.c.h.b16 %v71
  %v483 = vunpack.c.l.b16 %v72
  %v484 = vunpack.c.h.b16 %v72
  %v485 = vunpack.c.l.b16 %v73
  %v486 = vunpack.c.h.b16 %v73
  %v487 = vunpack.c.l.b16 %v74
  %v488 = vunpack.c.h.b16 %v74
  %v489 = vunpack.c.l.b16 %v75
  %v490 = vunpack.c.h.b16 %v75
  %v491 = vunpack.c.l.b16 %v76
  %v492 = vunpack.c.h.b16 %v76
  %v493 = vunpack.c.l.b16 %v77
  %v494 = vunpack.c.h.b16 %v77
  %v495 = vunpack.c.l.b16 %v78
  %v496 = vunpack.c.h.b16 %v78
  %v497 = vunpack.c.l.b16 %v79
  %v498 = vunpack.c.h.b16 %v79
  %v499 = vunpack.c.l.b16 %v80
  %v500 = vunpack.c.h.b16 %v80
  %v501 = vunpack.c.l.b16 %v81
  %v502 = vunpack.c.h.b16 %v81
  %v503 = vunpack.c.l.b16 %v82
  %v504 = vunpack.c.h.b16 %v82
  %v505 = vunpack.c.l.b16 %v83
  %v506 = vunpack.c.h.b16 %v83
  %v507 = vunpack.c.l.b16 %v84
  %v508 = vunpack.c.h.b16 %v84
  %v509 = vunpack.c.l.b16 %v85
  %v510 = vunpack.c.h.b16 %v85
  %v511 = vunpack.c.l.b16 %v86
  %v512 = vunpack.c.h.b16 %v86
  %v513 = vunpack.c.l.b16 %v87
  %v514 = vunpack.c.h.b16 %v87
  %v515 = vunpack.c.l.b16 %v88
  %v516 = vunpack.c.h.b16 %v88
  %v517 = vunpack.c.l.b16 %v89
  %v518 = vunpack.c.h.b16 %v89
  %v519 = vunpack.c.l.b16 %v90
  %v520 = vunpack.c.h.b16 %v90
  %v521 = vunpack.c.l.b16 %v91
  %v522 = vunpack.c.h.b16 %v91
  %v523 = vunpack.c.l.b16 %v92
  %v524 = vunpack.c.h.b16 %v92
  %v525 = vunpack.c.l.b16 %v93
  %v526 = vunpack.c.h.b16 %v93
  %v527 = vunpack.c.l.b16 %v94
  %v528 = vunpack.c.h.b16 %v94
  %v529 = vunpack.c.l.b16 %v95
  %v530 = vunpack.c.h.b16 %v95
  %v531 = vunpack.c.l.b16 %v96
  %v532 = vunpack.c.h.b16 %v96
  %v533 = vunpack.c.l.b16 %v97
  %v534 = vunpack.c.h.b16 %v97
  %v535 = vunpack.c.l.b16 %v98
  %v536 = vunpack.c.h.b16 %v98
  %v537 = vunpack.c.l.b16 %v99
  %v538 = vunpack.c.h.b16 %v99
  %v539 = vunpack.c.l.b16 %v100
  %v540 = vunpack.c.h.b16 %v100
  %v541 = vunpack.c.l.b16 %v101
  %v542 = vunpack.c.h.b16 %v101
  %v543 = vunpack.c.l.b16 %v102
  %v544 = vunpack.c.h.b16 %v102
  %v545 = vunpack.c.l.b16 %v103
  %v546 = vunpack.c.h.b16 %v103
  %v547 = vunpack.c.l.b16 %v104
  %v548 = vunpack.c.h.b16 %v104
  %v549 = vunpack.c.l.b16 %v105
  %v550 = vunpack.c.h.b16 %v105
  %v551 = vunpack.c.l.b16 %v106
  %v552 = vunpack.c.h.b16 %v106
  %v553 = vunpack.c.l.b16 %v107
  %v554 = vunpack.c.h.b16 %v107
  %v555 = vunpack.c.l.b16 %v108
  %v556 = vunpack.c.h.b16 %v108
  %v557 = vunpack.c.l.b16 %v109
  %v558 = vunpack.c.h.b16 %v109
  %v559 = vunpack.c.l.b16 %v110
  %v560 = vunpack.c.h.b16 %v110
  %v561 = vunpack.c.l.b16 %v111
  %v562 = vunpack.c.h.b16 %v111
  %v563 = vunpack.c.l.b16 %v112
  %v564 = vunpack.c.h.b16 %v112
  %v565 = vunpack.c.l.b16 %v113
  %v566 = vunpack.c.h.b16 %v113
  %v567 = vunpack.c.l.b16 %v114
  %v568 = vunpack.c.h.b16 %v114
  %v569 = vunpack.c.l.b16 %v115
  %v570 = vunpack.c.h.b16 %v115
  %v571 = vunpack.c.l.b16 %v116
  %v572 = vunpack.c.h.b16 %v116
  %v573 = vunpack.c.l.b16 %v117
  %v574 = vunpack.c.h.b16 %v117
  %v575 = vunpack.c.l.b16 %v118
  %v576 = vunpack.c.h.b16 %v118
  %v577 = vunpack.c.l.b16 %v119
  %v578 = vunpack.c.h.b16 %v119
  %v579 = vunpack.c.l.b16 %v120
  %v580 = vunpack.c.h.b16 %v120
  %v581 = vunpack.c.l.b16 %v121
  %v582 = vunpack.c.h.b16 %v121
  %v583 = vunpack.c.l.b16 %v122
  %v584 = vunpack.c.h.b16 %v122
  %v585 = vunpack.c.l.b16 %v123
  %v586 = vunpack.c.h.b16 %v123
  %v587 = vunpack.c.l.b16 %v124
  %v588 = vunpack.c.h.b16 %v124
  %v589 = vunpack.c.l.b16 %v125
  %v590 = vunpack.c.h.b16 %v125
  %v591 = vunpack.c.l.b16 %v126
  %v592 = vunpack.c.h.b16 %v126
  %v593 = vunpack.c.l.b16 %v127
  %v594 = vunpack.c.h.b16 %v127
  %v595 = vunpack.c.l.b16 %v128
  %v596 = vunpack.c.h.b16 %v128
  %v597 = vunpack.c.l.b16 %v129
  %v598 = vunpack.c.h.b16 %v129
  %v599 = vunpack.c.l.b16 %v130
  %v600 = vunpack.c.h.b16 %v130
  %v601 = vunpack.c.l.b16 %v131
  %v602 = vunpack.c.h.b16 %v131
  %v603 = vunpack.c.l.b16 %v132
  %v604 = vunpack.c.h.b16 %v132
  %v605 = vunpack.c.l.b16 %v133
  %v606 = vunpack.c.h.b16 %v133
  %v607 = vunpack.c.l.b16 %v134
  %v608 = vunpack.c.h.b16 %v134
  %v609 = vunpack.c.l.b16 %v135
  %v610 = vunpack.c.h.b16 %v135
  %v611 = vunpack.c.l.b16 %v136
  %v612 = vunpack.c.h.b16 %v136
  %v613 = vunpack.c.l.b16 %v137
  %v614 = vunpack.c.h.b16 %v137
  %v615 = vunpack.c.l.b16 %v138
  %v616 = vunpack.c.h.b16 %v138
  %v617 = vunpack.c.l.b16 %v139
  %v618 = vunpack.c.h.b16 %v139
  %v619 = vunpack.c.l.b16 %v140
  %v620 = vunpack.c.h.b16 %v140
  %v621 = vunpack.c.l.b16 %v141
  %v622 = vunpack.c.h.b16 %v141
  %v623 = vunpack.c.l.b16 %v142
  %v624 = vunpack.c.h.b16 %v142
  %v625 = vunpack.c.l.b16 %v143
  %v626 = vunpack.c.h.b16 %v143
  %v627 = vunpack.c.l.b16 %v144
  %v628 = vunpack.c.h.b16 %v144
  %v629 = vunpack.c.l.b16 %v145
  %v630 = vunpack.c.h.b16 %v145
  %v631 = vunpack.c.l.b16 %v146
  %v632 = vunpack.c.h.b16 %v146
  %v633 = vunpack.c.l.b16 %v147
  %v634 = vunpack.c.h.b16 %v147
  %v635 = vunpack.c.l.b16 %v148
  %v636 = vunpack.c.h.b16 %v148
  %v637 = vunpack.c.l.b16 %v149
  %v638 = vunpack.c.h.b16 %v149
  %v639 = vunpack.c.l.b16 %v150
  %v640 = vunpack.c.h.b16 %v150
  %v641 = vunpack.c.l.b16 %v151
  %v642 = vunpack.c.h.b16 %v151
  %v643 = vunpack.c.l.b16 %v152
  %v644 = vunpack.c.h.b16 %v152
  %v645 = vunpack.c.l.b16 %v153
  %v646 = vunpack.c.h.b16 %v153
  %v647 = vunpack.c.l.b16 %v154
  %v648 = vunpack.c.h.b16 %v154
  %v649 = vunpack.c.l.b16 %v155
  %v650 = vunpack.c.h.b16 %v155
  %v651 = vunpack.c.l.b16 %v156
  %v652 = vunpack.c.h.b16 %v156
  %v653 = vunpack.c.l.b16 %v157
  %v654 = vunpack.c.h.b16 %v157
  %v655 = vunpack.c.l.b16 %v158
  %v656 = vunpack.c.h.b16 %v158
  %v657 = vunpack.c.l.b16 %v159
  %v658 = vunpack.c.h.b16 %v159
  %v659 = vunpack.c.l.b16 %v160
  %v660 = vunpack.c.h.b16 %v160
  %v661 = vunpack.c.l.b16 %v161
  %v662 = vunpack.c.h.b16 %v161
  %v663 = vunpack.c.l.b16 %v162
  %v664 = vunpack.c.h.b16 %v162
  %v665 = vunpack.c.l.b16 %v163
  %v666 = vunpack.c.h.b16 %v163
  %v667 = vunpack.c.l.b16 %v164
  %v668 = vunpack.c.h.b16 %v164
  %v669 = vunpack.c.l.b16 %v165
  %v670 = vunpack.c.h.b16 %v165
  %v671 = vunpack.c.l.b16 %v166
  %v672 = vunpack.c.h.b16 %v166
  %v673 = vunpack.c.l.b16 %v167
  %v674 = vunpack.c.h.b16 %v167
  %v675 = vunpack.c.l.b16 %v168
  %v676 = vunpack.c.h.b16 %v168
  %v677 = vunpack.c.l.b16 %v169
  %v678 = vunpack.c.h.b16 %v169
  %v679 = vunpack.c.l.b16 %v170
  %v680 = vunpack.c.h.b16 %v170
  %v681 = vunpack.c.l.b16 %v171
  %v682 = vunpack.c.h.b16 %v171
  %v683 = vunpack.c.l.b16 %v172
  %v684 = vunpack.c.h.b16 %v172
  %v685 = vunpack.c.l.b16 %v173
  %v686 = vunpack.c.h.b16 %v173
  %v687 = vunpack.c.l.b16 %v174
  %v688 = vunpack.c.h.b16 %v174
  %v689 = vunpack.c.l.b16 %v175
  %v690 = vunpack.c.h.b16 %v175
  %v691 = vunpack.c.l.b16 %v176
  %v692 = vunpack.c.h.b16 %v176
  %v693 = vunpack.c.l.b16 %v177
  %v694 = vunpack.c.h.b16 %v177
  %v695 = vunpack.c.l.b16 %v178
  %v696 = vunpack.c.h.b16 %v178
  %v697 = vunpack.c.l.b16 %v179
  %v698 = vunpack.c.h.b16 %v179
  %v699 = vunpack.c.l.b16 %v180
  %v700 = vunpack.c.h.b16 %v180
  %v701 = vunpack.c.l.b16 %v181
  %v702 = vunpack.c.h.b16 %v181
  %v703 = vunpack.c.l.b16 %v182
  %v704 = vunpack.c.h.b16 %v182
  %v705 = vunpack.c.l.b16 %v183
  %v706 = vunpack.c.h.b16 %v183
  %v707 = vunpack.c.l.b16 %v184
  %v708 = vunpack.c.h.b16 %v184
  %v709 = vunpack.c.l.b16 %v185
  %v710 = vunpack.c.h.b16 %v185
  %v711 = vunpack.c.l.b16 %v186
  %v712 = vunpack.c.h.b16 %v186
  %v713 = vunpack.c.l.b16 %v187
  %v714 = vunpack.c.h.b16 %v187
  %v715 = vunpack.c.l.b16 %v188
  %v716 = vunpack.c.h.b16 %v188
  %v717 = vunpack.c.l.b16 %v189
  %v718 = vunpack.c.h.b16 %v189
  %v719 = vunpack.c.l.b16 %v190
  %v720 = vunpack.c.h.b16 %v190
  %v721 = vunpack.c.l.b16 %v191
  %v722 = vunpack.c.h.b16 %v191
  %v723 = vunpack.c.l.b16 %v192
  %v724 = vunpack.c.h.b16 %v192
  %v725 = vpack.c.b16 %v409, %v405
  %v726 = vpack.c.b16 %v410, %v406
  %v727 = vpack.c.b16 %v411, %v407
  %v728 = vpack.c.b16 %v412, %v408
  %v729 = vpack.c.b16 %v417, %v413
  %v730 = vpack.c.b16 %v418, %v414
  %v731 = vpack.c.b16 %v419, %v415
  %v732 = vpack.c.b16 %v420, %v416
  %v733 = vpack.c.b16 %v425, %v421
  %v734 = vpack.c.b16 %v426, %v422
  %v735 = vpack.c.b16 %v427, %v423
  %v736 = vpack.c.b16 %v428, %v424
  %v737 = vpack.c.b16 %v433, %v429
  %v738 = vpack.c.b16 %v434, %v430
  %v739 = vpack.c.b16 %v435, %v431
  %v740 = vpack.c.b16 %v436, %v432
  %v741 = vpack.c.b16 %v441, %v437
  %v742 = vpack.c.b16 %v442, %v438
  %v743 = vpack.c.b16 %v443, %v439
  %v744 = vpack.c.b16 %v444, %v440
  %v745 = vpack.c.b16 %v449, %v445
  %v746 = vpack.c.b16 %v450, %v446
  %v747 = vpack.c.b16 %v451, %v447
  %v748 = vpack.c.b16 %v452, %v448
  %v749 = vpack.c.b16 %v457, %v453
  %v750 = vpack.c.b16 %v458, %v454
  %v751 = vpack.c.b16 %v459, %v455
  %v752 = vpack.c.b16 %v460, %v456
  %v753 = vpack.c.b16 %v465, %v461
  %v754 = vpack.c.b16 %v466, %v462
  %v755 = vpack.c.b16 %v467, %v463
  %v756 = vpack.c.b16 %v468, %v464
  %v757 = vpack.c.b16 %v473, %v469
  %v758 = vpack.c.b16 %v474, %v470
  %v759 = vpack.c.b16 %v475, %v471
  %v760 = vpack.c.b16 %v476, %v472
  %v761 = vpack.c.b16 %v481, %v477
  %v762 = vpack.c.b16 %v482, %v478
  %v763 = vpack.c.b16 %v483, %v479
  %v764 = vpack.c.b16 %v484, %v480
  %v765 = vpack.c.b16 %v489, %v485
  %v766 = vpack.c.b16 %v490, %v486
  %v767 = vpack.c.b16 %v491, %v487
  %v768 = vpack.c.b16 %v492, %v488
  %v769 = vpack.c.b16 %v497, %v493
  %v770 = vpack.c.b16 %v498, %v494
  %v771 = vpack.c.b16 %v499, %v495
  %v772 = vpack.c.b16 %v500, %v496
  %v773 = vpack.c.b16 %v505, %v501
  %v774 = vpack.c.b16 %v506, %v502
  %v775 = vpack.c.b16 %v507, %v503
  %v776 = vpack.c.b16 %v508, %v504
  %v777 = vpack.c.b16 %v513, %v509
  %v778 = vpack.c.b16 %v514, %v510
  %v779 = vpack.c.b16 %v515, %v511
  %v780 = vpack.c.b16 %v516, %v512
  %v781 = vpack.c.b16 %v521, %v517
  %v782 = vpack.c.b16 %v522, %v518
  %v783 = vpack.c.b16 %v523, %v519
  %v784 = vpack.c.b16 %v524, %v520
  %v785 = vpack.c.b16 %v529, %v525
  %v786 = vpack.c.b16 %v530, %v526
  %v787 = vpack.c.b16 %v531, %v527
  %v788 = vpack.c.b16 %v532, %v528
  %v789 = vpack.c.b16 %v537, %v533
  %v790 = vpack.c.b16 %v538, %v534
  %v791 = vpack.c.b16 %v539, %v535
  %v792 = vpack.c.b16 %v540, %v536
  %v793 = vpack.c.b16 %v545, %v541
  %v794 = vpack.c.b16 %v546, %v542
  %v795 = vpack.c.b16 %v547, %v543
  %v796 = vpack.c.b16 %v548, %v544
  %v797 = vpack.c.b16 %v553, %v549
  %v798 = vpack.c.b16 %v554, %v550
  %v799 = vpack.c.b16 %v555, %v551
  %v800 = vpack.c.b16 %v556, %v552
  %v801 = vpack.c.b16 %v561, %v557
  %v802 = vpack.c.b16 %v562, %v558
  %v803 = vpack.c.b16 %v563, %v559
  %v804 = vpack.c.b16 %v564, %v560
  %v805 = vpack.c.b16 %v569, %v565
  %v806 = vpack.c.b16 %v570, %v566
  %v807 = vpack.c.b16 %v571, %v567
  %v808 = vpack.c.b16 %v572, %v568
  %v809 = vpack.c.b16 %v577, %v573
  %v810 = vpack.c.b16 %v578, %v574
  %v811 = vpack.c.b16 %v579, %v575
  %v812 = vpack.c.b16 %v580, %v576
  %v813 = vpack.c.b16 %v585, %v581
  %v814 = vpack.c.b16 %v586, %v582
  %v815 = vpack.c.b16 %v587, %v583
  %v816 = vpack.c.b16 %v588, %v584
  %v817 = vpack.c.b16 %v593, %v589
  %v818 = vpack.c.b16 %v594, %v590
  %v819 = vpack.c.b16 %v595, %v591
  %v820 = vpack.c.b16 %v596, %v592
  %v821 = vpack.c.b16 %v601, %v597
  %v822 = vpack.c.b16 %v602, %v598
  %v823 = vpack.c.b16 %v603, %v599
  %v824 = vpack.c.b16 %v604, %v600
  %v825 = vpack.c.b16 %v609, %v605
  %v826 = vpack.c.b16 %v610, %v606
  %v827 = vpack.c.b16 %v611, %v607
  %v828 = vpack.c.b16 %v612, %v608
  %v829 = vpack.c.b16 %v617, %v613
  %v830 = vpack.c.b16 %v618, %v614
  %v831 = vpack.c.b16 %v619, %v615
  %v832 = vpack.c.b16 %v620, %v616
  %v833 = vpack.c.b16 %v625, %v621
  %v834 = vpack.c.b16 %v626, %v622
  %v835 = vpack.c.b16 %v627, %v623
  %v836 = vpack.c.b16 %v628, %v624
  %v837 = vpack.c.b16 %v633, %v629
  %v838 = vpack.c.b16 %v634, %v630
  %v839 = vpack.c.b16 %v635, %v631
  %v840 = vpack.c.b16 %v636, %v632
  %v841 = vpack.c.b16 %v641, %v637
  %v842 = vpack.c.b16 %v642, %v638
  %v843 = vpack.c.b16 %v643, %v639
  %v844 = vpack.c.b16 %v644, %v640
  %v845 = vpack.c.b16 %v649, %v645
  %v846 = vpack.c.b16 %v650, %v646
  %v847 = vpack.c.b16 %v651, %v647
  %v848 = vpack.c.b16 %v652, %v648
  %v849 = vpack.c.b16 %v657, %v653
  %v850 = vpack.c.b16 %v658, %v654
  %v851 = vpack.c.b16 %v659, %v655
  %v852 = vpack.c.b16 %v660, %v656
  %v853 = vpack.c.b16 %v665, %v661
  %v854 = vpack.c.b16 %v666, %v662
  %v855 = vpack.c.b16 %v667, %v663
  %v856 = vpack.c.b16 %v668, %v664
  %v857 = vpack.c.b16 %v673, %v669
  %v858 = vpack.c.b16 %v674, %v670
  %v859 = vpack.c.b16 %v675, %v671
  %v860 = vpack.c.b16 %v676, %v672
  %v861 = vpack.c.b16 %v681, %v677
  %v862 = vpack.c.b16 %v682, %v678
  %v863 = vpack.c.b16 %v683, %v679
  %v864 = vpack.c.b16 %v684, %v680
  %v865 = vpack.c.b16 %v689, %v685
  %v866 = vpack.c.b16 %v690, %v686
  %v867 = vpack.c.b16 %v691, %v687
  %v868 = vpack.c.b16 %v692, %v688
  %v869 = vpack.c.b16 %v697, %v693
  %v870 = vpack.c.b16 %v698, %v694
  %v871 = vpack.c.b16 %v699, %v695
  %v872 = vpack.c.b16 %v700, %v696
  %v873 = vpack.c.b16 %v705, %v701
  %v874 = vpack.c.b16 %v706, %v702
  %v875 = vpack.c.b16 %v707, %v703
  %v876 = vpack.c.b16 %v708, %v704
  %v877 = vpack.c.b16 %v713, %v709
  %v878 = vpack.c.b16 %v714, %v710
  %v879 = vpack.c.b16 %v715, %v711
  %v880 = vpack.c.b16 %v716, %v712
  %v881 = vpack.c.b16 %v721, %v717
  %v882 = vpack.c.b16 %v722, %v718
  %v883 = vpack.c.b16 %v723, %v719
  %v884 = vpack.c.b16 %v724, %v720
  %1045 = vmatprep.subr.bf16.mxu0 %v726
  %1046 = vmatpush1.bf16.msra.mxu0 %v725
  %1047 = vmatprep.subr.bf16.mxu0 %v730
  %1048 = vmatpush1.bf16.msra.mxu0 %v729
  %1049 = vmatprep.subr.bf16.mxu0 %v734
  %1050 = vmatpush1.bf16.msra.mxu0 %v733
  %1051 = vmatprep.subr.bf16.mxu0 %v738
  %1052 = vmatpush1.bf16.msra.mxu0 %v737
  %1053 = vmatprep.subr.bf16.mxu0 %v742
  %1054 = vmatpush1.bf16.msra.mxu0 %v741
  %1055 = vmatprep.subr.bf16.mxu0 %v746
  %1056 = vmatpush1.bf16.msra.mxu0 %v745
  %1057 = vmatprep.subr.bf16.mxu0 %v750
  %1058 = vmatpush1.bf16.msra.mxu0 %v749
  %1059 = vmatprep.subr.bf16.mxu0 %v754
  %1060 = vmatpush1.bf16.msra.mxu0 %v753
  %1061 = vmatprep.subr.bf16.mxu0 %v758
  %1062 = vmatpush1.bf16.msra.mxu0 %v757
  %1063 = vmatprep.subr.bf16.mxu0 %v762
  %1064 = vmatpush1.bf16.msra.mxu0 %v761
  %1065 = vmatprep.subr.bf16.mxu0 %v766
  %1066 = vmatpush1.bf16.msra.mxu0 %v765
  %1067 = vmatprep.subr.bf16.mxu0 %v770
  %1068 = vmatpush1.bf16.msra.mxu0 %v769
  %1069 = vmatprep.subr.bf16.mxu0 %v774
  %1070 = vmatpush1.bf16.msra.mxu0 %v773
  %1071 = vmatprep.subr.bf16.mxu0 %v778
  %1072 = vmatpush1.bf16.msra.mxu0 %v777
  %1073 = vmatprep.subr.bf16.mxu0 %v782
  %1074 = vmatpush1.bf16.msra.mxu0 %v781
  %1075 = vmatprep.subr.bf16.mxu0 %v786
  %1076 = vmatpush1.bf16.msra.mxu0 %v785
  %1077 = vmatprep.mubr.bf16.mxu0 %v226
  %1078 = vmatmul.mubr.bf16.gmra.mrb[0].mxu0 %v225
  %v1079 = vpop.f32.mrb[0].mxu0
  %v1080 = vadd.f32 0.0, %v1079
  %v1081 = vpop.f32.mrb[0].mxu0
  %v1082 = vadd.f32 0.0, %v1081
  %v1083 = vpop.f32.mrb[0].mxu0
  %v1084 = vadd.f32 0.0, %v1083
  %v1085 = vpop.f32.mrb[0].mxu0
  %v1086 = vadd.f32 0.0, %v1085
  %1087 = vmatprep.mubr.bf16.mxu0 %v231
  %1088 = vmatmul.mubr.bf16.gmra.mrb[0].mxu0 %v230
  %v1089 = vpop.f32.mrb[0].mxu0
  %v1090 = vadd.f32 0.0, %v1089
  %v1091 = vpop.f32.mrb[0].mxu0
  %v1092 = vadd.f32 0.0, %v1091
  %v1093 = vpop.f32.mrb[0].mxu0
  %v1094 = vadd.f32 0.0, %v1093
  %v1095 = vpop.f32.mrb[0].mxu0
  %v1096 = vadd.f32 0.0, %v1095
  %1097 = vdwg.mxu0
  %1098 = vmatprep.subr.bf16.mxu0 %v790
  %1099 = vmatpush1.bf16.msra.mxu0 %v789
  %1100 = vmatprep.subr.bf16.mxu0 %v794
  %1101 = vmatpush1.bf16.msra.mxu0 %v793
  %1102 = vmatprep.subr.bf16.mxu0 %v798
  %1103 = vmatpush1.bf16.msra.mxu0 %v797
  %1104 = vmatprep.subr.bf16.mxu0 %v802
  %1105 = vmatpush1.bf16.msra.mxu0 %v801
  %1106 = vmatprep.subr.bf16.mxu0 %v806
  %1107 = vmatpush1.bf16.msra.mxu0 %v805
  %1108 = vmatprep.subr.bf16.mxu0 %v810
  %1109 = vmatpush1.bf16.msra.mxu0 %v809
  %1110 = vmatprep.subr.bf16.mxu0 %v814
  %1111 = vmatpush1.bf16.msra.mxu0 %v813
  %1112 = vmatprep.subr.bf16.mxu0 %v818
  %1113 = vmatpush1.bf16.msra.mxu0 %v817
  %1114 = vmatprep.subr.bf16.mxu0 %v822
  %1115 = vmatpush1.bf16.msra.mxu0 %v821
  %1116 = vmatprep.subr.bf16.mxu0 %v826
  %1117 = vmatpush1.bf16.msra.mxu0 %v825
  %1118 = vmatprep.subr.bf16.mxu0 %v830
  %1119 = vmatpush1.bf16.msra.mxu0 %v829
  %1120 = vmatprep.subr.bf16.mxu0 %v834
  %1121 = vmatpush1.bf16.msra.mxu0 %v833
  %1122 = vmatprep.subr.bf16.mxu0 %v838
  %1123 = vmatpush1.bf16.msra.mxu0 %v837
  %1124 = vmatprep.subr.bf16.mxu0 %v842
  %1125 = vmatpush1.bf16.msra.mxu0 %v841
  %1126 = vmatprep.subr.bf16.mxu0 %v846
  %1127 = vmatpush1.bf16.msra.mxu0 %v845
  %1128 = vmatprep.subr.bf16.mxu0 %v850
  %1129 = vmatpush1.bf16.msra.mxu0 %v849
  %1130 = vmatprep.mubr.bf16.mxu0 %v228
  %1131 = vmatmul.mubr.bf16.gmra.mrb[0].mxu0 %v227
  %v1132 = vpop.f32.mrb[0].mxu0
  %v1133 = vadd.f32 %v1080, %v1132
  %v1134 = vpop.f32.mrb[0].mxu0
  %v1135 = vadd.f32 %v1082, %v1134
  %v1136 = vpop.f32.mrb[0].mxu0
  %v1137 = vadd.f32 %v1084, %v1136
  %v1138 = vpop.f32.mrb[0].mxu0
  %v1139 = vadd.f32 %v1086, %v1138
  %1140 = vmatprep.mubr.bf16.mxu0 %v233
  %1141 = vmatmul.mubr.bf16.gmra.mrb[0].mxu0 %v232
  %v1142 = vpop.f32.mrb[0].mxu0
  %v1143 = vadd.f32 %v1090, %v1142
  %v1144 = vpop.f32.mrb[0].mxu0
  %v1145 = vadd.f32 %v1092, %v1144
  %v1146 = vpop.f32.mrb[0].mxu0
  %v1147 = vadd.f32 %v1094, %v1146
  %v1148 = vpop.f32.mrb[0].mxu0
  %v1149 = vadd.f32 %v1096, %v1148
  %1150 = vdwg.mxu0
  %1151 = vmatprep.subr.bf16.mxu0 %v854
  %1152 = vmatpush1.bf16.msra.mxu0 %v853
  %1153 = vmatprep.subr.bf16.mxu0 %v858
  %1154 = vmatpush1.bf16.msra.mxu0 %v857
  %1155 = vmatprep.subr.bf16.mxu0 %v862
  %1156 = vmatpush1.bf16.msra.mxu0 %v861
  %1157 = vmatprep.subr.bf16.mxu0 %v866
  %1158 = vmatpush1.bf16.msra.mxu0 %v865
  %1159 = vmatprep.subr.bf16.mxu0 %v870
  %1160 = vmatpush1.bf16.msra.mxu0 %v869
  %1161 = vmatprep.subr.bf16.mxu0 %v874
  %1162 = vmatpush1.bf16.msra.mxu0 %v873
  %1163 = vmatprep.subr.bf16.mxu0 %v878
  %1164 = vmatpush1.bf16.msra.mxu0 %v877
  %1165 = vmatprep.subr.bf16.mxu0 %v882
  %1166 = vmatpush1.bf16.msra.mxu0 %v881
  %1167 = vmatprep.subr.bf16.mxu0 0
  %1168 = vmatpush1.bf16.msra.mxu0 0
  %1169 = vmatprep.subr.bf16.mxu0 0
  %1170 = vmatpush1.bf16.msra.mxu0 0
  %1171 = vmatprep.subr.bf16.mxu0 0
  %1172 = vmatpush1.bf16.msra.mxu0 0
  %1173 = vmatprep.subr.bf16.mxu0 0
  %1174 = vmatpush1.bf16.msra.mxu0 0
  %1175 = vmatprep.subr.bf16.mxu0 0
  %1176 = vmatpush1.bf16.msra.mxu0 0
  %1177 = vmatprep.subr.bf16.mxu0 0
  %1178 = vmatpush1.bf16.msra.mxu0 0
  %1179 = vmatprep.subr.bf16.mxu0 0
  %1180 = vmatpush1.bf16.msra.mxu0 0
  %1181 = vmatprep.subr.bf16.mxu0 0
  %1182 = vmatpush1.bf16.msra.mxu0 0
  %1183 = vmatprep.mubr.bf16.mxu0 0
  %1184 = vmatmul.mubr.bf16.gmra.mrb[0].mxu0 %v229
  %v1185 = vpop.f32.mrb[0].mxu0
  %v1186 = vadd.f32 %v1133, %v1185
  %v1187 = vpop.f32.mrb[0].mxu0
  %v1188 = vadd.f32 %v1135, %v1187
  %v1189 = vpop.f32.mrb[0].mxu0
  %v1190 = vadd.f32 %v1137, %v1189
  %v1191 = vpop.f32.mrb[0].mxu0
  %v1192 = vadd.f32 %v1139, %v1191
  %1193 = vmatprep.mubr.bf16.mxu0 0
  %1194 = vmatmul.mubr.bf16.gmra.mrb[0].mxu0 %v234
  %v1195 = vpop.f32.mrb[0].mxu0
  %v1196 = vadd.f32 %v1143, %v1195
  %v1197 = vpop.f32.mrb[0].mxu0
  %v1198 = vadd.f32 %v1145, %v1197
  %v1199 = vpop.f32.mrb[0].mxu0
  %v1200 = vadd.f32 %v1147, %v1199
  %v1201 = vpop.f32.mrb[0].mxu0
  %v1202 = vadd.f32 %v1149, %v1201
  %1203 = vdwg.mxu0
  %1204 = vmatprep.subr.bf16.mxu0 %v728
  %1205 = vmatpush1.bf16.msra.mxu0 %v727
  %1206 = vmatprep.subr.bf16.mxu0 %v732
  %1207 = vmatpush1.bf16.msra.mxu0 %v731
  %1208 = vmatprep.subr.bf16.mxu0 %v736
  %1209 = vmatpush1.bf16.msra.mxu0 %v735
  %1210 = vmatprep.subr.bf16.mxu0 %v740
  %1211 = vmatpush1.bf16.msra.mxu0 %v739
  %1212 = vmatprep.subr.bf16.mxu0 %v744
  %1213 = vmatpush1.bf16.msra.mxu0 %v743
  %1214 = vmatprep.subr.bf16.mxu0 %v748
  %1215 = vmatpush1.bf16.msra.mxu0 %v747
  %1216 = vmatprep.subr.bf16.mxu0 %v752
  %1217 = vmatpush1.bf16.msra.mxu0 %v751
  %1218 = vmatprep.subr.bf16.mxu0 %v756
  %1219 = vmatpush1.bf16.msra.mxu0 %v755
  %1220 = vmatprep.subr.bf16.mxu0 %v760
  %1221 = vmatpush1.bf16.msra.mxu0 %v759
  %1222 = vmatprep.subr.bf16.mxu0 %v764
  %1223 = vmatpush1.bf16.msra.mxu0 %v763
  %1224 = vmatprep.subr.bf16.mxu0 %v768
  %1225 = vmatpush1.bf16.msra.mxu0 %v767
  %1226 = vmatprep.subr.bf16.mxu0 %v772
  %1227 = vmatpush1.bf16.msra.mxu0 %v771
  %1228 = vmatprep.subr.bf16.mxu0 %v776
  %1229 = vmatpush1.bf16.msra.mxu0 %v775
  %1230 = vmatprep.subr.bf16.mxu0 %v780
  %1231 = vmatpush1.bf16.msra.mxu0 %v779
  %1232 = vmatprep.subr.bf16.mxu0 %v784
  %1233 = vmatpush1.bf16.msra.mxu0 %v783
  %1234 = vmatprep.subr.bf16.mxu0 %v788
  %1235 = vmatpush1.bf16.msra.mxu0 %v787
  %1236 = vmatprep.mubr.bf16.mxu0 %v226
  %1237 = vmatmul.mubr.bf16.gmra.mrb[0].mxu0 %v225
  %v1238 = vpop.f32.mrb[0].mxu0
  %v1239 = vadd.f32 0.0, %v1238
  %v1240 = vpop.f32.mrb[0].mxu0
  %v1241 = vadd.f32 0.0, %v1240
  %v1242 = vpop.f32.mrb[0].mxu0
  %v1243 = vadd.f32 0.0, %v1242
  %v1244 = vpop.f32.mrb[0].mxu0
  %v1245 = vadd.f32 0.0, %v1244
  %1246 = vmatprep.mubr.bf16.mxu0 %v231
  %1247 = vmatmul.mubr.bf16.gmra.mrb[0].mxu0 %v230
  %v1248 = vpop.f32.mrb[0].mxu0
  %v1249 = vadd.f32 0.0, %v1248
  %v1250 = vpop.f32.mrb[0].mxu0
  %v1251 = vadd.f32 0.0, %v1250
  %v1252 = vpop.f32.mrb[0].mxu0
  %v1253 = vadd.f32 0.0, %v1252
  %v1254 = vpop.f32.mrb[0].mxu0
  %v1255 = vadd.f32 0.0, %v1254
  %1256 = vdwg.mxu0
  %1257 = vmatprep.subr.bf16.mxu0 %v792
  %1258 = vmatpush1.bf16.msra.mxu0 %v791
  %1259 = vmatprep.subr.bf16.mxu0 %v796
  %1260 = vmatpush1.bf16.msra.mxu0 %v795
  %1261 = vmatprep.subr.bf16.mxu0 %v800
  %1262 = vmatpush1.bf16.msra.mxu0 %v799
  %1263 = vmatprep.subr.bf16.mxu0 %v804
  %1264 = vmatpush1.bf16.msra.mxu0 %v803
  %1265 = vmatprep.subr.bf16.mxu0 %v808
  %1266 = vmatpush1.bf16.msra.mxu0 %v807
  %1267 = vmatprep.subr.bf16.mxu0 %v812
  %1268 = vmatpush1.bf16.msra.mxu0 %v811
  %1269 = vmatprep.subr.bf16.mxu0 %v816
  %1270 = vmatpush1.bf16.msra.mxu0 %v815
  %1271 = vmatprep.subr.bf16.mxu0 %v820
  %1272 = vmatpush1.bf16.msra.mxu0 %v819
  %1273 = vmatprep.subr.bf16.mxu0 %v824
  %1274 = vmatpush1.bf16.msra.mxu0 %v823
  %1275 = vmatprep.subr.bf16.mxu0 %v828
  %1276 = vmatpush1.bf16.msra.mxu0 %v827
  %1277 = vmatprep.subr.bf16.mxu0 %v832
  %1278 = vmatpush1.bf16.msra.mxu0 %v831
  %1279 = vmatprep.subr.bf16.mxu0 %v836
  %1280 = vmatpush1.bf16.msra.mxu0 %v835
  %1281 = vmatprep.subr.bf16.mxu0 %v840
  %1282 = vmatpush1.bf16.msra.mxu0 %v839
  %1283 = vmatprep.subr.bf16.mxu0 %v844
  %1284 = vmatpush1.bf16.msra.mxu0 %v843
  %1285 = vmatprep.subr.bf16.mxu0 %v848
  %1286 = vmatpush1.bf16.msra.mxu0 %v847
  %1287 = vmatprep.subr.bf16.mxu0 %v852
  %1288 = vmatpush1.bf16.msra.mxu0 %v851
  %1289 = vmatprep.mubr.bf16.mxu0 %v228
  %1290 = vmatmul.mubr.bf16.gmra.mrb[0].mxu0 %v227
  %v1291 = vpop.f32.mrb[0].mxu0
  %v1292 = vadd.f32 %v1239, %v1291
  %v1293 = vpop.f32.mrb[0].mxu0
  %v1294 = vadd.f32 %v1241, %v1293
  %v1295 = vpop.f32.mrb[0].mxu0
  %v1296 = vadd.f32 %v1243, %v1295
  %v1297 = vpop.f32.mrb[0].mxu0
  %v1298 = vadd.f32 %v1245, %v1297
  %1299 = vmatprep.mubr.bf16.mxu0 %v233
  %1300 = vmatmul.mubr.bf16.gmra.mrb[0].mxu0 %v232
  %v1301 = vpop.f32.mrb[0].mxu0
  %v1302 = vadd.f32 %v1249, %v1301
  %v1303 = vpop.f32.mrb[0].mxu0
  %v1304 = vadd.f32 %v1251, %v1303
  %v1305 = vpop.f32.mrb[0].mxu0
  %v1306 = vadd.f32 %v1253, %v1305
  %v1307 = vpop.f32.mrb[0].mxu0
  %v1308 = vadd.f32 %v1255, %v1307
  %1309 = vdwg.mxu0
  %1310 = vmatprep.subr.bf16.mxu0 %v856
  %1311 = vmatpush1.bf16.msra.mxu0 %v855
  %1312 = vmatprep.subr.bf16.mxu0 %v860
  %1313 = vmatpush1.bf16.msra.mxu0 %v859
  %1314 = vmatprep.subr.bf16.mxu0 %v864
  %1315 = vmatpush1.bf16.msra.mxu0 %v863
  %1316 = vmatprep.subr.bf16.mxu0 %v868
  %1317 = vmatpush1.bf16.msra.mxu0 %v867
  %1318 = vmatprep.subr.bf16.mxu0 %v872
  %1319 = vmatpush1.bf16.msra.mxu0 %v871
  %1320 = vmatprep.subr.bf16.mxu0 %v876
  %1321 = vmatpush1.bf16.msra.mxu0 %v875
  %1322 = vmatprep.subr.bf16.mxu0 %v880
  %1323 = vmatpush1.bf16.msra.mxu0 %v879
  %1324 = vmatprep.subr.bf16.mxu0 %v884
  %1325 = vmatpush1.bf16.msra.mxu0 %v883
  %1326 = vmatprep.subr.bf16.mxu0 0
  %1327 = vmatpush1.bf16.msra.mxu0 0
  %1328 = vmatprep.subr.bf16.mxu0 0
  %1329 = vmatpush1.bf16.msra.mxu0 0
  %1330 = vmatprep.subr.bf16.mxu0 0
  %1331 = vmatpush1.bf16.msra.mxu0 0
  %1332 = vmatprep.subr.bf16.mxu0 0
  %1333 = vmatpush1.bf16.msra.mxu0 0
  %1334 = vmatprep.subr.bf16.mxu0 0
  %1335 = vmatpush1.bf16.msra.mxu0 0
  %1336 = vmatprep.subr.bf16.mxu0 0
  %1337 = vmatpush1.bf16.msra.mxu0 0
  %1338 = vmatprep.subr.bf16.mxu0 0
  %1339 = vmatpush1.bf16.msra.mxu0 0
  %1340 = vmatprep.subr.bf16.mxu0 0
  %1341 = vmatpush1.bf16.msra.mxu0 0
  %1342 = vmatprep.mubr.bf16.mxu0 0
  %1343 = vmatmul.mubr.bf16.gmra.mrb[0].mxu0 %v229
  %v1344 = vpop.f32.mrb[0].mxu0
  %v1345 = vadd.f32 %v1292, %v1344
  %v1346 = vpop.f32.mrb[0].mxu0
  %v1347 = vadd.f32 %v1294, %v1346
  %v1348 = vpop.f32.mrb[0].mxu0
  %v1349 = vadd.f32 %v1296, %v1348
  %v1350 = vpop.f32.mrb[0].mxu0
  %v1351 = vadd.f32 %v1298, %v1350
  %1352 = vmatprep.mubr.bf16.mxu0 0
  %1353 = vmatmul.mubr.bf16.gmra.mrb[0].mxu0 %v234
  %v1354 = vpop.f32.mrb[0].mxu0
  %v1355 = vadd.f32 %v1302, %v1354
  %v1356 = vpop.f32.mrb[0].mxu0
  %v1357 = vadd.f32 %v1304, %v1356
  %v1358 = vpop.f32.mrb[0].mxu0
  %v1359 = vadd.f32 %v1306, %v1358
  %v1360 = vpop.f32.mrb[0].mxu0
  %v1361 = vadd.f32 %v1308, %v1360
  %1362 = vdwg.mxu0
  %v1363 = vadd.f32 %v1186, %v1190
  %v1364 = vadd.f32 %v1363, %v1196
  %v1365 = vadd.f32 %v1364, %v1200
  %v1366 = vrot.slane %v1365, 4
  %v1367 = vadd.f32 %v1365, %v1366
  %v1368 = vrot.slane %v1367, 2
  %v1369 = vadd.f32 %v1367, %v1368
  %v1370 = vrot.slane %v1369, 1
  %v1371 = vadd.f32 %v1369, %v1370
  %v1372 = vadd.f32 %v1188, %v1192
  %v1373 = vadd.f32 %v1372, %v1198
  %v1374 = vadd.f32 %v1373, %v1202
  %v1375 = vrot.slane %v1374, 4
  %v1376 = vadd.f32 %v1374, %v1375
  %v1377 = vrot.slane %v1376, 2
  %v1378 = vadd.f32 %v1376, %v1377
  %v1379 = vrot.slane %v1378, 1
  %v1380 = vadd.f32 %v1378, %v1379
  %v1381 = vadd.f32 %v1345, %v1349
  %v1382 = vadd.f32 %v1381, %v1355
  %v1383 = vadd.f32 %v1382, %v1359
  %v1384 = vrot.slane %v1383, 4
  %v1385 = vadd.f32 %v1383, %v1384
  %v1386 = vrot.slane %v1385, 2
  %v1387 = vadd.f32 %v1385, %v1386
  %v1388 = vrot.slane %v1387, 1
  %v1389 = vadd.f32 %v1387, %v1388
  %v1390 = vadd.f32 %v1347, %v1351
  %v1391 = vadd.f32 %v1390, %v1357
  %v1392 = vadd.f32 %v1391, %v1361
  %v1393 = vrot.slane %v1392, 4
  %v1394 = vadd.f32 %v1392, %v1393
  %v1395 = vrot.slane %v1394, 2
  %v1396 = vadd.f32 %v1394, %v1395
  %v1397 = vrot.slane %v1396, 1
  %v1398 = vadd.f32 %v1396, %v1397
  %v1399 = vmul.f32 %v1186, %v1186
  %v1400 = vmul.f32 %v1188, %v1188
  %v1401 = vmul.f32 %v1345, %v1345
  %v1402 = vmul.f32 %v1347, %v1347
  %v1403 = vmul.f32 %v1190, %v1190
  %v1404 = vmul.f32 %v1192, %v1192
  %v1405 = vmul.f32 %v1349, %v1349
  %v1406 = vmul.f32 %v1351, %v1351
  %v1407 = vmul.f32 %v1196, %v1196
  %v1408 = vmul.f32 %v1198, %v1198
  %v1409 = vmul.f32 %v1355, %v1355
  %v1410 = vmul.f32 %v1357, %v1357
  %v1411 = vmul.f32 %v1200, %v1200
  %v1412 = vmul.f32 %v1202, %v1202
  %v1413 = vmul.f32 %v1359, %v1359
  %v1414 = vmul.f32 %v1361, %v1361
  %v1415 = vadd.f32 %v1399, %v1403
  %v1416 = vadd.f32 %v1415, %v1407
  %v1417 = vadd.f32 %v1416, %v1411
  %v1418 = vrot.slane %v1417, 4
  %v1419 = vadd.f32 %v1417, %v1418
  %v1420 = vrot.slane %v1419, 2
  %v1421 = vadd.f32 %v1419, %v1420
  %v1422 = vrot.slane %v1421, 1
  %v1423 = vadd.f32 %v1421, %v1422
  %v1424 = vadd.f32 %v1400, %v1404
  %v1425 = vadd.f32 %v1424, %v1408
  %v1426 = vadd.f32 %v1425, %v1412
  %v1427 = vrot.slane %v1426, 4
  %v1428 = vadd.f32 %v1426, %v1427
  %v1429 = vrot.slane %v1428, 2
  %v1430 = vadd.f32 %v1428, %v1429
  %v1431 = vrot.slane %v1430, 1
  %v1432 = vadd.f32 %v1430, %v1431
  %v1433 = vadd.f32 %v1401, %v1405
  %v1434 = vadd.f32 %v1433, %v1409
  %v1435 = vadd.f32 %v1434, %v1413
  %v1436 = vrot.slane %v1435, 4
  %v1437 = vadd.f32 %v1435, %v1436
  %v1438 = vrot.slane %v1437, 2
  %v1439 = vadd.f32 %v1437, %v1438
  %v1440 = vrot.slane %v1439, 1
  %v1441 = vadd.f32 %v1439, %v1440
  %v1442 = vadd.f32 %v1402, %v1406
  %v1443 = vadd.f32 %v1442, %v1410
  %v1444 = vadd.f32 %v1443, %v1414
  %v1445 = vrot.slane %v1444, 4
  %v1446 = vadd.f32 %v1444, %v1445
  %v1447 = vrot.slane %v1446, 2
  %v1448 = vadd.f32 %v1446, %v1447
  %v1449 = vrot.slane %v1448, 1
  %v1450 = vadd.f32 %v1448, %v1449
  %v1451 = vadd.f32 %v1371, 0.0
  %v1452 = vadd.f32 %v1451, %v1380
  %v1453 = vadd.f32 %v1452, %v1389
  %v1454 = vadd.f32 %v1453, %v1398
  %v1455 = vadd.f32 %v1423, 0.0
  %v1456 = vadd.f32 %v1455, %v1432
  %v1457 = vadd.f32 %v1456, %v1441
  %v1458 = vadd.f32 %v1457, %v1450
  %v1459 = vmul.f32 %v1454, 0.0078125
  %v1460 = vmul.f32 %v1458, 0.0078125
  %v1461 = vmul.f32 %v1459, %v1459
  %v1462 = vsub.f32 %v1460, %v1461
  %v1463 = vmax.f32 %v1462, 0.0
  %v1464 = vadd.f32 %v1463, 1e-05
  %v1465 = vrsqrt.pop %v1464
  %v1466 = vld [vmem:[%s3] sm:$0x1]
  %v1467 = vmul.f32 %v1465, %v1466
  %v1468 = vld [vmem:[%s4] sm:$0x1]
  %v1469 = vmul.f32 %v1459, %v1467
  %v1470 = vsub.f32 %v1468, %v1469
  %v1471 = vlaneseq
  %v1472 = vshrl.u32 %v1471, 7
  %v1473 = vsub.s32 0, %v1472
  %v1474 = vrot.slane %v1467, %v1473
  %v1475 = vmul.f32 %v1186, %v1474
  %v1476 = vmul.f32 %v1188, %v1474
  %v1477 = vmul.f32 %v1345, %v1474
  %v1478 = vmul.f32 %v1347, %v1474
  %v1479 = vmul.f32 %v1190, %v1474
  %v1480 = vmul.f32 %v1192, %v1474
  %v1481 = vmul.f32 %v1349, %v1474
  %v1482 = vmul.f32 %v1351, %v1474
  %v1483 = vmul.f32 %v1196, %v1474
  %v1484 = vmul.f32 %v1198, %v1474
  %v1485 = vmul.f32 %v1355, %v1474
  %v1486 = vmul.f32 %v1357, %v1474
  %v1487 = vmul.f32 %v1200, %v1474
  %v1488 = vmul.f32 %v1202, %v1474
  %v1489 = vmul.f32 %v1359, %v1474
  %v1490 = vmul.f32 %v1361, %v1474
  %v1491 = vlaneseq
  %v1492 = vshrl.u32 %v1491, 7
  %v1493 = vsub.s32 0, %v1492
  %v1494 = vrot.slane %v1470, %v1493
  %v1495 = vadd.f32 %v1475, %v1494
  %v1496 = vadd.f32 %v1476, %v1494
  %v1497 = vadd.f32 %v1477, %v1494
  %v1498 = vadd.f32 %v1478, %v1494
  %v1499 = vadd.f32 %v1479, %v1494
  %v1500 = vadd.f32 %v1480, %v1494
  %v1501 = vadd.f32 %v1481, %v1494
  %v1502 = vadd.f32 %v1482, %v1494
  %v1503 = vadd.f32 %v1483, %v1494
  %v1504 = vadd.f32 %v1484, %v1494
  %v1505 = vadd.f32 %v1485, %v1494
  %v1506 = vadd.f32 %v1486, %v1494
  %v1507 = vadd.f32 %v1487, %v1494
  %v1508 = vadd.f32 %v1488, %v1494
  %v1509 = vadd.f32 %v1489, %v1494
  %v1510 = vadd.f32 %v1490, %v1494
  %v1511 = vmax.f32 %v1495, 0.0
  %v1512 = vmax.f32 %v1496, 0.0
  %v1513 = vmax.f32 %v1497, 0.0
  %v1514 = vmax.f32 %v1498, 0.0
  %v1515 = vmax.f32 %v1499, 0.0
  %v1516 = vmax.f32 %v1500, 0.0
  %v1517 = vmax.f32 %v1501, 0.0
  %v1518 = vmax.f32 %v1502, 0.0
  %v1519 = vmax.f32 %v1503, 0.0
  %v1520 = vmax.f32 %v1504, 0.0
  %v1521 = vmax.f32 %v1505, 0.0
  %v1522 = vmax.f32 %v1506, 0.0
  %v1523 = vmax.f32 %v1507, 0.0
  %v1524 = vmax.f32 %v1508, 0.0
  %v1525 = vmax.f32 %v1509, 0.0
  %v1526 = vmax.f32 %v1510, 0.0
  %v1527 = vpack.c.bf16 %v1515, %v1511
  %v1528 = vpack.c.bf16 %v1516, %v1512
  %v1529 = vpack.c.bf16 %v1517, %v1513
  %v1530 = vpack.c.bf16 %v1518, %v1514
  %v1531 = vpack.c.bf16 %v1523, %v1519
  %v1532 = vpack.c.bf16 %v1524, %v1520
  %v1533 = vpack.c.bf16 %v1525, %v1521
  %v1534 = vpack.c.bf16 %v1526, %v1522
  %v1543 = vunpack.c.l.b16 %v1527
  %v1544 = vunpack.c.l.b16 %v1528
  %v1545 = vunpack.c.l.b16 %v1529
  %v1546 = vunpack.c.l.b16 %v1530
  %v1547 = vunpack.c.h.b16 %v1527
  %v1548 = vunpack.c.h.b16 %v1528
  %v1549 = vunpack.c.h.b16 %v1529
  %v1550 = vunpack.c.h.b16 %v1530
  %v1551 = vunpack.c.l.b16 %v1531
  %v1552 = vunpack.c.l.b16 %v1532
  %v1553 = vunpack.c.l.b16 %v1533
  %v1554 = vunpack.c.l.b16 %v1534
  %v1555 = vunpack.c.h.b16 %v1531
  %v1556 = vunpack.c.h.b16 %v1532
  %v1557 = vunpack.c.h.b16 %v1533
  %v1558 = vunpack.c.h.b16 %v1534
  %v1559 = vpack.c.b16 %v1544, %v1543
  %v1560 = vpack.c.b16 %v1546, %v1545
  %v1561 = vpack.c.b16 %v1548, %v1547
  %v1562 = vpack.c.b16 %v1550, %v1549
  %v1563 = vpack.c.b16 %v1552, %v1551
  %v1564 = vpack.c.b16 %v1554, %v1553
  %v1565 = vpack.c.b16 %v1556, %v1555
  %v1566 = vpack.c.b16 %v1558, %v1557
  %1575 = vst [vmem:[%s5] sm:$0xff] %v1559
  %1576 = vst [vmem:[%s5 + $0x8] sm:$0xff] %v1560
  %1577 = vst [vmem:[%s5 + $0x10] sm:$0xff] %v1561
  %1578 = vst [vmem:[%s5 + $0x18] sm:$0xff] %v1562
  %1579 = vst [vmem:[%s5 + $0x20] sm:$0xff] %v1563
  %1580 = vst [vmem:[%s5 + $0x28] sm:$0xff] %v1564
  %1581 = vst [vmem:[%s5 + $0x30] sm:$0xff] %v1565
  %1582 = vst [vmem:[%s5 + $0x38] sm:$0xff] %v1566
  // Predicated region
  $region22: #{_lambda_.10} parent=0 // pred_check
    _
  $region23: #{_lambda_.10} parent=0 // pred_check_branch
    %1584 = sbr.rel (0) target = $region25
  $region24: #{_lambda_.10} parent=0 // pred_region
    _
  $region25: #{_lambda_.10} parent=0 // pred_fallthru
    _
  // Predicated region
  $region26: #{_lambda_.10} parent=0 // pred_check
    _
  $region27: #{_lambda_.10} parent=0 // pred_check_branch
    %1586 = sbr.rel (0) target = $region29
  $region28: #{_lambda_.10} parent=0 // pred_region
    _
  $region29: #{_lambda_.10} parent=0 // pred_fallthru
    _

// kernel: _lambda_.11
$region0: #{_lambda_.11}
  #allocation0 [shape = 'u32[]', space=smem, size = 0x4, offset = 0x4, fixed_abs, tag = 'smem constant byte address 0x4 - core index']
  #allocation1 [shape = 'u32[144,128]{1,0:T(1,128)}', space=vmem, size = 0x12000, scoped, tag = 'internal scratch']
  %s0 = inlined_call_operand.vmem [shape: bf16[128,384], index: 0, kind: input, shape index: {}]
  %s1 = inlined_call_operand.vmem [shape: bf16[384,512], index: 1, kind: input, shape index: {}]
  %s2 = inlined_call_operand.vmem [shape: f32[1,512], index: 2, kind: input, shape index: {}]
  %s3 = inlined_call_operand.vmem [shape: f32[1,128], index: 3, kind: input, shape index: {}]
  %s4 = inlined_call_operand.vmem [shape: f32[1,128], index: 4, kind: input, shape index: {}]
  %s5 = inlined_call_operand.vmem [shape: f32[128,512], index: 5, kind: output, shape index: {}]
  %s6 = sld [smem:[#allocation0]]
  $region30: #{_lambda_.11} parent=0
    _
  %s8 = ssub.s32 1, %s6
  %s9 = scalar_select 0, %s8, %s6
  // Predicated region
  $region2: #{_lambda_.11} parent=0 // pred_check
    _
  $region3: #{_lambda_.11} parent=0 // pred_check_branch
    %11 = sbr.rel (0) target = $region5
  $region4: #{_lambda_.11} parent=0 // pred_region
    _
  $region5: #{_lambda_.11} parent=0 // pred_fallthru
    _
  // Predicated region
  $region6: #{_lambda_.11} parent=0 // pred_check
    _
  $region7: #{_lambda_.11} parent=0 // pred_check_branch
    %13 = sbr.rel (0) target = $region9
  $region8: #{_lambda_.11} parent=0 // pred_region
    _
  $region9: #{_lambda_.11} parent=0 // pred_fallthru
    _
  // Predicated region
  $region10: #{_lambda_.11} parent=0 // pred_check
    _
  $region11: #{_lambda_.11} parent=0 // pred_check_branch
    %15 = sbr.rel (0) target = $region13
  $region12: #{_lambda_.11} parent=0 // pred_region
    _
  $region13: #{_lambda_.11} parent=0 // pred_fallthru
    _
  // Predicated region
  $region14: #{_lambda_.11} parent=0 // pred_check
    _
  $region15: #{_lambda_.11} parent=0 // pred_check_branch
    %17 = sbr.rel (0) target = $region17
  $region16: #{_lambda_.11} parent=0 // pred_region
    _
  $region17: #{_lambda_.11} parent=0 // pred_fallthru
    _
  // Predicated region
  $region18: #{_lambda_.11} parent=0 // pred_check
    _
  $region19: #{_lambda_.11} parent=0 // pred_check_branch
    %19 = sbr.rel (0) target = $region21
  $region20: #{_lambda_.11} parent=0 // pred_region
    _
  $region21: #{_lambda_.11} parent=0 // pred_fallthru
    _
  %v21 = vld [vmem:[%s0] sm:$0xff]
  %v22 = vld [vmem:[%s0 + $0x8] sm:$0xf]
  %v23 = vld [vmem:[%s0 + $0xc] sm:$0xff]
  %v24 = vld [vmem:[%s0 + $0x14] sm:$0xf]
  %v25 = vld [vmem:[%s0 + $0x18] sm:$0xff]
  %v26 = vld [vmem:[%s0 + $0x20] sm:$0xf]
  %v27 = vld [vmem:[%s0 + $0x24] sm:$0xff]
  %v28 = vld [vmem:[%s0 + $0x2c] sm:$0xf]
  %v29 = vld [vmem:[%s0 + $0x30] sm:$0xff]
  %v30 = vld [vmem:[%s0 + $0x38] sm:$0xf]
  %v31 = vld [vmem:[%s0 + $0x3c] sm:$0xff]
  %v32 = vld [vmem:[%s0 + $0x44] sm:$0xf]
  %v33 = vld [vmem:[%s0 + $0x48] sm:$0xff]
  %v34 = vld [vmem:[%s0 + $0x50] sm:$0xf]
  %v35 = vld [vmem:[%s0 + $0x54] sm:$0xff]
  %v36 = vld [vmem:[%s0 + $0x5c] sm:$0xf]
  %v37 = vld [vmem:[%s0 + $0x60] sm:$0xff]
  %v38 = vld [vmem:[%s0 + $0x68] sm:$0xf]
  %v39 = vld [vmem:[%s0 + $0x6c] sm:$0xff]
  %v40 = vld [vmem:[%s0 + $0x74] sm:$0xf]
  %v41 = vld [vmem:[%s0 + $0x78] sm:$0xff]
  %v42 = vld [vmem:[%s0 + $0x80] sm:$0xf]
  %v43 = vld [vmem:[%s0 + $0x84] sm:$0xff]
  %v44 = vld [vmem:[%s0 + $0x8c] sm:$0xf]
  %v45 = vld [vmem:[%s0 + $0x90] sm:$0xff]
  %v46 = vld [vmem:[%s0 + $0x98] sm:$0xf]
  %v47 = vld [vmem:[%s0 + $0x9c] sm:$0xff]
  %v48 = vld [vmem:[%s0 + $0xa4] sm:$0xf]
  %v49 = vld [vmem:[%s0 + $0xa8] sm:$0xff]
  %v50 = vld [vmem:[%s0 + $0xb0] sm:$0xf]
  %v51 = vld [vmem:[%s0 + $0xb4] sm:$0xff]
  %v52 = vld [vmem:[%s0 + $0xbc] sm:$0xf]
  %v53 = vld [vmem:[%s1] sm:$0xff]
  %v54 = vld [vmem:[%s1 + $0x8] sm:$0xff]
  %v55 = vld [vmem:[%s1 + $0x10] sm:$0xff]
  %v56 = vld [vmem:[%s1 + $0x18] sm:$0xff]
  %v57 = vld [vmem:[%s1 + $0x20] sm:$0xff]
  %v58 = vld [vmem:[%s1 + $0x28] sm:$0xff]
  %v59 = vld [vmem:[%s1 + $0x30] sm:$0xff]
  %v60 = vld [vmem:[%s1 + $0x38] sm:$0xff]
  %v61 = vld [vmem:[%s1 + $0x40] sm:$0xff]
  %v62 = vld [vmem:[%s1 + $0x48] sm:$0xff]
  %v63 = vld [vmem:[%s1 + $0x50] sm:$0xff]
  %v64 = vld [vmem:[%s1 + $0x58] sm:$0xff]
  %v65 = vld [vmem:[%s1 + $0x60] sm:$0xff]
  %v66 = vld [vmem:[%s1 + $0x68] sm:$0xff]
  %v67 = vld [vmem:[%s1 + $0x70] sm:$0xff]
  %v68 = vld [vmem:[%s1 + $0x78] sm:$0xff]
  %v69 = vld [vmem:[%s1 + $0x80] sm:$0xff]
  %v70 = vld [vmem:[%s1 + $0x88] sm:$0xff]
  %v71 = vld [vmem:[%s1 + $0x90] sm:$0xff]
  %v72 = vld [vmem:[%s1 + $0x98] sm:$0xff]
  %v73 = vld [vmem:[%s1 + $0xa0] sm:$0xff]
  %v74 = vld [vmem:[%s1 + $0xa8] sm:$0xff]
  %v75 = vld [vmem:[%s1 + $0xb0] sm:$0xff]
  %v76 = vld [vmem:[%s1 + $0xb8] sm:$0xff]
  %v77 = vld [vmem:[%s1 + $0xc0] sm:$0xff]
  %v78 = vld [vmem:[%s1 + $0xc8] sm:$0xff]
  %v79 = vld [vmem:[%s1 + $0xd0] sm:$0xff]
  %v80 = vld [vmem:[%s1 + $0xd8] sm:$0xff]
  %v81 = vld [vmem:[%s1 + $0xe0] sm:$0xff]
  %v82 = vld [vmem:[%s1 + $0xe8] sm:$0xff]
  %v83 = vld [vmem:[%s1 + $0xf0] sm:$0xff]
  %v84 = vld [vmem:[%s1 + $0xf8] sm:$0xff]
  %v85 = vld [vmem:[%s1 + $0x100] sm:$0xff]
  %v86 = vld [vmem:[%s1 + $0x108] sm:$0xff]
  %v87 = vld [vmem:[%s1 + $0x110] sm:$0xff]
  %v88 = vld [vmem:[%s1 + $0x118] sm:$0xff]
  %v89 = vld [vmem:[%s1 + $0x120] sm:$0xff]
  %v90 = vld [vmem:[%s1 + $0x128] sm:$0xff]
  %v91 = vld [vmem:[%s1 + $0x130] sm:$0xff]
  %v92 = vld [vmem:[%s1 + $0x138] sm:$0xff]
  %v93 = vld [vmem:[%s1 + $0x140] sm:$0xff]
  %v94 = vld [vmem:[%s1 + $0x148] sm:$0xff]
  %v95 = vld [vmem:[%s1 + $0x150] sm:$0xff]
  %v96 = vld [vmem:[%s1 + $0x158] sm:$0xff]
  %v97 = vld [vmem:[%s1 + $0x160] sm:$0xff]
  %v98 = vld [vmem:[%s1 + $0x168] sm:$0xff]
  %v99 = vld [vmem:[%s1 + $0x170] sm:$0xff]
  %v100 = vld [vmem:[%s1 + $0x178] sm:$0xff]
  %v101 = vld [vmem:[%s1 + $0x180] sm:$0xff]
  %v102 = vld [vmem:[%s1 + $0x188] sm:$0xff]
  %v103 = vld [vmem:[%s1 + $0x190] sm:$0xff]
  %v104 = vld [vmem:[%s1 + $0x198] sm:$0xff]
  %v105 = vld [vmem:[%s1 + $0x1a0] sm:$0xff]
  %v106 = vld [vmem:[%s1 + $0x1a8] sm:$0xff]
  %v107 = vld [vmem:[%s1 + $0x1b0] sm:$0xff]
  %v108 = vld [vmem:[%s1 + $0x1b8] sm:$0xff]
  %v109 = vld [vmem:[%s1 + $0x1c0] sm:$0xff]
  %v110 = vld [vmem:[%s1 + $0x1c8] sm:$0xff]
  %v111 = vld [vmem:[%s1 + $0x1d0] sm:$0xff]
  %v112 = vld [vmem:[%s1 + $0x1d8] sm:$0xff]
  %v113 = vld [vmem:[%s1 + $0x1e0] sm:$0xff]
  %v114 = vld [vmem:[%s1 + $0x1e8] sm:$0xff]
  %v115 = vld [vmem:[%s1 + $0x1f0] sm:$0xff]
  %v116 = vld [vmem:[%s1 + $0x1f8] sm:$0xff]
  %v117 = vld [vmem:[%s1 + $0x200] sm:$0xff]
  %v118 = vld [vmem:[%s1 + $0x208] sm:$0xff]
  %v119 = vld [vmem:[%s1 + $0x210] sm:$0xff]
  %v120 = vld [vmem:[%s1 + $0x218] sm:$0xff]
  %v121 = vld [vmem:[%s1 + $0x220] sm:$0xff]
  %v122 = vld [vmem:[%s1 + $0x228] sm:$0xff]
  %v123 = vld [vmem:[%s1 + $0x230] sm:$0xff]
  %v124 = vld [vmem:[%s1 + $0x238] sm:$0xff]
  %v125 = vld [vmem:[%s1 + $0x240] sm:$0xff]
  %v126 = vld [vmem:[%s1 + $0x248] sm:$0xff]
  %v127 = vld [vmem:[%s1 + $0x250] sm:$0xff]
  %v128 = vld [vmem:[%s1 + $0x258] sm:$0xff]
  %v129 = vld [vmem:[%s1 + $0x260] sm:$0xff]
  %v130 = vld [vmem:[%s1 + $0x268] sm:$0xff]
  %v131 = vld [vmem:[%s1 + $0x270] sm:$0xff]
  %v132 = vld [vmem:[%s1 + $0x278] sm:$0xff]
  %v133 = vld [vmem:[%s1 + $0x280] sm:$0xff]
  %v134 = vld [vmem:[%s1 + $0x288] sm:$0xff]
  %v135 = vld [vmem:[%s1 + $0x290] sm:$0xff]
  %v136 = vld [vmem:[%s1 + $0x298] sm:$0xff]
  %v137 = vld [vmem:[%s1 + $0x2a0] sm:$0xff]
  %v138 = vld [vmem:[%s1 + $0x2a8] sm:$0xff]
  %v139 = vld [vmem:[%s1 + $0x2b0] sm:$0xff]
  %v140 = vld [vmem:[%s1 + $0x2b8] sm:$0xff]
  %v141 = vld [vmem:[%s1 + $0x2c0] sm:$0xff]
  %v142 = vld [vmem:[%s1 + $0x2c8] sm:$0xff]
  %v143 = vld [vmem:[%s1 + $0x2d0] sm:$0xff]
  %v144 = vld [vmem:[%s1 + $0x2d8] sm:$0xff]
  %v145 = vld [vmem:[%s1 + $0x2e0] sm:$0xff]
  %v146 = vld [vmem:[%s1 + $0x2e8] sm:$0xff]
  %v147 = vld [vmem:[%s1 + $0x2f0] sm:$0xff]
  %v148 = vld [vmem:[%s1 + $0x2f8] sm:$0xff]
  %v181 = vunpack.c.l.b16 %v21
  %v182 = vunpack.c.h.b16 %v21
  %v183 = vunpack.c.l.b16 %v22
  %v184 = vunpack.c.l.b16 %v23
  %v185 = vunpack.c.h.b16 %v23
  %v186 = vunpack.c.l.b16 %v24
  %v187 = vunpack.c.l.b16 %v25
  %v188 = vunpack.c.h.b16 %v25
  %v189 = vunpack.c.l.b16 %v26
  %v190 = vunpack.c.l.b16 %v27
  %v191 = vunpack.c.h.b16 %v27
  %v192 = vunpack.c.l.b16 %v28
  %v193 = vunpack.c.l.b16 %v29
  %v194 = vunpack.c.h.b16 %v29
  %v195 = vunpack.c.l.b16 %v30
  %v196 = vunpack.c.l.b16 %v31
  %v197 = vunpack.c.h.b16 %v31
  %v198 = vunpack.c.l.b16 %v32
  %v199 = vunpack.c.l.b16 %v33
  %v200 = vunpack.c.h.b16 %v33
  %v201 = vunpack.c.l.b16 %v34
  %v202 = vunpack.c.l.b16 %v35
  %v203 = vunpack.c.h.b16 %v35
  %v204 = vunpack.c.l.b16 %v36
  %v205 = vunpack.c.l.b16 %v37
  %v206 = vunpack.c.h.b16 %v37
  %v207 = vunpack.c.l.b16 %v38
  %v208 = vunpack.c.l.b16 %v39
  %v209 = vunpack.c.h.b16 %v39
  %v210 = vunpack.c.l.b16 %v40
  %v211 = vunpack.c.l.b16 %v41
  %v212 = vunpack.c.h.b16 %v41
  %v213 = vunpack.c.l.b16 %v42
  %v214 = vunpack.c.l.b16 %v43
  %v215 = vunpack.c.h.b16 %v43
  %v216 = vunpack.c.l.b16 %v44
  %v217 = vunpack.c.l.b16 %v45
  %v218 = vunpack.c.h.b16 %v45
  %v219 = vunpack.c.l.b16 %v46
  %v220 = vunpack.c.l.b16 %v47
  %v221 = vunpack.c.h.b16 %v47
  %v222 = vunpack.c.l.b16 %v48
  %v223 = vunpack.c.l.b16 %v49
  %v224 = vunpack.c.h.b16 %v49
  %v225 = vunpack.c.l.b16 %v50
  %v226 = vunpack.c.l.b16 %v51
  %v227 = vunpack.c.h.b16 %v51
  %v228 = vunpack.c.l.b16 %v52
  %v229 = vpack.c.b16 %v184, %v181
  %v230 = vpack.c.b16 %v185, %v182
  %v231 = vpack.c.b16 %v186, %v183
  %v232 = vpack.c.b16 %v190, %v187
  %v233 = vpack.c.b16 %v191, %v188
  %v234 = vpack.c.b16 %v192, %v189
  %v235 = vpack.c.b16 %v196, %v193
  %v236 = vpack.c.b16 %v197, %v194
  %v237 = vpack.c.b16 %v198, %v195
  %v238 = vpack.c.b16 %v202, %v199
  %v239 = vpack.c.b16 %v203, %v200
  %v240 = vpack.c.b16 %v204, %v201
  %v241 = vpack.c.b16 %v208, %v205
  %v242 = vpack.c.b16 %v209, %v206
  %v243 = vpack.c.b16 %v210, %v207
  %v244 = vpack.c.b16 %v214, %v211
  %v245 = vpack.c.b16 %v215, %v212
  %v246 = vpack.c.b16 %v216, %v213
  %v247 = vpack.c.b16 %v220, %v217
  %v248 = vpack.c.b16 %v221, %v218
  %v249 = vpack.c.b16 %v222, %v219
  %v250 = vpack.c.b16 %v226, %v223
  %v251 = vpack.c.b16 %v227, %v224
  %v252 = vpack.c.b16 %v228, %v225
  %v373 = vunpack.c.l.b16 %v53
  %v374 = vunpack.c.h.b16 %v53
  %v375 = vunpack.c.l.b16 %v54
  %v376 = vunpack.c.h.b16 %v54
  %v377 = vunpack.c.l.b16 %v55
  %v378 = vunpack.c.h.b16 %v55
  %v379 = vunpack.c.l.b16 %v56
  %v380 = vunpack.c.h.b16 %v56
  %v381 = vunpack.c.l.b16 %v57
  %v382 = vunpack.c.h.b16 %v57
  %v383 = vunpack.c.l.b16 %v58
  %v384 = vunpack.c.h.b16 %v58
  %v385 = vunpack.c.l.b16 %v59
  %v386 = vunpack.c.h.b16 %v59
  %v387 = vunpack.c.l.b16 %v60
  %v388 = vunpack.c.h.b16 %v60
  %v389 = vunpack.c.l.b16 %v61
  %v390 = vunpack.c.h.b16 %v61
  %v391 = vunpack.c.l.b16 %v62
  %v392 = vunpack.c.h.b16 %v62
  %v393 = vunpack.c.l.b16 %v63
  %v394 = vunpack.c.h.b16 %v63
  %v395 = vunpack.c.l.b16 %v64
  %v396 = vunpack.c.h.b16 %v64
  %v397 = vunpack.c.l.b16 %v65
  %v398 = vunpack.c.h.b16 %v65
  %v399 = vunpack.c.l.b16 %v66
  %v400 = vunpack.c.h.b16 %v66
  %v401 = vunpack.c.l.b16 %v67
  %v402 = vunpack.c.h.b16 %v67
  %v403 = vunpack.c.l.b16 %v68
  %v404 = vunpack.c.h.b16 %v68
  %v405 = vunpack.c.l.b16 %v69
  %v406 = vunpack.c.h.b16 %v69
  %v407 = vunpack.c.l.b16 %v70
  %v408 = vunpack.c.h.b16 %v70
  %v409 = vunpack.c.l.b16 %v71
  %v410 = vunpack.c.h.b16 %v71
  %v411 = vunpack.c.l.b16 %v72
  %v412 = vunpack.c.h.b16 %v72
  %v413 = vunpack.c.l.b16 %v73
  %v414 = vunpack.c.h.b16 %v73
  %v415 = vunpack.c.l.b16 %v74
  %v416 = vunpack.c.h.b16 %v74
  %v417 = vunpack.c.l.b16 %v75
  %v418 = vunpack.c.h.b16 %v75
  %v419 = vunpack.c.l.b16 %v76
  %v420 = vunpack.c.h.b16 %v76
  %v421 = vunpack.c.l.b16 %v77
  %v422 = vunpack.c.h.b16 %v77
  %v423 = vunpack.c.l.b16 %v78
  %v424 = vunpack.c.h.b16 %v78
  %v425 = vunpack.c.l.b16 %v79
  %v426 = vunpack.c.h.b16 %v79
  %v427 = vunpack.c.l.b16 %v80
  %v428 = vunpack.c.h.b16 %v80
  %v429 = vunpack.c.l.b16 %v81
  %v430 = vunpack.c.h.b16 %v81
  %v431 = vunpack.c.l.b16 %v82
  %v432 = vunpack.c.h.b16 %v82
  %v433 = vunpack.c.l.b16 %v83
  %v434 = vunpack.c.h.b16 %v83
  %v435 = vunpack.c.l.b16 %v84
  %v436 = vunpack.c.h.b16 %v84
  %v437 = vunpack.c.l.b16 %v85
  %v438 = vunpack.c.h.b16 %v85
  %v439 = vunpack.c.l.b16 %v86
  %v440 = vunpack.c.h.b16 %v86
  %v441 = vunpack.c.l.b16 %v87
  %v442 = vunpack.c.h.b16 %v87
  %v443 = vunpack.c.l.b16 %v88
  %v444 = vunpack.c.h.b16 %v88
  %v445 = vunpack.c.l.b16 %v89
  %v446 = vunpack.c.h.b16 %v89
  %v447 = vunpack.c.l.b16 %v90
  %v448 = vunpack.c.h.b16 %v90
  %v449 = vunpack.c.l.b16 %v91
  %v450 = vunpack.c.h.b16 %v91
  %v451 = vunpack.c.l.b16 %v92
  %v452 = vunpack.c.h.b16 %v92
  %v453 = vunpack.c.l.b16 %v93
  %v454 = vunpack.c.h.b16 %v93
  %v455 = vunpack.c.l.b16 %v94
  %v456 = vunpack.c.h.b16 %v94
  %v457 = vunpack.c.l.b16 %v95
  %v458 = vunpack.c.h.b16 %v95
  %v459 = vunpack.c.l.b16 %v96
  %v460 = vunpack.c.h.b16 %v96
  %v461 = vunpack.c.l.b16 %v97
  %v462 = vunpack.c.h.b16 %v97
  %v463 = vunpack.c.l.b16 %v98
  %v464 = vunpack.c.h.b16 %v98
  %v465 = vunpack.c.l.b16 %v99
  %v466 = vunpack.c.h.b16 %v99
  %v467 = vunpack.c.l.b16 %v100
  %v468 = vunpack.c.h.b16 %v100
  %v469 = vunpack.c.l.b16 %v101
  %v470 = vunpack.c.h.b16 %v101
  %v471 = vunpack.c.l.b16 %v102
  %v472 = vunpack.c.h.b16 %v102
  %v473 = vunpack.c.l.b16 %v103
  %v474 = vunpack.c.h.b16 %v103
  %v475 = vunpack.c.l.b16 %v104
  %v476 = vunpack.c.h.b16 %v104
  %v477 = vunpack.c.l.b16 %v105
  %v478 = vunpack.c.h.b16 %v105
  %v479 = vunpack.c.l.b16 %v106
  %v480 = vunpack.c.h.b16 %v106
  %v481 = vunpack.c.l.b16 %v107
  %v482 = vunpack.c.h.b16 %v107
  %v483 = vunpack.c.l.b16 %v108
  %v484 = vunpack.c.h.b16 %v108
  %v485 = vunpack.c.l.b16 %v109
  %v486 = vunpack.c.h.b16 %v109
  %v487 = vunpack.c.l.b16 %v110
  %v488 = vunpack.c.h.b16 %v110
  %v489 = vunpack.c.l.b16 %v111
  %v490 = vunpack.c.h.b16 %v111
  %v491 = vunpack.c.l.b16 %v112
  %v492 = vunpack.c.h.b16 %v112
  %v493 = vunpack.c.l.b16 %v113
  %v494 = vunpack.c.h.b16 %v113
  %v495 = vunpack.c.l.b16 %v114
  %v496 = vunpack.c.h.b16 %v114
  %v497 = vunpack.c.l.b16 %v115
  %v498 = vunpack.c.h.b16 %v115
  %v499 = vunpack.c.l.b16 %v116
  %v500 = vunpack.c.h.b16 %v116
  %v501 = vunpack.c.l.b16 %v117
  %v502 = vunpack.c.h.b16 %v117
  %v503 = vunpack.c.l.b16 %v118
  %v504 = vunpack.c.h.b16 %v118
  %v505 = vunpack.c.l.b16 %v119
  %v506 = vunpack.c.h.b16 %v119
  %v507 = vunpack.c.l.b16 %v120
  %v508 = vunpack.c.h.b16 %v120
  %v509 = vunpack.c.l.b16 %v121
  %v510 = vunpack.c.h.b16 %v121
  %v511 = vunpack.c.l.b16 %v122
  %v512 = vunpack.c.h.b16 %v122
  %v513 = vunpack.c.l.b16 %v123
  %v514 = vunpack.c.h.b16 %v123
  %v515 = vunpack.c.l.b16 %v124
  %v516 = vunpack.c.h.b16 %v124
  %v517 = vunpack.c.l.b16 %v125
  %v518 = vunpack.c.h.b16 %v125
  %v519 = vunpack.c.l.b16 %v126
  %v520 = vunpack.c.h.b16 %v126
  %v521 = vunpack.c.l.b16 %v127
  %v522 = vunpack.c.h.b16 %v127
  %v523 = vunpack.c.l.b16 %v128
  %v524 = vunpack.c.h.b16 %v128
  %v525 = vunpack.c.l.b16 %v129
  %v526 = vunpack.c.h.b16 %v129
  %v527 = vunpack.c.l.b16 %v130
  %v528 = vunpack.c.h.b16 %v130
  %v529 = vunpack.c.l.b16 %v131
  %v530 = vunpack.c.h.b16 %v131
  %v531 = vunpack.c.l.b16 %v132
  %v532 = vunpack.c.h.b16 %v132
  %v533 = vunpack.c.l.b16 %v133
  %v534 = vunpack.c.h.b16 %v133
  %v535 = vunpack.c.l.b16 %v134
  %v536 = vunpack.c.h.b16 %v134
  %v537 = vunpack.c.l.b16 %v135
  %v538 = vunpack.c.h.b16 %v135
  %v539 = vunpack.c.l.b16 %v136
  %v540 = vunpack.c.h.b16 %v136
  %v541 = vunpack.c.l.b16 %v137
  %v542 = vunpack.c.h.b16 %v137
  %v543 = vunpack.c.l.b16 %v138
  %v544 = vunpack.c.h.b16 %v138
  %v545 = vunpack.c.l.b16 %v139
  %v546 = vunpack.c.h.b16 %v139
  %v547 = vunpack.c.l.b16 %v140
  %v548 = vunpack.c.h.b16 %v140
  %v549 = vunpack.c.l.b16 %v141
  %v550 = vunpack.c.h.b16 %v141
  %v551 = vunpack.c.l.b16 %v142
  %v552 = vunpack.c.h.b16 %v142
  %v553 = vunpack.c.l.b16 %v143
  %v554 = vunpack.c.h.b16 %v143
  %v555 = vunpack.c.l.b16 %v144
  %v556 = vunpack.c.h.b16 %v144
  %v557 = vunpack.c.l.b16 %v145
  %v558 = vunpack.c.h.b16 %v145
  %v559 = vunpack.c.l.b16 %v146
  %v560 = vunpack.c.h.b16 %v146
  %v561 = vunpack.c.l.b16 %v147
  %v562 = vunpack.c.h.b16 %v147
  %v563 = vunpack.c.l.b16 %v148
  %v564 = vunpack.c.h.b16 %v148
  %v565 = vpack.c.b16 %v377, %v373
  %v566 = vpack.c.b16 %v378, %v374
  %v567 = vpack.c.b16 %v379, %v375
  %v568 = vpack.c.b16 %v380, %v376
  %v569 = vpack.c.b16 %v385, %v381
  %v570 = vpack.c.b16 %v386, %v382
  %v571 = vpack.c.b16 %v387, %v383
  %v572 = vpack.c.b16 %v388, %v384
  %v573 = vpack.c.b16 %v393, %v389
  %v574 = vpack.c.b16 %v394, %v390
  %v575 = vpack.c.b16 %v395, %v391
  %v576 = vpack.c.b16 %v396, %v392
  %v577 = vpack.c.b16 %v401, %v397
  %v578 = vpack.c.b16 %v402, %v398
  %v579 = vpack.c.b16 %v403, %v399
  %v580 = vpack.c.b16 %v404, %v400
  %v581 = vpack.c.b16 %v409, %v405
  %v582 = vpack.c.b16 %v410, %v406
  %v583 = vpack.c.b16 %v411, %v407
  %v584 = vpack.c.b16 %v412, %v408
  %v585 = vpack.c.b16 %v417, %v413
  %v586 = vpack.c.b16 %v418, %v414
  %v587 = vpack.c.b16 %v419, %v415
  %v588 = vpack.c.b16 %v420, %v416
  %v589 = vpack.c.b16 %v425, %v421
  %v590 = vpack.c.b16 %v426, %v422
  %v591 = vpack.c.b16 %v427, %v423
  %v592 = vpack.c.b16 %v428, %v424
  %v593 = vpack.c.b16 %v433, %v429
  %v594 = vpack.c.b16 %v434, %v430
  %v595 = vpack.c.b16 %v435, %v431
  %v596 = vpack.c.b16 %v436, %v432
  %v597 = vpack.c.b16 %v441, %v437
  %v598 = vpack.c.b16 %v442, %v438
  %v599 = vpack.c.b16 %v443, %v439
  %v600 = vpack.c.b16 %v444, %v440
  %v601 = vpack.c.b16 %v449, %v445
  %v602 = vpack.c.b16 %v450, %v446
  %v603 = vpack.c.b16 %v451, %v447
  %v604 = vpack.c.b16 %v452, %v448
  %v605 = vpack.c.b16 %v457, %v453
  %v606 = vpack.c.b16 %v458, %v454
  %v607 = vpack.c.b16 %v459, %v455
  %v608 = vpack.c.b16 %v460, %v456
  %v609 = vpack.c.b16 %v465, %v461
  %v610 = vpack.c.b16 %v466, %v462
  %v611 = vpack.c.b16 %v467, %v463
  %v612 = vpack.c.b16 %v468, %v464
  %v613 = vpack.c.b16 %v473, %v469
  %v614 = vpack.c.b16 %v474, %v470
  %v615 = vpack.c.b16 %v475, %v471
  %v616 = vpack.c.b16 %v476, %v472
  %v617 = vpack.c.b16 %v481, %v477
  %v618 = vpack.c.b16 %v482, %v478
  %v619 = vpack.c.b16 %v483, %v479
  %v620 = vpack.c.b16 %v484, %v480
  %v621 = vpack.c.b16 %v489, %v485
  %v622 = vpack.c.b16 %v490, %v486
  %v623 = vpack.c.b16 %v491, %v487
  %v624 = vpack.c.b16 %v492, %v488
  %v625 = vpack.c.b16 %v497, %v493
  %v626 = vpack.c.b16 %v498, %v494
  %v627 = vpack.c.b16 %v499, %v495
  %v628 = vpack.c.b16 %v500, %v496
  %v629 = vpack.c.b16 %v505, %v501
  %v630 = vpack.c.b16 %v506, %v502
  %v631 = vpack.c.b16 %v507, %v503
  %v632 = vpack.c.b16 %v508, %v504
  %v633 = vpack.c.b16 %v513, %v509
  %v634 = vpack.c.b16 %v514, %v510
  %v635 = vpack.c.b16 %v515, %v511
  %v636 = vpack.c.b16 %v516, %v512
  %v637 = vpack.c.b16 %v521, %v517
  %v638 = vpack.c.b16 %v522, %v518
  %v639 = vpack.c.b16 %v523, %v519
  %v640 = vpack.c.b16 %v524, %v520
  %v641 = vpack.c.b16 %v529, %v525
  %v642 = vpack.c.b16 %v530, %v526
  %v643 = vpack.c.b16 %v531, %v527
  %v644 = vpack.c.b16 %v532, %v528
  %v645 = vpack.c.b16 %v537, %v533
  %v646 = vpack.c.b16 %v538, %v534
  %v647 = vpack.c.b16 %v539, %v535
  %v648 = vpack.c.b16 %v540, %v536
  %v649 = vpack.c.b16 %v545, %v541
  %v650 = vpack.c.b16 %v546, %v542
  %v651 = vpack.c.b16 %v547, %v543
  %v652 = vpack.c.b16 %v548, %v544
  %v653 = vpack.c.b16 %v553, %v549
  %v654 = vpack.c.b16 %v554, %v550
  %v655 = vpack.c.b16 %v555, %v551
  %v656 = vpack.c.b16 %v556, %v552
  %v657 = vpack.c.b16 %v561, %v557
  %v658 = vpack.c.b16 %v562, %v558
  %v659 = vpack.c.b16 %v563, %v559
  %v660 = vpack.c.b16 %v564, %v560
  %757 = vmatprep.subr.bf16.mxu0 %v566
  %758 = vmatpush1.bf16.msra.mxu0 %v565
  %759 = vmatprep.subr.bf16.mxu0 %v570
  %760 = vmatpush1.bf16.msra.mxu0 %v569
  %761 = vmatprep.subr.bf16.mxu0 %v574
  %762 = vmatpush1.bf16.msra.mxu0 %v573
  %763 = vmatprep.subr.bf16.mxu0 %v578
  %764 = vmatpush1.bf16.msra.mxu0 %v577
  %765 = vmatprep.subr.bf16.mxu0 %v582
  %766 = vmatpush1.bf16.msra.mxu0 %v581
  %767 = vmatprep.subr.bf16.mxu0 %v586
  %768 = vmatpush1.bf16.msra.mxu0 %v585
  %769 = vmatprep.subr.bf16.mxu0 %v590
  %770 = vmatpush1.bf16.msra.mxu0 %v589
  %771 = vmatprep.subr.bf16.mxu0 %v594
  %772 = vmatpush1.bf16.msra.mxu0 %v593
  %773 = vmatprep.subr.bf16.mxu0 %v598
  %774 = vmatpush1.bf16.msra.mxu0 %v597
  %775 = vmatprep.subr.bf16.mxu0 %v602
  %776 = vmatpush1.bf16.msra.mxu0 %v601
  %777 = vmatprep.subr.bf16.mxu0 %v606
  %778 = vmatpush1.bf16.msra.mxu0 %v605
  %779 = vmatprep.subr.bf16.mxu0 %v610
  %780 = vmatpush1.bf16.msra.mxu0 %v609
  %781 = vmatprep.subr.bf16.mxu0 %v614
  %782 = vmatpush1.bf16.msra.mxu0 %v613
  %783 = vmatprep.subr.bf16.mxu0 %v618
  %784 = vmatpush1.bf16.msra.mxu0 %v617
  %785 = vmatprep.subr.bf16.mxu0 %v622
  %786 = vmatpush1.bf16.msra.mxu0 %v621
  %787 = vmatprep.subr.bf16.mxu0 %v626
  %788 = vmatpush1.bf16.msra.mxu0 %v625
  %789 = vmatprep.mubr.bf16.mxu0 %v230
  %790 = vmatmul.mubr.bf16.gmra.mrb[0].mxu0 %v229
  %v791 = vpop.f32.mrb[0].mxu0
  %v792 = vadd.f32 0.0, %v791
  %v793 = vpop.f32.mrb[0].mxu0
  %v794 = vadd.f32 0.0, %v793
  %v795 = vpop.f32.mrb[0].mxu0
  %v796 = vadd.f32 0.0, %v795
  %v797 = vpop.f32.mrb[0].mxu0
  %v798 = vadd.f32 0.0, %v797
  %799 = vmatprep.mubr.bf16.mxu0 %v233
  %800 = vmatmul.mubr.bf16.gmra.mrb[0].mxu0 %v232
  %v801 = vpop.f32.mrb[0].mxu0
  %v802 = vadd.f32 0.0, %v801
  %v803 = vpop.f32.mrb[0].mxu0
  %v804 = vadd.f32 0.0, %v803
  %v805 = vpop.f32.mrb[0].mxu0
  %v806 = vadd.f32 0.0, %v805
  %v807 = vpop.f32.mrb[0].mxu0
  %v808 = vadd.f32 0.0, %v807
  %809 = vmatprep.mubr.bf16.mxu0 %v236
  %810 = vmatmul.mubr.bf16.gmra.mrb[0].mxu0 %v235
  %v811 = vpop.f32.mrb[0].mxu0
  %v812 = vadd.f32 0.0, %v811
  %v813 = vpop.f32.mrb[0].mxu0
  %v814 = vadd.f32 0.0, %v813
  %v815 = vpop.f32.mrb[0].mxu0
  %v816 = vadd.f32 0.0, %v815
  %v817 = vpop.f32.mrb[0].mxu0
  %v818 = vadd.f32 0.0, %v817
  %819 = vmatprep.mubr.bf16.mxu0 %v239
  %820 = vmatmul.mubr.bf16.gmra.mrb[0].mxu0 %v238
  %v821 = vpop.f32.mrb[0].mxu0
  %v822 = vadd.f32 0.0, %v821
  %v823 = vpop.f32.mrb[0].mxu0
  %v824 = vadd.f32 0.0, %v823
  %v825 = vpop.f32.mrb[0].mxu0
  %v826 = vadd.f32 0.0, %v825
  %v827 = vpop.f32.mrb[0].mxu0
  %v828 = vadd.f32 0.0, %v827
  %829 = vmatprep.mubr.bf16.mxu0 %v242
  %830 = vmatmul.mubr.bf16.gmra.mrb[0].mxu0 %v241
  %v831 = vpop.f32.mrb[0].mxu0
  %v832 = vadd.f32 0.0, %v831
  %v833 = vpop.f32.mrb[0].mxu0
  %v834 = vadd.f32 0.0, %v833
  %v835 = vpop.f32.mrb[0].mxu0
  %v836 = vadd.f32 0.0, %v835
  %v837 = vpop.f32.mrb[0].mxu0
  %v838 = vadd.f32 0.0, %v837
  %839 = vmatprep.mubr.bf16.mxu0 %v245
  %840 = vmatmul.mubr.bf16.gmra.mrb[0].mxu0 %v244
  %v841 = vpop.f32.mrb[0].mxu0
  %v842 = vadd.f32 0.0, %v841
  %v843 = vpop.f32.mrb[0].mxu0
  %v844 = vadd.f32 0.0, %v843
  %v845 = vpop.f32.mrb[0].mxu0
  %v846 = vadd.f32 0.0, %v845
  %v847 = vpop.f32.mrb[0].mxu0
  %v848 = vadd.f32 0.0, %v847
  %849 = vmatprep.mubr.bf16.mxu0 %v248
  %850 = vmatmul.mubr.bf16.gmra.mrb[0].mxu0 %v247
  %v851 = vpop.f32.mrb[0].mxu0
  %v852 = vadd.f32 0.0, %v851
  %v853 = vpop.f32.mrb[0].mxu0
  %v854 = vadd.f32 0.0, %v853
  %v855 = vpop.f32.mrb[0].mxu0
  %v856 = vadd.f32 0.0, %v855
  %v857 = vpop.f32.mrb[0].mxu0
  %v858 = vadd.f32 0.0, %v857
  %859 = vmatprep.mubr.bf16.mxu0 %v251
  %860 = vmatmul.mubr.bf16.gmra.mrb[0].mxu0 %v250
  %v861 = vpop.f32.mrb[0].mxu0
  %v862 = vadd.f32 0.0, %v861
  %v863 = vpop.f32.mrb[0].mxu0
  %v864 = vadd.f32 0.0, %v863
  %v865 = vpop.f32.mrb[0].mxu0
  %v866 = vadd.f32 0.0, %v865
  %v867 = vpop.f32.mrb[0].mxu0
  %v868 = vadd.f32 0.0, %v867
  %869 = vdwg.mxu0
  %870 = vmatprep.subr.bf16.mxu0 %v630
  %871 = vmatpush1.bf16.msra.mxu0 %v629
  %872 = vmatprep.subr.bf16.mxu0 %v634
  %873 = vmatpush1.bf16.msra.mxu0 %v633
  %874 = vmatprep.subr.bf16.mxu0 %v638
  %875 = vmatpush1.bf16.msra.mxu0 %v637
  %876 = vmatprep.subr.bf16.mxu0 %v642
  %877 = vmatpush1.bf16.msra.mxu0 %v641
  %878 = vmatprep.subr.bf16.mxu0 %v646
  %879 = vmatpush1.bf16.msra.mxu0 %v645
  %880 = vmatprep.subr.bf16.mxu0 %v650
  %881 = vmatpush1.bf16.msra.mxu0 %v649
  %882 = vmatprep.subr.bf16.mxu0 %v654
  %883 = vmatpush1.bf16.msra.mxu0 %v653
  %884 = vmatprep.subr.bf16.mxu0 %v658
  %885 = vmatpush1.bf16.msra.mxu0 %v657
  %886 = vmatprep.subr.bf16.mxu0 0
  %887 = vmatpush1.bf16.msra.mxu0 0
  %888 = vmatprep.subr.bf16.mxu0 0
  %889 = vmatpush1.bf16.msra.mxu0 0
  %890 = vmatprep.subr.bf16.mxu0 0
  %891 = vmatpush1.bf16.msra.mxu0 0
  %892 = vmatprep.subr.bf16.mxu0 0
  %893 = vmatpush1.bf16.msra.mxu0 0
  %894 = vmatprep.subr.bf16.mxu0 0
  %895 = vmatpush1.bf16.msra.mxu0 0
  %896 = vmatprep.subr.bf16.mxu0 0
  %897 = vmatpush1.bf16.msra.mxu0 0
  %898 = vmatprep.subr.bf16.mxu0 0
  %899 = vmatpush1.bf16.msra.mxu0 0
  %900 = vmatprep.subr.bf16.mxu0 0
  %901 = vmatpush1.bf16.msra.mxu0 0
  %902 = vmatprep.mubr.bf16.mxu0 0
  %903 = vmatmul.mubr.bf16.gmra.mrb[0].mxu0 %v231
  %v904 = vpop.f32.mrb[0].mxu0
  %v905 = vadd.f32 %v792, %v904
  %v906 = vpop.f32.mrb[0].mxu0
  %v907 = vadd.f32 %v794, %v906
  %v908 = vpop.f32.mrb[0].mxu0
  %v909 = vadd.f32 %v796, %v908
  %v910 = vpop.f32.mrb[0].mxu0
  %v911 = vadd.f32 %v798, %v910
  %912 = vmatprep.mubr.bf16.mxu0 0
  %913 = vmatmul.mubr.bf16.gmra.mrb[0].mxu0 %v234
  %v914 = vpop.f32.mrb[0].mxu0
  %v915 = vadd.f32 %v802, %v914
  %v916 = vpop.f32.mrb[0].mxu0
  %v917 = vadd.f32 %v804, %v916
  %v918 = vpop.f32.mrb[0].mxu0
  %v919 = vadd.f32 %v806, %v918
  %v920 = vpop.f32.mrb[0].mxu0
  %v921 = vadd.f32 %v808, %v920
  %922 = vmatprep.mubr.bf16.mxu0 0
  %923 = vmatmul.mubr.bf16.gmra.mrb[0].mxu0 %v237
  %v924 = vpop.f32.mrb[0].mxu0
  %v925 = vadd.f32 %v812, %v924
  %v926 = vpop.f32.mrb[0].mxu0
  %v927 = vadd.f32 %v814, %v926
  %v928 = vpop.f32.mrb[0].mxu0
  %v929 = vadd.f32 %v816, %v928
  %v930 = vpop.f32.mrb[0].mxu0
  %v931 = vadd.f32 %v818, %v930
  %932 = vmatprep.mubr.bf16.mxu0 0
  %933 = vmatmul.mubr.bf16.gmra.mrb[0].mxu0 %v240
  %v934 = vpop.f32.mrb[0].mxu0
  %v935 = vadd.f32 %v822, %v934
  %v936 = vpop.f32.mrb[0].mxu0
  %v937 = vadd.f32 %v824, %v936
  %v938 = vpop.f32.mrb[0].mxu0
  %v939 = vadd.f32 %v826, %v938
  %v940 = vpop.f32.mrb[0].mxu0
  %v941 = vadd.f32 %v828, %v940
  %942 = vmatprep.mubr.bf16.mxu0 0
  %943 = vmatmul.mubr.bf16.gmra.mrb[0].mxu0 %v243
  %v944 = vpop.f32.mrb[0].mxu0
  %v945 = vadd.f32 %v832, %v944
  %v946 = vpop.f32.mrb[0].mxu0
  %v947 = vadd.f32 %v834, %v946
  %v948 = vpop.f32.mrb[0].mxu0
  %v949 = vadd.f32 %v836, %v948
  %v950 = vpop.f32.mrb[0].mxu0
  %v951 = vadd.f32 %v838, %v950
  %952 = vmatprep.mubr.bf16.mxu0 0
  %953 = vmatmul.mubr.bf16.gmra.mrb[0].mxu0 %v246
  %v954 = vpop.f32.mrb[0].mxu0
  %v955 = vadd.f32 %v842, %v954
  %v956 = vpop.f32.mrb[0].mxu0
  %v957 = vadd.f32 %v844, %v956
  %v958 = vpop.f32.mrb[0].mxu0
  %v959 = vadd.f32 %v846, %v958
  %v960 = vpop.f32.mrb[0].mxu0
  %v961 = vadd.f32 %v848, %v960
  %962 = vmatprep.mubr.bf16.mxu0 0
  %963 = vmatmul.mubr.bf16.gmra.mrb[0].mxu0 %v249
  %v964 = vpop.f32.mrb[0].mxu0
  %v965 = vadd.f32 %v852, %v964
  %v966 = vpop.f32.mrb[0].mxu0
  %v967 = vadd.f32 %v854, %v966
  %v968 = vpop.f32.mrb[0].mxu0
  %v969 = vadd.f32 %v856, %v968
  %v970 = vpop.f32.mrb[0].mxu0
  %v971 = vadd.f32 %v858, %v970
  %972 = vmatprep.mubr.bf16.mxu0 0
  %973 = vmatmul.mubr.bf16.gmra.mrb[0].mxu0 %v252
  %v974 = vpop.f32.mrb[0].mxu0
  %v975 = vadd.f32 %v862, %v974
  %v976 = vpop.f32.mrb[0].mxu0
  %v977 = vadd.f32 %v864, %v976
  %v978 = vpop.f32.mrb[0].mxu0
  %v979 = vadd.f32 %v866, %v978
  %v980 = vpop.f32.mrb[0].mxu0
  %v981 = vadd.f32 %v868, %v980
  %982 = vdwg.mxu0
  %983 = vmatprep.subr.bf16.mxu0 %v568
  %984 = vmatpush1.bf16.msra.mxu0 %v567
  %985 = vmatprep.subr.bf16.mxu0 %v572
  %986 = vmatpush1.bf16.msra.mxu0 %v571
  %987 = vmatprep.subr.bf16.mxu0 %v576
  %988 = vmatpush1.bf16.msra.mxu0 %v575
  %989 = vmatprep.subr.bf16.mxu0 %v580
  %990 = vmatpush1.bf16.msra.mxu0 %v579
  %991 = vmatprep.subr.bf16.mxu0 %v584
  %992 = vmatpush1.bf16.msra.mxu0 %v583
  %993 = vmatprep.subr.bf16.mxu0 %v588
  %994 = vmatpush1.bf16.msra.mxu0 %v587
  %995 = vmatprep.subr.bf16.mxu0 %v592
  %996 = vmatpush1.bf16.msra.mxu0 %v591
  %997 = vmatprep.subr.bf16.mxu0 %v596
  %998 = vmatpush1.bf16.msra.mxu0 %v595
  %999 = vmatprep.subr.bf16.mxu0 %v600
  %1000 = vmatpush1.bf16.msra.mxu0 %v599
  %1001 = vmatprep.subr.bf16.mxu0 %v604
  %1002 = vmatpush1.bf16.msra.mxu0 %v603
  %1003 = vmatprep.subr.bf16.mxu0 %v608
  %1004 = vmatpush1.bf16.msra.mxu0 %v607
  %1005 = vmatprep.subr.bf16.mxu0 %v612
  %1006 = vmatpush1.bf16.msra.mxu0 %v611
  %1007 = vmatprep.subr.bf16.mxu0 %v616
  %1008 = vmatpush1.bf16.msra.mxu0 %v615
  %1009 = vmatprep.subr.bf16.mxu0 %v620
  %1010 = vmatpush1.bf16.msra.mxu0 %v619
  %1011 = vmatprep.subr.bf16.mxu0 %v624
  %1012 = vmatpush1.bf16.msra.mxu0 %v623
  %1013 = vmatprep.subr.bf16.mxu0 %v628
  %1014 = vmatpush1.bf16.msra.mxu0 %v627
  %1015 = vmatprep.mubr.bf16.mxu0 %v230
  %1016 = vmatmul.mubr.bf16.gmra.mrb[0].mxu0 %v229
  %v1017 = vpop.f32.mrb[0].mxu0
  %v1018 = vadd.f32 0.0, %v1017
  %v1019 = vpop.f32.mrb[0].mxu0
  %v1020 = vadd.f32 0.0, %v1019
  %v1021 = vpop.f32.mrb[0].mxu0
  %v1022 = vadd.f32 0.0, %v1021
  %v1023 = vpop.f32.mrb[0].mxu0
  %v1024 = vadd.f32 0.0, %v1023
  %1025 = vmatprep.mubr.bf16.mxu0 %v233
  %1026 = vmatmul.mubr.bf16.gmra.mrb[0].mxu0 %v232
  %v1027 = vpop.f32.mrb[0].mxu0
  %v1028 = vadd.f32 0.0, %v1027
  %v1029 = vpop.f32.mrb[0].mxu0
  %v1030 = vadd.f32 0.0, %v1029
  %v1031 = vpop.f32.mrb[0].mxu0
  %v1032 = vadd.f32 0.0, %v1031
  %v1033 = vpop.f32.mrb[0].mxu0
  %v1034 = vadd.f32 0.0, %v1033
  %1035 = vmatprep.mubr.bf16.mxu0 %v236
  %1036 = vmatmul.mubr.bf16.gmra.mrb[0].mxu0 %v235
  %v1037 = vpop.f32.mrb[0].mxu0
  %v1038 = vadd.f32 0.0, %v1037
  %v1039 = vpop.f32.mrb[0].mxu0
  %v1040 = vadd.f32 0.0, %v1039
  %v1041 = vpop.f32.mrb[0].mxu0
  %v1042 = vadd.f32 0.0, %v1041
  %v1043 = vpop.f32.mrb[0].mxu0
  %v1044 = vadd.f32 0.0, %v1043
  %1045 = vmatprep.mubr.bf16.mxu0 %v239
  %1046 = vmatmul.mubr.bf16.gmra.mrb[0].mxu0 %v238
  %v1047 = vpop.f32.mrb[0].mxu0
  %v1048 = vadd.f32 0.0, %v1047
  %v1049 = vpop.f32.mrb[0].mxu0
  %v1050 = vadd.f32 0.0, %v1049
  %v1051 = vpop.f32.mrb[0].mxu0
  %v1052 = vadd.f32 0.0, %v1051
  %v1053 = vpop.f32.mrb[0].mxu0
  %v1054 = vadd.f32 0.0, %v1053
  %1055 = vmatprep.mubr.bf16.mxu0 %v242
  %1056 = vmatmul.mubr.bf16.gmra.mrb[0].mxu0 %v241
  %v1057 = vpop.f32.mrb[0].mxu0
  %v1058 = vadd.f32 0.0, %v1057
  %v1059 = vpop.f32.mrb[0].mxu0
  %v1060 = vadd.f32 0.0, %v1059
  %v1061 = vpop.f32.mrb[0].mxu0
  %v1062 = vadd.f32 0.0, %v1061
  %v1063 = vpop.f32.mrb[0].mxu0
  %v1064 = vadd.f32 0.0, %v1063
  %1065 = vmatprep.mubr.bf16.mxu0 %v245
  %1066 = vmatmul.mubr.bf16.gmra.mrb[0].mxu0 %v244
  %v1067 = vpop.f32.mrb[0].mxu0
  %v1068 = vadd.f32 0.0, %v1067
  %v1069 = vpop.f32.mrb[0].mxu0
  %v1070 = vadd.f32 0.0, %v1069
  %v1071 = vpop.f32.mrb[0].mxu0
  %v1072 = vadd.f32 0.0, %v1071
  %v1073 = vpop.f32.mrb[0].mxu0
  %v1074 = vadd.f32 0.0, %v1073
  %1075 = vmatprep.mubr.bf16.mxu0 %v248
  %1076 = vmatmul.mubr.bf16.gmra.mrb[0].mxu0 %v247
  %v1077 = vpop.f32.mrb[0].mxu0
  %v1078 = vadd.f32 0.0, %v1077
  %v1079 = vpop.f32.mrb[0].mxu0
  %v1080 = vadd.f32 0.0, %v1079
  %v1081 = vpop.f32.mrb[0].mxu0
  %v1082 = vadd.f32 0.0, %v1081
  %v1083 = vpop.f32.mrb[0].mxu0
  %v1084 = vadd.f32 0.0, %v1083
  %1085 = vmatprep.mubr.bf16.mxu0 %v251
  %1086 = vmatmul.mubr.bf16.gmra.mrb[0].mxu0 %v250
  %v1087 = vpop.f32.mrb[0].mxu0
  %v1088 = vadd.f32 0.0, %v1087
  %v1089 = vpop.f32.mrb[0].mxu0
  %v1090 = vadd.f32 0.0, %v1089
  %v1091 = vpop.f32.mrb[0].mxu0
  %v1092 = vadd.f32 0.0, %v1091
  %v1093 = vpop.f32.mrb[0].mxu0
  %v1094 = vadd.f32 0.0, %v1093
  %1095 = vdwg.mxu0
  %1096 = vmatprep.subr.bf16.mxu0 %v632
  %1097 = vmatpush1.bf16.msra.mxu0 %v631
  %1098 = vmatprep.subr.bf16.mxu0 %v636
  %1099 = vmatpush1.bf16.msra.mxu0 %v635
  %1100 = vmatprep.subr.bf16.mxu0 %v640
  %1101 = vmatpush1.bf16.msra.mxu0 %v639
  %1102 = vmatprep.subr.bf16.mxu0 %v644
  %1103 = vmatpush1.bf16.msra.mxu0 %v643
  %1104 = vmatprep.subr.bf16.mxu0 %v648
  %1105 = vmatpush1.bf16.msra.mxu0 %v647
  %1106 = vmatprep.subr.bf16.mxu0 %v652
  %1107 = vmatpush1.bf16.msra.mxu0 %v651
  %1108 = vmatprep.subr.bf16.mxu0 %v656
  %1109 = vmatpush1.bf16.msra.mxu0 %v655
  %1110 = vmatprep.subr.bf16.mxu0 %v660
  %1111 = vmatpush1.bf16.msra.mxu0 %v659
  %1112 = vmatprep.subr.bf16.mxu0 0
  %1113 = vmatpush1.bf16.msra.mxu0 0
  %1114 = vmatprep.subr.bf16.mxu0 0
  %1115 = vmatpush1.bf16.msra.mxu0 0
  %1116 = vmatprep.subr.bf16.mxu0 0
  %1117 = vmatpush1.bf16.msra.mxu0 0
  %1118 = vmatprep.subr.bf16.mxu0 0
  %1119 = vmatpush1.bf16.msra.mxu0 0
  %1120 = vmatprep.subr.bf16.mxu0 0
  %1121 = vmatpush1.bf16.msra.mxu0 0
  %1122 = vmatprep.subr.bf16.mxu0 0
  %1123 = vmatpush1.bf16.msra.mxu0 0
  %1124 = vmatprep.subr.bf16.mxu0 0
  %1125 = vmatpush1.bf16.msra.mxu0 0
  %1126 = vmatprep.subr.bf16.mxu0 0
  %1127 = vmatpush1.bf16.msra.mxu0 0
  %1128 = vmatprep.mubr.bf16.mxu0 0
  %1129 = vmatmul.mubr.bf16.gmra.mrb[0].mxu0 %v231
  %v1130 = vpop.f32.mrb[0].mxu0
  %v1131 = vadd.f32 %v1018, %v1130
  %v1132 = vpop.f32.mrb[0].mxu0
  %v1133 = vadd.f32 %v1020, %v1132
  %v1134 = vpop.f32.mrb[0].mxu0
  %v1135 = vadd.f32 %v1022, %v1134
  %v1136 = vpop.f32.mrb[0].mxu0
  %v1137 = vadd.f32 %v1024, %v1136
  %1138 = vmatprep.mubr.bf16.mxu0 0
  %1139 = vmatmul.mubr.bf16.gmra.mrb[0].mxu0 %v234
  %v1140 = vpop.f32.mrb[0].mxu0
  %v1141 = vadd.f32 %v1028, %v1140
  %v1142 = vpop.f32.mrb[0].mxu0
  %v1143 = vadd.f32 %v1030, %v1142
  %v1144 = vpop.f32.mrb[0].mxu0
  %v1145 = vadd.f32 %v1032, %v1144
  %v1146 = vpop.f32.mrb[0].mxu0
  %v1147 = vadd.f32 %v1034, %v1146
  %1148 = vmatprep.mubr.bf16.mxu0 0
  %1149 = vmatmul.mubr.bf16.gmra.mrb[0].mxu0 %v237
  %v1150 = vpop.f32.mrb[0].mxu0
  %v1151 = vadd.f32 %v1038, %v1150
  %v1152 = vpop.f32.mrb[0].mxu0
  %v1153 = vadd.f32 %v1040, %v1152
  %v1154 = vpop.f32.mrb[0].mxu0
  %v1155 = vadd.f32 %v1042, %v1154
  %v1156 = vpop.f32.mrb[0].mxu0
  %v1157 = vadd.f32 %v1044, %v1156
  %1158 = vmatprep.mubr.bf16.mxu0 0
  %1159 = vmatmul.mubr.bf16.gmra.mrb[0].mxu0 %v240
  %v1160 = vpop.f32.mrb[0].mxu0
  %v1161 = vadd.f32 %v1048, %v1160
  %v1162 = vpop.f32.mrb[0].mxu0
  %v1163 = vadd.f32 %v1050, %v1162
  %v1164 = vpop.f32.mrb[0].mxu0
  %v1165 = vadd.f32 %v1052, %v1164
  %v1166 = vpop.f32.mrb[0].mxu0
  %v1167 = vadd.f32 %v1054, %v1166
  %1168 = vmatprep.mubr.bf16.mxu0 0
  %1169 = vmatmul.mubr.bf16.gmra.mrb[0].mxu0 %v243
  %v1170 = vpop.f32.mrb[0].mxu0
  %v1171 = vadd.f32 %v1058, %v1170
  %v1172 = vpop.f32.mrb[0].mxu0
  %v1173 = vadd.f32 %v1060, %v1172
  %v1174 = vpop.f32.mrb[0].mxu0
  %v1175 = vadd.f32 %v1062, %v1174
  %v1176 = vpop.f32.mrb[0].mxu0
  %v1177 = vadd.f32 %v1064, %v1176
  %1178 = vmatprep.mubr.bf16.mxu0 0
  %1179 = vmatmul.mubr.bf16.gmra.mrb[0].mxu0 %v246
  %v1180 = vpop.f32.mrb[0].mxu0
  %v1181 = vadd.f32 %v1068, %v1180
  %v1182 = vpop.f32.mrb[0].mxu0
  %v1183 = vadd.f32 %v1070, %v1182
  %v1184 = vpop.f32.mrb[0].mxu0
  %v1185 = vadd.f32 %v1072, %v1184
  %v1186 = vpop.f32.mrb[0].mxu0
  %v1187 = vadd.f32 %v1074, %v1186
  %1188 = vmatprep.mubr.bf16.mxu0 0
  %1189 = vmatmul.mubr.bf16.gmra.mrb[0].mxu0 %v249
  %v1190 = vpop.f32.mrb[0].mxu0
  %v1191 = vadd.f32 %v1078, %v1190
  %v1192 = vpop.f32.mrb[0].mxu0
  %v1193 = vadd.f32 %v1080, %v1192
  %v1194 = vpop.f32.mrb[0].mxu0
  %v1195 = vadd.f32 %v1082, %v1194
  %v1196 = vpop.f32.mrb[0].mxu0
  %v1197 = vadd.f32 %v1084, %v1196
  %1198 = vmatprep.mubr.bf16.mxu0 0
  %1199 = vmatmul.mubr.bf16.gmra.mrb[0].mxu0 %v252
  %v1200 = vpop.f32.mrb[0].mxu0
  %v1201 = vadd.f32 %v1088, %v1200
  %v1202 = vpop.f32.mrb[0].mxu0
  %v1203 = vadd.f32 %v1090, %v1202
  %v1204 = vpop.f32.mrb[0].mxu0
  %v1205 = vadd.f32 %v1092, %v1204
  %v1206 = vpop.f32.mrb[0].mxu0
  %v1207 = vadd.f32 %v1094, %v1206
  %1208 = vdwg.mxu0
  %v1209 = vadd.f32 %v905, %v909
  %v1210 = vadd.f32 %v1209, %v915
  %v1211 = vadd.f32 %v1210, %v919
  %v1212 = vadd.f32 %v1211, %v925
  %v1213 = vadd.f32 %v1212, %v929
  %v1214 = vadd.f32 %v1213, %v935
  %v1215 = vadd.f32 %v1214, %v939
  %v1216 = vadd.f32 %v1215, %v945
  %v1217 = vadd.f32 %v1216, %v949
  %v1218 = vadd.f32 %v1217, %v955
  %v1219 = vadd.f32 %v1218, %v959
  %v1220 = vadd.f32 %v1219, %v965
  %v1221 = vadd.f32 %v1220, %v969
  %v1222 = vadd.f32 %v1221, %v975
  %v1223 = vadd.f32 %v1222, %v979
  %v1224 = vrot.slane %v1223, 4
  %v1225 = vadd.f32 %v1223, %v1224
  %v1226 = vrot.slane %v1225, 2
  %v1227 = vadd.f32 %v1225, %v1226
  %v1228 = vrot.slane %v1227, 1
  %v1229 = vadd.f32 %v1227, %v1228
  %v1230 = vadd.f32 %v907, %v911
  %v1231 = vadd.f32 %v1230, %v917
  %v1232 = vadd.f32 %v1231, %v921
  %v1233 = vadd.f32 %v1232, %v927
  %v1234 = vadd.f32 %v1233, %v931
  %v1235 = vadd.f32 %v1234, %v937
  %v1236 = vadd.f32 %v1235, %v941
  %v1237 = vadd.f32 %v1236, %v947
  %v1238 = vadd.f32 %v1237, %v951
  %v1239 = vadd.f32 %v1238, %v957
  %v1240 = vadd.f32 %v1239, %v961
  %v1241 = vadd.f32 %v1240, %v967
  %v1242 = vadd.f32 %v1241, %v971
  %v1243 = vadd.f32 %v1242, %v977
  %v1244 = vadd.f32 %v1243, %v981
  %v1245 = vrot.slane %v1244, 4
  %v1246 = vadd.f32 %v1244, %v1245
  %v1247 = vrot.slane %v1246, 2
  %v1248 = vadd.f32 %v1246, %v1247
  %v1249 = vrot.slane %v1248, 1
  %v1250 = vadd.f32 %v1248, %v1249
  %v1251 = vadd.f32 %v1131, %v1135
  %v1252 = vadd.f32 %v1251, %v1141
  %v1253 = vadd.f32 %v1252, %v1145
  %v1254 = vadd.f32 %v1253, %v1151
  %v1255 = vadd.f32 %v1254, %v1155
  %v1256 = vadd.f32 %v1255, %v1161
  %v1257 = vadd.f32 %v1256, %v1165
  %v1258 = vadd.f32 %v1257, %v1171
  %v1259 = vadd.f32 %v1258, %v1175
  %v1260 = vadd.f32 %v1259, %v1181
  %v1261 = vadd.f32 %v1260, %v1185
  %v1262 = vadd.f32 %v1261, %v1191
  %v1263 = vadd.f32 %v1262, %v1195
  %v1264 = vadd.f32 %v1263, %v1201
  %v1265 = vadd.f32 %v1264, %v1205
  %v1266 = vrot.slane %v1265, 4
  %v1267 = vadd.f32 %v1265, %v1266
  %v1268 = vrot.slane %v1267, 2
  %v1269 = vadd.f32 %v1267, %v1268
  %v1270 = vrot.slane %v1269, 1
  %v1271 = vadd.f32 %v1269, %v1270
  %v1272 = vadd.f32 %v1133, %v1137
  %v1273 = vadd.f32 %v1272, %v1143
  %v1274 = vadd.f32 %v1273, %v1147
  %v1275 = vadd.f32 %v1274, %v1153
  %v1276 = vadd.f32 %v1275, %v1157
  %v1277 = vadd.f32 %v1276, %v1163
  %v1278 = vadd.f32 %v1277, %v1167
  %v1279 = vadd.f32 %v1278, %v1173
  %v1280 = vadd.f32 %v1279, %v1177
  %v1281 = vadd.f32 %v1280, %v1183
  %v1282 = vadd.f32 %v1281, %v1187
  %v1283 = vadd.f32 %v1282, %v1193
  %v1284 = vadd.f32 %v1283, %v1197
  %v1285 = vadd.f32 %v1284, %v1203
  %v1286 = vadd.f32 %v1285, %v1207
  %v1287 = vrot.slane %v1286, 4
  %v1288 = vadd.f32 %v1286, %v1287
  %v1289 = vrot.slane %v1288, 2
  %v1290 = vadd.f32 %v1288, %v1289
  %v1291 = vrot.slane %v1290, 1
  %v1292 = vadd.f32 %v1290, %v1291
  %v1293 = vmul.f32 %v905, %v905
  %v1294 = vmul.f32 %v907, %v907
  %v1295 = vmul.f32 %v1131, %v1131
  %v1296 = vmul.f32 %v1133, %v1133
  %v1297 = vmul.f32 %v909, %v909
  %v1298 = vmul.f32 %v911, %v911
  %v1299 = vmul.f32 %v1135, %v1135
  %v1300 = vmul.f32 %v1137, %v1137
  %v1301 = vmul.f32 %v915, %v915
  %v1302 = vmul.f32 %v917, %v917
  %v1303 = vmul.f32 %v1141, %v1141
  %v1304 = vmul.f32 %v1143, %v1143
  %v1305 = vmul.f32 %v919, %v919
  %v1306 = vmul.f32 %v921, %v921
  %v1307 = vmul.f32 %v1145, %v1145
  %v1308 = vmul.f32 %v1147, %v1147
  %v1309 = vmul.f32 %v925, %v925
  %v1310 = vmul.f32 %v927, %v927
  %v1311 = vmul.f32 %v1151, %v1151
  %v1312 = vmul.f32 %v1153, %v1153
  %v1313 = vmul.f32 %v929, %v929
  %v1314 = vmul.f32 %v931, %v931
  %v1315 = vmul.f32 %v1155, %v1155
  %v1316 = vmul.f32 %v1157, %v1157
  %v1317 = vmul.f32 %v935, %v935
  %v1318 = vmul.f32 %v937, %v937
  %v1319 = vmul.f32 %v1161, %v1161
  %v1320 = vmul.f32 %v1163, %v1163
  %v1321 = vmul.f32 %v939, %v939
  %v1322 = vmul.f32 %v941, %v941
  %v1323 = vmul.f32 %v1165, %v1165
  %v1324 = vmul.f32 %v1167, %v1167
  %v1325 = vmul.f32 %v945, %v945
  %v1326 = vmul.f32 %v947, %v947
  %v1327 = vmul.f32 %v1171, %v1171
  %v1328 = vmul.f32 %v1173, %v1173
  %v1329 = vmul.f32 %v949, %v949
  %v1330 = vmul.f32 %v951, %v951
  %v1331 = vmul.f32 %v1175, %v1175
  %v1332 = vmul.f32 %v1177, %v1177
  %v1333 = vmul.f32 %v955, %v955
  %v1334 = vmul.f32 %v957, %v957
  %v1335 = vmul.f32 %v1181, %v1181
  %v1336 = vmul.f32 %v1183, %v1183
  %v1337 = vmul.f32 %v959, %v959
  %v1338 = vmul.f32 %v961, %v961
  %v1339 = vmul.f32 %v1185, %v1185
  %v1340 = vmul.f32 %v1187, %v1187
  %v1341 = vmul.f32 %v965, %v965
  %v1342 = vmul.f32 %v967, %v967
  %v1343 = vmul.f32 %v1191, %v1191
  %v1344 = vmul.f32 %v1193, %v1193
  %v1345 = vmul.f32 %v969, %v969
  %v1346 = vmul.f32 %v971, %v971
  %v1347 = vmul.f32 %v1195, %v1195
  %v1348 = vmul.f32 %v1197, %v1197
  %v1349 = vmul.f32 %v975, %v975
  %v1350 = vmul.f32 %v977, %v977
  %v1351 = vmul.f32 %v1201, %v1201
  %v1352 = vmul.f32 %v1203, %v1203
  %v1353 = vmul.f32 %v979, %v979
  %v1354 = vmul.f32 %v981, %v981
  %v1355 = vmul.f32 %v1205, %v1205
  %v1356 = vmul.f32 %v1207, %v1207
  %v1357 = vadd.f32 %v1293, %v1297
  %v1358 = vadd.f32 %v1357, %v1301
  %v1359 = vadd.f32 %v1358, %v1305
  %v1360 = vadd.f32 %v1359, %v1309
  %v1361 = vadd.f32 %v1360, %v1313
  %v1362 = vadd.f32 %v1361, %v1317
  %v1363 = vadd.f32 %v1362, %v1321
  %v1364 = vadd.f32 %v1363, %v1325
  %v1365 = vadd.f32 %v1364, %v1329
  %v1366 = vadd.f32 %v1365, %v1333
  %v1367 = vadd.f32 %v1366, %v1337
  %v1368 = vadd.f32 %v1367, %v1341
  %v1369 = vadd.f32 %v1368, %v1345
  %v1370 = vadd.f32 %v1369, %v1349
  %v1371 = vadd.f32 %v1370, %v1353
  %v1372 = vrot.slane %v1371, 4
  %v1373 = vadd.f32 %v1371, %v1372
  %v1374 = vrot.slane %v1373, 2
  %v1375 = vadd.f32 %v1373, %v1374
  %v1376 = vrot.slane %v1375, 1
  %v1377 = vadd.f32 %v1375, %v1376
  %v1378 = vadd.f32 %v1294, %v1298
  %v1379 = vadd.f32 %v1378, %v1302
  %v1380 = vadd.f32 %v1379, %v1306
  %v1381 = vadd.f32 %v1380, %v1310
  %v1382 = vadd.f32 %v1381, %v1314
  %v1383 = vadd.f32 %v1382, %v1318
  %v1384 = vadd.f32 %v1383, %v1322
  %v1385 = vadd.f32 %v1384, %v1326
  %v1386 = vadd.f32 %v1385, %v1330
  %v1387 = vadd.f32 %v1386, %v1334
  %v1388 = vadd.f32 %v1387, %v1338
  %v1389 = vadd.f32 %v1388, %v1342
  %v1390 = vadd.f32 %v1389, %v1346
  %v1391 = vadd.f32 %v1390, %v1350
  %v1392 = vadd.f32 %v1391, %v1354
  %v1393 = vrot.slane %v1392, 4
  %v1394 = vadd.f32 %v1392, %v1393
  %v1395 = vrot.slane %v1394, 2
  %v1396 = vadd.f32 %v1394, %v1395
  %v1397 = vrot.slane %v1396, 1
  %v1398 = vadd.f32 %v1396, %v1397
  %v1399 = vadd.f32 %v1295, %v1299
  %v1400 = vadd.f32 %v1399, %v1303
  %v1401 = vadd.f32 %v1400, %v1307
  %v1402 = vadd.f32 %v1401, %v1311
  %v1403 = vadd.f32 %v1402, %v1315
  %v1404 = vadd.f32 %v1403, %v1319
  %v1405 = vadd.f32 %v1404, %v1323
  %v1406 = vadd.f32 %v1405, %v1327
  %v1407 = vadd.f32 %v1406, %v1331
  %v1408 = vadd.f32 %v1407, %v1335
  %v1409 = vadd.f32 %v1408, %v1339
  %v1410 = vadd.f32 %v1409, %v1343
  %v1411 = vadd.f32 %v1410, %v1347
  %v1412 = vadd.f32 %v1411, %v1351
  %v1413 = vadd.f32 %v1412, %v1355
  %v1414 = vrot.slane %v1413, 4
  %v1415 = vadd.f32 %v1413, %v1414
  %v1416 = vrot.slane %v1415, 2
  %v1417 = vadd.f32 %v1415, %v1416
  %v1418 = vrot.slane %v1417, 1
  %v1419 = vadd.f32 %v1417, %v1418
  %v1420 = vadd.f32 %v1296, %v1300
  %v1421 = vadd.f32 %v1420, %v1304
  %v1422 = vadd.f32 %v1421, %v1308
  %v1423 = vadd.f32 %v1422, %v1312
  %v1424 = vadd.f32 %v1423, %v1316
  %v1425 = vadd.f32 %v1424, %v1320
  %v1426 = vadd.f32 %v1425, %v1324
  %v1427 = vadd.f32 %v1426, %v1328
  %v1428 = vadd.f32 %v1427, %v1332
  %v1429 = vadd.f32 %v1428, %v1336
  %v1430 = vadd.f32 %v1429, %v1340
  %v1431 = vadd.f32 %v1430, %v1344
  %v1432 = vadd.f32 %v1431, %v1348
  %v1433 = vadd.f32 %v1432, %v1352
  %v1434 = vadd.f32 %v1433, %v1356
  %v1435 = vrot.slane %v1434, 4
  %v1436 = vadd.f32 %v1434, %v1435
  %v1437 = vrot.slane %v1436, 2
  %v1438 = vadd.f32 %v1436, %v1437
  %v1439 = vrot.slane %v1438, 1
  %v1440 = vadd.f32 %v1438, %v1439
  %v1441 = vadd.f32 %v1229, 0.0
  %v1442 = vadd.f32 %v1441, %v1250
  %v1443 = vadd.f32 %v1442, %v1271
  %v1444 = vadd.f32 %v1443, %v1292
  %v1445 = vadd.f32 %v1377, 0.0
  %v1446 = vadd.f32 %v1445, %v1398
  %v1447 = vadd.f32 %v1446, %v1419
  %v1448 = vadd.f32 %v1447, %v1440
  %v1449 = vmul.f32 %v1444, 0.001953125
  %v1450 = vmul.f32 %v1448, 0.001953125
  %v1451 = vmul.f32 %v1449, %v1449
  %v1452 = vsub.f32 %v1450, %v1451
  %v1453 = vmax.f32 %v1452, 0.0
  %v1454 = vadd.f32 %v1453, 1e-05
  %v1455 = vrsqrt.pop %v1454
  %v1456 = vld [vmem:[%s3] sm:$0x1]
  %v1457 = vmul.f32 %v1455, %v1456
  %v1458 = vld [vmem:[%s4] sm:$0x1]
  %v1459 = vmul.f32 %v1449, %v1457
  %v1460 = vsub.f32 %v1458, %v1459
  %v1461 = vlaneseq
  %v1462 = vshrl.u32 %v1461, 7
  %v1463 = vsub.s32 0, %v1462
  %v1464 = vrot.slane %v1457, %v1463
  %v1465 = vmul.f32 %v905, %v1464
  %v1466 = vmul.f32 %v907, %v1464
  %v1467 = vmul.f32 %v1131, %v1464
  %v1468 = vmul.f32 %v1133, %v1464
  %v1469 = vmul.f32 %v909, %v1464
  %v1470 = vmul.f32 %v911, %v1464
  %v1471 = vmul.f32 %v1135, %v1464
  %v1472 = vmul.f32 %v1137, %v1464
  %v1473 = vmul.f32 %v915, %v1464
  %v1474 = vmul.f32 %v917, %v1464
  %v1475 = vmul.f32 %v1141, %v1464
  %v1476 = vmul.f32 %v1143, %v1464
  %v1477 = vmul.f32 %v919, %v1464
  %v1478 = vmul.f32 %v921, %v1464
  %v1479 = vmul.f32 %v1145, %v1464
  %v1480 = vmul.f32 %v1147, %v1464
  %v1481 = vmul.f32 %v925, %v1464
  %v1482 = vmul.f32 %v927, %v1464
  %v1483 = vmul.f32 %v1151, %v1464
  %v1484 = vmul.f32 %v1153, %v1464
  %v1485 = vmul.f32 %v929, %v1464
  %v1486 = vmul.f32 %v931, %v1464
  %v1487 = vmul.f32 %v1155, %v1464
  %v1488 = vmul.f32 %v1157, %v1464
  %v1489 = vmul.f32 %v935, %v1464
  %v1490 = vmul.f32 %v937, %v1464
  %v1491 = vmul.f32 %v1161, %v1464
  %v1492 = vmul.f32 %v1163, %v1464
  %v1493 = vmul.f32 %v939, %v1464
  %v1494 = vmul.f32 %v941, %v1464
  %v1495 = vmul.f32 %v1165, %v1464
  %v1496 = vmul.f32 %v1167, %v1464
  %v1497 = vmul.f32 %v945, %v1464
  %v1498 = vmul.f32 %v947, %v1464
  %v1499 = vmul.f32 %v1171, %v1464
  %v1500 = vmul.f32 %v1173, %v1464
  %v1501 = vmul.f32 %v949, %v1464
  %v1502 = vmul.f32 %v951, %v1464
  %v1503 = vmul.f32 %v1175, %v1464
  %v1504 = vmul.f32 %v1177, %v1464
  %v1505 = vmul.f32 %v955, %v1464
  %v1506 = vmul.f32 %v957, %v1464
  %v1507 = vmul.f32 %v1181, %v1464
  %v1508 = vmul.f32 %v1183, %v1464
  %v1509 = vmul.f32 %v959, %v1464
  %v1510 = vmul.f32 %v961, %v1464
  %v1511 = vmul.f32 %v1185, %v1464
  %v1512 = vmul.f32 %v1187, %v1464
  %v1513 = vmul.f32 %v965, %v1464
  %v1514 = vmul.f32 %v967, %v1464
  %v1515 = vmul.f32 %v1191, %v1464
  %v1516 = vmul.f32 %v1193, %v1464
  %v1517 = vmul.f32 %v969, %v1464
  %v1518 = vmul.f32 %v971, %v1464
  %v1519 = vmul.f32 %v1195, %v1464
  %v1520 = vmul.f32 %v1197, %v1464
  %v1521 = vmul.f32 %v975, %v1464
  %v1522 = vmul.f32 %v977, %v1464
  %v1523 = vmul.f32 %v1201, %v1464
  %v1524 = vmul.f32 %v1203, %v1464
  %v1525 = vmul.f32 %v979, %v1464
  %v1526 = vmul.f32 %v981, %v1464
  %v1527 = vmul.f32 %v1205, %v1464
  %v1528 = vmul.f32 %v1207, %v1464
  %v1529 = vlaneseq
  %v1530 = vshrl.u32 %v1529, 7
  %v1531 = vsub.s32 0, %v1530
  %v1532 = vrot.slane %v1460, %v1531
  %v1533 = vadd.f32 %v1465, %v1532
  %v1534 = vadd.f32 %v1466, %v1532
  %v1535 = vadd.f32 %v1467, %v1532
  %v1536 = vadd.f32 %v1468, %v1532
  %v1537 = vadd.f32 %v1469, %v1532
  %v1538 = vadd.f32 %v1470, %v1532
  %v1539 = vadd.f32 %v1471, %v1532
  %v1540 = vadd.f32 %v1472, %v1532
  %v1541 = vadd.f32 %v1473, %v1532
  %v1542 = vadd.f32 %v1474, %v1532
  %v1543 = vadd.f32 %v1475, %v1532
  %v1544 = vadd.f32 %v1476, %v1532
  %v1545 = vadd.f32 %v1477, %v1532
  %v1546 = vadd.f32 %v1478, %v1532
  %v1547 = vadd.f32 %v1479, %v1532
  %v1548 = vadd.f32 %v1480, %v1532
  %v1549 = vadd.f32 %v1481, %v1532
  %v1550 = vadd.f32 %v1482, %v1532
  %v1551 = vadd.f32 %v1483, %v1532
  %v1552 = vadd.f32 %v1484, %v1532
  %v1553 = vadd.f32 %v1485, %v1532
  %v1554 = vadd.f32 %v1486, %v1532
  %v1555 = vadd.f32 %v1487, %v1532
  %v1556 = vadd.f32 %v1488, %v1532
  %v1557 = vadd.f32 %v1489, %v1532
  %v1558 = vadd.f32 %v1490, %v1532
  %v1559 = vadd.f32 %v1491, %v1532
  %v1560 = vadd.f32 %v1492, %v1532
  %v1561 = vadd.f32 %v1493, %v1532
  %v1562 = vadd.f32 %v1494, %v1532
  %v1563 = vadd.f32 %v1495, %v1532
  %v1564 = vadd.f32 %v1496, %v1532
  %v1565 = vadd.f32 %v1497, %v1532
  %v1566 = vadd.f32 %v1498, %v1532
  %v1567 = vadd.f32 %v1499, %v1532
  %v1568 = vadd.f32 %v1500, %v1532
  %v1569 = vadd.f32 %v1501, %v1532
  %v1570 = vadd.f32 %v1502, %v1532
  %v1571 = vadd.f32 %v1503, %v1532
  %v1572 = vadd.f32 %v1504, %v1532
  %v1573 = vadd.f32 %v1505, %v1532
  %v1574 = vadd.f32 %v1506, %v1532
  %v1575 = vadd.f32 %v1507, %v1532
  %v1576 = vadd.f32 %v1508, %v1532
  %v1577 = vadd.f32 %v1509, %v1532
  %v1578 = vadd.f32 %v1510, %v1532
  %v1579 = vadd.f32 %v1511, %v1532
  %v1580 = vadd.f32 %v1512, %v1532
  %v1581 = vadd.f32 %v1513, %v1532
  %v1582 = vadd.f32 %v1514, %v1532
  %v1583 = vadd.f32 %v1515, %v1532
  %v1584 = vadd.f32 %v1516, %v1532
  %v1585 = vadd.f32 %v1517, %v1532
  %v1586 = vadd.f32 %v1518, %v1532
  %v1587 = vadd.f32 %v1519, %v1532
  %v1588 = vadd.f32 %v1520, %v1532
  %v1589 = vadd.f32 %v1521, %v1532
  %v1590 = vadd.f32 %v1522, %v1532
  %v1591 = vadd.f32 %v1523, %v1532
  %v1592 = vadd.f32 %v1524, %v1532
  %v1593 = vadd.f32 %v1525, %v1532
  %v1594 = vadd.f32 %v1526, %v1532
  %v1595 = vadd.f32 %v1527, %v1532
  %v1596 = vadd.f32 %v1528, %v1532
  %v1597 = vmax.f32 %v1533, 0.0
  %v1598 = vmax.f32 %v1534, 0.0
  %v1599 = vmax.f32 %v1535, 0.0
  %v1600 = vmax.f32 %v1536, 0.0
  %v1601 = vmax.f32 %v1537, 0.0
  %v1602 = vmax.f32 %v1538, 0.0
  %v1603 = vmax.f32 %v1539, 0.0
  %v1604 = vmax.f32 %v1540, 0.0
  %v1605 = vmax.f32 %v1541, 0.0
  %v1606 = vmax.f32 %v1542, 0.0
  %v1607 = vmax.f32 %v1543, 0.0
  %v1608 = vmax.f32 %v1544, 0.0
  %v1609 = vmax.f32 %v1545, 0.0
  %v1610 = vmax.f32 %v1546, 0.0
  %v1611 = vmax.f32 %v1547, 0.0
  %v1612 = vmax.f32 %v1548, 0.0
  %v1613 = vmax.f32 %v1549, 0.0
  %v1614 = vmax.f32 %v1550, 0.0
  %v1615 = vmax.f32 %v1551, 0.0
  %v1616 = vmax.f32 %v1552, 0.0
  %v1617 = vmax.f32 %v1553, 0.0
  %v1618 = vmax.f32 %v1554, 0.0
  %v1619 = vmax.f32 %v1555, 0.0
  %v1620 = vmax.f32 %v1556, 0.0
  %v1621 = vmax.f32 %v1557, 0.0
  %v1622 = vmax.f32 %v1558, 0.0
  %v1623 = vmax.f32 %v1559, 0.0
  %v1624 = vmax.f32 %v1560, 0.0
  %v1625 = vmax.f32 %v1561, 0.0
  %v1626 = vmax.f32 %v1562, 0.0
  %v1627 = vmax.f32 %v1563, 0.0
  %v1628 = vmax.f32 %v1564, 0.0
  %v1629 = vmax.f32 %v1565, 0.0
  %v1630 = vmax.f32 %v1566, 0.0
  %v1631 = vmax.f32 %v1567, 0.0
  %v1632 = vmax.f32 %v1568, 0.0
  %v1633 = vmax.f32 %v1569, 0.0
  %v1634 = vmax.f32 %v1570, 0.0
  %v1635 = vmax.f32 %v1571, 0.0
  %v1636 = vmax.f32 %v1572, 0.0
  %v1637 = vmax.f32 %v1573, 0.0
  %v1638 = vmax.f32 %v1574, 0.0
  %v1639 = vmax.f32 %v1575, 0.0
  %v1640 = vmax.f32 %v1576, 0.0
  %v1641 = vmax.f32 %v1577, 0.0
  %v1642 = vmax.f32 %v1578, 0.0
  %v1643 = vmax.f32 %v1579, 0.0
  %v1644 = vmax.f32 %v1580, 0.0
  %v1645 = vmax.f32 %v1581, 0.0
  %v1646 = vmax.f32 %v1582, 0.0
  %v1647 = vmax.f32 %v1583, 0.0
  %v1648 = vmax.f32 %v1584, 0.0
  %v1649 = vmax.f32 %v1585, 0.0
  %v1650 = vmax.f32 %v1586, 0.0
  %v1651 = vmax.f32 %v1587, 0.0
  %v1652 = vmax.f32 %v1588, 0.0
  %v1653 = vmax.f32 %v1589, 0.0
  %v1654 = vmax.f32 %v1590, 0.0
  %v1655 = vmax.f32 %v1591, 0.0
  %v1656 = vmax.f32 %v1592, 0.0
  %v1657 = vmax.f32 %v1593, 0.0
  %v1658 = vmax.f32 %v1594, 0.0
  %v1659 = vmax.f32 %v1595, 0.0
  %v1660 = vmax.f32 %v1596, 0.0
  %1661 = vst [vmem:[%s5] sm:$0xff] %v1597
  %1662 = vst [vmem:[%s5 + $0x8] sm:$0xff] %v1598
  %1663 = vst [vmem:[%s5 + $0x10] sm:$0xff] %v1599
  %1664 = vst [vmem:[%s5 + $0x18] sm:$0xff] %v1600
  %1665 = vst [vmem:[%s5 + $0x20] sm:$0xff] %v1601
  %1666 = vst [vmem:[%s5 + $0x28] sm:$0xff] %v1602
  %1667 = vst [vmem:[%s5 + $0x30] sm:$0xff] %v1603
  %1668 = vst [vmem:[%s5 + $0x38] sm:$0xff] %v1604
  %1669 = vst [vmem:[%s5 + $0x40] sm:$0xff] %v1605
  %1670 = vst [vmem:[%s5 + $0x48] sm:$0xff] %v1606
  %1671 = vst [vmem:[%s5 + $0x50] sm:$0xff] %v1607
  %1672 = vst [vmem:[%s5 + $0x58] sm:$0xff] %v1608
  %1673 = vst [vmem:[%s5 + $0x60] sm:$0xff] %v1609
  %1674 = vst [vmem:[%s5 + $0x68] sm:$0xff] %v1610
  %1675 = vst [vmem:[%s5 + $0x70] sm:$0xff] %v1611
  %1676 = vst [vmem:[%s5 + $0x78] sm:$0xff] %v1612
  %1677 = vst [vmem:[%s5 + $0x80] sm:$0xff] %v1613
  %1678 = vst [vmem:[%s5 + $0x88] sm:$0xff] %v1614
  %1679 = vst [vmem:[%s5 + $0x90] sm:$0xff] %v1615
  %1680 = vst [vmem:[%s5 + $0x98] sm:$0xff] %v1616
  %1681 = vst [vmem:[%s5 + $0xa0] sm:$0xff] %v1617
  %1682 = vst [vmem:[%s5 + $0xa8] sm:$0xff] %v1618
  %1683 = vst [vmem:[%s5 + $0xb0] sm:$0xff] %v1619
  %1684 = vst [vmem:[%s5 + $0xb8] sm:$0xff] %v1620
  %1685 = vst [vmem:[%s5 + $0xc0] sm:$0xff] %v1621
  %1686 = vst [vmem:[%s5 + $0xc8] sm:$0xff] %v1622
  %1687 = vst [vmem:[%s5 + $0xd0] sm:$0xff] %v1623
  %1688 = vst [vmem:[%s5 + $0xd8] sm:$0xff] %v1624
  %1689 = vst [vmem:[%s5 + $0xe0] sm:$0xff] %v1625
  %1690 = vst [vmem:[%s5 + $0xe8] sm:$0xff] %v1626
  %1691 = vst [vmem:[%s5 + $0xf0] sm:$0xff] %v1627
  %1692 = vst [vmem:[%s5 + $0xf8] sm:$0xff] %v1628
  %1693 = vst [vmem:[%s5 + $0x100] sm:$0xff] %v1629
  %1694 = vst [vmem:[%s5 + $0x108] sm:$0xff] %v1630
  %1695 = vst [vmem:[%s5 + $0x110] sm:$0xff] %v1631
  %1696 = vst [vmem:[%s5 + $0x118] sm:$0xff] %v1632
  %1697 = vst [vmem:[%s5 + $0x120] sm:$0xff] %v1633
  %1698 = vst [vmem:[%s5 + $0x128] sm:$0xff] %v1634
  %1699 = vst [vmem:[%s5 + $0x130] sm:$0xff] %v1635
  %1700 = vst [vmem:[%s5 + $0x138] sm:$0xff] %v1636
  %1701 = vst [vmem:[%s5 + $0x140] sm:$0xff] %v1637
  %1702 = vst [vmem:[%s5 + $0x148] sm:$0xff] %v1638
  %1703 = vst [vmem:[%s5 + $0x150] sm:$0xff] %v1639
  %1704 = vst [vmem:[%s5 + $0x158] sm:$0xff] %v1640
  %1705 = vst [vmem:[%s5 + $0x160] sm:$0xff] %v1641
  %1706 = vst [vmem:[%s5 + $0x168] sm:$0xff] %v1642
  %1707 = vst [vmem:[%s5 + $0x170] sm:$0xff] %v1643
  %1708 = vst [vmem:[%s5 + $0x178] sm:$0xff] %v1644
  %1709 = vst [vmem:[%s5 + $0x180] sm:$0xff] %v1645
  %1710 = vst [vmem:[%s5 + $0x188] sm:$0xff] %v1646
  %1711 = vst [vmem:[%s5 + $0x190] sm:$0xff] %v1647
  %1712 = vst [vmem:[%s5 + $0x198] sm:$0xff] %v1648
  %1713 = vst [vmem:[%s5 + $0x1a0] sm:$0xff] %v1649
  %1714 = vst [vmem:[%s5 + $0x1a8] sm:$0xff] %v1650
  %1715 = vst [vmem:[%s5 + $0x1b0] sm:$0xff] %v1651
  %1716 = vst [vmem:[%s5 + $0x1b8] sm:$0xff] %v1652
  %1717 = vst [vmem:[%s5 + $0x1c0] sm:$0xff] %v1653
  %1718 = vst [vmem:[%s5 + $0x1c8] sm:$0xff] %v1654
  %1719 = vst [vmem:[%s5 + $0x1d0] sm:$0xff] %v1655
  %1720 = vst [vmem:[%s5 + $0x1d8] sm:$0xff] %v1656
  %1721 = vst [vmem:[%s5 + $0x1e0] sm:$0xff] %v1657
  %1722 = vst [vmem:[%s5 + $0x1e8] sm:$0xff] %v1658
  %1723 = vst [vmem:[%s5 + $0x1f0] sm:$0xff] %v1659
  %1724 = vst [vmem:[%s5 + $0x1f8] sm:$0xff] %v1660
  // Predicated region
  $region22: #{_lambda_.11} parent=0 // pred_check
    _
  $region23: #{_lambda_.11} parent=0 // pred_check_branch
    %1726 = sbr.rel (0) target = $region25
  $region24: #{_lambda_.11} parent=0 // pred_region
    _
  $region25: #{_lambda_.11} parent=0 // pred_fallthru
    _
  // Predicated region
  $region26: #{_lambda_.11} parent=0 // pred_check
    _
  $region27: #{_lambda_.11} parent=0 // pred_check_branch
    %1728 = sbr.rel (0) target = $region29
  $region28: #{_lambda_.11} parent=0 // pred_region
    _
  $region29: #{_lambda_.11} parent=0 // pred_fallthru
    _

</llo_original>
